<compile_context>
chip_gen: v7x
topology: tpu7x:2x2x1
jax: 0.10.0
libtpu: 0.0.40
codegen_flags: <defaults>
</compile_context>

<pallas_src>
import functools

import jax
import jax.numpy as jnp
from jax import lax
from jax.experimental import pallas as pl
from jax.experimental.pallas import tpu as pltpu


LANE = 128
LATENT = 4
IN_C = [3, 96, 128, 192]
OUT_C = [96, 128, 192, 256]
POOLING_LAYERS = (0, 2)
BN_EPS = 1e-5


def _round_up(c, m=LANE):
    return ((c + m - 1) // m) * m


OUT_C_PAD = [_round_up(c) for c in OUT_C]        # [128, 128, 256, 256]
IN_C_PAD = [IN_C[0]] + OUT_C_PAD[:-1]            # [3, 128, 128, 256]


def _default_vmem_limit():
    """Per-generation VMEM budget: ~3/4 of physical, capped at 100 MiB.
    v5e/v6e (128 MiB) -> 96 MiB, v7x (64 MiB) -> 48 MiB."""
    cap = 128 * 1024 * 1024
    try:
        cap = int(pltpu.get_tpu_info().vmem_capacity_bytes)
    except Exception:
        pass
    return min((cap * 3) // 4, 100 * 1024 * 1024)


VMEM_LIMIT = _default_vmem_limit()


def _pick_batch_tile(n, h, w, w_out, cin, cout, vmem_limit):
    """Images per grid step: fold batch into the GEMM M dim (target M >= 256)
    while staying well inside the VMEM budget and keeping the second-minor
    block dims (bt*w, bt*w_out) 8-aligned (or full)."""
    per_img = (h + 2) * w * cin * 2 * 3 + h * w * cout * 6     # rough bytes
    cap = max(1, (vmem_limit // 4) // max(per_img, 1))
    target = max(1, pl.cdiv(256, max(h * w, 1)))
    valid = [d for d in range(1, n + 1)
             if n % d == 0 and d <= cap
             and (d == n or ((d * w) % 8 == 0 and (d * w_out) % 8 == 0))]
    if not valid:
        return n
    for d in valid:
        if d >= target:
            return d
    return valid[-1]


# ---------------------------------------------------------------------------
# Kernel 1: fused [shift of previous BN] + 3x3 conv (9 accumulated GEMMs)
#           + bias + ReLU + optional 2x2 max-pool + BN-stat partial sums.
# Activation layout: (H, B*W, C) with channels on lanes, rows ordered (h,b,w).
# ---------------------------------------------------------------------------
def _conv_block_kernel(shift_ref, x_ref, w_ref, b_ref, o_ref, stat_ref,
                       *, width, pool):
    H, BW, Cin = x_ref.shape
    Cout = o_ref.shape[-1]
    W = width
    dt = x_ref.dtype

    # BN(previous block): scale was folded into w in the wrapper; only the
    # per-channel shift survives (one bf16 add; v5e emulates via f32).
    xn = x_ref[...] + shift_ref[...].reshape(1, 1, Cin)

    # Flatten once to the GEMM M layout (rows ordered (h, image, w)).
    x2 = xn.reshape(H * BW, Cin)

    # Zero halo along H: the h=-1 / h=H rows of every image in the tile are
    # exactly the first / last BW rows of the flat view -> two cheap concats.
    zrow = jnp.zeros((BW, Cin), dt)
    xh = jnp.concatenate([zrow, x2, zrow], axis=0)           # ((H+2)*BW, Cin)

    # dx = -1 / +1 taps: shift the flat rows by one and zero the positions
    # that wrapped across an image's left/right edge (w == 0 / w == W-1).
    Mh = (H + 2) * BW
    zed = jnp.zeros((1, Cin), dt)
    wcol = jax.lax.broadcasted_iota(jnp.int32, (Mh, Cin), 0) & (W - 1)
    x_m1 = jnp.where(wcol == 0, 0.0,
                     jnp.concatenate([zed, xh[:Mh - 1]], axis=0))
    x_p1 = jnp.where(wcol == W - 1, 0.0,
                     jnp.concatenate([xh[1:], zed], axis=0))
    taps_dx = (x_m1, xh, x_p1)

    # 3x3 conv as 9 accumulated GEMMs (K = Cin >= 128): no im2col patch, every
    # dy tap is an 8-aligned sublane slice (no per-tap re-tiling copies).
    M = H * BW
    acc = jnp.zeros((M, Cout), jnp.float32)
    for dy in range(3):
        base = dy * BW
        for dx in range(3):
            tap = taps_dx[dx][base:base + M]
            acc = acc + jnp.dot(tap, w_ref[dy * 3 + dx],
                                preferred_element_type=jnp.float32)

    # f32 epilogue: bias + ReLU (+ fused MaxPool2d(2, 2)).
    y = jnp.maximum(acc + b_ref[...], 0.0)
    if pool:
        y = y.reshape(H // 2, 2, BW, Cout)
        y = jnp.maximum(y[:, 0], y[:, 1])                    # pool along H
        y = y.reshape(H // 2, BW // 2, 2, Cout)
        y = jnp.maximum(y[:, :, 0, :], y[:, :, 1, :])        # pool along W
        yf = y.reshape((H // 2) * (BW // 2), Cout)
        y3 = y
    else:
        yf = y
        y3 = y.reshape(H, BW, Cout)

    # Training-mode BatchNorm batch-stat partials: one axis-0 reduce over the
    # flat (M, Cout) view; reduced across grid steps by tiny XLA glue.
    s1 = jnp.sum(yf, axis=0, keepdims=True)
    s2 = jnp.sum(yf * yf, axis=0, keepdims=True)
    stat_ref[...] = jnp.concatenate([s1, s2], axis=0)

    o_ref[...] = y3.astype(o_ref.dtype)


def conv_block(x, w, b, shift, *, width, pool, vmem_limit):
    H, NW, Cin = x.shape
    Cout = w.shape[-1]
    assert width > 0 and (width & (width - 1)) == 0, "width must be 2^k"
    n = NW // width
    Ho = H // 2 if pool else H
    Wo = width // 2 if pool else width
    bt = _pick_batch_tile(n, H, width, Wo, Cin, Cout, vmem_limit)
    G = n // bt

    flops = 2 * n * H * width * 9 * Cin * Cout
    bytes_accessed = (H * NW * Cin * 2 + 9 * Cin * Cout * 2
                      + Ho * n * Wo * Cout * 2 + G * 2 * Cout * 4
                      + (Cin + Cout) * 4)

    # NOTE: weight / bias / shift index maps are grid-invariant; on v7x their
    # default double buffers could additionally be reclaimed with
    # pipeline_mode=pl.Buffered(1) (left at the default here for portability).
    out, stats = pl.pallas_call(
        functools.partial(_conv_block_kernel, width=width, pool=pool),
        out_shape=(jax.ShapeDtypeStruct((Ho, n * Wo, Cout), jnp.bfloat16),
                   jax.ShapeDtypeStruct((G, 2, Cout), jnp.float32)),
        grid=(G,),
        in_specs=[
            pl.BlockSpec((1, Cin), lambda g: (0, 0)),                  # BN shift
            pl.BlockSpec((H, bt * width, Cin), lambda g: (0, g, 0)),   # activation
            pl.BlockSpec((9, Cin, Cout), lambda g: (0, 0, 0)),         # folded weights
            pl.BlockSpec((1, Cout), lambda g: (0, 0)),                 # bias
        ],
        out_specs=(
            pl.BlockSpec((Ho, bt * Wo, Cout), lambda g: (0, g, 0)),
            pl.BlockSpec((None, 2, Cout), lambda g: (g, 0, 0)),
        ),
        compiler_params=pltpu.CompilerParams(
            dimension_semantics=("parallel",),
            vmem_limit_bytes=vmem_limit),
        cost_estimate=pl.CostEstimate(flops=flops, transcendentals=0,
                                      bytes_accessed=bytes_accessed),
    )(shift, x, w, b)
    return out, stats


# ---------------------------------------------------------------------------
# Kernel 2: fused VAE head: packed [mu | logvar] GEMM (BN of block 3 already
# folded into weight+bias) + reparameterization.  Lane-dense 128-wide output.
# ---------------------------------------------------------------------------
def _vae_head_kernel(x_ref, w_ref, b_ref, eps_ref, z_ref):
    H, BW, C = x_ref.shape
    M = H * BW
    out = jnp.dot(x_ref[...].reshape(M, C), w_ref[...],
                  preferred_element_type=jnp.float32) + b_ref[...]
    mu = out[:, :LANE]                       # lanes 0..3 real, rest exactly 0
    logvar = out[:, LANE:]                   # lanes 0..3 real, rest exactly 0
    z = mu + eps_ref[...].reshape(M, LANE) * jnp.exp(0.5 * logvar)
    z_ref[...] = z.reshape(H, BW, LANE)


def vae_head(x, w2, b2, eps, *, width, vmem_limit):
    H, NW, C = x.shape
    n = NW // width
    Wcols = w2.shape[-1]
    bt = _pick_batch_tile(n, H, width, width, C, Wcols, vmem_limit)
    G = n // bt
    M = H * NW

    flops = 2 * M * C * Wcols
    bytes_accessed = M * C * 2 + C * Wcols * 2 + 2 * M * LANE * 4

    return pl.pallas_call(
        _vae_head_kernel,
        out_shape=jax.ShapeDtypeStruct((H, NW, LANE), jnp.float32),
        grid=(G,),
        in_specs=[
            pl.BlockSpec((H, bt * width, C), lambda g: (0, g, 0)),
            pl.BlockSpec((C, Wcols), lambda g: (0, 0)),
            pl.BlockSpec((1, Wcols), lambda g: (0, 0)),
            pl.BlockSpec((H, bt * width, LANE), lambda g: (0, g, 0)),
        ],
        out_specs=pl.BlockSpec((H, bt * width, LANE), lambda g: (0, g, 0)),
        compiler_params=pltpu.CompilerParams(
            dimension_semantics=("parallel",),
            vmem_limit_bytes=vmem_limit),
        cost_estimate=pl.CostEstimate(flops=flops, transcendentals=M * LANE,
                                      bytes_accessed=bytes_accessed),
    )(x, w2, b2, eps)


# ---------------------------------------------------------------------------
# Parameters (channel-padded, conv weights stored as (9, Cin, Cout) f32 so the
# per-forward BN-scale fold and bf16 cast are exact and cheap).
# ---------------------------------------------------------------------------
def init_params(seed=0):
    key = jax.random.PRNGKey(seed)
    p = {}

    # Block 0: plain XLA conv in the wrapper (Cin=3, negligible FLOPs).
    key, kw, kb = jax.random.split(key, 3)
    fan0 = 3 * 3 * IN_C[0]
    p["conv_w_0"] = (jax.random.normal(kw, (3, 3, IN_C[0], OUT_C[0]), jnp.float32)
                     / jnp.sqrt(fan0))
    p["conv_b_0"] = jax.random.normal(kb, (OUT_C[0],), jnp.float32) * 0.01

    # BatchNorm2d defaults: gamma=1, beta=0 (padded channels -> gamma=0).
    for i in range(4):
        cpad = OUT_C_PAD[i]
        p[f"bn_g_{i}"] = jnp.zeros((cpad,), jnp.float32).at[:OUT_C[i]].set(1.0)
        p[f"bn_b_{i}"] = jnp.zeros((cpad,), jnp.float32)

    # Blocks 1..3: Pallas fused conv blocks.
    for i in range(1, 4):
        cin_r, cout_r = IN_C[i], OUT_C[i]
        cin_p, cout_p = IN_C_PAD[i], OUT_C_PAD[i]
        key, kw, kb = jax.random.split(key, 3)
        fan = 3 * 3 * cin_r
        wr = jax.random.normal(kw, (3, 3, cin_r, cout_r), jnp.float32) / jnp.sqrt(fan)
        wp = jnp.zeros((3, 3, cin_p, cout_p), jnp.float32)
        wp = wp.at[:, :, :cin_r, :cout_r].set(wr)
        p[f"conv_w_{i}"] = wp.reshape(9, cin_p, cout_p)
        br = jax.random.normal(kb, (cout_r,), jnp.float32) * 0.01
        p[f"conv_b_{i}"] = jnp.zeros((1, cout_p), jnp.float32).at[0, :cout_r].set(br)

    # Head: packed [mu | logvar] 1x1 convs, lane-aligned halves of a 256-wide W.
    c_r, c_p = OUT_C[-1], OUT_C_PAD[-1]
    key, kwm, kbm, kwl, kbl = jax.random.split(key, 5)
    w2 = jnp.zeros((c_p, 2 * LANE), jnp.float32)
    w2 = w2.at[:c_r, :LATENT].set(
        jax.random.normal(kwm, (c_r, LATENT), jnp.float32) / jnp.sqrt(c_r))
    w2 = w2.at[:c_r, LANE:LANE + LATENT].set(
        jax.random.normal(kwl, (c_r, LATENT), jnp.float32) / jnp.sqrt(c_r))
    p["w_head"] = w2
    b2 = jnp.zeros((1, 2 * LANE), jnp.float32)
    b2 = b2.at[0, :LATENT].set(jax.random.normal(kbm, (LATENT,), jnp.float32) * 0.01)
    b2 = b2.at[0, LANE:LANE + LATENT].set(
        jax.random.normal(kbl, (LATENT,), jnp.float32) * 0.01)
    p["b_head"] = b2
    return p


# ---------------------------------------------------------------------------
# Forward pass (NCHW in / NCHW out, like the PyTorch module)
# ---------------------------------------------------------------------------
def vae_encoder_forward(x_nchw, params, eps_key):
    N = x_nchw.shape[0]
    x = jnp.transpose(x_nchw, (0, 2, 3, 1)).astype(jnp.float32)   # NCHW -> NHWC

    # ---- Block 0: Cin=3 is lane-sparse (3/128 of every vreg) and its FLOPs
    # are negligible -> plain XLA conv per the perf review.
    y = lax.conv_general_dilated(x, params["conv_w_0"], (1, 1), ((1, 1), (1, 1)),
                                 dimension_numbers=("NHWC", "HWIO", "NHWC"))
    y = jnp.maximum(y + params["conv_b_0"], 0.0)
    n, h, w, c = y.shape
    y = y.reshape(n, h // 2, 2, w, c).max(axis=2)                 # MaxPool 2x2
    y = y.reshape(n, h // 2, w // 2, 2, c).max(axis=3)
    h_img, w_img = h // 2, w // 2
    # TODO(synk): MaxPool2d(return_indices=True) indices / pool_sizes are not
    # materialized; they do not affect the forward output z.

    mean = jnp.mean(y, axis=(0, 1, 2))
    var = jnp.maximum(jnp.mean(jnp.square(y), axis=(0, 1, 2)) - mean * mean, 0.0)
    cpad = OUT_C_PAD[0]
    mean = jnp.pad(mean, (0, cpad - c))
    var = jnp.pad(var, (0, cpad - c))

    # Spatial-major (H, N*W, C) bf16 layout for the Pallas blocks.
    act = jnp.pad(y, ((0, 0), (0, 0), (0, 0), (0, cpad - c)))
    act = jnp.transpose(act, (1, 0, 2, 3)).reshape(h_img, N * w_img, cpad)
    act = act.astype(jnp.bfloat16)

    # ---- Blocks 1..3: fused Pallas conv blocks; BN of the previous block is
    # folded in (scale -> weight, shift -> single bf16 add before the conv).
    for i in range(1, 4):
        gamma = params[f"bn_g_{i - 1}"]
        beta = params[f"bn_b_{i - 1}"]
        scale = gamma * lax.rsqrt(var + BN_EPS)
        safe = jnp.where(scale == 0.0, 1.0, scale)
        shift_in = jnp.where(scale == 0.0, 0.0, beta / safe) - mean     # pre-conv add
        w_f = (params[f"conv_w_{i}"] * scale[None, :, None]).astype(jnp.bfloat16)
        pool = i in POOLING_LAYERS
        act, stats = conv_block(act, w_f, params[f"conv_b_{i}"],
                                shift_in.reshape(1, -1).astype(jnp.bfloat16),
                                width=w_img, pool=pool, vmem_limit=VMEM_LIMIT)
        if pool:
            h_img, w_img = h_img // 2, w_img // 2
        cnt = act.shape[0] * act.shape[1]
        s = jnp.sum(stats, axis=0)
        mean = s[0] / cnt
        var = jnp.maximum(s[1] / cnt - mean * mean, 0.0)       # biased (training mode)

    # ---- Head: BN(block 3) folds entirely into the packed GEMM (exact: 1x1
    # conv has no halo) + fused reparameterization.
    scale = params["bn_g_3"] * lax.rsqrt(var + BN_EPS)
    shift = params["bn_b_3"] - mean * scale
    w_h = (params["w_head"] * scale[:, None]).astype(jnp.bfloat16)
    b_h = params["b_head"] + shift[None, :] @ params["w_head"]

    # torch.randn_like(std) -> JAX PRNG (stochastic op, not bit-matched);
    # zero-padded to 128 lanes so all head loads/stores are lane-dense.
    eps = jax.random.normal(eps_key, (h_img, N * w_img, LATENT), jnp.float32)
    eps = jnp.pad(eps, ((0, 0), (0, 0), (0, LANE - LATENT)))

    z_slab = vae_head(act, w_h, b_h, eps, width=w_img, vmem_limit=VMEM_LIMIT)
    z = z_slab.reshape(h_img, N, w_img, LANE)[..., :LATENT]
    return jnp.transpose(z, (1, 3, 0, 2))                      # -> NCHW (N, 4, H, W)


if __name__ == "__main__":
    key = jax.random.PRNGKey(0)
    kx, keps = jax.random.split(key)
    x = jax.random.normal(kx, (2, 3, 16, 16), jnp.float32)     # NCHW like PyTorch
    params = init_params(0)
    fwd = jax.jit(vae_encoder_forward)
    z = jax.block_until_ready(fwd(x, params, keps))
    assert z.shape == (2, LATENT, 4, 4), z.shape
    assert bool(jnp.all(jnp.isfinite(z)))
    print("KERNEL_OK")
</pallas_src>

<mosaic_0001>
module attributes {stable_mosaic.version = 11 : i64} {
  func.func @_conv_block_kernel(%arg0: i32, %arg1: memref<1x128xbf16, #tpu.memory_space<vmem>>, %arg2: memref<8x16x128xbf16, #tpu.memory_space<vmem>>, %arg3: memref<9x128x128xbf16, #tpu.memory_space<vmem>>, %arg4: memref<1x128xf32, #tpu.memory_space<vmem>>, %arg5: memref<8x16x128xbf16, #tpu.memory_space<vmem>>, %arg6: memref<1x2x128xf32, #tpu.memory_space<vmem>>) attributes {dimension_semantics = [#tpu.dimension_semantics<parallel>], iteration_bounds = array<i64: 1>, scalar_prefetch = 0 : i64, scratch_operands = 0 : i64, tpu.core_type = #tpu.core_type<tc>, window_params = [{pipeline_mode = #tpu.pipeline_mode<synchronous>, transform_indices = @transform_0, window_bounds = array<i64: 1, 128>}, {transform_indices = @transform_1, window_bounds = array<i64: 8, 16, 128>}, {pipeline_mode = #tpu.pipeline_mode<synchronous>, transform_indices = @transform_2, window_bounds = array<i64: 9, 128, 128>}, {pipeline_mode = #tpu.pipeline_mode<synchronous>, transform_indices = @transform_3, window_bounds = array<i64: 1, 128>}, {transform_indices = @transform_4, window_bounds = array<i64: 8, 16, 128>}, {transform_indices = @transform_5, window_bounds = array<i64: 1, 2, 128>}]} {
    %c0 = arith.constant 0 : index
    %c0_0 = arith.constant 0 : index
    %c0_1 = arith.constant 0 : index
    %0 = vector.load %arg2[%c0, %c0_0, %c0_1] : memref<8x16x128xbf16, #tpu.memory_space<vmem>>, vector<8x16x128xbf16>
    %c0_2 = arith.constant 0 : index
    %c0_3 = arith.constant 0 : index
    %1 = vector.load %arg1[%c0_2, %c0_3] : memref<1x128xbf16, #tpu.memory_space<vmem>>, vector<1x128xbf16>
    %2 = vector.shape_cast %1 : vector<1x128xbf16> to vector<1x1x128xbf16>
    %3 = vector.broadcast %2 : vector<1x1x128xbf16> to vector<8x16x128xbf16>
    %4 = arith.addf %0, %3 : vector<8x16x128xbf16>
    %5 = vector.shape_cast %4 : vector<8x16x128xbf16> to vector<128x128xbf16>
    %cst = arith.constant 0.000000e+00 : bf16
    %6 = vector.broadcast %cst : bf16 to vector<16x128xbf16>
    %7 = tpu.concatenate %6, %5, %6 in 0 : vector<16x128xbf16>, vector<128x128xbf16>, vector<16x128xbf16> -> vector<160x128xbf16>
    %cst_4 = arith.constant 0.000000e+00 : bf16
    %8 = vector.broadcast %cst_4 : bf16 to vector<1x128xbf16>
    %9 = tpu.iota {dimensions = array<i32: 0>} : vector<160x128xi32>
    %c7_i32 = arith.constant 7 : i32
    %10 = vector.broadcast %c7_i32 : i32 to vector<160x128xi32>
    %11 = arith.andi %9, %10 : vector<160x128xi32>
    %c0_i32 = arith.constant 0 : i32
    %12 = vector.broadcast %c0_i32 : i32 to vector<160x128xi32>
    %13 = arith.cmpi eq, %11, %12 : vector<160x128xi32>
    %14 = vector.extract_strided_slice %7 {offsets = [0, 0], sizes = [159, 128], strides = [1, 1]} : vector<160x128xbf16> to vector<159x128xbf16>
    %15 = tpu.concatenate %8, %14 in 0 : vector<1x128xbf16>, vector<159x128xbf16> -> vector<160x128xbf16>
    %cst_5 = arith.constant 0.000000e+00 : f32
    %16 = arith.truncf %cst_5 : f32 to bf16
    %17 = vector.broadcast %16 : bf16 to vector<160x128xbf16>
    %18 = arith.select %13, %17, %15 : vector<160x128xi1>, vector<160x128xbf16>
    %c7_i32_6 = arith.constant 7 : i32
    %19 = vector.broadcast %c7_i32_6 : i32 to vector<160x128xi32>
    %20 = arith.cmpi eq, %11, %19 : vector<160x128xi32>
    %21 = vector.extract_strided_slice %7 {offsets = [1, 0], sizes = [159, 128], strides = [1, 1]} : vector<160x128xbf16> to vector<159x128xbf16>
    %22 = tpu.concatenate %21, %8 in 0 : vector<159x128xbf16>, vector<1x128xbf16> -> vector<160x128xbf16>
    %cst_7 = arith.constant 0.000000e+00 : f32
    %23 = arith.truncf %cst_7 : f32 to bf16
    %24 = vector.broadcast %23 : bf16 to vector<160x128xbf16>
    %25 = arith.select %20, %24, %22 : vector<160x128xi1>, vector<160x128xbf16>
    %cst_8 = arith.constant 0.000000e+00 : f32
    %26 = vector.broadcast %cst_8 : f32 to vector<128x128xf32>
    %27 = vector.extract_strided_slice %18 {offsets = [0, 0], sizes = [128, 128], strides = [1, 1]} : vector<160x128xbf16> to vector<128x128xbf16>
    %c0_9 = arith.constant 0 : index
    %c0_10 = arith.constant 0 : index
    %c0_11 = arith.constant 0 : index
    %28 = vector.load %arg3[%c0_9, %c0_10, %c0_11] : memref<9x128x128xbf16, #tpu.memory_space<vmem>>, vector<1x128x128xbf16>
    %29 = vector.shape_cast %28 : vector<1x128x128xbf16> to vector<128x128xbf16>
    %cst_12 = arith.constant dense<0.000000e+00> : vector<128x128xf32>
    %30 = tpu.matmul %27, %29, %cst_12 {dimension_numbers = #tpu.dot_dimension_numbers<[1], [0], [0], [1], [0, 0, 1, 1], [], []>} : vector<128x128xbf16>, vector<128x128xbf16>, vector<128x128xf32> -> vector<128x128xf32>
    %31 = arith.addf %26, %30 : vector<128x128xf32>
    %32 = vector.extract_strided_slice %7 {offsets = [0, 0], sizes = [128, 128], strides = [1, 1]} : vector<160x128xbf16> to vector<128x128xbf16>
    %c1 = arith.constant 1 : index
    %c0_13 = arith.constant 0 : index
    %c0_14 = arith.constant 0 : index
    %33 = vector.load %arg3[%c1, %c0_13, %c0_14] : memref<9x128x128xbf16, #tpu.memory_space<vmem>>, vector<1x128x128xbf16>
    %34 = vector.shape_cast %33 : vector<1x128x128xbf16> to vector<128x128xbf16>
    %cst_15 = arith.constant dense<0.000000e+00> : vector<128x128xf32>
    %35 = tpu.matmul %32, %34, %cst_15 {dimension_numbers = #tpu.dot_dimension_numbers<[1], [0], [0], [1], [0, 0, 1, 1], [], []>} : vector<128x128xbf16>, vector<128x128xbf16>, vector<128x128xf32> -> vector<128x128xf32>
    %36 = arith.addf %31, %35 : vector<128x128xf32>
    %37 = vector.extract_strided_slice %25 {offsets = [0, 0], sizes = [128, 128], strides = [1, 1]} : vector<160x128xbf16> to vector<128x128xbf16>
    %c2 = arith.constant 2 : index
    %c0_16 = arith.constant 0 : index
    %c0_17 = arith.constant 0 : index
    %38 = vector.load %arg3[%c2, %c0_16, %c0_17] : memref<9x128x128xbf16, #tpu.memory_space<vmem>>, vector<1x128x128xbf16>
    %39 = vector.shape_cast %38 : vector<1x128x128xbf16> to vector<128x128xbf16>
    %cst_18 = arith.constant dense<0.000000e+00> : vector<128x128xf32>
    %40 = tpu.matmul %37, %39, %cst_18 {dimension_numbers = #tpu.dot_dimension_numbers<[1], [0], [0], [1], [0, 0, 1, 1], [], []>} : vector<128x128xbf16>, vector<128x128xbf16>, vector<128x128xf32> -> vector<128x128xf32>
    %41 = arith.addf %36, %40 : vector<128x128xf32>
    %42 = vector.extract_strided_slice %18 {offsets = [16, 0], sizes = [128, 128], strides = [1, 1]} : vector<160x128xbf16> to vector<128x128xbf16>
    %c3 = arith.constant 3 : index
    %c0_19 = arith.constant 0 : index
    %c0_20 = arith.constant 0 : index
    %43 = vector.load %arg3[%c3, %c0_19, %c0_20] : memref<9x128x128xbf16, #tpu.memory_space<vmem>>, vector<1x128x128xbf16>
    %44 = vector.shape_cast %43 : vector<1x128x128xbf16> to vector<128x128xbf16>
    %cst_21 = arith.constant dense<0.000000e+00> : vector<128x128xf32>
    %45 = tpu.matmul %42, %44, %cst_21 {dimension_numbers = #tpu.dot_dimension_numbers<[1], [0], [0], [1], [0, 0, 1, 1], [], []>} : vector<128x128xbf16>, vector<128x128xbf16>, vector<128x128xf32> -> vector<128x128xf32>
    %46 = arith.addf %41, %45 : vector<128x128xf32>
    %47 = vector.extract_strided_slice %7 {offsets = [16, 0], sizes = [128, 128], strides = [1, 1]} : vector<160x128xbf16> to vector<128x128xbf16>
    %c4 = arith.constant 4 : index
    %c0_22 = arith.constant 0 : index
    %c0_23 = arith.constant 0 : index
    %48 = vector.load %arg3[%c4, %c0_22, %c0_23] : memref<9x128x128xbf16, #tpu.memory_space<vmem>>, vector<1x128x128xbf16>
    %49 = vector.shape_cast %48 : vector<1x128x128xbf16> to vector<128x128xbf16>
    %cst_24 = arith.constant dense<0.000000e+00> : vector<128x128xf32>
    %50 = tpu.matmul %47, %49, %cst_24 {dimension_numbers = #tpu.dot_dimension_numbers<[1], [0], [0], [1], [0, 0, 1, 1], [], []>} : vector<128x128xbf16>, vector<128x128xbf16>, vector<128x128xf32> -> vector<128x128xf32>
    %51 = arith.addf %46, %50 : vector<128x128xf32>
    %52 = vector.extract_strided_slice %25 {offsets = [16, 0], sizes = [128, 128], strides = [1, 1]} : vector<160x128xbf16> to vector<128x128xbf16>
    %c5 = arith.constant 5 : index
    %c0_25 = arith.constant 0 : index
    %c0_26 = arith.constant 0 : index
    %53 = vector.load %arg3[%c5, %c0_25, %c0_26] : memref<9x128x128xbf16, #tpu.memory_space<vmem>>, vector<1x128x128xbf16>
    %54 = vector.shape_cast %53 : vector<1x128x128xbf16> to vector<128x128xbf16>
    %cst_27 = arith.constant dense<0.000000e+00> : vector<128x128xf32>
    %55 = tpu.matmul %52, %54, %cst_27 {dimension_numbers = #tpu.dot_dimension_numbers<[1], [0], [0], [1], [0, 0, 1, 1], [], []>} : vector<128x128xbf16>, vector<128x128xbf16>, vector<128x128xf32> -> vector<128x128xf32>
    %56 = arith.addf %51, %55 : vector<128x128xf32>
    %57 = vector.extract_strided_slice %18 {offsets = [32, 0], sizes = [128, 128], strides = [1, 1]} : vector<160x128xbf16> to vector<128x128xbf16>
    %c6 = arith.constant 6 : index
    %c0_28 = arith.constant 0 : index
    %c0_29 = arith.constant 0 : index
    %58 = vector.load %arg3[%c6, %c0_28, %c0_29] : memref<9x128x128xbf16, #tpu.memory_space<vmem>>, vector<1x128x128xbf16>
    %59 = vector.shape_cast %58 : vector<1x128x128xbf16> to vector<128x128xbf16>
    %cst_30 = arith.constant dense<0.000000e+00> : vector<128x128xf32>
    %60 = tpu.matmul %57, %59, %cst_30 {dimension_numbers = #tpu.dot_dimension_numbers<[1], [0], [0], [1], [0, 0, 1, 1], [], []>} : vector<128x128xbf16>, vector<128x128xbf16>, vector<128x128xf32> -> vector<128x128xf32>
    %61 = arith.addf %56, %60 : vector<128x128xf32>
    %62 = vector.extract_strided_slice %7 {offsets = [32, 0], sizes = [128, 128], strides = [1, 1]} : vector<160x128xbf16> to vector<128x128xbf16>
    %c7 = arith.constant 7 : index
    %c0_31 = arith.constant 0 : index
    %c0_32 = arith.constant 0 : index
    %63 = vector.load %arg3[%c7, %c0_31, %c0_32] : memref<9x128x128xbf16, #tpu.memory_space<vmem>>, vector<1x128x128xbf16>
    %64 = vector.shape_cast %63 : vector<1x128x128xbf16> to vector<128x128xbf16>
    %cst_33 = arith.constant dense<0.000000e+00> : vector<128x128xf32>
    %65 = tpu.matmul %62, %64, %cst_33 {dimension_numbers = #tpu.dot_dimension_numbers<[1], [0], [0], [1], [0, 0, 1, 1], [], []>} : vector<128x128xbf16>, vector<128x128xbf16>, vector<128x128xf32> -> vector<128x128xf32>
    %66 = arith.addf %61, %65 : vector<128x128xf32>
    %67 = vector.extract_strided_slice %25 {offsets = [32, 0], sizes = [128, 128], strides = [1, 1]} : vector<160x128xbf16> to vector<128x128xbf16>
    %c8 = arith.constant 8 : index
    %c0_34 = arith.constant 0 : index
    %c0_35 = arith.constant 0 : index
    %68 = vector.load %arg3[%c8, %c0_34, %c0_35] : memref<9x128x128xbf16, #tpu.memory_space<vmem>>, vector<1x128x128xbf16>
    %69 = vector.shape_cast %68 : vector<1x128x128xbf16> to vector<128x128xbf16>
    %cst_36 = arith.constant dense<0.000000e+00> : vector<128x128xf32>
    %70 = tpu.matmul %67, %69, %cst_36 {dimension_numbers = #tpu.dot_dimension_numbers<[1], [0], [0], [1], [0, 0, 1, 1], [], []>} : vector<128x128xbf16>, vector<128x128xbf16>, vector<128x128xf32> -> vector<128x128xf32>
    %71 = arith.addf %66, %70 : vector<128x128xf32>
    %c0_37 = arith.constant 0 : index
    %c0_38 = arith.constant 0 : index
    %72 = vector.load %arg4[%c0_37, %c0_38] : memref<1x128xf32, #tpu.memory_space<vmem>>, vector<1x128xf32>
    %73 = vector.broadcast %72 : vector<1x128xf32> to vector<128x128xf32>
    %74 = arith.addf %71, %73 : vector<128x128xf32>
    %cst_39 = arith.constant 0.000000e+00 : f32
    %75 = vector.broadcast %cst_39 : f32 to vector<128x128xf32>
    %76 = arith.maximumf %74, %75 : vector<128x128xf32>
    %77 = vector.shape_cast %76 : vector<128x128xf32> to vector<8x16x128xf32>
    %cst_40 = arith.constant dense<0.000000e+00> : vector<128xf32>
    %78 = vector.multi_reduction <add>, %76, %cst_40 [0] : vector<128x128xf32> to vector<128xf32>
    %79 = vector.shape_cast %78 : vector<128xf32> to vector<1x128xf32>
    %80 = arith.mulf %76, %76 : vector<128x128xf32>
    %cst_41 = arith.constant dense<0.000000e+00> : vector<128xf32>
    %81 = vector.multi_reduction <add>, %80, %cst_41 [0] : vector<128x128xf32> to vector<128xf32>
    %82 = vector.shape_cast %81 : vector<128xf32> to vector<1x128xf32>
    %83 = tpu.concatenate %79, %82 in 0 : vector<1x128xf32>, vector<1x128xf32> -> vector<2x128xf32>
    %c0_42 = arith.constant 0 : index
    %c0_43 = arith.constant 0 : index
    %c0_44 = arith.constant 0 : index
    %84 = vector.load %arg6[%c0_42, %c0_43, %c0_44] : memref<1x2x128xf32, #tpu.memory_space<vmem>>, vector<1x2x128xf32>
    %85 = vector.shape_cast %84 : vector<1x2x128xf32> to vector<2x128xf32>
    %86 = vector.shape_cast %83 : vector<2x128xf32> to vector<1x2x128xf32>
    tpu.vector_store %arg6[%c0_42, %c0_43, %c0_44], %86 {strides = array<i32>} : memref<1x2x128xf32, #tpu.memory_space<vmem>>, vector<1x2x128xf32>,
    %87 = arith.truncf %77 : vector<8x16x128xf32> to vector<8x16x128xbf16>
    %c0_45 = arith.constant 0 : index
    %c0_46 = arith.constant 0 : index
    %c0_47 = arith.constant 0 : index
    %88 = vector.load %arg5[%c0_45, %c0_46, %c0_47] : memref<8x16x128xbf16, #tpu.memory_space<vmem>>, vector<8x16x128xbf16>
    tpu.vector_store %arg5[%c0_45, %c0_46, %c0_47], %87 {strides = array<i32>} : memref<8x16x128xbf16, #tpu.memory_space<vmem>>, vector<8x16x128xbf16>,
    return
  }
  func.func @transform_0(%arg0: i32) -> (i32, i32) {
    %c0_i32 = arith.constant 0 : i32
    %c0_i32_0 = arith.constant 0 : i32
    %c0_i32_1 = arith.constant 0 : i32
    return %c0_i32, %c0_i32_0 : i32, i32
  }
  func.func @transform_1(%arg0: i32) -> (i32, i32, i32) {
    %c0_i32 = arith.constant 0 : i32
    %c0_i32_0 = arith.constant 0 : i32
    %c0_i32_1 = arith.constant 0 : i32
    return %c0_i32, %arg0, %c0_i32_0 : i32, i32, i32
  }
  func.func @transform_2(%arg0: i32) -> (i32, i32, i32) {
    %c0_i32 = arith.constant 0 : i32
    %c0_i32_0 = arith.constant 0 : i32
    %c0_i32_1 = arith.constant 0 : i32
    %c0_i32_2 = arith.constant 0 : i32
    return %c0_i32, %c0_i32_0, %c0_i32_1 : i32, i32, i32
  }
  func.func @transform_3(%arg0: i32) -> (i32, i32) {
    %c0_i32 = arith.constant 0 : i32
    %c0_i32_0 = arith.constant 0 : i32
    %c0_i32_1 = arith.constant 0 : i32
    return %c0_i32, %c0_i32_0 : i32, i32
  }
  func.func @transform_4(%arg0: i32) -> (i32, i32, i32) {
    %c0_i32 = arith.constant 0 : i32
    %c0_i32_0 = arith.constant 0 : i32
    %c0_i32_1 = arith.constant 0 : i32
    return %c0_i32, %arg0, %c0_i32_0 : i32, i32, i32
  }
  func.func @transform_5(%arg0: i32) -> (i32, i32, i32) {
    %c0_i32 = arith.constant 0 : i32
    %c0_i32_0 = arith.constant 0 : i32
    %c0_i32_1 = arith.constant 0 : i32
    return %arg0, %c0_i32, %c0_i32_0 : i32, i32, i32
  }
}

module attributes {stable_mosaic.version = 11 : i64} {
  func.func @_conv_block_kernel(%arg0: i32, %arg1: memref<1x128xbf16, #tpu.memory_space<vmem>>, %arg2: memref<8x16x128xbf16, #tpu.memory_space<vmem>>, %arg3: memref<9x128x256xbf16, #tpu.memory_space<vmem>>, %arg4: memref<1x256xf32, #tpu.memory_space<vmem>>, %arg5: memref<4x8x256xbf16, #tpu.memory_space<vmem>>, %arg6: memref<1x2x256xf32, #tpu.memory_space<vmem>>) attributes {dimension_semantics = [#tpu.dimension_semantics<parallel>], iteration_bounds = array<i64: 1>, scalar_prefetch = 0 : i64, scratch_operands = 0 : i64, tpu.core_type = #tpu.core_type<tc>, window_params = [{pipeline_mode = #tpu.pipeline_mode<synchronous>, transform_indices = @transform_0, window_bounds = array<i64: 1, 128>}, {transform_indices = @transform_1, window_bounds = array<i64: 8, 16, 128>}, {pipeline_mode = #tpu.pipeline_mode<synchronous>, transform_indices = @transform_2, window_bounds = array<i64: 9, 128, 256>}, {pipeline_mode = #tpu.pipeline_mode<synchronous>, transform_indices = @transform_3, window_bounds = array<i64: 1, 256>}, {transform_indices = @transform_4, window_bounds = array<i64: 4, 8, 256>}, {transform_indices = @transform_5, window_bounds = array<i64: 1, 2, 256>}]} {
    %c0 = arith.constant 0 : index
    %c0_0 = arith.constant 0 : index
    %c0_1 = arith.constant 0 : index
    %0 = vector.load %arg2[%c0, %c0_0, %c0_1] : memref<8x16x128xbf16, #tpu.memory_space<vmem>>, vector<8x16x128xbf16>
    %c0_2 = arith.constant 0 : index
    %c0_3 = arith.constant 0 : index
    %1 = vector.load %arg1[%c0_2, %c0_3] : memref<1x128xbf16, #tpu.memory_space<vmem>>, vector<1x128xbf16>
    %2 = vector.shape_cast %1 : vector<1x128xbf16> to vector<1x1x128xbf16>
    %3 = vector.broadcast %2 : vector<1x1x128xbf16> to vector<8x16x128xbf16>
    %4 = arith.addf %0, %3 : vector<8x16x128xbf16>
    %5 = vector.shape_cast %4 : vector<8x16x128xbf16> to vector<128x128xbf16>
    %cst = arith.constant 0.000000e+00 : bf16
    %6 = vector.broadcast %cst : bf16 to vector<16x128xbf16>
    %7 = tpu.concatenate %6, %5, %6 in 0 : vector<16x128xbf16>, vector<128x128xbf16>, vector<16x128xbf16> -> vector<160x128xbf16>
    %cst_4 = arith.constant 0.000000e+00 : bf16
    %8 = vector.broadcast %cst_4 : bf16 to vector<1x128xbf16>
    %9 = tpu.iota {dimensions = array<i32: 0>} : vector<160x128xi32>
    %c7_i32 = arith.constant 7 : i32
    %10 = vector.broadcast %c7_i32 : i32 to vector<160x128xi32>
    %11 = arith.andi %9, %10 : vector<160x128xi32>
    %c0_i32 = arith.constant 0 : i32
    %12 = vector.broadcast %c0_i32 : i32 to vector<160x128xi32>
    %13 = arith.cmpi eq, %11, %12 : vector<160x128xi32>
    %14 = vector.extract_strided_slice %7 {offsets = [0, 0], sizes = [159, 128], strides = [1, 1]} : vector<160x128xbf16> to vector<159x128xbf16>
    %15 = tpu.concatenate %8, %14 in 0 : vector<1x128xbf16>, vector<159x128xbf16> -> vector<160x128xbf16>
    %cst_5 = arith.constant 0.000000e+00 : f32
    %16 = arith.truncf %cst_5 : f32 to bf16
    %17 = vector.broadcast %16 : bf16 to vector<160x128xbf16>
    %18 = arith.select %13, %17, %15 : vector<160x128xi1>, vector<160x128xbf16>
    %c7_i32_6 = arith.constant 7 : i32
    %19 = vector.broadcast %c7_i32_6 : i32 to vector<160x128xi32>
    %20 = arith.cmpi eq, %11, %19 : vector<160x128xi32>
    %21 = vector.extract_strided_slice %7 {offsets = [1, 0], sizes = [159, 128], strides = [1, 1]} : vector<160x128xbf16> to vector<159x128xbf16>
    %22 = tpu.concatenate %21, %8 in 0 : vector<159x128xbf16>, vector<1x128xbf16> -> vector<160x128xbf16>
    %cst_7 = arith.constant 0.000000e+00 : f32
    %23 = arith.truncf %cst_7 : f32 to bf16
    %24 = vector.broadcast %23 : bf16 to vector<160x128xbf16>
    %25 = arith.select %20, %24, %22 : vector<160x128xi1>, vector<160x128xbf16>
    %cst_8 = arith.constant 0.000000e+00 : f32
    %26 = vector.broadcast %cst_8 : f32 to vector<128x256xf32>
    %27 = vector.extract_strided_slice %18 {offsets = [0, 0], sizes = [128, 128], strides = [1, 1]} : vector<160x128xbf16> to vector<128x128xbf16>
    %c0_9 = arith.constant 0 : index
    %c0_10 = arith.constant 0 : index
    %c0_11 = arith.constant 0 : index
    %28 = vector.load %arg3[%c0_9, %c0_10, %c0_11] : memref<9x128x256xbf16, #tpu.memory_space<vmem>>, vector<1x128x256xbf16>
    %29 = vector.shape_cast %28 : vector<1x128x256xbf16> to vector<128x256xbf16>
    %cst_12 = arith.constant dense<0.000000e+00> : vector<128x256xf32>
    %30 = tpu.matmul %27, %29, %cst_12 {dimension_numbers = #tpu.dot_dimension_numbers<[1], [0], [0], [1], [0, 0, 1, 1], [], []>} : vector<128x128xbf16>, vector<128x256xbf16>, vector<128x256xf32> -> vector<128x256xf32>
    %31 = arith.addf %26, %30 : vector<128x256xf32>
    %32 = vector.extract_strided_slice %7 {offsets = [0, 0], sizes = [128, 128], strides = [1, 1]} : vector<160x128xbf16> to vector<128x128xbf16>
    %c1 = arith.constant 1 : index
    %c0_13 = arith.constant 0 : index
    %c0_14 = arith.constant 0 : index
    %33 = vector.load %arg3[%c1, %c0_13, %c0_14] : memref<9x128x256xbf16, #tpu.memory_space<vmem>>, vector<1x128x256xbf16>
    %34 = vector.shape_cast %33 : vector<1x128x256xbf16> to vector<128x256xbf16>
    %cst_15 = arith.constant dense<0.000000e+00> : vector<128x256xf32>
    %35 = tpu.matmul %32, %34, %cst_15 {dimension_numbers = #tpu.dot_dimension_numbers<[1], [0], [0], [1], [0, 0, 1, 1], [], []>} : vector<128x128xbf16>, vector<128x256xbf16>, vector<128x256xf32> -> vector<128x256xf32>
    %36 = arith.addf %31, %35 : vector<128x256xf32>
    %37 = vector.extract_strided_slice %25 {offsets = [0, 0], sizes = [128, 128], strides = [1, 1]} : vector<160x128xbf16> to vector<128x128xbf16>
    %c2 = arith.constant 2 : index
    %c0_16 = arith.constant 0 : index
    %c0_17 = arith.constant 0 : index
    %38 = vector.load %arg3[%c2, %c0_16, %c0_17] : memref<9x128x256xbf16, #tpu.memory_space<vmem>>, vector<1x128x256xbf16>
    %39 = vector.shape_cast %38 : vector<1x128x256xbf16> to vector<128x256xbf16>
    %cst_18 = arith.constant dense<0.000000e+00> : vector<128x256xf32>
    %40 = tpu.matmul %37, %39, %cst_18 {dimension_numbers = #tpu.dot_dimension_numbers<[1], [0], [0], [1], [0, 0, 1, 1], [], []>} : vector<128x128xbf16>, vector<128x256xbf16>, vector<128x256xf32> -> vector<128x256xf32>
    %41 = arith.addf %36, %40 : vector<128x256xf32>
    %42 = vector.extract_strided_slice %18 {offsets = [16, 0], sizes = [128, 128], strides = [1, 1]} : vector<160x128xbf16> to vector<128x128xbf16>
    %c3 = arith.constant 3 : index
    %c0_19 = arith.constant 0 : index
    %c0_20 = arith.constant 0 : index
    %43 = vector.load %arg3[%c3, %c0_19, %c0_20] : memref<9x128x256xbf16, #tpu.memory_space<vmem>>, vector<1x128x256xbf16>
    %44 = vector.shape_cast %43 : vector<1x128x256xbf16> to vector<128x256xbf16>
    %cst_21 = arith.constant dense<0.000000e+00> : vector<128x256xf32>
    %45 = tpu.matmul %42, %44, %cst_21 {dimension_numbers = #tpu.dot_dimension_numbers<[1], [0], [0], [1], [0, 0, 1, 1], [], []>} : vector<128x128xbf16>, vector<128x256xbf16>, vector<128x256xf32> -> vector<128x256xf32>
    %46 = arith.addf %41, %45 : vector<128x256xf32>
    %47 = vector.extract_strided_slice %7 {offsets = [16, 0], sizes = [128, 128], strides = [1, 1]} : vector<160x128xbf16> to vector<128x128xbf16>
    %c4 = arith.constant 4 : index
    %c0_22 = arith.constant 0 : index
    %c0_23 = arith.constant 0 : index
    %48 = vector.load %arg3[%c4, %c0_22, %c0_23] : memref<9x128x256xbf16, #tpu.memory_space<vmem>>, vector<1x128x256xbf16>
    %49 = vector.shape_cast %48 : vector<1x128x256xbf16> to vector<128x256xbf16>
    %cst_24 = arith.constant dense<0.000000e+00> : vector<128x256xf32>
    %50 = tpu.matmul %47, %49, %cst_24 {dimension_numbers = #tpu.dot_dimension_numbers<[1], [0], [0], [1], [0, 0, 1, 1], [], []>} : vector<128x128xbf16>, vector<128x256xbf16>, vector<128x256xf32> -> vector<128x256xf32>
    %51 = arith.addf %46, %50 : vector<128x256xf32>
    %52 = vector.extract_strided_slice %25 {offsets = [16, 0], sizes = [128, 128], strides = [1, 1]} : vector<160x128xbf16> to vector<128x128xbf16>
    %c5 = arith.constant 5 : index
    %c0_25 = arith.constant 0 : index
    %c0_26 = arith.constant 0 : index
    %53 = vector.load %arg3[%c5, %c0_25, %c0_26] : memref<9x128x256xbf16, #tpu.memory_space<vmem>>, vector<1x128x256xbf16>
    %54 = vector.shape_cast %53 : vector<1x128x256xbf16> to vector<128x256xbf16>
    %cst_27 = arith.constant dense<0.000000e+00> : vector<128x256xf32>
    %55 = tpu.matmul %52, %54, %cst_27 {dimension_numbers = #tpu.dot_dimension_numbers<[1], [0], [0], [1], [0, 0, 1, 1], [], []>} : vector<128x128xbf16>, vector<128x256xbf16>, vector<128x256xf32> -> vector<128x256xf32>
    %56 = arith.addf %51, %55 : vector<128x256xf32>
    %57 = vector.extract_strided_slice %18 {offsets = [32, 0], sizes = [128, 128], strides = [1, 1]} : vector<160x128xbf16> to vector<128x128xbf16>
    %c6 = arith.constant 6 : index
    %c0_28 = arith.constant 0 : index
    %c0_29 = arith.constant 0 : index
    %58 = vector.load %arg3[%c6, %c0_28, %c0_29] : memref<9x128x256xbf16, #tpu.memory_space<vmem>>, vector<1x128x256xbf16>
    %59 = vector.shape_cast %58 : vector<1x128x256xbf16> to vector<128x256xbf16>
    %cst_30 = arith.constant dense<0.000000e+00> : vector<128x256xf32>
    %60 = tpu.matmul %57, %59, %cst_30 {dimension_numbers = #tpu.dot_dimension_numbers<[1], [0], [0], [1], [0, 0, 1, 1], [], []>} : vector<128x128xbf16>, vector<128x256xbf16>, vector<128x256xf32> -> vector<128x256xf32>
    %61 = arith.addf %56, %60 : vector<128x256xf32>
    %62 = vector.extract_strided_slice %7 {offsets = [32, 0], sizes = [128, 128], strides = [1, 1]} : vector<160x128xbf16> to vector<128x128xbf16>
    %c7 = arith.constant 7 : index
    %c0_31 = arith.constant 0 : index
    %c0_32 = arith.constant 0 : index
    %63 = vector.load %arg3[%c7, %c0_31, %c0_32] : memref<9x128x256xbf16, #tpu.memory_space<vmem>>, vector<1x128x256xbf16>
    %64 = vector.shape_cast %63 : vector<1x128x256xbf16> to vector<128x256xbf16>
    %cst_33 = arith.constant dense<0.000000e+00> : vector<128x256xf32>
    %65 = tpu.matmul %62, %64, %cst_33 {dimension_numbers = #tpu.dot_dimension_numbers<[1], [0], [0], [1], [0, 0, 1, 1], [], []>} : vector<128x128xbf16>, vector<128x256xbf16>, vector<128x256xf32> -> vector<128x256xf32>
    %66 = arith.addf %61, %65 : vector<128x256xf32>
    %67 = vector.extract_strided_slice %25 {offsets = [32, 0], sizes = [128, 128], strides = [1, 1]} : vector<160x128xbf16> to vector<128x128xbf16>
    %c8 = arith.constant 8 : index
    %c0_34 = arith.constant 0 : index
    %c0_35 = arith.constant 0 : index
    %68 = vector.load %arg3[%c8, %c0_34, %c0_35] : memref<9x128x256xbf16, #tpu.memory_space<vmem>>, vector<1x128x256xbf16>
    %69 = vector.shape_cast %68 : vector<1x128x256xbf16> to vector<128x256xbf16>
    %cst_36 = arith.constant dense<0.000000e+00> : vector<128x256xf32>
    %70 = tpu.matmul %67, %69, %cst_36 {dimension_numbers = #tpu.dot_dimension_numbers<[1], [0], [0], [1], [0, 0, 1, 1], [], []>} : vector<128x128xbf16>, vector<128x256xbf16>, vector<128x256xf32> -> vector<128x256xf32>
    %71 = arith.addf %66, %70 : vector<128x256xf32>
    %c0_37 = arith.constant 0 : index
    %c0_38 = arith.constant 0 : index
    %72 = vector.load %arg4[%c0_37, %c0_38] : memref<1x256xf32, #tpu.memory_space<vmem>>, vector<1x256xf32>
    %73 = vector.broadcast %72 : vector<1x256xf32> to vector<128x256xf32>
    %74 = arith.addf %71, %73 : vector<128x256xf32>
    %cst_39 = arith.constant 0.000000e+00 : f32
    %75 = vector.broadcast %cst_39 : f32 to vector<128x256xf32>
    %76 = arith.maximumf %74, %75 : vector<128x256xf32>
    %77 = vector.shape_cast %76 : vector<128x256xf32> to vector<4x2x16x256xf32>
    %78 = vector.extract_strided_slice %77 {offsets = [0, 0, 0, 0], sizes = [4, 1, 16, 256], strides = [1, 1, 1, 1]} : vector<4x2x16x256xf32> to vector<4x1x16x256xf32>
    %79 = vector.shape_cast %78 : vector<4x1x16x256xf32> to vector<4x16x256xf32>
    %80 = vector.extract_strided_slice %77 {offsets = [0, 1, 0, 0], sizes = [4, 1, 16, 256], strides = [1, 1, 1, 1]} : vector<4x2x16x256xf32> to vector<4x1x16x256xf32>
    %81 = vector.shape_cast %80 : vector<4x1x16x256xf32> to vector<4x16x256xf32>
    %82 = arith.maximumf %79, %81 : vector<4x16x256xf32>
    %83 = vector.shape_cast %82 : vector<4x16x256xf32> to vector<4x8x2x256xf32>
    %84 = vector.extract_strided_slice %83 {offsets = [0, 0, 0, 0], sizes = [4, 8, 1, 256], strides = [1, 1, 1, 1]} : vector<4x8x2x256xf32> to vector<4x8x1x256xf32>
    %85 = vector.shape_cast %84 : vector<4x8x1x256xf32> to vector<4x8x256xf32>
    %86 = vector.extract_strided_slice %83 {offsets = [0, 0, 1, 0], sizes = [4, 8, 1, 256], strides = [1, 1, 1, 1]} : vector<4x8x2x256xf32> to vector<4x8x1x256xf32>
    %87 = vector.shape_cast %86 : vector<4x8x1x256xf32> to vector<4x8x256xf32>
    %88 = arith.maximumf %85, %87 : vector<4x8x256xf32>
    %89 = vector.shape_cast %88 : vector<4x8x256xf32> to vector<32x256xf32>
    %cst_40 = arith.constant dense<0.000000e+00> : vector<256xf32>
    %90 = vector.multi_reduction <add>, %89, %cst_40 [0] : vector<32x256xf32> to vector<256xf32>
    %91 = vector.shape_cast %90 : vector<256xf32> to vector<1x256xf32>
    %92 = arith.mulf %89, %89 : vector<32x256xf32>
    %cst_41 = arith.constant dense<0.000000e+00> : vector<256xf32>
    %93 = vector.multi_reduction <add>, %92, %cst_41 [0] : vector<32x256xf32> to vector<256xf32>
    %94 = vector.shape_cast %93 : vector<256xf32> to vector<1x256xf32>
    %95 = tpu.concatenate %91, %94 in 0 : vector<1x256xf32>, vector<1x256xf32> -> vector<2x256xf32>
    %c0_42 = arith.constant 0 : index
    %c0_43 = arith.constant 0 : index
    %c0_44 = arith.constant 0 : index
    %96 = vector.load %arg6[%c0_42, %c0_43, %c0_44] : memref<1x2x256xf32, #tpu.memory_space<vmem>>, vector<1x2x256xf32>
    %97 = vector.shape_cast %96 : vector<1x2x256xf32> to vector<2x256xf32>
    %98 = vector.shape_cast %95 : vector<2x256xf32> to vector<1x2x256xf32>
    tpu.vector_store %arg6[%c0_42, %c0_43, %c0_44], %98 {strides = array<i32>} : memref<1x2x256xf32, #tpu.memory_space<vmem>>, vector<1x2x256xf32>,
    %99 = arith.truncf %88 : vector<4x8x256xf32> to vector<4x8x256xbf16>
    %c0_45 = arith.constant 0 : index
    %c0_46 = arith.constant 0 : index
    %c0_47 = arith.constant 0 : index
    %100 = vector.load %arg5[%c0_45, %c0_46, %c0_47] : memref<4x8x256xbf16, #tpu.memory_space<vmem>>, vector<4x8x256xbf16>
    tpu.vector_store %arg5[%c0_45, %c0_46, %c0_47], %99 {strides = array<i32>} : memref<4x8x256xbf16, #tpu.memory_space<vmem>>, vector<4x8x256xbf16>,
    return
  }
  func.func @transform_0(%arg0: i32) -> (i32, i32) {
    %c0_i32 = arith.constant 0 : i32
    %c0_i32_0 = arith.constant 0 : i32
    %c0_i32_1 = arith.constant 0 : i32
    return %c0_i32, %c0_i32_0 : i32, i32
  }
  func.func @transform_1(%arg0: i32) -> (i32, i32, i32) {
    %c0_i32 = arith.constant 0 : i32
    %c0_i32_0 = arith.constant 0 : i32
    %c0_i32_1 = arith.constant 0 : i32
    return %c0_i32, %arg0, %c0_i32_0 : i32, i32, i32
  }
  func.func @transform_2(%arg0: i32) -> (i32, i32, i32) {
    %c0_i32 = arith.constant 0 : i32
    %c0_i32_0 = arith.constant 0 : i32
    %c0_i32_1 = arith.constant 0 : i32
    %c0_i32_2 = arith.constant 0 : i32
    return %c0_i32, %c0_i32_0, %c0_i32_1 : i32, i32, i32
  }
  func.func @transform_3(%arg0: i32) -> (i32, i32) {
    %c0_i32 = arith.constant 0 : i32
    %c0_i32_0 = arith.constant 0 : i32
    %c0_i32_1 = arith.constant 0 : i32
    return %c0_i32, %c0_i32_0 : i32, i32
  }
  func.func @transform_4(%arg0: i32) -> (i32, i32, i32) {
    %c0_i32 = arith.constant 0 : i32
    %c0_i32_0 = arith.constant 0 : i32
    %c0_i32_1 = arith.constant 0 : i32
    return %c0_i32, %arg0, %c0_i32_0 : i32, i32, i32
  }
  func.func @transform_5(%arg0: i32) -> (i32, i32, i32) {
    %c0_i32 = arith.constant 0 : i32
    %c0_i32_0 = arith.constant 0 : i32
    %c0_i32_1 = arith.constant 0 : i32
    return %arg0, %c0_i32, %c0_i32_0 : i32, i32, i32
  }
}

module attributes {stable_mosaic.version = 11 : i64} {
  func.func @_conv_block_kernel(%arg0: i32, %arg1: memref<1x256xbf16, #tpu.memory_space<vmem>>, %arg2: memref<4x8x256xbf16, #tpu.memory_space<vmem>>, %arg3: memref<9x256x256xbf16, #tpu.memory_space<vmem>>, %arg4: memref<1x256xf32, #tpu.memory_space<vmem>>, %arg5: memref<4x8x256xbf16, #tpu.memory_space<vmem>>, %arg6: memref<1x2x256xf32, #tpu.memory_space<vmem>>) attributes {dimension_semantics = [#tpu.dimension_semantics<parallel>], iteration_bounds = array<i64: 1>, scalar_prefetch = 0 : i64, scratch_operands = 0 : i64, tpu.core_type = #tpu.core_type<tc>, window_params = [{pipeline_mode = #tpu.pipeline_mode<synchronous>, transform_indices = @transform_0, window_bounds = array<i64: 1, 256>}, {transform_indices = @transform_1, window_bounds = array<i64: 4, 8, 256>}, {pipeline_mode = #tpu.pipeline_mode<synchronous>, transform_indices = @transform_2, window_bounds = array<i64: 9, 256, 256>}, {pipeline_mode = #tpu.pipeline_mode<synchronous>, transform_indices = @transform_3, window_bounds = array<i64: 1, 256>}, {transform_indices = @transform_4, window_bounds = array<i64: 4, 8, 256>}, {transform_indices = @transform_5, window_bounds = array<i64: 1, 2, 256>}]} {
    %c0 = arith.constant 0 : index
    %c0_0 = arith.constant 0 : index
    %c0_1 = arith.constant 0 : index
    %0 = vector.load %arg2[%c0, %c0_0, %c0_1] : memref<4x8x256xbf16, #tpu.memory_space<vmem>>, vector<4x8x256xbf16>
    %c0_2 = arith.constant 0 : index
    %c0_3 = arith.constant 0 : index
    %1 = vector.load %arg1[%c0_2, %c0_3] : memref<1x256xbf16, #tpu.memory_space<vmem>>, vector<1x256xbf16>
    %2 = vector.shape_cast %1 : vector<1x256xbf16> to vector<1x1x256xbf16>
    %3 = vector.broadcast %2 : vector<1x1x256xbf16> to vector<4x8x256xbf16>
    %4 = arith.addf %0, %3 : vector<4x8x256xbf16>
    %5 = vector.shape_cast %4 : vector<4x8x256xbf16> to vector<32x256xbf16>
    %cst = arith.constant 0.000000e+00 : bf16
    %6 = vector.broadcast %cst : bf16 to vector<8x256xbf16>
    %7 = tpu.concatenate %6, %5, %6 in 0 : vector<8x256xbf16>, vector<32x256xbf16>, vector<8x256xbf16> -> vector<48x256xbf16>
    %cst_4 = arith.constant 0.000000e+00 : bf16
    %8 = vector.broadcast %cst_4 : bf16 to vector<1x256xbf16>
    %9 = tpu.iota {dimensions = array<i32: 0>} : vector<48x256xi32>
    %c3_i32 = arith.constant 3 : i32
    %10 = vector.broadcast %c3_i32 : i32 to vector<48x256xi32>
    %11 = arith.andi %9, %10 : vector<48x256xi32>
    %c0_i32 = arith.constant 0 : i32
    %12 = vector.broadcast %c0_i32 : i32 to vector<48x256xi32>
    %13 = arith.cmpi eq, %11, %12 : vector<48x256xi32>
    %14 = vector.extract_strided_slice %7 {offsets = [0, 0], sizes = [47, 256], strides = [1, 1]} : vector<48x256xbf16> to vector<47x256xbf16>
    %15 = tpu.concatenate %8, %14 in 0 : vector<1x256xbf16>, vector<47x256xbf16> -> vector<48x256xbf16>
    %cst_5 = arith.constant 0.000000e+00 : f32
    %16 = arith.truncf %cst_5 : f32 to bf16
    %17 = vector.broadcast %16 : bf16 to vector<48x256xbf16>
    %18 = arith.select %13, %17, %15 : vector<48x256xi1>, vector<48x256xbf16>
    %c3_i32_6 = arith.constant 3 : i32
    %19 = vector.broadcast %c3_i32_6 : i32 to vector<48x256xi32>
    %20 = arith.cmpi eq, %11, %19 : vector<48x256xi32>
    %21 = vector.extract_strided_slice %7 {offsets = [1, 0], sizes = [47, 256], strides = [1, 1]} : vector<48x256xbf16> to vector<47x256xbf16>
    %22 = tpu.concatenate %21, %8 in 0 : vector<47x256xbf16>, vector<1x256xbf16> -> vector<48x256xbf16>
    %cst_7 = arith.constant 0.000000e+00 : f32
    %23 = arith.truncf %cst_7 : f32 to bf16
    %24 = vector.broadcast %23 : bf16 to vector<48x256xbf16>
    %25 = arith.select %20, %24, %22 : vector<48x256xi1>, vector<48x256xbf16>
    %cst_8 = arith.constant 0.000000e+00 : f32
    %26 = vector.broadcast %cst_8 : f32 to vector<32x256xf32>
    %27 = vector.extract_strided_slice %18 {offsets = [0, 0], sizes = [32, 256], strides = [1, 1]} : vector<48x256xbf16> to vector<32x256xbf16>
    %c0_9 = arith.constant 0 : index
    %c0_10 = arith.constant 0 : index
    %c0_11 = arith.constant 0 : index
    %28 = vector.load %arg3[%c0_9, %c0_10, %c0_11] : memref<9x256x256xbf16, #tpu.memory_space<vmem>>, vector<1x256x256xbf16>
    %29 = vector.shape_cast %28 : vector<1x256x256xbf16> to vector<256x256xbf16>
    %cst_12 = arith.constant dense<0.000000e+00> : vector<32x256xf32>
    %30 = tpu.matmul %27, %29, %cst_12 {dimension_numbers = #tpu.dot_dimension_numbers<[1], [0], [0], [1], [0, 0, 1, 1], [], []>} : vector<32x256xbf16>, vector<256x256xbf16>, vector<32x256xf32> -> vector<32x256xf32>
    %31 = arith.addf %26, %30 : vector<32x256xf32>
    %32 = vector.extract_strided_slice %7 {offsets = [0, 0], sizes = [32, 256], strides = [1, 1]} : vector<48x256xbf16> to vector<32x256xbf16>
    %c1 = arith.constant 1 : index
    %c0_13 = arith.constant 0 : index
    %c0_14 = arith.constant 0 : index
    %33 = vector.load %arg3[%c1, %c0_13, %c0_14] : memref<9x256x256xbf16, #tpu.memory_space<vmem>>, vector<1x256x256xbf16>
    %34 = vector.shape_cast %33 : vector<1x256x256xbf16> to vector<256x256xbf16>
    %cst_15 = arith.constant dense<0.000000e+00> : vector<32x256xf32>
    %35 = tpu.matmul %32, %34, %cst_15 {dimension_numbers = #tpu.dot_dimension_numbers<[1], [0], [0], [1], [0, 0, 1, 1], [], []>} : vector<32x256xbf16>, vector<256x256xbf16>, vector<32x256xf32> -> vector<32x256xf32>
    %36 = arith.addf %31, %35 : vector<32x256xf32>
    %37 = vector.extract_strided_slice %25 {offsets = [0, 0], sizes = [32, 256], strides = [1, 1]} : vector<48x256xbf16> to vector<32x256xbf16>
    %c2 = arith.constant 2 : index
    %c0_16 = arith.constant 0 : index
    %c0_17 = arith.constant 0 : index
    %38 = vector.load %arg3[%c2, %c0_16, %c0_17] : memref<9x256x256xbf16, #tpu.memory_space<vmem>>, vector<1x256x256xbf16>
    %39 = vector.shape_cast %38 : vector<1x256x256xbf16> to vector<256x256xbf16>
    %cst_18 = arith.constant dense<0.000000e+00> : vector<32x256xf32>
    %40 = tpu.matmul %37, %39, %cst_18 {dimension_numbers = #tpu.dot_dimension_numbers<[1], [0], [0], [1], [0, 0, 1, 1], [], []>} : vector<32x256xbf16>, vector<256x256xbf16>, vector<32x256xf32> -> vector<32x256xf32>
    %41 = arith.addf %36, %40 : vector<32x256xf32>
    %42 = vector.extract_strided_slice %18 {offsets = [8, 0], sizes = [32, 256], strides = [1, 1]} : vector<48x256xbf16> to vector<32x256xbf16>
    %c3 = arith.constant 3 : index
    %c0_19 = arith.constant 0 : index
    %c0_20 = arith.constant 0 : index
    %43 = vector.load %arg3[%c3, %c0_19, %c0_20] : memref<9x256x256xbf16, #tpu.memory_space<vmem>>, vector<1x256x256xbf16>
    %44 = vector.shape_cast %43 : vector<1x256x256xbf16> to vector<256x256xbf16>
    %cst_21 = arith.constant dense<0.000000e+00> : vector<32x256xf32>
    %45 = tpu.matmul %42, %44, %cst_21 {dimension_numbers = #tpu.dot_dimension_numbers<[1], [0], [0], [1], [0, 0, 1, 1], [], []>} : vector<32x256xbf16>, vector<256x256xbf16>, vector<32x256xf32> -> vector<32x256xf32>
    %46 = arith.addf %41, %45 : vector<32x256xf32>
    %47 = vector.extract_strided_slice %7 {offsets = [8, 0], sizes = [32, 256], strides = [1, 1]} : vector<48x256xbf16> to vector<32x256xbf16>
    %c4 = arith.constant 4 : index
    %c0_22 = arith.constant 0 : index
    %c0_23 = arith.constant 0 : index
    %48 = vector.load %arg3[%c4, %c0_22, %c0_23] : memref<9x256x256xbf16, #tpu.memory_space<vmem>>, vector<1x256x256xbf16>
    %49 = vector.shape_cast %48 : vector<1x256x256xbf16> to vector<256x256xbf16>
    %cst_24 = arith.constant dense<0.000000e+00> : vector<32x256xf32>
    %50 = tpu.matmul %47, %49, %cst_24 {dimension_numbers = #tpu.dot_dimension_numbers<[1], [0], [0], [1], [0, 0, 1, 1], [], []>} : vector<32x256xbf16>, vector<256x256xbf16>, vector<32x256xf32> -> vector<32x256xf32>
    %51 = arith.addf %46, %50 : vector<32x256xf32>
    %52 = vector.extract_strided_slice %25 {offsets = [8, 0], sizes = [32, 256], strides = [1, 1]} : vector<48x256xbf16> to vector<32x256xbf16>
    %c5 = arith.constant 5 : index
    %c0_25 = arith.constant 0 : index
    %c0_26 = arith.constant 0 : index
    %53 = vector.load %arg3[%c5, %c0_25, %c0_26] : memref<9x256x256xbf16, #tpu.memory_space<vmem>>, vector<1x256x256xbf16>
    %54 = vector.shape_cast %53 : vector<1x256x256xbf16> to vector<256x256xbf16>
    %cst_27 = arith.constant dense<0.000000e+00> : vector<32x256xf32>
    %55 = tpu.matmul %52, %54, %cst_27 {dimension_numbers = #tpu.dot_dimension_numbers<[1], [0], [0], [1], [0, 0, 1, 1], [], []>} : vector<32x256xbf16>, vector<256x256xbf16>, vector<32x256xf32> -> vector<32x256xf32>
    %56 = arith.addf %51, %55 : vector<32x256xf32>
    %57 = vector.extract_strided_slice %18 {offsets = [16, 0], sizes = [32, 256], strides = [1, 1]} : vector<48x256xbf16> to vector<32x256xbf16>
    %c6 = arith.constant 6 : index
    %c0_28 = arith.constant 0 : index
    %c0_29 = arith.constant 0 : index
    %58 = vector.load %arg3[%c6, %c0_28, %c0_29] : memref<9x256x256xbf16, #tpu.memory_space<vmem>>, vector<1x256x256xbf16>
    %59 = vector.shape_cast %58 : vector<1x256x256xbf16> to vector<256x256xbf16>
    %cst_30 = arith.constant dense<0.000000e+00> : vector<32x256xf32>
    %60 = tpu.matmul %57, %59, %cst_30 {dimension_numbers = #tpu.dot_dimension_numbers<[1], [0], [0], [1], [0, 0, 1, 1], [], []>} : vector<32x256xbf16>, vector<256x256xbf16>, vector<32x256xf32> -> vector<32x256xf32>
    %61 = arith.addf %56, %60 : vector<32x256xf32>
    %62 = vector.extract_strided_slice %7 {offsets = [16, 0], sizes = [32, 256], strides = [1, 1]} : vector<48x256xbf16> to vector<32x256xbf16>
    %c7 = arith.constant 7 : index
    %c0_31 = arith.constant 0 : index
    %c0_32 = arith.constant 0 : index
    %63 = vector.load %arg3[%c7, %c0_31, %c0_32] : memref<9x256x256xbf16, #tpu.memory_space<vmem>>, vector<1x256x256xbf16>
    %64 = vector.shape_cast %63 : vector<1x256x256xbf16> to vector<256x256xbf16>
    %cst_33 = arith.constant dense<0.000000e+00> : vector<32x256xf32>
    %65 = tpu.matmul %62, %64, %cst_33 {dimension_numbers = #tpu.dot_dimension_numbers<[1], [0], [0], [1], [0, 0, 1, 1], [], []>} : vector<32x256xbf16>, vector<256x256xbf16>, vector<32x256xf32> -> vector<32x256xf32>
    %66 = arith.addf %61, %65 : vector<32x256xf32>
    %67 = vector.extract_strided_slice %25 {offsets = [16, 0], sizes = [32, 256], strides = [1, 1]} : vector<48x256xbf16> to vector<32x256xbf16>
    %c8 = arith.constant 8 : index
    %c0_34 = arith.constant 0 : index
    %c0_35 = arith.constant 0 : index
    %68 = vector.load %arg3[%c8, %c0_34, %c0_35] : memref<9x256x256xbf16, #tpu.memory_space<vmem>>, vector<1x256x256xbf16>
    %69 = vector.shape_cast %68 : vector<1x256x256xbf16> to vector<256x256xbf16>
    %cst_36 = arith.constant dense<0.000000e+00> : vector<32x256xf32>
    %70 = tpu.matmul %67, %69, %cst_36 {dimension_numbers = #tpu.dot_dimension_numbers<[1], [0], [0], [1], [0, 0, 1, 1], [], []>} : vector<32x256xbf16>, vector<256x256xbf16>, vector<32x256xf32> -> vector<32x256xf32>
    %71 = arith.addf %66, %70 : vector<32x256xf32>
    %c0_37 = arith.constant 0 : index
    %c0_38 = arith.constant 0 : index
    %72 = vector.load %arg4[%c0_37, %c0_38] : memref<1x256xf32, #tpu.memory_space<vmem>>, vector<1x256xf32>
    %73 = vector.broadcast %72 : vector<1x256xf32> to vector<32x256xf32>
    %74 = arith.addf %71, %73 : vector<32x256xf32>
    %cst_39 = arith.constant 0.000000e+00 : f32
    %75 = vector.broadcast %cst_39 : f32 to vector<32x256xf32>
    %76 = arith.maximumf %74, %75 : vector<32x256xf32>
    %77 = vector.shape_cast %76 : vector<32x256xf32> to vector<4x8x256xf32>
    %cst_40 = arith.constant dense<0.000000e+00> : vector<256xf32>
    %78 = vector.multi_reduction <add>, %76, %cst_40 [0] : vector<32x256xf32> to vector<256xf32>
    %79 = vector.shape_cast %78 : vector<256xf32> to vector<1x256xf32>
    %80 = arith.mulf %76, %76 : vector<32x256xf32>
    %cst_41 = arith.constant dense<0.000000e+00> : vector<256xf32>
    %81 = vector.multi_reduction <add>, %80, %cst_41 [0] : vector<32x256xf32> to vector<256xf32>
    %82 = vector.shape_cast %81 : vector<256xf32> to vector<1x256xf32>
    %83 = tpu.concatenate %79, %82 in 0 : vector<1x256xf32>, vector<1x256xf32> -> vector<2x256xf32>
    %c0_42 = arith.constant 0 : index
    %c0_43 = arith.constant 0 : index
    %c0_44 = arith.constant 0 : index
    %84 = vector.load %arg6[%c0_42, %c0_43, %c0_44] : memref<1x2x256xf32, #tpu.memory_space<vmem>>, vector<1x2x256xf32>
    %85 = vector.shape_cast %84 : vector<1x2x256xf32> to vector<2x256xf32>
    %86 = vector.shape_cast %83 : vector<2x256xf32> to vector<1x2x256xf32>
    tpu.vector_store %arg6[%c0_42, %c0_43, %c0_44], %86 {strides = array<i32>} : memref<1x2x256xf32, #tpu.memory_space<vmem>>, vector<1x2x256xf32>,
    %87 = arith.truncf %77 : vector<4x8x256xf32> to vector<4x8x256xbf16>
    %c0_45 = arith.constant 0 : index
    %c0_46 = arith.constant 0 : index
    %c0_47 = arith.constant 0 : index
    %88 = vector.load %arg5[%c0_45, %c0_46, %c0_47] : memref<4x8x256xbf16, #tpu.memory_space<vmem>>, vector<4x8x256xbf16>
    tpu.vector_store %arg5[%c0_45, %c0_46, %c0_47], %87 {strides = array<i32>} : memref<4x8x256xbf16, #tpu.memory_space<vmem>>, vector<4x8x256xbf16>,
    return
  }
  func.func @transform_0(%arg0: i32) -> (i32, i32) {
    %c0_i32 = arith.constant 0 : i32
    %c0_i32_0 = arith.constant 0 : i32
    %c0_i32_1 = arith.constant 0 : i32
    return %c0_i32, %c0_i32_0 : i32, i32
  }
  func.func @transform_1(%arg0: i32) -> (i32, i32, i32) {
    %c0_i32 = arith.constant 0 : i32
    %c0_i32_0 = arith.constant 0 : i32
    %c0_i32_1 = arith.constant 0 : i32
    return %c0_i32, %arg0, %c0_i32_0 : i32, i32, i32
  }
  func.func @transform_2(%arg0: i32) -> (i32, i32, i32) {
    %c0_i32 = arith.constant 0 : i32
    %c0_i32_0 = arith.constant 0 : i32
    %c0_i32_1 = arith.constant 0 : i32
    %c0_i32_2 = arith.constant 0 : i32
    return %c0_i32, %c0_i32_0, %c0_i32_1 : i32, i32, i32
  }
  func.func @transform_3(%arg0: i32) -> (i32, i32) {
    %c0_i32 = arith.constant 0 : i32
    %c0_i32_0 = arith.constant 0 : i32
    %c0_i32_1 = arith.constant 0 : i32
    return %c0_i32, %c0_i32_0 : i32, i32
  }
  func.func @transform_4(%arg0: i32) -> (i32, i32, i32) {
    %c0_i32 = arith.constant 0 : i32
    %c0_i32_0 = arith.constant 0 : i32
    %c0_i32_1 = arith.constant 0 : i32
    return %c0_i32, %arg0, %c0_i32_0 : i32, i32, i32
  }
  func.func @transform_5(%arg0: i32) -> (i32, i32, i32) {
    %c0_i32 = arith.constant 0 : i32
    %c0_i32_0 = arith.constant 0 : i32
    %c0_i32_1 = arith.constant 0 : i32
    return %arg0, %c0_i32, %c0_i32_0 : i32, i32, i32
  }
}

module attributes {stable_mosaic.version = 11 : i64} {
  func.func @_vae_head_kernel(%arg0: i32, %arg1: memref<4x8x256xbf16, #tpu.memory_space<vmem>>, %arg2: memref<256x256xbf16, #tpu.memory_space<vmem>>, %arg3: memref<1x256xf32, #tpu.memory_space<vmem>>, %arg4: memref<4x8x128xf32, #tpu.memory_space<vmem>>, %arg5: memref<4x8x128xf32, #tpu.memory_space<vmem>>) attributes {dimension_semantics = [#tpu.dimension_semantics<parallel>], iteration_bounds = array<i64: 1>, scalar_prefetch = 0 : i64, scratch_operands = 0 : i64, tpu.core_type = #tpu.core_type<tc>, window_params = [{transform_indices = @transform_0, window_bounds = array<i64: 4, 8, 256>}, {pipeline_mode = #tpu.pipeline_mode<synchronous>, transform_indices = @transform_1, window_bounds = array<i64: 256, 256>}, {pipeline_mode = #tpu.pipeline_mode<synchronous>, transform_indices = @transform_2, window_bounds = array<i64: 1, 256>}, {transform_indices = @transform_3, window_bounds = array<i64: 4, 8, 128>}, {transform_indices = @transform_4, window_bounds = array<i64: 4, 8, 128>}]} {
    %c0 = arith.constant 0 : index
    %c0_0 = arith.constant 0 : index
    %c0_1 = arith.constant 0 : index
    %0 = vector.load %arg1[%c0, %c0_0, %c0_1] : memref<4x8x256xbf16, #tpu.memory_space<vmem>>, vector<4x8x256xbf16>
    %1 = vector.shape_cast %0 : vector<4x8x256xbf16> to vector<32x256xbf16>
    %c0_2 = arith.constant 0 : index
    %c0_3 = arith.constant 0 : index
    %2 = vector.load %arg2[%c0_2, %c0_3] : memref<256x256xbf16, #tpu.memory_space<vmem>>, vector<256x256xbf16>
    %cst = arith.constant dense<0.000000e+00> : vector<32x256xf32>
    %3 = tpu.matmul %1, %2, %cst {dimension_numbers = #tpu.dot_dimension_numbers<[1], [0], [0], [1], [0, 0, 1, 1], [], []>} : vector<32x256xbf16>, vector<256x256xbf16>, vector<32x256xf32> -> vector<32x256xf32>
    %c0_4 = arith.constant 0 : index
    %c0_5 = arith.constant 0 : index
    %4 = vector.load %arg3[%c0_4, %c0_5] : memref<1x256xf32, #tpu.memory_space<vmem>>, vector<1x256xf32>
    %5 = vector.broadcast %4 : vector<1x256xf32> to vector<32x256xf32>
    %6 = arith.addf %3, %5 : vector<32x256xf32>
    %7 = vector.extract_strided_slice %6 {offsets = [0, 0], sizes = [32, 128], strides = [1, 1]} : vector<32x256xf32> to vector<32x128xf32>
    %8 = vector.extract_strided_slice %6 {offsets = [0, 128], sizes = [32, 128], strides = [1, 1]} : vector<32x256xf32> to vector<32x128xf32>
    %c0_6 = arith.constant 0 : index
    %c0_7 = arith.constant 0 : index
    %c0_8 = arith.constant 0 : index
    %9 = vector.load %arg4[%c0_6, %c0_7, %c0_8] : memref<4x8x128xf32, #tpu.memory_space<vmem>>, vector<4x8x128xf32>
    %10 = vector.shape_cast %9 : vector<4x8x128xf32> to vector<32x128xf32>
    %cst_9 = arith.constant 5.000000e-01 : f32
    %11 = vector.broadcast %cst_9 : f32 to vector<32x128xf32>
    %12 = arith.mulf %11, %8 : vector<32x128xf32>
    %13 = math.exp %12 : vector<32x128xf32>
    %14 = arith.mulf %10, %13 : vector<32x128xf32>
    %15 = arith.addf %7, %14 : vector<32x128xf32>
    %16 = vector.shape_cast %15 : vector<32x128xf32> to vector<4x8x128xf32>
    %c0_10 = arith.constant 0 : index
    %c0_11 = arith.constant 0 : index
    %c0_12 = arith.constant 0 : index
    %17 = vector.load %arg5[%c0_10, %c0_11, %c0_12] : memref<4x8x128xf32, #tpu.memory_space<vmem>>, vector<4x8x128xf32>
    tpu.vector_store %arg5[%c0_10, %c0_11, %c0_12], %16 {strides = array<i32>} : memref<4x8x128xf32, #tpu.memory_space<vmem>>, vector<4x8x128xf32>,
    return
  }
  func.func @transform_0(%arg0: i32) -> (i32, i32, i32) {
    %c0_i32 = arith.constant 0 : i32
    %c0_i32_0 = arith.constant 0 : i32
    %c0_i32_1 = arith.constant 0 : i32
    return %c0_i32, %arg0, %c0_i32_0 : i32, i32, i32
  }
  func.func @transform_1(%arg0: i32) -> (i32, i32) {
    %c0_i32 = arith.constant 0 : i32
    %c0_i32_0 = arith.constant 0 : i32
    %c0_i32_1 = arith.constant 0 : i32
    return %c0_i32, %c0_i32_0 : i32, i32
  }
  func.func @transform_2(%arg0: i32) -> (i32, i32) {
    %c0_i32 = arith.constant 0 : i32
    %c0_i32_0 = arith.constant 0 : i32
    %c0_i32_1 = arith.constant 0 : i32
    return %c0_i32, %c0_i32_0 : i32, i32
  }
  func.func @transform_3(%arg0: i32) -> (i32, i32, i32) {
    %c0_i32 = arith.constant 0 : i32
    %c0_i32_0 = arith.constant 0 : i32
    %c0_i32_1 = arith.constant 0 : i32
    return %c0_i32, %arg0, %c0_i32_0 : i32, i32, i32
  }
  func.func @transform_4(%arg0: i32) -> (i32, i32, i32) {
    %c0_i32 = arith.constant 0 : i32
    %c0_i32_0 = arith.constant 0 : i32
    %c0_i32_1 = arith.constant 0 : i32
    return %c0_i32, %arg0, %c0_i32_0 : i32, i32, i32
  }
}

</mosaic_0001>

<llo_original>
// kernel: vae_encoder_forward.4
$region0: #{vae_encoder_forward.4}
  #allocation0 [shape = 'u32[]', space=smem, size = 0x4, offset = 0x4, fixed_abs, tag = 'smem constant byte address 0x4 - core index']
  #allocation1 [shape = 'u32[144,128]{1,0:T(1,128)}', space=vmem, size = 0x12000, scoped, tag = 'internal scratch']
  %s0 = inlined_call_operand.hbm [shape: bf16[1,128], index: 0, kind: input, shape index: {}]
  %s1 = inlined_call_operand.hbm [shape: bf16[8,16,128], index: 1, kind: input, shape index: {}]
  %s2 = inlined_call_operand.hbm [shape: bf16[9,128,128], index: 2, kind: input, shape index: {}]
  %s3 = inlined_call_operand.hbm [shape: f32[1,128], index: 3, kind: input, shape index: {}]
  %s4 = inlined_call_operand.hbm [shape: bf16[8,16,128], index: 4, kind: output, shape index: {0}]
  %s5 = inlined_call_operand.hbm [shape: f32[1,2,128], index: 5, kind: output, shape index: {1}]
  %6 = xla_tuple %s4, %s5
  %s7 = sld [smem:[#allocation0]]
  $region50: #{vae_encoder_forward.4} parent=0
    _
  %s9 = ssub.s32 1, %s7
  %s10 = scalar_select 0, %s9, %s7
  $region1: #{vae_encoder_forward.4} parent=0
    #allocation2 [shape = 'u8[512]{0}', space=vmem, size = 0x400, scoped, tag = 'input window, operand 0, single buffered']
    #allocation3 [shape = 's32[1]{0}', space=sflag, size = 0x4, scoped, tag = 'scoped memory for vae_encoder_forward.4']
    #allocation4 [shape = 's32[1]{0}', space=sflag, size = 0x4, scoped, tag = 'scoped memory for vae_encoder_forward.4']
    #allocation5 [shape = 'u8[32768]{0}', space=vmem, size = 0x8000, scoped, tag = 'input window, operand 1, single buffered']
    #allocation6 [shape = 's32[1]{0}', space=sflag, size = 0x4, scoped, tag = 'scoped memory for vae_encoder_forward.4']
    #allocation7 [shape = 'u8[294912]{0}', space=vmem, size = 0x48000, scoped, tag = 'input window, operand 2, single buffered']
    #allocation8 [shape = 'u8[512]{0}', space=vmem, size = 0x400, scoped, tag = 'input window, operand 3, single buffered']
    #allocation9 [shape = 's32[1]{0}', space=sflag, size = 0x4, scoped, tag = 'scoped memory for vae_encoder_forward.4']
    #allocation10 [shape = 'u8[32768]{0}', space=vmem, size = 0x8000, scoped, tag = 'output window, operand 0, single buffered']
    #allocation11 [shape = 'u8[1024]{0}', space=vmem, size = 0x400, scoped, tag = 'output window, operand 1, single buffered']
    #allocation12 [shape = 's32[1]{0}', space=sflag, size = 0x4, scoped, tag = 'scoped memory for vae_encoder_forward.4']
    %11 = vsyncpa [#allocation3], 0
    %12 = vsyncpa [#allocation6], 0
    %13 = vsyncpa [#allocation9], 0
    %14 = vsyncpa [#allocation4], 0
    %15 = vsyncpa [#allocation12], 0
    // Predicated region
    $region2: #{vae_encoder_forward.4} parent=1 // pred_check
      _
    $region3: #{vae_encoder_forward.4} parent=1 // pred_check_branch
      %17 = sbr.rel (0) target = $region5
    $region4: #{vae_encoder_forward.4} parent=1 // pred_region
      %s19 = ssub.s32 16, 16
      %20 = vsyncadd [#allocation3], %s19
      %s22 = sshll.u32 [#allocation2], 4
      %s23 = int_to_ptr.vmem [resolvable:$true] %s22
      %25 = dma.hbm_to_vmem [thread:$0]  %s0, 16, %s23, [#allocation3]
    $region5: #{vae_encoder_forward.4} parent=1 // pred_fallthru
      _
    // Predicated region
    $region6: #{vae_encoder_forward.4} parent=1 // pred_check
      _
    $region7: #{vae_encoder_forward.4} parent=1 // pred_check_branch
      %27 = sbr.rel (0) target = $region9
    $region8: #{vae_encoder_forward.4} parent=1 // pred_region
      %s29 = ssub.s32 1024, 1024
      %30 = vsyncadd [#allocation6], %s29
      %s31 = sshll.u32 [#allocation5], 4
      %s32 = int_to_ptr.vmem [resolvable:$true] %s31
      %37 = dma.hbm_to_vmem [thread:$0]  %s1, 1024, %s32, [#allocation6], 64, 64, 4
    $region9: #{vae_encoder_forward.4} parent=1 // pred_fallthru
      _
    // Predicated region
    $region10: #{vae_encoder_forward.4} parent=1 // pred_check
      _
    $region11: #{vae_encoder_forward.4} parent=1 // pred_check_branch
      %39 = sbr.rel (0) target = $region13
    $region12: #{vae_encoder_forward.4} parent=1 // pred_region
      %s41 = ssub.s32 9216, 9216
      %42 = vsyncadd [#allocation6], %s41
      %s43 = sshll.u32 [#allocation7], 4
      %s44 = int_to_ptr.vmem [resolvable:$true] %s43
      %49 = dma.hbm_to_vmem [thread:$0]  %s2, 9216, %s44, [#allocation6], 64, 64, 4
    $region13: #{vae_encoder_forward.4} parent=1 // pred_fallthru
      _
    // Predicated region
    $region14: #{vae_encoder_forward.4} parent=1 // pred_check
      _
    $region15: #{vae_encoder_forward.4} parent=1 // pred_check_branch
      %51 = sbr.rel (0) target = $region17
    $region16: #{vae_encoder_forward.4} parent=1 // pred_region
      %s53 = ssub.s32 16, 16
      %54 = vsyncadd [#allocation9], %s53
      %s56 = sshll.u32 [#allocation8], 4
      %s57 = int_to_ptr.vmem [resolvable:$true] %s56
      %59 = dma.hbm_to_vmem [thread:$0]  %s3, 16, %s57, [#allocation9]
    $region17: #{vae_encoder_forward.4} parent=1 // pred_fallthru
      _
    // Predicated region
    $region18: #{vae_encoder_forward.4} parent=1 // pred_check
      _
    $region19: #{vae_encoder_forward.4} parent=1 // pred_check_branch
      %61 = sbr.rel (0) target = $region21
    $region20: #{vae_encoder_forward.4} parent=1 // pred_region
      %62 = dma.done [#allocation3], 16
    $region21: #{vae_encoder_forward.4} parent=1 // pred_fallthru
      _
    // Predicated region
    $region22: #{vae_encoder_forward.4} parent=1 // pred_check
      _
    $region23: #{vae_encoder_forward.4} parent=1 // pred_check_branch
      %64 = sbr.rel (0) target = $region25
    $region24: #{vae_encoder_forward.4} parent=1 // pred_region
      %65 = dma.done [#allocation6], 1024
    $region25: #{vae_encoder_forward.4} parent=1 // pred_fallthru
      _
    // Predicated region
    $region26: #{vae_encoder_forward.4} parent=1 // pred_check
      _
    $region27: #{vae_encoder_forward.4} parent=1 // pred_check_branch
      %67 = sbr.rel (0) target = $region29
    $region28: #{vae_encoder_forward.4} parent=1 // pred_region
      %68 = dma.done [#allocation6], 9216
    $region29: #{vae_encoder_forward.4} parent=1 // pred_fallthru
      _
    // Predicated region
    $region30: #{vae_encoder_forward.4} parent=1 // pred_check
      _
    $region31: #{vae_encoder_forward.4} parent=1 // pred_check_branch
      %70 = sbr.rel (0) target = $region33
    $region32: #{vae_encoder_forward.4} parent=1 // pred_region
      %71 = dma.done [#allocation9], 16
    $region33: #{vae_encoder_forward.4} parent=1 // pred_fallthru
      _
    %v75 = vld [vmem:[#allocation5] sm:$0xf]
    %v76 = vld [vmem:[#allocation5 + $0x4] sm:$0xf]
    %v77 = vld [vmem:[#allocation5 + $0x8] sm:$0xf]
    %v78 = vld [vmem:[#allocation5 + $0xc] sm:$0xf]
    %v79 = vld [vmem:[#allocation5 + $0x10] sm:$0xf]
    %v80 = vld [vmem:[#allocation5 + $0x14] sm:$0xf]
    %v81 = vld [vmem:[#allocation5 + $0x18] sm:$0xf]
    %v82 = vld [vmem:[#allocation5 + $0x1c] sm:$0xf]
    %v83 = vld [vmem:[#allocation5 + $0x20] sm:$0xf]
    %v84 = vld [vmem:[#allocation5 + $0x24] sm:$0xf]
    %v85 = vld [vmem:[#allocation5 + $0x28] sm:$0xf]
    %v86 = vld [vmem:[#allocation5 + $0x2c] sm:$0xf]
    %v87 = vld [vmem:[#allocation5 + $0x30] sm:$0xf]
    %v88 = vld [vmem:[#allocation5 + $0x34] sm:$0xf]
    %v89 = vld [vmem:[#allocation5 + $0x38] sm:$0xf]
    %v90 = vld [vmem:[#allocation5 + $0x3c] sm:$0xf]
    %v91 = vld [vmem:[#allocation2] sm:$0x1]
    %v93 = vpack.i.b16 %v91, %v91
    %v95 = vlaneseq
    %v96 = vshrl.u32 %v95, 7
    %v97 = vsub.s32 0, %v96
    %v98 = vrot.slane %v93, %v97
    %v100 = vunpack.c.l.b16 %v98
    %v101 = vpack.c.b16 %v100, %v100
    %v103 = vadd.bf16 %v75, %v101
    %v104 = vadd.bf16 %v76, %v101
    %v105 = vadd.bf16 %v77, %v101
    %v106 = vadd.bf16 %v78, %v101
    %v107 = vadd.bf16 %v79, %v101
    %v108 = vadd.bf16 %v80, %v101
    %v109 = vadd.bf16 %v81, %v101
    %v110 = vadd.bf16 %v82, %v101
    %v111 = vadd.bf16 %v83, %v101
    %v112 = vadd.bf16 %v84, %v101
    %v113 = vadd.bf16 %v85, %v101
    %v114 = vadd.bf16 %v86, %v101
    %v115 = vadd.bf16 %v87, %v101
    %v116 = vadd.bf16 %v88, %v101
    %v117 = vadd.bf16 %v89, %v101
    %v118 = vadd.bf16 %v90, %v101
    %v135 = vunpack.c.l.b16 %v103
    %v136 = vunpack.c.l.b16 %v104
    %v137 = vunpack.c.l.b16 %v105
    %v138 = vunpack.c.l.b16 %v106
    %v139 = vunpack.c.l.b16 %v107
    %v140 = vunpack.c.l.b16 %v108
    %v141 = vunpack.c.l.b16 %v109
    %v142 = vunpack.c.l.b16 %v110
    %v143 = vunpack.c.l.b16 %v111
    %v144 = vunpack.c.l.b16 %v112
    %v145 = vunpack.c.l.b16 %v113
    %v146 = vunpack.c.l.b16 %v114
    %v147 = vunpack.c.l.b16 %v115
    %v148 = vunpack.c.l.b16 %v116
    %v149 = vunpack.c.l.b16 %v117
    %v150 = vunpack.c.l.b16 %v118
    %v151 = vpack.c.b16 %v136, %v135
    %v152 = vpack.c.b16 %v138, %v137
    %v153 = vpack.c.b16 %v140, %v139
    %v154 = vpack.c.b16 %v142, %v141
    %v155 = vpack.c.b16 %v144, %v143
    %v156 = vpack.c.b16 %v146, %v145
    %v157 = vpack.c.b16 %v148, %v147
    %v158 = vpack.c.b16 %v150, %v149
    %v167 = vlaneseq
    %v168 = vshrl.u32 %v167, 7
    %v169 = vadd.s32 %v168, 8
    %v170 = vadd.s32 %v168, 16
    %v171 = vadd.s32 %v168, 24
    %v172 = vadd.s32 %v168, 32
    %v173 = vadd.s32 %v168, 40
    %v174 = vadd.s32 %v168, 48
    %v175 = vadd.s32 %v168, 56
    %v176 = vadd.s32 %v168, 64
    %v177 = vadd.s32 %v168, 72
    %v178 = vadd.s32 %v168, 80
    %v179 = vadd.s32 %v168, 88
    %v180 = vadd.s32 %v168, 96
    %v181 = vadd.s32 %v168, 104
    %v182 = vadd.s32 %v168, 112
    %v183 = vadd.s32 %v168, 120
    %v184 = vadd.s32 %v168, 128
    %v185 = vadd.s32 %v168, 136
    %v186 = vadd.s32 %v168, 144
    %v187 = vadd.s32 %v168, 152
    %v188 = vand.u32 %v168, 7
    %v189 = vand.u32 %v169, 7
    %v190 = vand.u32 %v170, 7
    %v191 = vand.u32 %v171, 7
    %v192 = vand.u32 %v172, 7
    %v193 = vand.u32 %v173, 7
    %v194 = vand.u32 %v174, 7
    %v195 = vand.u32 %v175, 7
    %v196 = vand.u32 %v176, 7
    %v197 = vand.u32 %v177, 7
    %v198 = vand.u32 %v178, 7
    %v199 = vand.u32 %v179, 7
    %v200 = vand.u32 %v180, 7
    %v201 = vand.u32 %v181, 7
    %v202 = vand.u32 %v182, 7
    %v203 = vand.u32 %v183, 7
    %v204 = vand.u32 %v184, 7
    %v205 = vand.u32 %v185, 7
    %v206 = vand.u32 %v186, 7
    %v207 = vand.u32 %v187, 7
    %vm208 = vcmp.eq.s32.totalorder %v188, 0
    %vm209 = vcmp.eq.s32.totalorder %v189, 0
    %vm210 = vcmp.eq.s32.totalorder %v190, 0
    %vm211 = vcmp.eq.s32.totalorder %v191, 0
    %vm212 = vcmp.eq.s32.totalorder %v192, 0
    %vm213 = vcmp.eq.s32.totalorder %v193, 0
    %vm214 = vcmp.eq.s32.totalorder %v194, 0
    %vm215 = vcmp.eq.s32.totalorder %v195, 0
    %vm216 = vcmp.eq.s32.totalorder %v196, 0
    %vm217 = vcmp.eq.s32.totalorder %v197, 0
    %vm218 = vcmp.eq.s32.totalorder %v198, 0
    %vm219 = vcmp.eq.s32.totalorder %v199, 0
    %vm220 = vcmp.eq.s32.totalorder %v200, 0
    %vm221 = vcmp.eq.s32.totalorder %v201, 0
    %vm222 = vcmp.eq.s32.totalorder %v202, 0
    %vm223 = vcmp.eq.s32.totalorder %v203, 0
    %vm224 = vcmp.eq.s32.totalorder %v204, 0
    %vm225 = vcmp.eq.s32.totalorder %v205, 0
    %vm226 = vcmp.eq.s32.totalorder %v206, 0
    %vm227 = vcmp.eq.s32.totalorder %v207, 0
    %vm228 = vsmask.f32 256
    %v230 = vshrl.u32 0, 16
    %v232 = vrot.slane %v230, 7
    %v233 = vshll.u32 0, 16
    %v235 = vor.u32 %v232, %v233
    %v237 = vshrl.u32 %v151, 16
    %v239 = vrot.slane %v237, 7
    %v240 = vshll.u32 %v151, 16
    %v242 = vor.u32 %v239, %v240
    %v243 = vsel %vm228, %v232, %v242
    %v245 = vshrl.u32 %v152, 16
    %v247 = vrot.slane %v245, 7
    %v248 = vshll.u32 %v152, 16
    %v250 = vor.u32 %v247, %v248
    %v251 = vsel %vm228, %v239, %v250
    %v253 = vshrl.u32 %v153, 16
    %v255 = vrot.slane %v253, 7
    %v256 = vshll.u32 %v153, 16
    %v258 = vor.u32 %v255, %v256
    %v259 = vsel %vm228, %v247, %v258
    %v261 = vshrl.u32 %v154, 16
    %v263 = vrot.slane %v261, 7
    %v264 = vshll.u32 %v154, 16
    %v266 = vor.u32 %v263, %v264
    %v267 = vsel %vm228, %v255, %v266
    %v269 = vshrl.u32 %v155, 16
    %v271 = vrot.slane %v269, 7
    %v272 = vshll.u32 %v155, 16
    %v274 = vor.u32 %v271, %v272
    %v275 = vsel %vm228, %v263, %v274
    %v277 = vshrl.u32 %v156, 16
    %v279 = vrot.slane %v277, 7
    %v280 = vshll.u32 %v156, 16
    %v282 = vor.u32 %v279, %v280
    %v283 = vsel %vm228, %v271, %v282
    %v285 = vshrl.u32 %v157, 16
    %v287 = vrot.slane %v285, 7
    %v288 = vshll.u32 %v157, 16
    %v290 = vor.u32 %v287, %v288
    %v291 = vsel %vm228, %v279, %v290
    %v293 = vshrl.u32 %v158, 16
    %v295 = vrot.slane %v293, 7
    %v296 = vshll.u32 %v158, 16
    %v298 = vor.u32 %v295, %v296
    %v299 = vsel %vm228, %v287, %v298
    %v300 = vsel %vm228, %v295, %v235
    %vm311 = vcmask 1040384
    %vm312 = vmand %vm311, %vm228
    %v313 = vsel %vm312, 0, %v235
    %vm314 = vmpackc.low %vm208, %vm208
    %vm315 = vmpackc.low %vm209, %vm209
    %vm316 = vmpackc.low %vm210, %vm210
    %vm317 = vmpackc.low %vm211, %vm211
    %vm318 = vmpackc.low %vm212, %vm212
    %vm319 = vmpackc.low %vm213, %vm213
    %vm320 = vmpackc.low %vm214, %vm214
    %vm321 = vmpackc.low %vm215, %vm215
    %vm322 = vmpackc.low %vm216, %vm216
    %vm323 = vmpackc.low %vm217, %vm217
    %vm324 = vmpackc.low %vm218, %vm218
    %vm325 = vmpackc.low %vm219, %vm219
    %vm326 = vmpackc.low %vm220, %vm220
    %vm327 = vmpackc.low %vm221, %vm221
    %vm328 = vmpackc.low %vm222, %vm222
    %vm329 = vmpackc.low %vm223, %vm223
    %vm330 = vmpackc.low %vm224, %vm224
    %vm331 = vmpackc.low %vm225, %vm225
    %vm332 = vmpackc.low %vm226, %vm226
    %vm333 = vmpackc.low %vm227, %vm227
    %v334 = vsel %vm314, 65537, 0
    %v335 = vsel %vm315, 65537, 0
    %v336 = vsel %vm316, 65537, 0
    %v337 = vsel %vm317, 65537, 0
    %v338 = vsel %vm318, 65537, 0
    %v339 = vsel %vm319, 65537, 0
    %v340 = vsel %vm320, 65537, 0
    %v341 = vsel %vm321, 65537, 0
    %v342 = vsel %vm322, 65537, 0
    %v343 = vsel %vm323, 65537, 0
    %v344 = vsel %vm324, 65537, 0
    %v345 = vsel %vm325, 65537, 0
    %v346 = vsel %vm326, 65537, 0
    %v347 = vsel %vm327, 65537, 0
    %v348 = vsel %vm328, 65537, 0
    %v349 = vsel %vm329, 65537, 0
    %v350 = vsel %vm330, 65537, 0
    %v351 = vsel %vm331, 65537, 0
    %v352 = vsel %vm332, 65537, 0
    %v353 = vsel %vm333, 65537, 0
    %v354 = vunpack.c.l.b16 %v334
    %v355 = vunpack.c.l.b16 %v335
    %v356 = vunpack.c.l.b16 %v336
    %v357 = vunpack.c.l.b16 %v337
    %v358 = vunpack.c.l.b16 %v338
    %v359 = vunpack.c.l.b16 %v339
    %v360 = vunpack.c.l.b16 %v340
    %v361 = vunpack.c.l.b16 %v341
    %v362 = vunpack.c.l.b16 %v342
    %v363 = vunpack.c.l.b16 %v343
    %v364 = vunpack.c.l.b16 %v344
    %v365 = vunpack.c.l.b16 %v345
    %v366 = vunpack.c.l.b16 %v346
    %v367 = vunpack.c.l.b16 %v347
    %v368 = vunpack.c.l.b16 %v348
    %v369 = vunpack.c.l.b16 %v349
    %v370 = vunpack.c.l.b16 %v350
    %v371 = vunpack.c.l.b16 %v351
    %v372 = vunpack.c.l.b16 %v352
    %v373 = vunpack.c.l.b16 %v353
    %v374 = vpack.c.b16 %v355, %v354
    %v375 = vpack.c.b16 %v357, %v356
    %v376 = vpack.c.b16 %v359, %v358
    %v377 = vpack.c.b16 %v361, %v360
    %v378 = vpack.c.b16 %v363, %v362
    %v379 = vpack.c.b16 %v365, %v364
    %v380 = vpack.c.b16 %v367, %v366
    %v381 = vpack.c.b16 %v369, %v368
    %v382 = vpack.c.b16 %v371, %v370
    %v383 = vpack.c.b16 %v373, %v372
    %vm384 = vcmp.ne.s16.totalorder %v374, 0
    %vm385 = vcmp.ne.s16.totalorder %v375, 0
    %vm386 = vcmp.ne.s16.totalorder %v376, 0
    %vm387 = vcmp.ne.s16.totalorder %v377, 0
    %vm388 = vcmp.ne.s16.totalorder %v378, 0
    %vm389 = vcmp.ne.s16.totalorder %v379, 0
    %vm390 = vcmp.ne.s16.totalorder %v380, 0
    %vm391 = vcmp.ne.s16.totalorder %v381, 0
    %vm392 = vcmp.ne.s16.totalorder %v382, 0
    %vm393 = vcmp.ne.s16.totalorder %v383, 0
    %v394 = vsel %vm384, 0, %v313
    %v395 = vsel %vm385, 0, %v243
    %v396 = vsel %vm386, 0, %v251
    %v397 = vsel %vm387, 0, %v259
    %v398 = vsel %vm388, 0, %v267
    %v399 = vsel %vm389, 0, %v275
    %v400 = vsel %vm390, 0, %v283
    %v401 = vsel %vm391, 0, %v291
    %v402 = vsel %vm392, 0, %v299
    %v403 = vsel %vm393, 0, %v300
    %vm404 = vcmp.eq.s32.totalorder %v188, 7
    %vm405 = vcmp.eq.s32.totalorder %v189, 7
    %vm406 = vcmp.eq.s32.totalorder %v190, 7
    %vm407 = vcmp.eq.s32.totalorder %v191, 7
    %vm408 = vcmp.eq.s32.totalorder %v192, 7
    %vm409 = vcmp.eq.s32.totalorder %v193, 7
    %vm410 = vcmp.eq.s32.totalorder %v194, 7
    %vm411 = vcmp.eq.s32.totalorder %v195, 7
    %vm412 = vcmp.eq.s32.totalorder %v196, 7
    %vm413 = vcmp.eq.s32.totalorder %v197, 7
    %vm414 = vcmp.eq.s32.totalorder %v198, 7
    %vm415 = vcmp.eq.s32.totalorder %v199, 7
    %vm416 = vcmp.eq.s32.totalorder %v200, 7
    %vm417 = vcmp.eq.s32.totalorder %v201, 7
    %vm418 = vcmp.eq.s32.totalorder %v202, 7
    %vm419 = vcmp.eq.s32.totalorder %v203, 7
    %vm420 = vcmp.eq.s32.totalorder %v204, 7
    %vm421 = vcmp.eq.s32.totalorder %v205, 7
    %vm422 = vcmp.eq.s32.totalorder %v206, 7
    %vm423 = vcmp.eq.s32.totalorder %v207, 7
    %vm424 = vsmask.f32 7424
    %v425 = vrot.slane %v233, 1
    %v426 = vor.u32 %v230, %v425
    %v427 = vrot.slane %v240, 1
    %v428 = vsel %vm424, %v426, %v427
    %v429 = vor.u32 %v237, %v427
    %v430 = vrot.slane %v248, 1
    %v431 = vsel %vm424, %v429, %v430
    %v432 = vor.u32 %v245, %v430
    %v433 = vrot.slane %v256, 1
    %v434 = vsel %vm424, %v432, %v433
    %v435 = vor.u32 %v253, %v433
    %v436 = vrot.slane %v264, 1
    %v437 = vsel %vm424, %v435, %v436
    %v438 = vor.u32 %v261, %v436
    %v439 = vrot.slane %v272, 1
    %v440 = vsel %vm424, %v438, %v439
    %v441 = vor.u32 %v269, %v439
    %v442 = vrot.slane %v280, 1
    %v443 = vsel %vm424, %v441, %v442
    %v444 = vor.u32 %v277, %v442
    %v445 = vrot.slane %v288, 1
    %v446 = vsel %vm424, %v444, %v445
    %v447 = vor.u32 %v285, %v445
    %v448 = vrot.slane %v296, 1
    %v449 = vsel %vm424, %v447, %v448
    %v450 = vor.u32 %v293, %v448
    %v451 = vsel %vm424, %v450, %v425
    %vm462 = vcmask 1047552
    %vm463 = vmand %vm462, %vm424
    %v464 = vsel %vm463, %v426, 0
    %vm465 = vmpackc.low %vm404, %vm404
    %vm466 = vmpackc.low %vm405, %vm405
    %vm467 = vmpackc.low %vm406, %vm406
    %vm468 = vmpackc.low %vm407, %vm407
    %vm469 = vmpackc.low %vm408, %vm408
    %vm470 = vmpackc.low %vm409, %vm409
    %vm471 = vmpackc.low %vm410, %vm410
    %vm472 = vmpackc.low %vm411, %vm411
    %vm473 = vmpackc.low %vm412, %vm412
    %vm474 = vmpackc.low %vm413, %vm413
    %vm475 = vmpackc.low %vm414, %vm414
    %vm476 = vmpackc.low %vm415, %vm415
    %vm477 = vmpackc.low %vm416, %vm416
    %vm478 = vmpackc.low %vm417, %vm417
    %vm479 = vmpackc.low %vm418, %vm418
    %vm480 = vmpackc.low %vm419, %vm419
    %vm481 = vmpackc.low %vm420, %vm420
    %vm482 = vmpackc.low %vm421, %vm421
    %vm483 = vmpackc.low %vm422, %vm422
    %vm484 = vmpackc.low %vm423, %vm423
    %v485 = vsel %vm465, 65537, 0
    %v486 = vsel %vm466, 65537, 0
    %v487 = vsel %vm467, 65537, 0
    %v488 = vsel %vm468, 65537, 0
    %v489 = vsel %vm469, 65537, 0
    %v490 = vsel %vm470, 65537, 0
    %v491 = vsel %vm471, 65537, 0
    %v492 = vsel %vm472, 65537, 0
    %v493 = vsel %vm473, 65537, 0
    %v494 = vsel %vm474, 65537, 0
    %v495 = vsel %vm475, 65537, 0
    %v496 = vsel %vm476, 65537, 0
    %v497 = vsel %vm477, 65537, 0
    %v498 = vsel %vm478, 65537, 0
    %v499 = vsel %vm479, 65537, 0
    %v500 = vsel %vm480, 65537, 0
    %v501 = vsel %vm481, 65537, 0
    %v502 = vsel %vm482, 65537, 0
    %v503 = vsel %vm483, 65537, 0
    %v504 = vsel %vm484, 65537, 0
    %v505 = vunpack.c.l.b16 %v485
    %v506 = vunpack.c.l.b16 %v486
    %v507 = vunpack.c.l.b16 %v487
    %v508 = vunpack.c.l.b16 %v488
    %v509 = vunpack.c.l.b16 %v489
    %v510 = vunpack.c.l.b16 %v490
    %v511 = vunpack.c.l.b16 %v491
    %v512 = vunpack.c.l.b16 %v492
    %v513 = vunpack.c.l.b16 %v493
    %v514 = vunpack.c.l.b16 %v494
    %v515 = vunpack.c.l.b16 %v495
    %v516 = vunpack.c.l.b16 %v496
    %v517 = vunpack.c.l.b16 %v497
    %v518 = vunpack.c.l.b16 %v498
    %v519 = vunpack.c.l.b16 %v499
    %v520 = vunpack.c.l.b16 %v500
    %v521 = vunpack.c.l.b16 %v501
    %v522 = vunpack.c.l.b16 %v502
    %v523 = vunpack.c.l.b16 %v503
    %v524 = vunpack.c.l.b16 %v504
    %v525 = vpack.c.b16 %v506, %v505
    %v526 = vpack.c.b16 %v508, %v507
    %v527 = vpack.c.b16 %v510, %v509
    %v528 = vpack.c.b16 %v512, %v511
    %v529 = vpack.c.b16 %v514, %v513
    %v530 = vpack.c.b16 %v516, %v515
    %v531 = vpack.c.b16 %v518, %v517
    %v532 = vpack.c.b16 %v520, %v519
    %v533 = vpack.c.b16 %v522, %v521
    %v534 = vpack.c.b16 %v524, %v523
    %vm535 = vcmp.ne.s16.totalorder %v525, 0
    %vm536 = vcmp.ne.s16.totalorder %v526, 0
    %vm537 = vcmp.ne.s16.totalorder %v527, 0
    %vm538 = vcmp.ne.s16.totalorder %v528, 0
    %vm539 = vcmp.ne.s16.totalorder %v529, 0
    %vm540 = vcmp.ne.s16.totalorder %v530, 0
    %vm541 = vcmp.ne.s16.totalorder %v531, 0
    %vm542 = vcmp.ne.s16.totalorder %v532, 0
    %vm543 = vcmp.ne.s16.totalorder %v533, 0
    %vm544 = vcmp.ne.s16.totalorder %v534, 0
    %v545 = vsel %vm535, 0, %v428
    %v546 = vsel %vm536, 0, %v431
    %v547 = vsel %vm537, 0, %v434
    %v548 = vsel %vm538, 0, %v437
    %v549 = vsel %vm539, 0, %v440
    %v550 = vsel %vm540, 0, %v443
    %v551 = vsel %vm541, 0, %v446
    %v552 = vsel %vm542, 0, %v449
    %v553 = vsel %vm543, 0, %v451
    %v554 = vsel %vm544, 0, %v464
    %v555 = vld [vmem:[#allocation7] sm:$0xf]
    %v556 = vld [vmem:[#allocation7 + $0x4] sm:$0xf]
    %v557 = vld [vmem:[#allocation7 + $0x8] sm:$0xf]
    %v558 = vld [vmem:[#allocation7 + $0xc] sm:$0xf]
    %v559 = vld [vmem:[#allocation7 + $0x10] sm:$0xf]
    %v560 = vld [vmem:[#allocation7 + $0x14] sm:$0xf]
    %v561 = vld [vmem:[#allocation7 + $0x18] sm:$0xf]
    %v562 = vld [vmem:[#allocation7 + $0x1c] sm:$0xf]
    %v563 = vld [vmem:[#allocation7 + $0x20] sm:$0xf]
    %v564 = vld [vmem:[#allocation7 + $0x24] sm:$0xf]
    %v565 = vld [vmem:[#allocation7 + $0x28] sm:$0xf]
    %v566 = vld [vmem:[#allocation7 + $0x2c] sm:$0xf]
    %v567 = vld [vmem:[#allocation7 + $0x30] sm:$0xf]
    %v568 = vld [vmem:[#allocation7 + $0x34] sm:$0xf]
    %v569 = vld [vmem:[#allocation7 + $0x38] sm:$0xf]
    %v570 = vld [vmem:[#allocation7 + $0x3c] sm:$0xf]
    %s571 = scalar_lea.vmem [#allocation7], 64
    %v572 = vld [vmem:[%s571] sm:$0xf]
    %v573 = vld [vmem:[%s571 + $0x4] sm:$0xf]
    %v574 = vld [vmem:[%s571 + $0x8] sm:$0xf]
    %v575 = vld [vmem:[%s571 + $0xc] sm:$0xf]
    %v576 = vld [vmem:[%s571 + $0x10] sm:$0xf]
    %v577 = vld [vmem:[%s571 + $0x14] sm:$0xf]
    %v578 = vld [vmem:[%s571 + $0x18] sm:$0xf]
    %v579 = vld [vmem:[%s571 + $0x1c] sm:$0xf]
    %v580 = vld [vmem:[%s571 + $0x20] sm:$0xf]
    %v581 = vld [vmem:[%s571 + $0x24] sm:$0xf]
    %v582 = vld [vmem:[%s571 + $0x28] sm:$0xf]
    %v583 = vld [vmem:[%s571 + $0x2c] sm:$0xf]
    %v584 = vld [vmem:[%s571 + $0x30] sm:$0xf]
    %v585 = vld [vmem:[%s571 + $0x34] sm:$0xf]
    %v586 = vld [vmem:[%s571 + $0x38] sm:$0xf]
    %v587 = vld [vmem:[%s571 + $0x3c] sm:$0xf]
    %v604 = vunpack.c.l.b16 %v572
    %v605 = vunpack.c.l.b16 %v573
    %v606 = vunpack.c.l.b16 %v574
    %v607 = vunpack.c.l.b16 %v575
    %v608 = vunpack.c.l.b16 %v576
    %v609 = vunpack.c.l.b16 %v577
    %v610 = vunpack.c.l.b16 %v578
    %v611 = vunpack.c.l.b16 %v579
    %v612 = vunpack.c.l.b16 %v580
    %v613 = vunpack.c.l.b16 %v581
    %v614 = vunpack.c.l.b16 %v582
    %v615 = vunpack.c.l.b16 %v583
    %v616 = vunpack.c.l.b16 %v584
    %v617 = vunpack.c.l.b16 %v585
    %v618 = vunpack.c.l.b16 %v586
    %v619 = vunpack.c.l.b16 %v587
    %v620 = vpack.c.b16 %v605, %v604
    %v621 = vpack.c.b16 %v607, %v606
    %v622 = vpack.c.b16 %v609, %v608
    %v623 = vpack.c.b16 %v611, %v610
    %v624 = vpack.c.b16 %v613, %v612
    %v625 = vpack.c.b16 %v615, %v614
    %v626 = vpack.c.b16 %v617, %v616
    %v627 = vpack.c.b16 %v619, %v618
    %636 = vmatprep.subr.bf16.mxu0 0
    %637 = vmatpush1.bf16.msra.mxu0 %v620
    %638 = vmatprep.subr.bf16.mxu0 0
    %639 = vmatpush1.bf16.msra.mxu0 %v621
    %640 = vmatprep.subr.bf16.mxu0 0
    %641 = vmatpush1.bf16.msra.mxu0 %v622
    %642 = vmatprep.subr.bf16.mxu0 0
    %643 = vmatpush1.bf16.msra.mxu0 %v623
    %644 = vmatprep.subr.bf16.mxu0 0
    %645 = vmatpush1.bf16.msra.mxu0 %v624
    %646 = vmatprep.subr.bf16.mxu0 0
    %647 = vmatpush1.bf16.msra.mxu0 %v625
    %648 = vmatprep.subr.bf16.mxu0 0
    %649 = vmatpush1.bf16.msra.mxu0 %v626
    %650 = vmatprep.subr.bf16.mxu0 0
    %651 = vmatpush1.bf16.msra.mxu0 %v627
    %652 = vmatprep.subr.bf16.mxu0 0
    %653 = vmatpush1.bf16.msra.mxu0 0
    %654 = vmatprep.subr.bf16.mxu0 0
    %655 = vmatpush1.bf16.msra.mxu0 0
    %656 = vmatprep.subr.bf16.mxu0 0
    %657 = vmatpush1.bf16.msra.mxu0 0
    %658 = vmatprep.subr.bf16.mxu0 0
    %659 = vmatpush1.bf16.msra.mxu0 0
    %660 = vmatprep.subr.bf16.mxu0 0
    %661 = vmatpush1.bf16.msra.mxu0 0
    %662 = vmatprep.subr.bf16.mxu0 0
    %663 = vmatpush1.bf16.msra.mxu0 0
    %664 = vmatprep.subr.bf16.mxu0 0
    %665 = vmatpush1.bf16.msra.mxu0 0
    %666 = vmatprep.subr.bf16.mxu0 0
    %667 = vmatpush1.bf16.msra.mxu0 0
    %668 = vmatprep.mubr.bf16.mxu0 0
    %669 = vmatmul.mubr.bf16.gmra.mrb[0].mxu0 0
    %v670 = vpop.f32.mrb[0].mxu0
    %v671 = vadd.f32 0.0, %v670
    %v672 = vpop.f32.mrb[0].mxu0
    %v673 = vpop.f32.mrb[0].mxu0
    %v674 = vadd.f32 0.0, %v673
    %v675 = vpop.f32.mrb[0].mxu0
    %676 = vmatprep.mubr.bf16.mxu0 0
    %677 = vmatmul.mubr.bf16.gmra.mrb[0].mxu0 %v151
    %v678 = vpop.f32.mrb[0].mxu0
    %v679 = vadd.f32 0.0, %v678
    %v680 = vpop.f32.mrb[0].mxu0
    %v681 = vpop.f32.mrb[0].mxu0
    %v682 = vadd.f32 0.0, %v681
    %v683 = vpop.f32.mrb[0].mxu0
    %684 = vmatprep.mubr.bf16.mxu0 0
    %685 = vmatmul.mubr.bf16.gmra.mrb[0].mxu0 %v152
    %v686 = vpop.f32.mrb[0].mxu0
    %v687 = vadd.f32 0.0, %v686
    %v688 = vpop.f32.mrb[0].mxu0
    %v689 = vpop.f32.mrb[0].mxu0
    %v690 = vadd.f32 0.0, %v689
    %v691 = vpop.f32.mrb[0].mxu0
    %692 = vmatprep.mubr.bf16.mxu0 0
    %693 = vmatmul.mubr.bf16.gmra.mrb[0].mxu0 %v153
    %v694 = vpop.f32.mrb[0].mxu0
    %v695 = vadd.f32 0.0, %v694
    %v696 = vpop.f32.mrb[0].mxu0
    %v697 = vpop.f32.mrb[0].mxu0
    %v698 = vadd.f32 0.0, %v697
    %v699 = vpop.f32.mrb[0].mxu0
    %700 = vmatprep.mubr.bf16.mxu0 0
    %701 = vmatmul.mubr.bf16.gmra.mrb[0].mxu0 %v154
    %v702 = vpop.f32.mrb[0].mxu0
    %v703 = vadd.f32 0.0, %v702
    %v704 = vpop.f32.mrb[0].mxu0
    %v705 = vpop.f32.mrb[0].mxu0
    %v706 = vadd.f32 0.0, %v705
    %v707 = vpop.f32.mrb[0].mxu0
    %708 = vmatprep.mubr.bf16.mxu0 0
    %709 = vmatmul.mubr.bf16.gmra.mrb[0].mxu0 %v155
    %v710 = vpop.f32.mrb[0].mxu0
    %v711 = vadd.f32 0.0, %v710
    %v712 = vpop.f32.mrb[0].mxu0
    %v713 = vpop.f32.mrb[0].mxu0
    %v714 = vadd.f32 0.0, %v713
    %v715 = vpop.f32.mrb[0].mxu0
    %716 = vmatprep.mubr.bf16.mxu0 0
    %717 = vmatmul.mubr.bf16.gmra.mrb[0].mxu0 %v156
    %v718 = vpop.f32.mrb[0].mxu0
    %v719 = vadd.f32 0.0, %v718
    %v720 = vpop.f32.mrb[0].mxu0
    %v721 = vpop.f32.mrb[0].mxu0
    %v722 = vadd.f32 0.0, %v721
    %v723 = vpop.f32.mrb[0].mxu0
    %724 = vmatprep.mubr.bf16.mxu0 0
    %725 = vmatmul.mubr.bf16.gmra.mrb[0].mxu0 %v157
    %v726 = vpop.f32.mrb[0].mxu0
    %v727 = vadd.f32 0.0, %v726
    %v728 = vpop.f32.mrb[0].mxu0
    %v729 = vpop.f32.mrb[0].mxu0
    %v730 = vadd.f32 0.0, %v729
    %v731 = vpop.f32.mrb[0].mxu0
    %732 = vdwg.mxu0
    %v749 = vunpack.c.l.b16 %v555
    %v750 = vunpack.c.l.b16 %v556
    %v751 = vunpack.c.l.b16 %v557
    %v752 = vunpack.c.l.b16 %v558
    %v753 = vunpack.c.l.b16 %v559
    %v754 = vunpack.c.l.b16 %v560
    %v755 = vunpack.c.l.b16 %v561
    %v756 = vunpack.c.l.b16 %v562
    %v757 = vunpack.c.l.b16 %v563
    %v758 = vunpack.c.l.b16 %v564
    %v759 = vunpack.c.l.b16 %v565
    %v760 = vunpack.c.l.b16 %v566
    %v761 = vunpack.c.l.b16 %v567
    %v762 = vunpack.c.l.b16 %v568
    %v763 = vunpack.c.l.b16 %v569
    %v764 = vunpack.c.l.b16 %v570
    %v765 = vpack.c.b16 %v750, %v749
    %v766 = vpack.c.b16 %v752, %v751
    %v767 = vpack.c.b16 %v754, %v753
    %v768 = vpack.c.b16 %v756, %v755
    %v769 = vpack.c.b16 %v758, %v757
    %v770 = vpack.c.b16 %v760, %v759
    %v771 = vpack.c.b16 %v762, %v761
    %v772 = vpack.c.b16 %v764, %v763
    %781 = vmatprep.subr.bf16.mxu0 0
    %782 = vmatpush1.bf16.msra.mxu0 %v765
    %783 = vmatprep.subr.bf16.mxu0 0
    %784 = vmatpush1.bf16.msra.mxu0 %v766
    %785 = vmatprep.subr.bf16.mxu0 0
    %786 = vmatpush1.bf16.msra.mxu0 %v767
    %787 = vmatprep.subr.bf16.mxu0 0
    %788 = vmatpush1.bf16.msra.mxu0 %v768
    %789 = vmatprep.subr.bf16.mxu0 0
    %790 = vmatpush1.bf16.msra.mxu0 %v769
    %791 = vmatprep.subr.bf16.mxu0 0
    %792 = vmatpush1.bf16.msra.mxu0 %v770
    %793 = vmatprep.subr.bf16.mxu0 0
    %794 = vmatpush1.bf16.msra.mxu0 %v771
    %795 = vmatprep.subr.bf16.mxu0 0
    %796 = vmatpush1.bf16.msra.mxu0 %v772
    %797 = vmatprep.subr.bf16.mxu0 0
    %798 = vmatpush1.bf16.msra.mxu0 0
    %799 = vmatprep.subr.bf16.mxu0 0
    %800 = vmatpush1.bf16.msra.mxu0 0
    %801 = vmatprep.subr.bf16.mxu0 0
    %802 = vmatpush1.bf16.msra.mxu0 0
    %803 = vmatprep.subr.bf16.mxu0 0
    %804 = vmatpush1.bf16.msra.mxu0 0
    %805 = vmatprep.subr.bf16.mxu0 0
    %806 = vmatpush1.bf16.msra.mxu0 0
    %807 = vmatprep.subr.bf16.mxu0 0
    %808 = vmatpush1.bf16.msra.mxu0 0
    %809 = vmatprep.subr.bf16.mxu0 0
    %810 = vmatpush1.bf16.msra.mxu0 0
    %811 = vmatprep.subr.bf16.mxu0 0
    %812 = vmatpush1.bf16.msra.mxu0 0
    %813 = vmatprep.mubr.bf16.mxu0 0
    %814 = vmatmul.mubr.bf16.gmra.mrb[0].mxu0 %v394
    %v815 = vpop.f32.mrb[0].mxu0
    %v816 = vadd.f32 %v671, %v815
    %v817 = vpop.f32.mrb[0].mxu0
    %v818 = vpop.f32.mrb[0].mxu0
    %v819 = vadd.f32 %v674, %v818
    %v820 = vpop.f32.mrb[0].mxu0
    %821 = vmatprep.mubr.bf16.mxu0 0
    %822 = vmatmul.mubr.bf16.gmra.mrb[0].mxu0 %v395
    %v823 = vpop.f32.mrb[0].mxu0
    %v824 = vadd.f32 %v679, %v823
    %v825 = vpop.f32.mrb[0].mxu0
    %v826 = vpop.f32.mrb[0].mxu0
    %v827 = vadd.f32 %v682, %v826
    %v828 = vpop.f32.mrb[0].mxu0
    %829 = vmatprep.mubr.bf16.mxu0 0
    %830 = vmatmul.mubr.bf16.gmra.mrb[0].mxu0 %v396
    %v831 = vpop.f32.mrb[0].mxu0
    %v832 = vadd.f32 %v687, %v831
    %v833 = vpop.f32.mrb[0].mxu0
    %v834 = vpop.f32.mrb[0].mxu0
    %v835 = vadd.f32 %v690, %v834
    %v836 = vpop.f32.mrb[0].mxu0
    %837 = vmatprep.mubr.bf16.mxu0 0
    %838 = vmatmul.mubr.bf16.gmra.mrb[0].mxu0 %v397
    %v839 = vpop.f32.mrb[0].mxu0
    %v840 = vadd.f32 %v695, %v839
    %v841 = vpop.f32.mrb[0].mxu0
    %v842 = vpop.f32.mrb[0].mxu0
    %v843 = vadd.f32 %v698, %v842
    %v844 = vpop.f32.mrb[0].mxu0
    %845 = vmatprep.mubr.bf16.mxu0 0
    %846 = vmatmul.mubr.bf16.gmra.mrb[0].mxu0 %v398
    %v847 = vpop.f32.mrb[0].mxu0
    %v848 = vadd.f32 %v703, %v847
    %v849 = vpop.f32.mrb[0].mxu0
    %v850 = vpop.f32.mrb[0].mxu0
    %v851 = vadd.f32 %v706, %v850
    %v852 = vpop.f32.mrb[0].mxu0
    %853 = vmatprep.mubr.bf16.mxu0 0
    %854 = vmatmul.mubr.bf16.gmra.mrb[0].mxu0 %v399
    %v855 = vpop.f32.mrb[0].mxu0
    %v856 = vadd.f32 %v711, %v855
    %v857 = vpop.f32.mrb[0].mxu0
    %v858 = vpop.f32.mrb[0].mxu0
    %v859 = vadd.f32 %v714, %v858
    %v860 = vpop.f32.mrb[0].mxu0
    %861 = vmatprep.mubr.bf16.mxu0 0
    %862 = vmatmul.mubr.bf16.gmra.mrb[0].mxu0 %v400
    %v863 = vpop.f32.mrb[0].mxu0
    %v864 = vadd.f32 %v719, %v863
    %v865 = vpop.f32.mrb[0].mxu0
    %v866 = vpop.f32.mrb[0].mxu0
    %v867 = vadd.f32 %v722, %v866
    %v868 = vpop.f32.mrb[0].mxu0
    %869 = vmatprep.mubr.bf16.mxu0 0
    %870 = vmatmul.mubr.bf16.gmra.mrb[0].mxu0 %v401
    %v871 = vpop.f32.mrb[0].mxu0
    %v872 = vadd.f32 %v727, %v871
    %v873 = vpop.f32.mrb[0].mxu0
    %v874 = vpop.f32.mrb[0].mxu0
    %v875 = vadd.f32 %v730, %v874
    %v876 = vpop.f32.mrb[0].mxu0
    %877 = vdwg.mxu0
    %s878 = scalar_lea.vmem [#allocation7], 128
    %v879 = vld [vmem:[%s878] sm:$0xf]
    %v880 = vld [vmem:[%s878 + $0x4] sm:$0xf]
    %v881 = vld [vmem:[%s878 + $0x8] sm:$0xf]
    %v882 = vld [vmem:[%s878 + $0xc] sm:$0xf]
    %v883 = vld [vmem:[%s878 + $0x10] sm:$0xf]
    %v884 = vld [vmem:[%s878 + $0x14] sm:$0xf]
    %v885 = vld [vmem:[%s878 + $0x18] sm:$0xf]
    %v886 = vld [vmem:[%s878 + $0x1c] sm:$0xf]
    %v887 = vld [vmem:[%s878 + $0x20] sm:$0xf]
    %v888 = vld [vmem:[%s878 + $0x24] sm:$0xf]
    %v889 = vld [vmem:[%s878 + $0x28] sm:$0xf]
    %v890 = vld [vmem:[%s878 + $0x2c] sm:$0xf]
    %v891 = vld [vmem:[%s878 + $0x30] sm:$0xf]
    %v892 = vld [vmem:[%s878 + $0x34] sm:$0xf]
    %v893 = vld [vmem:[%s878 + $0x38] sm:$0xf]
    %v894 = vld [vmem:[%s878 + $0x3c] sm:$0xf]
    %v911 = vunpack.c.l.b16 %v879
    %v912 = vunpack.c.l.b16 %v880
    %v913 = vunpack.c.l.b16 %v881
    %v914 = vunpack.c.l.b16 %v882
    %v915 = vunpack.c.l.b16 %v883
    %v916 = vunpack.c.l.b16 %v884
    %v917 = vunpack.c.l.b16 %v885
    %v918 = vunpack.c.l.b16 %v886
    %v919 = vunpack.c.l.b16 %v887
    %v920 = vunpack.c.l.b16 %v888
    %v921 = vunpack.c.l.b16 %v889
    %v922 = vunpack.c.l.b16 %v890
    %v923 = vunpack.c.l.b16 %v891
    %v924 = vunpack.c.l.b16 %v892
    %v925 = vunpack.c.l.b16 %v893
    %v926 = vunpack.c.l.b16 %v894
    %v927 = vpack.c.b16 %v912, %v911
    %v928 = vpack.c.b16 %v914, %v913
    %v929 = vpack.c.b16 %v916, %v915
    %v930 = vpack.c.b16 %v918, %v917
    %v931 = vpack.c.b16 %v920, %v919
    %v932 = vpack.c.b16 %v922, %v921
    %v933 = vpack.c.b16 %v924, %v923
    %v934 = vpack.c.b16 %v926, %v925
    %943 = vmatprep.subr.bf16.mxu0 0
    %944 = vmatpush1.bf16.msra.mxu0 %v927
    %945 = vmatprep.subr.bf16.mxu0 0
    %946 = vmatpush1.bf16.msra.mxu0 %v928
    %947 = vmatprep.subr.bf16.mxu0 0
    %948 = vmatpush1.bf16.msra.mxu0 %v929
    %949 = vmatprep.subr.bf16.mxu0 0
    %950 = vmatpush1.bf16.msra.mxu0 %v930
    %951 = vmatprep.subr.bf16.mxu0 0
    %952 = vmatpush1.bf16.msra.mxu0 %v931
    %953 = vmatprep.subr.bf16.mxu0 0
    %954 = vmatpush1.bf16.msra.mxu0 %v932
    %955 = vmatprep.subr.bf16.mxu0 0
    %956 = vmatpush1.bf16.msra.mxu0 %v933
    %957 = vmatprep.subr.bf16.mxu0 0
    %958 = vmatpush1.bf16.msra.mxu0 %v934
    %959 = vmatprep.subr.bf16.mxu0 0
    %960 = vmatpush1.bf16.msra.mxu0 0
    %961 = vmatprep.subr.bf16.mxu0 0
    %962 = vmatpush1.bf16.msra.mxu0 0
    %963 = vmatprep.subr.bf16.mxu0 0
    %964 = vmatpush1.bf16.msra.mxu0 0
    %965 = vmatprep.subr.bf16.mxu0 0
    %966 = vmatpush1.bf16.msra.mxu0 0
    %967 = vmatprep.subr.bf16.mxu0 0
    %968 = vmatpush1.bf16.msra.mxu0 0
    %969 = vmatprep.subr.bf16.mxu0 0
    %970 = vmatpush1.bf16.msra.mxu0 0
    %971 = vmatprep.subr.bf16.mxu0 0
    %972 = vmatpush1.bf16.msra.mxu0 0
    %973 = vmatprep.subr.bf16.mxu0 0
    %974 = vmatpush1.bf16.msra.mxu0 0
    %975 = vmatprep.mubr.bf16.mxu0 0
    %976 = vmatmul.mubr.bf16.gmra.mrb[0].mxu0 %v545
    %v977 = vpop.f32.mrb[0].mxu0
    %v978 = vadd.f32 0.0, %v977
    %v979 = vpop.f32.mrb[0].mxu0
    %v980 = vpop.f32.mrb[0].mxu0
    %v981 = vadd.f32 0.0, %v980
    %v982 = vpop.f32.mrb[0].mxu0
    %983 = vmatprep.mubr.bf16.mxu0 0
    %984 = vmatmul.mubr.bf16.gmra.mrb[0].mxu0 %v546
    %v985 = vpop.f32.mrb[0].mxu0
    %v986 = vadd.f32 0.0, %v985
    %v987 = vpop.f32.mrb[0].mxu0
    %v988 = vpop.f32.mrb[0].mxu0
    %v989 = vadd.f32 0.0, %v988
    %v990 = vpop.f32.mrb[0].mxu0
    %991 = vmatprep.mubr.bf16.mxu0 0
    %992 = vmatmul.mubr.bf16.gmra.mrb[0].mxu0 %v547
    %v993 = vpop.f32.mrb[0].mxu0
    %v994 = vadd.f32 0.0, %v993
    %v995 = vpop.f32.mrb[0].mxu0
    %v996 = vpop.f32.mrb[0].mxu0
    %v997 = vadd.f32 0.0, %v996
    %v998 = vpop.f32.mrb[0].mxu0
    %999 = vmatprep.mubr.bf16.mxu0 0
    %1000 = vmatmul.mubr.bf16.gmra.mrb[0].mxu0 %v548
    %v1001 = vpop.f32.mrb[0].mxu0
    %v1002 = vadd.f32 0.0, %v1001
    %v1003 = vpop.f32.mrb[0].mxu0
    %v1004 = vpop.f32.mrb[0].mxu0
    %v1005 = vadd.f32 0.0, %v1004
    %v1006 = vpop.f32.mrb[0].mxu0
    %1007 = vmatprep.mubr.bf16.mxu0 0
    %1008 = vmatmul.mubr.bf16.gmra.mrb[0].mxu0 %v549
    %v1009 = vpop.f32.mrb[0].mxu0
    %v1010 = vadd.f32 0.0, %v1009
    %v1011 = vpop.f32.mrb[0].mxu0
    %v1012 = vpop.f32.mrb[0].mxu0
    %v1013 = vadd.f32 0.0, %v1012
    %v1014 = vpop.f32.mrb[0].mxu0
    %1015 = vmatprep.mubr.bf16.mxu0 0
    %1016 = vmatmul.mubr.bf16.gmra.mrb[0].mxu0 %v550
    %v1017 = vpop.f32.mrb[0].mxu0
    %v1018 = vadd.f32 0.0, %v1017
    %v1019 = vpop.f32.mrb[0].mxu0
    %v1020 = vpop.f32.mrb[0].mxu0
    %v1021 = vadd.f32 0.0, %v1020
    %v1022 = vpop.f32.mrb[0].mxu0
    %1023 = vmatprep.mubr.bf16.mxu0 0
    %1024 = vmatmul.mubr.bf16.gmra.mrb[0].mxu0 %v551
    %v1025 = vpop.f32.mrb[0].mxu0
    %v1026 = vadd.f32 0.0, %v1025
    %v1027 = vpop.f32.mrb[0].mxu0
    %v1028 = vpop.f32.mrb[0].mxu0
    %v1029 = vadd.f32 0.0, %v1028
    %v1030 = vpop.f32.mrb[0].mxu0
    %1031 = vmatprep.mubr.bf16.mxu0 0
    %1032 = vmatmul.mubr.bf16.gmra.mrb[0].mxu0 %v552
    %v1033 = vpop.f32.mrb[0].mxu0
    %v1034 = vadd.f32 0.0, %v1033
    %v1035 = vpop.f32.mrb[0].mxu0
    %v1036 = vpop.f32.mrb[0].mxu0
    %v1037 = vadd.f32 0.0, %v1036
    %v1038 = vpop.f32.mrb[0].mxu0
    %1039 = vdwg.mxu0
    %v1040 = vadd.f32 %v816, %v978
    %v1041 = vadd.f32 %v819, %v981
    %v1042 = vadd.f32 %v824, %v986
    %v1043 = vadd.f32 %v827, %v989
    %v1044 = vadd.f32 %v832, %v994
    %v1045 = vadd.f32 %v835, %v997
    %v1046 = vadd.f32 %v840, %v1002
    %v1047 = vadd.f32 %v843, %v1005
    %v1048 = vadd.f32 %v848, %v1010
    %v1049 = vadd.f32 %v851, %v1013
    %v1050 = vadd.f32 %v856, %v1018
    %v1051 = vadd.f32 %v859, %v1021
    %v1052 = vadd.f32 %v864, %v1026
    %v1053 = vadd.f32 %v867, %v1029
    %v1054 = vadd.f32 %v872, %v1034
    %v1055 = vadd.f32 %v875, %v1037
    %s1056 = scalar_lea.vmem [#allocation7], 192
    %v1057 = vld [vmem:[%s1056] sm:$0xf]
    %v1058 = vld [vmem:[%s1056 + $0x4] sm:$0xf]
    %v1059 = vld [vmem:[%s1056 + $0x8] sm:$0xf]
    %v1060 = vld [vmem:[%s1056 + $0xc] sm:$0xf]
    %v1061 = vld [vmem:[%s1056 + $0x10] sm:$0xf]
    %v1062 = vld [vmem:[%s1056 + $0x14] sm:$0xf]
    %v1063 = vld [vmem:[%s1056 + $0x18] sm:$0xf]
    %v1064 = vld [vmem:[%s1056 + $0x1c] sm:$0xf]
    %v1065 = vld [vmem:[%s1056 + $0x20] sm:$0xf]
    %v1066 = vld [vmem:[%s1056 + $0x24] sm:$0xf]
    %v1067 = vld [vmem:[%s1056 + $0x28] sm:$0xf]
    %v1068 = vld [vmem:[%s1056 + $0x2c] sm:$0xf]
    %v1069 = vld [vmem:[%s1056 + $0x30] sm:$0xf]
    %v1070 = vld [vmem:[%s1056 + $0x34] sm:$0xf]
    %v1071 = vld [vmem:[%s1056 + $0x38] sm:$0xf]
    %v1072 = vld [vmem:[%s1056 + $0x3c] sm:$0xf]
    %v1089 = vunpack.c.l.b16 %v1057
    %v1090 = vunpack.c.l.b16 %v1058
    %v1091 = vunpack.c.l.b16 %v1059
    %v1092 = vunpack.c.l.b16 %v1060
    %v1093 = vunpack.c.l.b16 %v1061
    %v1094 = vunpack.c.l.b16 %v1062
    %v1095 = vunpack.c.l.b16 %v1063
    %v1096 = vunpack.c.l.b16 %v1064
    %v1097 = vunpack.c.l.b16 %v1065
    %v1098 = vunpack.c.l.b16 %v1066
    %v1099 = vunpack.c.l.b16 %v1067
    %v1100 = vunpack.c.l.b16 %v1068
    %v1101 = vunpack.c.l.b16 %v1069
    %v1102 = vunpack.c.l.b16 %v1070
    %v1103 = vunpack.c.l.b16 %v1071
    %v1104 = vunpack.c.l.b16 %v1072
    %v1105 = vpack.c.b16 %v1090, %v1089
    %v1106 = vpack.c.b16 %v1092, %v1091
    %v1107 = vpack.c.b16 %v1094, %v1093
    %v1108 = vpack.c.b16 %v1096, %v1095
    %v1109 = vpack.c.b16 %v1098, %v1097
    %v1110 = vpack.c.b16 %v1100, %v1099
    %v1111 = vpack.c.b16 %v1102, %v1101
    %v1112 = vpack.c.b16 %v1104, %v1103
    %1121 = vmatprep.subr.bf16.mxu0 0
    %1122 = vmatpush1.bf16.msra.mxu0 %v1105
    %1123 = vmatprep.subr.bf16.mxu0 0
    %1124 = vmatpush1.bf16.msra.mxu0 %v1106
    %1125 = vmatprep.subr.bf16.mxu0 0
    %1126 = vmatpush1.bf16.msra.mxu0 %v1107
    %1127 = vmatprep.subr.bf16.mxu0 0
    %1128 = vmatpush1.bf16.msra.mxu0 %v1108
    %1129 = vmatprep.subr.bf16.mxu0 0
    %1130 = vmatpush1.bf16.msra.mxu0 %v1109
    %1131 = vmatprep.subr.bf16.mxu0 0
    %1132 = vmatpush1.bf16.msra.mxu0 %v1110
    %1133 = vmatprep.subr.bf16.mxu0 0
    %1134 = vmatpush1.bf16.msra.mxu0 %v1111
    %1135 = vmatprep.subr.bf16.mxu0 0
    %1136 = vmatpush1.bf16.msra.mxu0 %v1112
    %1137 = vmatprep.subr.bf16.mxu0 0
    %1138 = vmatpush1.bf16.msra.mxu0 0
    %1139 = vmatprep.subr.bf16.mxu0 0
    %1140 = vmatpush1.bf16.msra.mxu0 0
    %1141 = vmatprep.subr.bf16.mxu0 0
    %1142 = vmatpush1.bf16.msra.mxu0 0
    %1143 = vmatprep.subr.bf16.mxu0 0
    %1144 = vmatpush1.bf16.msra.mxu0 0
    %1145 = vmatprep.subr.bf16.mxu0 0
    %1146 = vmatpush1.bf16.msra.mxu0 0
    %1147 = vmatprep.subr.bf16.mxu0 0
    %1148 = vmatpush1.bf16.msra.mxu0 0
    %1149 = vmatprep.subr.bf16.mxu0 0
    %1150 = vmatpush1.bf16.msra.mxu0 0
    %1151 = vmatprep.subr.bf16.mxu0 0
    %1152 = vmatpush1.bf16.msra.mxu0 0
    %1153 = vmatprep.mubr.bf16.mxu0 0
    %1154 = vmatmul.mubr.bf16.gmra.mrb[0].mxu0 %v395
    %v1155 = vpop.f32.mrb[0].mxu0
    %v1156 = vadd.f32 0.0, %v1155
    %v1157 = vpop.f32.mrb[0].mxu0
    %v1158 = vpop.f32.mrb[0].mxu0
    %v1159 = vadd.f32 0.0, %v1158
    %v1160 = vpop.f32.mrb[0].mxu0
    %1161 = vmatprep.mubr.bf16.mxu0 0
    %1162 = vmatmul.mubr.bf16.gmra.mrb[0].mxu0 %v396
    %v1163 = vpop.f32.mrb[0].mxu0
    %v1164 = vadd.f32 0.0, %v1163
    %v1165 = vpop.f32.mrb[0].mxu0
    %v1166 = vpop.f32.mrb[0].mxu0
    %v1167 = vadd.f32 0.0, %v1166
    %v1168 = vpop.f32.mrb[0].mxu0
    %1169 = vmatprep.mubr.bf16.mxu0 0
    %1170 = vmatmul.mubr.bf16.gmra.mrb[0].mxu0 %v397
    %v1171 = vpop.f32.mrb[0].mxu0
    %v1172 = vadd.f32 0.0, %v1171
    %v1173 = vpop.f32.mrb[0].mxu0
    %v1174 = vpop.f32.mrb[0].mxu0
    %v1175 = vadd.f32 0.0, %v1174
    %v1176 = vpop.f32.mrb[0].mxu0
    %1177 = vmatprep.mubr.bf16.mxu0 0
    %1178 = vmatmul.mubr.bf16.gmra.mrb[0].mxu0 %v398
    %v1179 = vpop.f32.mrb[0].mxu0
    %v1180 = vadd.f32 0.0, %v1179
    %v1181 = vpop.f32.mrb[0].mxu0
    %v1182 = vpop.f32.mrb[0].mxu0
    %v1183 = vadd.f32 0.0, %v1182
    %v1184 = vpop.f32.mrb[0].mxu0
    %1185 = vmatprep.mubr.bf16.mxu0 0
    %1186 = vmatmul.mubr.bf16.gmra.mrb[0].mxu0 %v399
    %v1187 = vpop.f32.mrb[0].mxu0
    %v1188 = vadd.f32 0.0, %v1187
    %v1189 = vpop.f32.mrb[0].mxu0
    %v1190 = vpop.f32.mrb[0].mxu0
    %v1191 = vadd.f32 0.0, %v1190
    %v1192 = vpop.f32.mrb[0].mxu0
    %1193 = vmatprep.mubr.bf16.mxu0 0
    %1194 = vmatmul.mubr.bf16.gmra.mrb[0].mxu0 %v400
    %v1195 = vpop.f32.mrb[0].mxu0
    %v1196 = vadd.f32 0.0, %v1195
    %v1197 = vpop.f32.mrb[0].mxu0
    %v1198 = vpop.f32.mrb[0].mxu0
    %v1199 = vadd.f32 0.0, %v1198
    %v1200 = vpop.f32.mrb[0].mxu0
    %1201 = vmatprep.mubr.bf16.mxu0 0
    %1202 = vmatmul.mubr.bf16.gmra.mrb[0].mxu0 %v401
    %v1203 = vpop.f32.mrb[0].mxu0
    %v1204 = vadd.f32 0.0, %v1203
    %v1205 = vpop.f32.mrb[0].mxu0
    %v1206 = vpop.f32.mrb[0].mxu0
    %v1207 = vadd.f32 0.0, %v1206
    %v1208 = vpop.f32.mrb[0].mxu0
    %1209 = vmatprep.mubr.bf16.mxu0 0
    %1210 = vmatmul.mubr.bf16.gmra.mrb[0].mxu0 %v402
    %v1211 = vpop.f32.mrb[0].mxu0
    %v1212 = vadd.f32 0.0, %v1211
    %v1213 = vpop.f32.mrb[0].mxu0
    %v1214 = vpop.f32.mrb[0].mxu0
    %v1215 = vadd.f32 0.0, %v1214
    %v1216 = vpop.f32.mrb[0].mxu0
    %1217 = vdwg.mxu0
    %v1218 = vadd.f32 %v1040, %v1156
    %v1219 = vadd.f32 %v1041, %v1159
    %v1220 = vadd.f32 %v1042, %v1164
    %v1221 = vadd.f32 %v1043, %v1167
    %v1222 = vadd.f32 %v1044, %v1172
    %v1223 = vadd.f32 %v1045, %v1175
    %v1224 = vadd.f32 %v1046, %v1180
    %v1225 = vadd.f32 %v1047, %v1183
    %v1226 = vadd.f32 %v1048, %v1188
    %v1227 = vadd.f32 %v1049, %v1191
    %v1228 = vadd.f32 %v1050, %v1196
    %v1229 = vadd.f32 %v1051, %v1199
    %v1230 = vadd.f32 %v1052, %v1204
    %v1231 = vadd.f32 %v1053, %v1207
    %v1232 = vadd.f32 %v1054, %v1212
    %v1233 = vadd.f32 %v1055, %v1215
    %s1234 = scalar_lea.vmem [#allocation7], 256
    %v1235 = vld [vmem:[%s1234] sm:$0xf]
    %v1236 = vld [vmem:[%s1234 + $0x4] sm:$0xf]
    %v1237 = vld [vmem:[%s1234 + $0x8] sm:$0xf]
    %v1238 = vld [vmem:[%s1234 + $0xc] sm:$0xf]
    %v1239 = vld [vmem:[%s1234 + $0x10] sm:$0xf]
    %v1240 = vld [vmem:[%s1234 + $0x14] sm:$0xf]
    %v1241 = vld [vmem:[%s1234 + $0x18] sm:$0xf]
    %v1242 = vld [vmem:[%s1234 + $0x1c] sm:$0xf]
    %v1243 = vld [vmem:[%s1234 + $0x20] sm:$0xf]
    %v1244 = vld [vmem:[%s1234 + $0x24] sm:$0xf]
    %v1245 = vld [vmem:[%s1234 + $0x28] sm:$0xf]
    %v1246 = vld [vmem:[%s1234 + $0x2c] sm:$0xf]
    %v1247 = vld [vmem:[%s1234 + $0x30] sm:$0xf]
    %v1248 = vld [vmem:[%s1234 + $0x34] sm:$0xf]
    %v1249 = vld [vmem:[%s1234 + $0x38] sm:$0xf]
    %v1250 = vld [vmem:[%s1234 + $0x3c] sm:$0xf]
    %v1267 = vunpack.c.l.b16 %v1235
    %v1268 = vunpack.c.l.b16 %v1236
    %v1269 = vunpack.c.l.b16 %v1237
    %v1270 = vunpack.c.l.b16 %v1238
    %v1271 = vunpack.c.l.b16 %v1239
    %v1272 = vunpack.c.l.b16 %v1240
    %v1273 = vunpack.c.l.b16 %v1241
    %v1274 = vunpack.c.l.b16 %v1242
    %v1275 = vunpack.c.l.b16 %v1243
    %v1276 = vunpack.c.l.b16 %v1244
    %v1277 = vunpack.c.l.b16 %v1245
    %v1278 = vunpack.c.l.b16 %v1246
    %v1279 = vunpack.c.l.b16 %v1247
    %v1280 = vunpack.c.l.b16 %v1248
    %v1281 = vunpack.c.l.b16 %v1249
    %v1282 = vunpack.c.l.b16 %v1250
    %v1283 = vpack.c.b16 %v1268, %v1267
    %v1284 = vpack.c.b16 %v1270, %v1269
    %v1285 = vpack.c.b16 %v1272, %v1271
    %v1286 = vpack.c.b16 %v1274, %v1273
    %v1287 = vpack.c.b16 %v1276, %v1275
    %v1288 = vpack.c.b16 %v1278, %v1277
    %v1289 = vpack.c.b16 %v1280, %v1279
    %v1290 = vpack.c.b16 %v1282, %v1281
    %1299 = vmatprep.subr.bf16.mxu0 0
    %1300 = vmatpush1.bf16.msra.mxu0 %v1283
    %1301 = vmatprep.subr.bf16.mxu0 0
    %1302 = vmatpush1.bf16.msra.mxu0 %v1284
    %1303 = vmatprep.subr.bf16.mxu0 0
    %1304 = vmatpush1.bf16.msra.mxu0 %v1285
    %1305 = vmatprep.subr.bf16.mxu0 0
    %1306 = vmatpush1.bf16.msra.mxu0 %v1286
    %1307 = vmatprep.subr.bf16.mxu0 0
    %1308 = vmatpush1.bf16.msra.mxu0 %v1287
    %1309 = vmatprep.subr.bf16.mxu0 0
    %1310 = vmatpush1.bf16.msra.mxu0 %v1288
    %1311 = vmatprep.subr.bf16.mxu0 0
    %1312 = vmatpush1.bf16.msra.mxu0 %v1289
    %1313 = vmatprep.subr.bf16.mxu0 0
    %1314 = vmatpush1.bf16.msra.mxu0 %v1290
    %1315 = vmatprep.subr.bf16.mxu0 0
    %1316 = vmatpush1.bf16.msra.mxu0 0
    %1317 = vmatprep.subr.bf16.mxu0 0
    %1318 = vmatpush1.bf16.msra.mxu0 0
    %1319 = vmatprep.subr.bf16.mxu0 0
    %1320 = vmatpush1.bf16.msra.mxu0 0
    %1321 = vmatprep.subr.bf16.mxu0 0
    %1322 = vmatpush1.bf16.msra.mxu0 0
    %1323 = vmatprep.subr.bf16.mxu0 0
    %1324 = vmatpush1.bf16.msra.mxu0 0
    %1325 = vmatprep.subr.bf16.mxu0 0
    %1326 = vmatpush1.bf16.msra.mxu0 0
    %1327 = vmatprep.subr.bf16.mxu0 0
    %1328 = vmatpush1.bf16.msra.mxu0 0
    %1329 = vmatprep.subr.bf16.mxu0 0
    %1330 = vmatpush1.bf16.msra.mxu0 0
    %1331 = vmatprep.mubr.bf16.mxu0 0
    %1332 = vmatmul.mubr.bf16.gmra.mrb[0].mxu0 %v151
    %v1333 = vpop.f32.mrb[0].mxu0
    %v1334 = vadd.f32 0.0, %v1333
    %v1335 = vpop.f32.mrb[0].mxu0
    %v1336 = vpop.f32.mrb[0].mxu0
    %v1337 = vadd.f32 0.0, %v1336
    %v1338 = vpop.f32.mrb[0].mxu0
    %1339 = vmatprep.mubr.bf16.mxu0 0
    %1340 = vmatmul.mubr.bf16.gmra.mrb[0].mxu0 %v152
    %v1341 = vpop.f32.mrb[0].mxu0
    %v1342 = vadd.f32 0.0, %v1341
    %v1343 = vpop.f32.mrb[0].mxu0
    %v1344 = vpop.f32.mrb[0].mxu0
    %v1345 = vadd.f32 0.0, %v1344
    %v1346 = vpop.f32.mrb[0].mxu0
    %1347 = vmatprep.mubr.bf16.mxu0 0
    %1348 = vmatmul.mubr.bf16.gmra.mrb[0].mxu0 %v153
    %v1349 = vpop.f32.mrb[0].mxu0
    %v1350 = vadd.f32 0.0, %v1349
    %v1351 = vpop.f32.mrb[0].mxu0
    %v1352 = vpop.f32.mrb[0].mxu0
    %v1353 = vadd.f32 0.0, %v1352
    %v1354 = vpop.f32.mrb[0].mxu0
    %1355 = vmatprep.mubr.bf16.mxu0 0
    %1356 = vmatmul.mubr.bf16.gmra.mrb[0].mxu0 %v154
    %v1357 = vpop.f32.mrb[0].mxu0
    %v1358 = vadd.f32 0.0, %v1357
    %v1359 = vpop.f32.mrb[0].mxu0
    %v1360 = vpop.f32.mrb[0].mxu0
    %v1361 = vadd.f32 0.0, %v1360
    %v1362 = vpop.f32.mrb[0].mxu0
    %1363 = vmatprep.mubr.bf16.mxu0 0
    %1364 = vmatmul.mubr.bf16.gmra.mrb[0].mxu0 %v155
    %v1365 = vpop.f32.mrb[0].mxu0
    %v1366 = vadd.f32 0.0, %v1365
    %v1367 = vpop.f32.mrb[0].mxu0
    %v1368 = vpop.f32.mrb[0].mxu0
    %v1369 = vadd.f32 0.0, %v1368
    %v1370 = vpop.f32.mrb[0].mxu0
    %1371 = vmatprep.mubr.bf16.mxu0 0
    %1372 = vmatmul.mubr.bf16.gmra.mrb[0].mxu0 %v156
    %v1373 = vpop.f32.mrb[0].mxu0
    %v1374 = vadd.f32 0.0, %v1373
    %v1375 = vpop.f32.mrb[0].mxu0
    %v1376 = vpop.f32.mrb[0].mxu0
    %v1377 = vadd.f32 0.0, %v1376
    %v1378 = vpop.f32.mrb[0].mxu0
    %1379 = vmatprep.mubr.bf16.mxu0 0
    %1380 = vmatmul.mubr.bf16.gmra.mrb[0].mxu0 %v157
    %v1381 = vpop.f32.mrb[0].mxu0
    %v1382 = vadd.f32 0.0, %v1381
    %v1383 = vpop.f32.mrb[0].mxu0
    %v1384 = vpop.f32.mrb[0].mxu0
    %v1385 = vadd.f32 0.0, %v1384
    %v1386 = vpop.f32.mrb[0].mxu0
    %1387 = vmatprep.mubr.bf16.mxu0 0
    %1388 = vmatmul.mubr.bf16.gmra.mrb[0].mxu0 %v158
    %v1389 = vpop.f32.mrb[0].mxu0
    %v1390 = vadd.f32 0.0, %v1389
    %v1391 = vpop.f32.mrb[0].mxu0
    %v1392 = vpop.f32.mrb[0].mxu0
    %v1393 = vadd.f32 0.0, %v1392
    %v1394 = vpop.f32.mrb[0].mxu0
    %1395 = vdwg.mxu0
    %v1396 = vadd.f32 %v1218, %v1334
    %v1397 = vadd.f32 %v1219, %v1337
    %v1398 = vadd.f32 %v1220, %v1342
    %v1399 = vadd.f32 %v1221, %v1345
    %v1400 = vadd.f32 %v1222, %v1350
    %v1401 = vadd.f32 %v1223, %v1353
    %v1402 = vadd.f32 %v1224, %v1358
    %v1403 = vadd.f32 %v1225, %v1361
    %v1404 = vadd.f32 %v1226, %v1366
    %v1405 = vadd.f32 %v1227, %v1369
    %v1406 = vadd.f32 %v1228, %v1374
    %v1407 = vadd.f32 %v1229, %v1377
    %v1408 = vadd.f32 %v1230, %v1382
    %v1409 = vadd.f32 %v1231, %v1385
    %v1410 = vadd.f32 %v1232, %v1390
    %v1411 = vadd.f32 %v1233, %v1393
    %s1412 = scalar_lea.vmem [#allocation7], 320
    %v1413 = vld [vmem:[%s1412] sm:$0xf]
    %v1414 = vld [vmem:[%s1412 + $0x4] sm:$0xf]
    %v1415 = vld [vmem:[%s1412 + $0x8] sm:$0xf]
    %v1416 = vld [vmem:[%s1412 + $0xc] sm:$0xf]
    %v1417 = vld [vmem:[%s1412 + $0x10] sm:$0xf]
    %v1418 = vld [vmem:[%s1412 + $0x14] sm:$0xf]
    %v1419 = vld [vmem:[%s1412 + $0x18] sm:$0xf]
    %v1420 = vld [vmem:[%s1412 + $0x1c] sm:$0xf]
    %v1421 = vld [vmem:[%s1412 + $0x20] sm:$0xf]
    %v1422 = vld [vmem:[%s1412 + $0x24] sm:$0xf]
    %v1423 = vld [vmem:[%s1412 + $0x28] sm:$0xf]
    %v1424 = vld [vmem:[%s1412 + $0x2c] sm:$0xf]
    %v1425 = vld [vmem:[%s1412 + $0x30] sm:$0xf]
    %v1426 = vld [vmem:[%s1412 + $0x34] sm:$0xf]
    %v1427 = vld [vmem:[%s1412 + $0x38] sm:$0xf]
    %v1428 = vld [vmem:[%s1412 + $0x3c] sm:$0xf]
    %v1445 = vunpack.c.l.b16 %v1413
    %v1446 = vunpack.c.l.b16 %v1414
    %v1447 = vunpack.c.l.b16 %v1415
    %v1448 = vunpack.c.l.b16 %v1416
    %v1449 = vunpack.c.l.b16 %v1417
    %v1450 = vunpack.c.l.b16 %v1418
    %v1451 = vunpack.c.l.b16 %v1419
    %v1452 = vunpack.c.l.b16 %v1420
    %v1453 = vunpack.c.l.b16 %v1421
    %v1454 = vunpack.c.l.b16 %v1422
    %v1455 = vunpack.c.l.b16 %v1423
    %v1456 = vunpack.c.l.b16 %v1424
    %v1457 = vunpack.c.l.b16 %v1425
    %v1458 = vunpack.c.l.b16 %v1426
    %v1459 = vunpack.c.l.b16 %v1427
    %v1460 = vunpack.c.l.b16 %v1428
    %v1461 = vpack.c.b16 %v1446, %v1445
    %v1462 = vpack.c.b16 %v1448, %v1447
    %v1463 = vpack.c.b16 %v1450, %v1449
    %v1464 = vpack.c.b16 %v1452, %v1451
    %v1465 = vpack.c.b16 %v1454, %v1453
    %v1466 = vpack.c.b16 %v1456, %v1455
    %v1467 = vpack.c.b16 %v1458, %v1457
    %v1468 = vpack.c.b16 %v1460, %v1459
    %1477 = vmatprep.subr.bf16.mxu0 0
    %1478 = vmatpush1.bf16.msra.mxu0 %v1461
    %1479 = vmatprep.subr.bf16.mxu0 0
    %1480 = vmatpush1.bf16.msra.mxu0 %v1462
    %1481 = vmatprep.subr.bf16.mxu0 0
    %1482 = vmatpush1.bf16.msra.mxu0 %v1463
    %1483 = vmatprep.subr.bf16.mxu0 0
    %1484 = vmatpush1.bf16.msra.mxu0 %v1464
    %1485 = vmatprep.subr.bf16.mxu0 0
    %1486 = vmatpush1.bf16.msra.mxu0 %v1465
    %1487 = vmatprep.subr.bf16.mxu0 0
    %1488 = vmatpush1.bf16.msra.mxu0 %v1466
    %1489 = vmatprep.subr.bf16.mxu0 0
    %1490 = vmatpush1.bf16.msra.mxu0 %v1467
    %1491 = vmatprep.subr.bf16.mxu0 0
    %1492 = vmatpush1.bf16.msra.mxu0 %v1468
    %1493 = vmatprep.subr.bf16.mxu0 0
    %1494 = vmatpush1.bf16.msra.mxu0 0
    %1495 = vmatprep.subr.bf16.mxu0 0
    %1496 = vmatpush1.bf16.msra.mxu0 0
    %1497 = vmatprep.subr.bf16.mxu0 0
    %1498 = vmatpush1.bf16.msra.mxu0 0
    %1499 = vmatprep.subr.bf16.mxu0 0
    %1500 = vmatpush1.bf16.msra.mxu0 0
    %1501 = vmatprep.subr.bf16.mxu0 0
    %1502 = vmatpush1.bf16.msra.mxu0 0
    %1503 = vmatprep.subr.bf16.mxu0 0
    %1504 = vmatpush1.bf16.msra.mxu0 0
    %1505 = vmatprep.subr.bf16.mxu0 0
    %1506 = vmatpush1.bf16.msra.mxu0 0
    %1507 = vmatprep.subr.bf16.mxu0 0
    %1508 = vmatpush1.bf16.msra.mxu0 0
    %1509 = vmatprep.mubr.bf16.mxu0 0
    %1510 = vmatmul.mubr.bf16.gmra.mrb[0].mxu0 %v546
    %v1511 = vpop.f32.mrb[0].mxu0
    %v1512 = vadd.f32 0.0, %v1511
    %v1513 = vpop.f32.mrb[0].mxu0
    %v1514 = vpop.f32.mrb[0].mxu0
    %v1515 = vadd.f32 0.0, %v1514
    %v1516 = vpop.f32.mrb[0].mxu0
    %1517 = vmatprep.mubr.bf16.mxu0 0
    %1518 = vmatmul.mubr.bf16.gmra.mrb[0].mxu0 %v547
    %v1519 = vpop.f32.mrb[0].mxu0
    %v1520 = vadd.f32 0.0, %v1519
    %v1521 = vpop.f32.mrb[0].mxu0
    %v1522 = vpop.f32.mrb[0].mxu0
    %v1523 = vadd.f32 0.0, %v1522
    %v1524 = vpop.f32.mrb[0].mxu0
    %1525 = vmatprep.mubr.bf16.mxu0 0
    %1526 = vmatmul.mubr.bf16.gmra.mrb[0].mxu0 %v548
    %v1527 = vpop.f32.mrb[0].mxu0
    %v1528 = vadd.f32 0.0, %v1527
    %v1529 = vpop.f32.mrb[0].mxu0
    %v1530 = vpop.f32.mrb[0].mxu0
    %v1531 = vadd.f32 0.0, %v1530
    %v1532 = vpop.f32.mrb[0].mxu0
    %1533 = vmatprep.mubr.bf16.mxu0 0
    %1534 = vmatmul.mubr.bf16.gmra.mrb[0].mxu0 %v549
    %v1535 = vpop.f32.mrb[0].mxu0
    %v1536 = vadd.f32 0.0, %v1535
    %v1537 = vpop.f32.mrb[0].mxu0
    %v1538 = vpop.f32.mrb[0].mxu0
    %v1539 = vadd.f32 0.0, %v1538
    %v1540 = vpop.f32.mrb[0].mxu0
    %1541 = vmatprep.mubr.bf16.mxu0 0
    %1542 = vmatmul.mubr.bf16.gmra.mrb[0].mxu0 %v550
    %v1543 = vpop.f32.mrb[0].mxu0
    %v1544 = vadd.f32 0.0, %v1543
    %v1545 = vpop.f32.mrb[0].mxu0
    %v1546 = vpop.f32.mrb[0].mxu0
    %v1547 = vadd.f32 0.0, %v1546
    %v1548 = vpop.f32.mrb[0].mxu0
    %1549 = vmatprep.mubr.bf16.mxu0 0
    %1550 = vmatmul.mubr.bf16.gmra.mrb[0].mxu0 %v551
    %v1551 = vpop.f32.mrb[0].mxu0
    %v1552 = vadd.f32 0.0, %v1551
    %v1553 = vpop.f32.mrb[0].mxu0
    %v1554 = vpop.f32.mrb[0].mxu0
    %v1555 = vadd.f32 0.0, %v1554
    %v1556 = vpop.f32.mrb[0].mxu0
    %1557 = vmatprep.mubr.bf16.mxu0 0
    %1558 = vmatmul.mubr.bf16.gmra.mrb[0].mxu0 %v552
    %v1559 = vpop.f32.mrb[0].mxu0
    %v1560 = vadd.f32 0.0, %v1559
    %v1561 = vpop.f32.mrb[0].mxu0
    %v1562 = vpop.f32.mrb[0].mxu0
    %v1563 = vadd.f32 0.0, %v1562
    %v1564 = vpop.f32.mrb[0].mxu0
    %1565 = vmatprep.mubr.bf16.mxu0 0
    %1566 = vmatmul.mubr.bf16.gmra.mrb[0].mxu0 %v553
    %v1567 = vpop.f32.mrb[0].mxu0
    %v1568 = vadd.f32 0.0, %v1567
    %v1569 = vpop.f32.mrb[0].mxu0
    %v1570 = vpop.f32.mrb[0].mxu0
    %v1571 = vadd.f32 0.0, %v1570
    %v1572 = vpop.f32.mrb[0].mxu0
    %1573 = vdwg.mxu0
    %v1574 = vadd.f32 %v1396, %v1512
    %v1575 = vadd.f32 %v1397, %v1515
    %v1576 = vadd.f32 %v1398, %v1520
    %v1577 = vadd.f32 %v1399, %v1523
    %v1578 = vadd.f32 %v1400, %v1528
    %v1579 = vadd.f32 %v1401, %v1531
    %v1580 = vadd.f32 %v1402, %v1536
    %v1581 = vadd.f32 %v1403, %v1539
    %v1582 = vadd.f32 %v1404, %v1544
    %v1583 = vadd.f32 %v1405, %v1547
    %v1584 = vadd.f32 %v1406, %v1552
    %v1585 = vadd.f32 %v1407, %v1555
    %v1586 = vadd.f32 %v1408, %v1560
    %v1587 = vadd.f32 %v1409, %v1563
    %v1588 = vadd.f32 %v1410, %v1568
    %v1589 = vadd.f32 %v1411, %v1571
    %s1590 = scalar_lea.vmem [#allocation7], 384
    %v1591 = vld [vmem:[%s1590] sm:$0xf]
    %v1592 = vld [vmem:[%s1590 + $0x4] sm:$0xf]
    %v1593 = vld [vmem:[%s1590 + $0x8] sm:$0xf]
    %v1594 = vld [vmem:[%s1590 + $0xc] sm:$0xf]
    %v1595 = vld [vmem:[%s1590 + $0x10] sm:$0xf]
    %v1596 = vld [vmem:[%s1590 + $0x14] sm:$0xf]
    %v1597 = vld [vmem:[%s1590 + $0x18] sm:$0xf]
    %v1598 = vld [vmem:[%s1590 + $0x1c] sm:$0xf]
    %v1599 = vld [vmem:[%s1590 + $0x20] sm:$0xf]
    %v1600 = vld [vmem:[%s1590 + $0x24] sm:$0xf]
    %v1601 = vld [vmem:[%s1590 + $0x28] sm:$0xf]
    %v1602 = vld [vmem:[%s1590 + $0x2c] sm:$0xf]
    %v1603 = vld [vmem:[%s1590 + $0x30] sm:$0xf]
    %v1604 = vld [vmem:[%s1590 + $0x34] sm:$0xf]
    %v1605 = vld [vmem:[%s1590 + $0x38] sm:$0xf]
    %v1606 = vld [vmem:[%s1590 + $0x3c] sm:$0xf]
    %v1623 = vunpack.c.l.b16 %v1591
    %v1624 = vunpack.c.l.b16 %v1592
    %v1625 = vunpack.c.l.b16 %v1593
    %v1626 = vunpack.c.l.b16 %v1594
    %v1627 = vunpack.c.l.b16 %v1595
    %v1628 = vunpack.c.l.b16 %v1596
    %v1629 = vunpack.c.l.b16 %v1597
    %v1630 = vunpack.c.l.b16 %v1598
    %v1631 = vunpack.c.l.b16 %v1599
    %v1632 = vunpack.c.l.b16 %v1600
    %v1633 = vunpack.c.l.b16 %v1601
    %v1634 = vunpack.c.l.b16 %v1602
    %v1635 = vunpack.c.l.b16 %v1603
    %v1636 = vunpack.c.l.b16 %v1604
    %v1637 = vunpack.c.l.b16 %v1605
    %v1638 = vunpack.c.l.b16 %v1606
    %v1639 = vpack.c.b16 %v1624, %v1623
    %v1640 = vpack.c.b16 %v1626, %v1625
    %v1641 = vpack.c.b16 %v1628, %v1627
    %v1642 = vpack.c.b16 %v1630, %v1629
    %v1643 = vpack.c.b16 %v1632, %v1631
    %v1644 = vpack.c.b16 %v1634, %v1633
    %v1645 = vpack.c.b16 %v1636, %v1635
    %v1646 = vpack.c.b16 %v1638, %v1637
    %1655 = vmatprep.subr.bf16.mxu0 0
    %1656 = vmatpush1.bf16.msra.mxu0 %v1639
    %1657 = vmatprep.subr.bf16.mxu0 0
    %1658 = vmatpush1.bf16.msra.mxu0 %v1640
    %1659 = vmatprep.subr.bf16.mxu0 0
    %1660 = vmatpush1.bf16.msra.mxu0 %v1641
    %1661 = vmatprep.subr.bf16.mxu0 0
    %1662 = vmatpush1.bf16.msra.mxu0 %v1642
    %1663 = vmatprep.subr.bf16.mxu0 0
    %1664 = vmatpush1.bf16.msra.mxu0 %v1643
    %1665 = vmatprep.subr.bf16.mxu0 0
    %1666 = vmatpush1.bf16.msra.mxu0 %v1644
    %1667 = vmatprep.subr.bf16.mxu0 0
    %1668 = vmatpush1.bf16.msra.mxu0 %v1645
    %1669 = vmatprep.subr.bf16.mxu0 0
    %1670 = vmatpush1.bf16.msra.mxu0 %v1646
    %1671 = vmatprep.subr.bf16.mxu0 0
    %1672 = vmatpush1.bf16.msra.mxu0 0
    %1673 = vmatprep.subr.bf16.mxu0 0
    %1674 = vmatpush1.bf16.msra.mxu0 0
    %1675 = vmatprep.subr.bf16.mxu0 0
    %1676 = vmatpush1.bf16.msra.mxu0 0
    %1677 = vmatprep.subr.bf16.mxu0 0
    %1678 = vmatpush1.bf16.msra.mxu0 0
    %1679 = vmatprep.subr.bf16.mxu0 0
    %1680 = vmatpush1.bf16.msra.mxu0 0
    %1681 = vmatprep.subr.bf16.mxu0 0
    %1682 = vmatpush1.bf16.msra.mxu0 0
    %1683 = vmatprep.subr.bf16.mxu0 0
    %1684 = vmatpush1.bf16.msra.mxu0 0
    %1685 = vmatprep.subr.bf16.mxu0 0
    %1686 = vmatpush1.bf16.msra.mxu0 0
    %1687 = vmatprep.mubr.bf16.mxu0 0
    %1688 = vmatmul.mubr.bf16.gmra.mrb[0].mxu0 %v396
    %v1689 = vpop.f32.mrb[0].mxu0
    %v1690 = vadd.f32 0.0, %v1689
    %v1691 = vpop.f32.mrb[0].mxu0
    %v1692 = vpop.f32.mrb[0].mxu0
    %v1693 = vadd.f32 0.0, %v1692
    %v1694 = vpop.f32.mrb[0].mxu0
    %1695 = vmatprep.mubr.bf16.mxu0 0
    %1696 = vmatmul.mubr.bf16.gmra.mrb[0].mxu0 %v397
    %v1697 = vpop.f32.mrb[0].mxu0
    %v1698 = vadd.f32 0.0, %v1697
    %v1699 = vpop.f32.mrb[0].mxu0
    %v1700 = vpop.f32.mrb[0].mxu0
    %v1701 = vadd.f32 0.0, %v1700
    %v1702 = vpop.f32.mrb[0].mxu0
    %1703 = vmatprep.mubr.bf16.mxu0 0
    %1704 = vmatmul.mubr.bf16.gmra.mrb[0].mxu0 %v398
    %v1705 = vpop.f32.mrb[0].mxu0
    %v1706 = vadd.f32 0.0, %v1705
    %v1707 = vpop.f32.mrb[0].mxu0
    %v1708 = vpop.f32.mrb[0].mxu0
    %v1709 = vadd.f32 0.0, %v1708
    %v1710 = vpop.f32.mrb[0].mxu0
    %1711 = vmatprep.mubr.bf16.mxu0 0
    %1712 = vmatmul.mubr.bf16.gmra.mrb[0].mxu0 %v399
    %v1713 = vpop.f32.mrb[0].mxu0
    %v1714 = vadd.f32 0.0, %v1713
    %v1715 = vpop.f32.mrb[0].mxu0
    %v1716 = vpop.f32.mrb[0].mxu0
    %v1717 = vadd.f32 0.0, %v1716
    %v1718 = vpop.f32.mrb[0].mxu0
    %1719 = vmatprep.mubr.bf16.mxu0 0
    %1720 = vmatmul.mubr.bf16.gmra.mrb[0].mxu0 %v400
    %v1721 = vpop.f32.mrb[0].mxu0
    %v1722 = vadd.f32 0.0, %v1721
    %v1723 = vpop.f32.mrb[0].mxu0
    %v1724 = vpop.f32.mrb[0].mxu0
    %v1725 = vadd.f32 0.0, %v1724
    %v1726 = vpop.f32.mrb[0].mxu0
    %1727 = vmatprep.mubr.bf16.mxu0 0
    %1728 = vmatmul.mubr.bf16.gmra.mrb[0].mxu0 %v401
    %v1729 = vpop.f32.mrb[0].mxu0
    %v1730 = vadd.f32 0.0, %v1729
    %v1731 = vpop.f32.mrb[0].mxu0
    %v1732 = vpop.f32.mrb[0].mxu0
    %v1733 = vadd.f32 0.0, %v1732
    %v1734 = vpop.f32.mrb[0].mxu0
    %1735 = vmatprep.mubr.bf16.mxu0 0
    %1736 = vmatmul.mubr.bf16.gmra.mrb[0].mxu0 %v402
    %v1737 = vpop.f32.mrb[0].mxu0
    %v1738 = vadd.f32 0.0, %v1737
    %v1739 = vpop.f32.mrb[0].mxu0
    %v1740 = vpop.f32.mrb[0].mxu0
    %v1741 = vadd.f32 0.0, %v1740
    %v1742 = vpop.f32.mrb[0].mxu0
    %1743 = vmatprep.mubr.bf16.mxu0 0
    %1744 = vmatmul.mubr.bf16.gmra.mrb[0].mxu0 %v403
    %v1745 = vpop.f32.mrb[0].mxu0
    %v1746 = vadd.f32 0.0, %v1745
    %v1747 = vpop.f32.mrb[0].mxu0
    %v1748 = vpop.f32.mrb[0].mxu0
    %v1749 = vadd.f32 0.0, %v1748
    %v1750 = vpop.f32.mrb[0].mxu0
    %1751 = vdwg.mxu0
    %v1752 = vadd.f32 %v1574, %v1690
    %v1753 = vadd.f32 %v1575, %v1693
    %v1754 = vadd.f32 %v1576, %v1698
    %v1755 = vadd.f32 %v1577, %v1701
    %v1756 = vadd.f32 %v1578, %v1706
    %v1757 = vadd.f32 %v1579, %v1709
    %v1758 = vadd.f32 %v1580, %v1714
    %v1759 = vadd.f32 %v1581, %v1717
    %v1760 = vadd.f32 %v1582, %v1722
    %v1761 = vadd.f32 %v1583, %v1725
    %v1762 = vadd.f32 %v1584, %v1730
    %v1763 = vadd.f32 %v1585, %v1733
    %v1764 = vadd.f32 %v1586, %v1738
    %v1765 = vadd.f32 %v1587, %v1741
    %v1766 = vadd.f32 %v1588, %v1746
    %v1767 = vadd.f32 %v1589, %v1749
    %s1768 = scalar_lea.vmem [#allocation7], 448
    %v1769 = vld [vmem:[%s1768] sm:$0xf]
    %v1770 = vld [vmem:[%s1768 + $0x4] sm:$0xf]
    %v1771 = vld [vmem:[%s1768 + $0x8] sm:$0xf]
    %v1772 = vld [vmem:[%s1768 + $0xc] sm:$0xf]
    %v1773 = vld [vmem:[%s1768 + $0x10] sm:$0xf]
    %v1774 = vld [vmem:[%s1768 + $0x14] sm:$0xf]
    %v1775 = vld [vmem:[%s1768 + $0x18] sm:$0xf]
    %v1776 = vld [vmem:[%s1768 + $0x1c] sm:$0xf]
    %v1777 = vld [vmem:[%s1768 + $0x20] sm:$0xf]
    %v1778 = vld [vmem:[%s1768 + $0x24] sm:$0xf]
    %v1779 = vld [vmem:[%s1768 + $0x28] sm:$0xf]
    %v1780 = vld [vmem:[%s1768 + $0x2c] sm:$0xf]
    %v1781 = vld [vmem:[%s1768 + $0x30] sm:$0xf]
    %v1782 = vld [vmem:[%s1768 + $0x34] sm:$0xf]
    %v1783 = vld [vmem:[%s1768 + $0x38] sm:$0xf]
    %v1784 = vld [vmem:[%s1768 + $0x3c] sm:$0xf]
    %v1801 = vunpack.c.l.b16 %v1769
    %v1802 = vunpack.c.l.b16 %v1770
    %v1803 = vunpack.c.l.b16 %v1771
    %v1804 = vunpack.c.l.b16 %v1772
    %v1805 = vunpack.c.l.b16 %v1773
    %v1806 = vunpack.c.l.b16 %v1774
    %v1807 = vunpack.c.l.b16 %v1775
    %v1808 = vunpack.c.l.b16 %v1776
    %v1809 = vunpack.c.l.b16 %v1777
    %v1810 = vunpack.c.l.b16 %v1778
    %v1811 = vunpack.c.l.b16 %v1779
    %v1812 = vunpack.c.l.b16 %v1780
    %v1813 = vunpack.c.l.b16 %v1781
    %v1814 = vunpack.c.l.b16 %v1782
    %v1815 = vunpack.c.l.b16 %v1783
    %v1816 = vunpack.c.l.b16 %v1784
    %v1817 = vpack.c.b16 %v1802, %v1801
    %v1818 = vpack.c.b16 %v1804, %v1803
    %v1819 = vpack.c.b16 %v1806, %v1805
    %v1820 = vpack.c.b16 %v1808, %v1807
    %v1821 = vpack.c.b16 %v1810, %v1809
    %v1822 = vpack.c.b16 %v1812, %v1811
    %v1823 = vpack.c.b16 %v1814, %v1813
    %v1824 = vpack.c.b16 %v1816, %v1815
    %1833 = vmatprep.subr.bf16.mxu0 0
    %1834 = vmatpush1.bf16.msra.mxu0 %v1817
    %1835 = vmatprep.subr.bf16.mxu0 0
    %1836 = vmatpush1.bf16.msra.mxu0 %v1818
    %1837 = vmatprep.subr.bf16.mxu0 0
    %1838 = vmatpush1.bf16.msra.mxu0 %v1819
    %1839 = vmatprep.subr.bf16.mxu0 0
    %1840 = vmatpush1.bf16.msra.mxu0 %v1820
    %1841 = vmatprep.subr.bf16.mxu0 0
    %1842 = vmatpush1.bf16.msra.mxu0 %v1821
    %1843 = vmatprep.subr.bf16.mxu0 0
    %1844 = vmatpush1.bf16.msra.mxu0 %v1822
    %1845 = vmatprep.subr.bf16.mxu0 0
    %1846 = vmatpush1.bf16.msra.mxu0 %v1823
    %1847 = vmatprep.subr.bf16.mxu0 0
    %1848 = vmatpush1.bf16.msra.mxu0 %v1824
    %1849 = vmatprep.subr.bf16.mxu0 0
    %1850 = vmatpush1.bf16.msra.mxu0 0
    %1851 = vmatprep.subr.bf16.mxu0 0
    %1852 = vmatpush1.bf16.msra.mxu0 0
    %1853 = vmatprep.subr.bf16.mxu0 0
    %1854 = vmatpush1.bf16.msra.mxu0 0
    %1855 = vmatprep.subr.bf16.mxu0 0
    %1856 = vmatpush1.bf16.msra.mxu0 0
    %1857 = vmatprep.subr.bf16.mxu0 0
    %1858 = vmatpush1.bf16.msra.mxu0 0
    %1859 = vmatprep.subr.bf16.mxu0 0
    %1860 = vmatpush1.bf16.msra.mxu0 0
    %1861 = vmatprep.subr.bf16.mxu0 0
    %1862 = vmatpush1.bf16.msra.mxu0 0
    %1863 = vmatprep.subr.bf16.mxu0 0
    %1864 = vmatpush1.bf16.msra.mxu0 0
    %1865 = vmatprep.mubr.bf16.mxu0 0
    %1866 = vmatmul.mubr.bf16.gmra.mrb[0].mxu0 %v152
    %v1867 = vpop.f32.mrb[0].mxu0
    %v1868 = vadd.f32 0.0, %v1867
    %v1869 = vpop.f32.mrb[0].mxu0
    %v1870 = vpop.f32.mrb[0].mxu0
    %v1871 = vadd.f32 0.0, %v1870
    %v1872 = vpop.f32.mrb[0].mxu0
    %1873 = vmatprep.mubr.bf16.mxu0 0
    %1874 = vmatmul.mubr.bf16.gmra.mrb[0].mxu0 %v153
    %v1875 = vpop.f32.mrb[0].mxu0
    %v1876 = vadd.f32 0.0, %v1875
    %v1877 = vpop.f32.mrb[0].mxu0
    %v1878 = vpop.f32.mrb[0].mxu0
    %v1879 = vadd.f32 0.0, %v1878
    %v1880 = vpop.f32.mrb[0].mxu0
    %1881 = vmatprep.mubr.bf16.mxu0 0
    %1882 = vmatmul.mubr.bf16.gmra.mrb[0].mxu0 %v154
    %v1883 = vpop.f32.mrb[0].mxu0
    %v1884 = vadd.f32 0.0, %v1883
    %v1885 = vpop.f32.mrb[0].mxu0
    %v1886 = vpop.f32.mrb[0].mxu0
    %v1887 = vadd.f32 0.0, %v1886
    %v1888 = vpop.f32.mrb[0].mxu0
    %1889 = vmatprep.mubr.bf16.mxu0 0
    %1890 = vmatmul.mubr.bf16.gmra.mrb[0].mxu0 %v155
    %v1891 = vpop.f32.mrb[0].mxu0
    %v1892 = vadd.f32 0.0, %v1891
    %v1893 = vpop.f32.mrb[0].mxu0
    %v1894 = vpop.f32.mrb[0].mxu0
    %v1895 = vadd.f32 0.0, %v1894
    %v1896 = vpop.f32.mrb[0].mxu0
    %1897 = vmatprep.mubr.bf16.mxu0 0
    %1898 = vmatmul.mubr.bf16.gmra.mrb[0].mxu0 %v156
    %v1899 = vpop.f32.mrb[0].mxu0
    %v1900 = vadd.f32 0.0, %v1899
    %v1901 = vpop.f32.mrb[0].mxu0
    %v1902 = vpop.f32.mrb[0].mxu0
    %v1903 = vadd.f32 0.0, %v1902
    %v1904 = vpop.f32.mrb[0].mxu0
    %1905 = vmatprep.mubr.bf16.mxu0 0
    %1906 = vmatmul.mubr.bf16.gmra.mrb[0].mxu0 %v157
    %v1907 = vpop.f32.mrb[0].mxu0
    %v1908 = vadd.f32 0.0, %v1907
    %v1909 = vpop.f32.mrb[0].mxu0
    %v1910 = vpop.f32.mrb[0].mxu0
    %v1911 = vadd.f32 0.0, %v1910
    %v1912 = vpop.f32.mrb[0].mxu0
    %1913 = vmatprep.mubr.bf16.mxu0 0
    %1914 = vmatmul.mubr.bf16.gmra.mrb[0].mxu0 %v158
    %v1915 = vpop.f32.mrb[0].mxu0
    %v1916 = vadd.f32 0.0, %v1915
    %v1917 = vpop.f32.mrb[0].mxu0
    %v1918 = vpop.f32.mrb[0].mxu0
    %v1919 = vadd.f32 0.0, %v1918
    %v1920 = vpop.f32.mrb[0].mxu0
    %1921 = vmatprep.mubr.bf16.mxu0 0
    %1922 = vmatmul.mubr.bf16.gmra.mrb[0].mxu0 0
    %v1923 = vpop.f32.mrb[0].mxu0
    %v1924 = vadd.f32 0.0, %v1923
    %v1925 = vpop.f32.mrb[0].mxu0
    %v1926 = vpop.f32.mrb[0].mxu0
    %v1927 = vadd.f32 0.0, %v1926
    %v1928 = vpop.f32.mrb[0].mxu0
    %1929 = vdwg.mxu0
    %v1930 = vadd.f32 %v1752, %v1868
    %v1931 = vadd.f32 %v1753, %v1871
    %v1932 = vadd.f32 %v1754, %v1876
    %v1933 = vadd.f32 %v1755, %v1879
    %v1934 = vadd.f32 %v1756, %v1884
    %v1935 = vadd.f32 %v1757, %v1887
    %v1936 = vadd.f32 %v1758, %v1892
    %v1937 = vadd.f32 %v1759, %v1895
    %v1938 = vadd.f32 %v1760, %v1900
    %v1939 = vadd.f32 %v1761, %v1903
    %v1940 = vadd.f32 %v1762, %v1908
    %v1941 = vadd.f32 %v1763, %v1911
    %v1942 = vadd.f32 %v1764, %v1916
    %v1943 = vadd.f32 %v1765, %v1919
    %v1944 = vadd.f32 %v1766, %v1924
    %v1945 = vadd.f32 %v1767, %v1927
    %s1946 = scalar_lea.vmem [#allocation7], 512
    %v1947 = vld [vmem:[%s1946] sm:$0xf]
    %v1948 = vld [vmem:[%s1946 + $0x4] sm:$0xf]
    %v1949 = vld [vmem:[%s1946 + $0x8] sm:$0xf]
    %v1950 = vld [vmem:[%s1946 + $0xc] sm:$0xf]
    %v1951 = vld [vmem:[%s1946 + $0x10] sm:$0xf]
    %v1952 = vld [vmem:[%s1946 + $0x14] sm:$0xf]
    %v1953 = vld [vmem:[%s1946 + $0x18] sm:$0xf]
    %v1954 = vld [vmem:[%s1946 + $0x1c] sm:$0xf]
    %v1955 = vld [vmem:[%s1946 + $0x20] sm:$0xf]
    %v1956 = vld [vmem:[%s1946 + $0x24] sm:$0xf]
    %v1957 = vld [vmem:[%s1946 + $0x28] sm:$0xf]
    %v1958 = vld [vmem:[%s1946 + $0x2c] sm:$0xf]
    %v1959 = vld [vmem:[%s1946 + $0x30] sm:$0xf]
    %v1960 = vld [vmem:[%s1946 + $0x34] sm:$0xf]
    %v1961 = vld [vmem:[%s1946 + $0x38] sm:$0xf]
    %v1962 = vld [vmem:[%s1946 + $0x3c] sm:$0xf]
    %v1979 = vunpack.c.l.b16 %v1947
    %v1980 = vunpack.c.l.b16 %v1948
    %v1981 = vunpack.c.l.b16 %v1949
    %v1982 = vunpack.c.l.b16 %v1950
    %v1983 = vunpack.c.l.b16 %v1951
    %v1984 = vunpack.c.l.b16 %v1952
    %v1985 = vunpack.c.l.b16 %v1953
    %v1986 = vunpack.c.l.b16 %v1954
    %v1987 = vunpack.c.l.b16 %v1955
    %v1988 = vunpack.c.l.b16 %v1956
    %v1989 = vunpack.c.l.b16 %v1957
    %v1990 = vunpack.c.l.b16 %v1958
    %v1991 = vunpack.c.l.b16 %v1959
    %v1992 = vunpack.c.l.b16 %v1960
    %v1993 = vunpack.c.l.b16 %v1961
    %v1994 = vunpack.c.l.b16 %v1962
    %v1995 = vpack.c.b16 %v1980, %v1979
    %v1996 = vpack.c.b16 %v1982, %v1981
    %v1997 = vpack.c.b16 %v1984, %v1983
    %v1998 = vpack.c.b16 %v1986, %v1985
    %v1999 = vpack.c.b16 %v1988, %v1987
    %v2000 = vpack.c.b16 %v1990, %v1989
    %v2001 = vpack.c.b16 %v1992, %v1991
    %v2002 = vpack.c.b16 %v1994, %v1993
    %2011 = vmatprep.subr.bf16.mxu0 0
    %2012 = vmatpush1.bf16.msra.mxu0 %v1995
    %2013 = vmatprep.subr.bf16.mxu0 0
    %2014 = vmatpush1.bf16.msra.mxu0 %v1996
    %2015 = vmatprep.subr.bf16.mxu0 0
    %2016 = vmatpush1.bf16.msra.mxu0 %v1997
    %2017 = vmatprep.subr.bf16.mxu0 0
    %2018 = vmatpush1.bf16.msra.mxu0 %v1998
    %2019 = vmatprep.subr.bf16.mxu0 0
    %2020 = vmatpush1.bf16.msra.mxu0 %v1999
    %2021 = vmatprep.subr.bf16.mxu0 0
    %2022 = vmatpush1.bf16.msra.mxu0 %v2000
    %2023 = vmatprep.subr.bf16.mxu0 0
    %2024 = vmatpush1.bf16.msra.mxu0 %v2001
    %2025 = vmatprep.subr.bf16.mxu0 0
    %2026 = vmatpush1.bf16.msra.mxu0 %v2002
    %2027 = vmatprep.subr.bf16.mxu0 0
    %2028 = vmatpush1.bf16.msra.mxu0 0
    %2029 = vmatprep.subr.bf16.mxu0 0
    %2030 = vmatpush1.bf16.msra.mxu0 0
    %2031 = vmatprep.subr.bf16.mxu0 0
    %2032 = vmatpush1.bf16.msra.mxu0 0
    %2033 = vmatprep.subr.bf16.mxu0 0
    %2034 = vmatpush1.bf16.msra.mxu0 0
    %2035 = vmatprep.subr.bf16.mxu0 0
    %2036 = vmatpush1.bf16.msra.mxu0 0
    %2037 = vmatprep.subr.bf16.mxu0 0
    %2038 = vmatpush1.bf16.msra.mxu0 0
    %2039 = vmatprep.subr.bf16.mxu0 0
    %2040 = vmatpush1.bf16.msra.mxu0 0
    %2041 = vmatprep.subr.bf16.mxu0 0
    %2042 = vmatpush1.bf16.msra.mxu0 0
    %2043 = vmatprep.mubr.bf16.mxu0 0
    %2044 = vmatmul.mubr.bf16.gmra.mrb[0].mxu0 %v547
    %v2045 = vpop.f32.mrb[0].mxu0
    %v2046 = vadd.f32 0.0, %v2045
    %v2047 = vpop.f32.mrb[0].mxu0
    %v2048 = vpop.f32.mrb[0].mxu0
    %v2049 = vadd.f32 0.0, %v2048
    %v2050 = vpop.f32.mrb[0].mxu0
    %2051 = vmatprep.mubr.bf16.mxu0 0
    %2052 = vmatmul.mubr.bf16.gmra.mrb[0].mxu0 %v548
    %v2053 = vpop.f32.mrb[0].mxu0
    %v2054 = vadd.f32 0.0, %v2053
    %v2055 = vpop.f32.mrb[0].mxu0
    %v2056 = vpop.f32.mrb[0].mxu0
    %v2057 = vadd.f32 0.0, %v2056
    %v2058 = vpop.f32.mrb[0].mxu0
    %2059 = vmatprep.mubr.bf16.mxu0 0
    %2060 = vmatmul.mubr.bf16.gmra.mrb[0].mxu0 %v549
    %v2061 = vpop.f32.mrb[0].mxu0
    %v2062 = vadd.f32 0.0, %v2061
    %v2063 = vpop.f32.mrb[0].mxu0
    %v2064 = vpop.f32.mrb[0].mxu0
    %v2065 = vadd.f32 0.0, %v2064
    %v2066 = vpop.f32.mrb[0].mxu0
    %2067 = vmatprep.mubr.bf16.mxu0 0
    %2068 = vmatmul.mubr.bf16.gmra.mrb[0].mxu0 %v550
    %v2069 = vpop.f32.mrb[0].mxu0
    %v2070 = vadd.f32 0.0, %v2069
    %v2071 = vpop.f32.mrb[0].mxu0
    %v2072 = vpop.f32.mrb[0].mxu0
    %v2073 = vadd.f32 0.0, %v2072
    %v2074 = vpop.f32.mrb[0].mxu0
    %2075 = vmatprep.mubr.bf16.mxu0 0
    %2076 = vmatmul.mubr.bf16.gmra.mrb[0].mxu0 %v551
    %v2077 = vpop.f32.mrb[0].mxu0
    %v2078 = vadd.f32 0.0, %v2077
    %v2079 = vpop.f32.mrb[0].mxu0
    %v2080 = vpop.f32.mrb[0].mxu0
    %v2081 = vadd.f32 0.0, %v2080
    %v2082 = vpop.f32.mrb[0].mxu0
    %2083 = vmatprep.mubr.bf16.mxu0 0
    %2084 = vmatmul.mubr.bf16.gmra.mrb[0].mxu0 %v552
    %v2085 = vpop.f32.mrb[0].mxu0
    %v2086 = vadd.f32 0.0, %v2085
    %v2087 = vpop.f32.mrb[0].mxu0
    %v2088 = vpop.f32.mrb[0].mxu0
    %v2089 = vadd.f32 0.0, %v2088
    %v2090 = vpop.f32.mrb[0].mxu0
    %2091 = vmatprep.mubr.bf16.mxu0 0
    %2092 = vmatmul.mubr.bf16.gmra.mrb[0].mxu0 %v553
    %v2093 = vpop.f32.mrb[0].mxu0
    %v2094 = vadd.f32 0.0, %v2093
    %v2095 = vpop.f32.mrb[0].mxu0
    %v2096 = vpop.f32.mrb[0].mxu0
    %v2097 = vadd.f32 0.0, %v2096
    %v2098 = vpop.f32.mrb[0].mxu0
    %2099 = vmatprep.mubr.bf16.mxu0 0
    %2100 = vmatmul.mubr.bf16.gmra.mrb[0].mxu0 %v554
    %v2101 = vpop.f32.mrb[0].mxu0
    %v2102 = vadd.f32 0.0, %v2101
    %v2103 = vpop.f32.mrb[0].mxu0
    %v2104 = vpop.f32.mrb[0].mxu0
    %v2105 = vadd.f32 0.0, %v2104
    %v2106 = vpop.f32.mrb[0].mxu0
    %2107 = vdwg.mxu0
    %v2108 = vadd.f32 %v1930, %v2046
    %v2109 = vadd.f32 %v1931, %v2049
    %v2110 = vadd.f32 %v1932, %v2054
    %v2111 = vadd.f32 %v1933, %v2057
    %v2112 = vadd.f32 %v1934, %v2062
    %v2113 = vadd.f32 %v1935, %v2065
    %v2114 = vadd.f32 %v1936, %v2070
    %v2115 = vadd.f32 %v1937, %v2073
    %v2116 = vadd.f32 %v1938, %v2078
    %v2117 = vadd.f32 %v1939, %v2081
    %v2118 = vadd.f32 %v1940, %v2086
    %v2119 = vadd.f32 %v1941, %v2089
    %v2120 = vadd.f32 %v1942, %v2094
    %v2121 = vadd.f32 %v1943, %v2097
    %v2122 = vadd.f32 %v1944, %v2102
    %v2123 = vadd.f32 %v1945, %v2105
    %v2124 = vld [vmem:[#allocation8] sm:$0x1]
    %v2126 = vlaneseq
    %v2127 = vshrl.u32 %v2126, 7
    %v2128 = vsub.s32 0, %v2127
    %v2129 = vrot.slane %v2124, %v2128
    %v2131 = vadd.f32 %v2108, %v2129
    %v2132 = vadd.f32 %v2109, %v2129
    %v2133 = vadd.f32 %v2110, %v2129
    %v2134 = vadd.f32 %v2111, %v2129
    %v2135 = vadd.f32 %v2112, %v2129
    %v2136 = vadd.f32 %v2113, %v2129
    %v2137 = vadd.f32 %v2114, %v2129
    %v2138 = vadd.f32 %v2115, %v2129
    %v2139 = vadd.f32 %v2116, %v2129
    %v2140 = vadd.f32 %v2117, %v2129
    %v2141 = vadd.f32 %v2118, %v2129
    %v2142 = vadd.f32 %v2119, %v2129
    %v2143 = vadd.f32 %v2120, %v2129
    %v2144 = vadd.f32 %v2121, %v2129
    %v2145 = vadd.f32 %v2122, %v2129
    %v2146 = vadd.f32 %v2123, %v2129
    %v2147 = vmax.f32 %v2131, 0.0
    %v2148 = vmax.f32 %v2132, 0.0
    %v2149 = vmax.f32 %v2133, 0.0
    %v2150 = vmax.f32 %v2134, 0.0
    %v2151 = vmax.f32 %v2135, 0.0
    %v2152 = vmax.f32 %v2136, 0.0
    %v2153 = vmax.f32 %v2137, 0.0
    %v2154 = vmax.f32 %v2138, 0.0
    %v2155 = vmax.f32 %v2139, 0.0
    %v2156 = vmax.f32 %v2140, 0.0
    %v2157 = vmax.f32 %v2141, 0.0
    %v2158 = vmax.f32 %v2142, 0.0
    %v2159 = vmax.f32 %v2143, 0.0
    %v2160 = vmax.f32 %v2144, 0.0
    %v2161 = vmax.f32 %v2145, 0.0
    %v2162 = vmax.f32 %v2146, 0.0
    %v2163 = vadd.f32 %v2147, %v2148
    %v2164 = vadd.f32 %v2163, %v2149
    %v2165 = vadd.f32 %v2164, %v2150
    %v2166 = vadd.f32 %v2165, %v2151
    %v2167 = vadd.f32 %v2166, %v2152
    %v2168 = vadd.f32 %v2167, %v2153
    %v2169 = vadd.f32 %v2168, %v2154
    %v2170 = vadd.f32 %v2169, %v2155
    %v2171 = vadd.f32 %v2170, %v2156
    %v2172 = vadd.f32 %v2171, %v2157
    %v2173 = vadd.f32 %v2172, %v2158
    %v2174 = vadd.f32 %v2173, %v2159
    %v2175 = vadd.f32 %v2174, %v2160
    %v2176 = vadd.f32 %v2175, %v2161
    %v2177 = vadd.f32 %v2176, %v2162
    %v2178 = vrot.slane %v2177, 4
    %v2179 = vadd.f32 %v2177, %v2178
    %v2180 = vrot.slane %v2179, 2
    %v2181 = vadd.f32 %v2179, %v2180
    %v2182 = vrot.slane %v2181, 1
    %v2183 = vadd.f32 %v2181, %v2182
    %v2184 = vmul.f32 %v2147, %v2147
    %v2185 = vmul.f32 %v2148, %v2148
    %v2186 = vmul.f32 %v2149, %v2149
    %v2187 = vmul.f32 %v2150, %v2150
    %v2188 = vmul.f32 %v2151, %v2151
    %v2189 = vmul.f32 %v2152, %v2152
    %v2190 = vmul.f32 %v2153, %v2153
    %v2191 = vmul.f32 %v2154, %v2154
    %v2192 = vmul.f32 %v2155, %v2155
    %v2193 = vmul.f32 %v2156, %v2156
    %v2194 = vmul.f32 %v2157, %v2157
    %v2195 = vmul.f32 %v2158, %v2158
    %v2196 = vmul.f32 %v2159, %v2159
    %v2197 = vmul.f32 %v2160, %v2160
    %v2198 = vmul.f32 %v2161, %v2161
    %v2199 = vmul.f32 %v2162, %v2162
    %v2200 = vadd.f32 %v2184, %v2185
    %v2201 = vadd.f32 %v2200, %v2186
    %v2202 = vadd.f32 %v2201, %v2187
    %v2203 = vadd.f32 %v2202, %v2188
    %v2204 = vadd.f32 %v2203, %v2189
    %v2205 = vadd.f32 %v2204, %v2190
    %v2206 = vadd.f32 %v2205, %v2191
    %v2207 = vadd.f32 %v2206, %v2192
    %v2208 = vadd.f32 %v2207, %v2193
    %v2209 = vadd.f32 %v2208, %v2194
    %v2210 = vadd.f32 %v2209, %v2195
    %v2211 = vadd.f32 %v2210, %v2196
    %v2212 = vadd.f32 %v2211, %v2197
    %v2213 = vadd.f32 %v2212, %v2198
    %v2214 = vadd.f32 %v2213, %v2199
    %v2215 = vrot.slane %v2214, 4
    %v2216 = vadd.f32 %v2214, %v2215
    %v2217 = vrot.slane %v2216, 2
    %v2218 = vadd.f32 %v2216, %v2217
    %v2219 = vrot.slane %v2218, 1
    %v2220 = vadd.f32 %v2218, %v2219
    %vm2221 = vcmask 1040384
    %v2222 = vsel %vm2221, %v2183, %v2220
    %2223 = vst [vmem:[#allocation11] sm:$0x3] %v2222
    %v2224 = vpack.c.bf16 %v2148, %v2147
    %v2225 = vpack.c.bf16 %v2150, %v2149
    %v2226 = vpack.c.bf16 %v2152, %v2151
    %v2227 = vpack.c.bf16 %v2154, %v2153
    %v2228 = vpack.c.bf16 %v2156, %v2155
    %v2229 = vpack.c.bf16 %v2158, %v2157
    %v2230 = vpack.c.bf16 %v2160, %v2159
    %v2231 = vpack.c.bf16 %v2162, %v2161
    %v2240 = vunpack.c.l.b16 %v2224
    %v2241 = vunpack.c.h.b16 %v2224
    %v2242 = vunpack.c.l.b16 %v2225
    %v2243 = vunpack.c.h.b16 %v2225
    %v2244 = vunpack.c.l.b16 %v2226
    %v2245 = vunpack.c.h.b16 %v2226
    %v2246 = vunpack.c.l.b16 %v2227
    %v2247 = vunpack.c.h.b16 %v2227
    %v2248 = vunpack.c.l.b16 %v2228
    %v2249 = vunpack.c.h.b16 %v2228
    %v2250 = vunpack.c.l.b16 %v2229
    %v2251 = vunpack.c.h.b16 %v2229
    %v2252 = vunpack.c.l.b16 %v2230
    %v2253 = vunpack.c.h.b16 %v2230
    %v2254 = vunpack.c.l.b16 %v2231
    %v2255 = vunpack.c.h.b16 %v2231
    %v2256 = vpack.c.b16 %v2240, %v2240
    %v2257 = vpack.c.b16 %v2241, %v2241
    %v2258 = vpack.c.b16 %v2242, %v2242
    %v2259 = vpack.c.b16 %v2243, %v2243
    %v2260 = vpack.c.b16 %v2244, %v2244
    %v2261 = vpack.c.b16 %v2245, %v2245
    %v2262 = vpack.c.b16 %v2246, %v2246
    %v2263 = vpack.c.b16 %v2247, %v2247
    %v2264 = vpack.c.b16 %v2248, %v2248
    %v2265 = vpack.c.b16 %v2249, %v2249
    %v2266 = vpack.c.b16 %v2250, %v2250
    %v2267 = vpack.c.b16 %v2251, %v2251
    %v2268 = vpack.c.b16 %v2252, %v2252
    %v2269 = vpack.c.b16 %v2253, %v2253
    %v2270 = vpack.c.b16 %v2254, %v2254
    %v2271 = vpack.c.b16 %v2255, %v2255
    %2288 = vst [vmem:[#allocation10] sm:$0xf] %v2256
    %2289 = vst [vmem:[#allocation10 + $0x4] sm:$0xf] %v2257
    %2290 = vst [vmem:[#allocation10 + $0x8] sm:$0xf] %v2258
    %2291 = vst [vmem:[#allocation10 + $0xc] sm:$0xf] %v2259
    %2292 = vst [vmem:[#allocation10 + $0x10] sm:$0xf] %v2260
    %2293 = vst [vmem:[#allocation10 + $0x14] sm:$0xf] %v2261
    %2294 = vst [vmem:[#allocation10 + $0x18] sm:$0xf] %v2262
    %2295 = vst [vmem:[#allocation10 + $0x1c] sm:$0xf] %v2263
    %2296 = vst [vmem:[#allocation10 + $0x20] sm:$0xf] %v2264
    %2297 = vst [vmem:[#allocation10 + $0x24] sm:$0xf] %v2265
    %2298 = vst [vmem:[#allocation10 + $0x28] sm:$0xf] %v2266
    %2299 = vst [vmem:[#allocation10 + $0x2c] sm:$0xf] %v2267
    %2300 = vst [vmem:[#allocation10 + $0x30] sm:$0xf] %v2268
    %2301 = vst [vmem:[#allocation10 + $0x34] sm:$0xf] %v2269
    %2302 = vst [vmem:[#allocation10 + $0x38] sm:$0xf] %v2270
    %2303 = vst [vmem:[#allocation10 + $0x3c] sm:$0xf] %v2271
    // Predicated region
    $region34: #{vae_encoder_forward.4} parent=1 // pred_check
      _
    $region35: #{vae_encoder_forward.4} parent=1 // pred_check_branch
      %2305 = sbr.rel (0) target = $region37
    $region36: #{vae_encoder_forward.4} parent=1 // pred_region
      %s2307 = ssub.s32 1024, 1024
      %2308 = vsyncadd [#allocation4], %s2307
      %s2309 = sshll.u32 [#allocation10], 4
      %s2310 = int_to_ptr.vmem [resolvable:$true] %s2309
      %2315 = dma.vmem_to_hbm [thread:$0]  %s2310, 1024, %s4, [#allocation4], 64, 64, 4
    $region37: #{vae_encoder_forward.4} parent=1 // pred_fallthru
      _
    // Predicated region
    $region38: #{vae_encoder_forward.4} parent=1 // pred_check
      _
    $region39: #{vae_encoder_forward.4} parent=1 // pred_check_branch
      %2317 = sbr.rel (0) target = $region41
    $region40: #{vae_encoder_forward.4} parent=1 // pred_region
      %s2319 = ssub.s32 32, 32
      %2320 = vsyncadd [#allocation12], %s2319
      %s2322 = sshll.u32 [#allocation11], 4
      %s2323 = int_to_ptr.vmem [resolvable:$true] %s2322
      %2325 = dma.vmem_to_hbm [thread:$0]  %s2323, 32, %s5, [#allocation12]
    $region41: #{vae_encoder_forward.4} parent=1 // pred_fallthru
      _
    // Predicated region
    $region42: #{vae_encoder_forward.4} parent=1 // pred_check
      _
    $region43: #{vae_encoder_forward.4} parent=1 // pred_check_branch
      %2327 = sbr.rel (0) target = $region45
    $region44: #{vae_encoder_forward.4} parent=1 // pred_region
      %2328 = dma.done [#allocation4], 1024
    $region45: #{vae_encoder_forward.4} parent=1 // pred_fallthru
      _
    // Predicated region
    $region46: #{vae_encoder_forward.4} parent=1 // pred_check
      _
    $region47: #{vae_encoder_forward.4} parent=1 // pred_check_branch
      %2330 = sbr.rel (0) target = $region49
    $region48: #{vae_encoder_forward.4} parent=1 // pred_region
      %2331 = dma.done [#allocation12], 32
    $region49: #{vae_encoder_forward.4} parent=1 // pred_fallthru
      _
    %2332 = vsyncpa [#allocation3], 1
    %2333 = vsyncpa [#allocation6], 1
    %2334 = vsyncpa [#allocation9], 1
    %2335 = vsyncpa [#allocation4], 1
    %2336 = vsyncpa [#allocation12], 1

// kernel: vae_encoder_forward.5
$region0: #{vae_encoder_forward.5}
  #allocation0 [shape = 'u32[]', space=smem, size = 0x4, offset = 0x4, fixed_abs, tag = 'smem constant byte address 0x4 - core index']
  #allocation1 [shape = 'u32[144,128]{1,0:T(1,128)}', space=vmem, size = 0x12000, scoped, tag = 'internal scratch']
  %s0 = inlined_call_operand.hbm [shape: bf16[1,128], index: 0, kind: input, shape index: {}]
  %s1 = inlined_call_operand.hbm [shape: bf16[8,16,128], index: 1, kind: input, shape index: {}]
  %s2 = inlined_call_operand.hbm [shape: bf16[9,128,256], index: 2, kind: input, shape index: {}]
  %s3 = inlined_call_operand.hbm [shape: f32[1,256], index: 3, kind: input, shape index: {}]
  %s4 = inlined_call_operand.hbm [shape: bf16[4,8,256], index: 4, kind: output, shape index: {0}]
  %s5 = inlined_call_operand.hbm [shape: f32[1,2,256], index: 5, kind: output, shape index: {1}]
  %6 = xla_tuple %s4, %s5
  %s7 = sld [smem:[#allocation0]]
  $region50: #{vae_encoder_forward.5} parent=0
    _
  %s9 = ssub.s32 1, %s7
  %s10 = scalar_select 0, %s9, %s7
  $region1: #{vae_encoder_forward.5} parent=0
    #allocation2 [shape = 'u8[512]{0}', space=vmem, size = 0x400, scoped, tag = 'input window, operand 0, single buffered']
    #allocation3 [shape = 's32[1]{0}', space=sflag, size = 0x4, scoped, tag = 'scoped memory for vae_encoder_forward.5']
    #allocation4 [shape = 's32[1]{0}', space=sflag, size = 0x4, scoped, tag = 'scoped memory for vae_encoder_forward.5']
    #allocation5 [shape = 'u8[32768]{0}', space=vmem, size = 0x8000, scoped, tag = 'input window, operand 1, single buffered']
    #allocation6 [shape = 's32[1]{0}', space=sflag, size = 0x4, scoped, tag = 'scoped memory for vae_encoder_forward.5']
    #allocation7 [shape = 'u8[589824]{0}', space=vmem, size = 0x90000, scoped, tag = 'input window, operand 2, single buffered']
    #allocation8 [shape = 'u8[1024]{0}', space=vmem, size = 0x400, scoped, tag = 'input window, operand 3, single buffered']
    #allocation9 [shape = 's32[1]{0}', space=sflag, size = 0x4, scoped, tag = 'scoped memory for vae_encoder_forward.5']
    #allocation10 [shape = 'u8[16384]{0}', space=vmem, size = 0x4000, scoped, tag = 'output window, operand 0, single buffered']
    #allocation11 [shape = 'u8[2048]{0}', space=vmem, size = 0x800, scoped, tag = 'output window, operand 1, single buffered']
    #allocation12 [shape = 's32[1]{0}', space=sflag, size = 0x4, scoped, tag = 'scoped memory for vae_encoder_forward.5']
    %11 = vsyncpa [#allocation3], 0
    %12 = vsyncpa [#allocation6], 0
    %13 = vsyncpa [#allocation9], 0
    %14 = vsyncpa [#allocation4], 0
    %15 = vsyncpa [#allocation12], 0
    // Predicated region
    $region2: #{vae_encoder_forward.5} parent=1 // pred_check
      _
    $region3: #{vae_encoder_forward.5} parent=1 // pred_check_branch
      %17 = sbr.rel (0) target = $region5
    $region4: #{vae_encoder_forward.5} parent=1 // pred_region
      %s19 = ssub.s32 16, 16
      %20 = vsyncadd [#allocation3], %s19
      %s22 = sshll.u32 [#allocation2], 4
      %s23 = int_to_ptr.vmem [resolvable:$true] %s22
      %25 = dma.hbm_to_vmem [thread:$0]  %s0, 16, %s23, [#allocation3]
    $region5: #{vae_encoder_forward.5} parent=1 // pred_fallthru
      _
    // Predicated region
    $region6: #{vae_encoder_forward.5} parent=1 // pred_check
      _
    $region7: #{vae_encoder_forward.5} parent=1 // pred_check_branch
      %27 = sbr.rel (0) target = $region9
    $region8: #{vae_encoder_forward.5} parent=1 // pred_region
      %s29 = ssub.s32 1024, 1024
      %30 = vsyncadd [#allocation6], %s29
      %s31 = sshll.u32 [#allocation5], 4
      %s32 = int_to_ptr.vmem [resolvable:$true] %s31
      %37 = dma.hbm_to_vmem [thread:$0]  %s1, 1024, %s32, [#allocation6], 64, 64, 4
    $region9: #{vae_encoder_forward.5} parent=1 // pred_fallthru
      _
    // Predicated region
    $region10: #{vae_encoder_forward.5} parent=1 // pred_check
      _
    $region11: #{vae_encoder_forward.5} parent=1 // pred_check_branch
      %39 = sbr.rel (0) target = $region13
    $region12: #{vae_encoder_forward.5} parent=1 // pred_region
      %s41 = ssub.s32 18432, 18432
      %42 = vsyncadd [#allocation6], %s41
      %s43 = sshll.u32 [#allocation7], 4
      %s44 = int_to_ptr.vmem [resolvable:$true] %s43
      %49 = dma.hbm_to_vmem [thread:$0]  %s2, 18432, %s44, [#allocation6], 128, 128, 8
    $region13: #{vae_encoder_forward.5} parent=1 // pred_fallthru
      _
    // Predicated region
    $region14: #{vae_encoder_forward.5} parent=1 // pred_check
      _
    $region15: #{vae_encoder_forward.5} parent=1 // pred_check_branch
      %51 = sbr.rel (0) target = $region17
    $region16: #{vae_encoder_forward.5} parent=1 // pred_region
      %s53 = ssub.s32 32, 32
      %54 = vsyncadd [#allocation9], %s53
      %s56 = sshll.u32 [#allocation8], 4
      %s57 = int_to_ptr.vmem [resolvable:$true] %s56
      %59 = dma.hbm_to_vmem [thread:$0]  %s3, 32, %s57, [#allocation9]
    $region17: #{vae_encoder_forward.5} parent=1 // pred_fallthru
      _
    // Predicated region
    $region18: #{vae_encoder_forward.5} parent=1 // pred_check
      _
    $region19: #{vae_encoder_forward.5} parent=1 // pred_check_branch
      %61 = sbr.rel (0) target = $region21
    $region20: #{vae_encoder_forward.5} parent=1 // pred_region
      %62 = dma.done [#allocation3], 16
    $region21: #{vae_encoder_forward.5} parent=1 // pred_fallthru
      _
    // Predicated region
    $region22: #{vae_encoder_forward.5} parent=1 // pred_check
      _
    $region23: #{vae_encoder_forward.5} parent=1 // pred_check_branch
      %64 = sbr.rel (0) target = $region25
    $region24: #{vae_encoder_forward.5} parent=1 // pred_region
      %65 = dma.done [#allocation6], 1024
    $region25: #{vae_encoder_forward.5} parent=1 // pred_fallthru
      _
    // Predicated region
    $region26: #{vae_encoder_forward.5} parent=1 // pred_check
      _
    $region27: #{vae_encoder_forward.5} parent=1 // pred_check_branch
      %67 = sbr.rel (0) target = $region29
    $region28: #{vae_encoder_forward.5} parent=1 // pred_region
      %68 = dma.done [#allocation6], 18432
    $region29: #{vae_encoder_forward.5} parent=1 // pred_fallthru
      _
    // Predicated region
    $region30: #{vae_encoder_forward.5} parent=1 // pred_check
      _
    $region31: #{vae_encoder_forward.5} parent=1 // pred_check_branch
      %70 = sbr.rel (0) target = $region33
    $region32: #{vae_encoder_forward.5} parent=1 // pred_region
      %71 = dma.done [#allocation9], 32
    $region33: #{vae_encoder_forward.5} parent=1 // pred_fallthru
      _
    %v75 = vld [vmem:[#allocation5] sm:$0xf]
    %v76 = vld [vmem:[#allocation5 + $0x4] sm:$0xf]
    %v77 = vld [vmem:[#allocation5 + $0x8] sm:$0xf]
    %v78 = vld [vmem:[#allocation5 + $0xc] sm:$0xf]
    %v79 = vld [vmem:[#allocation5 + $0x10] sm:$0xf]
    %v80 = vld [vmem:[#allocation5 + $0x14] sm:$0xf]
    %v81 = vld [vmem:[#allocation5 + $0x18] sm:$0xf]
    %v82 = vld [vmem:[#allocation5 + $0x1c] sm:$0xf]
    %v83 = vld [vmem:[#allocation5 + $0x20] sm:$0xf]
    %v84 = vld [vmem:[#allocation5 + $0x24] sm:$0xf]
    %v85 = vld [vmem:[#allocation5 + $0x28] sm:$0xf]
    %v86 = vld [vmem:[#allocation5 + $0x2c] sm:$0xf]
    %v87 = vld [vmem:[#allocation5 + $0x30] sm:$0xf]
    %v88 = vld [vmem:[#allocation5 + $0x34] sm:$0xf]
    %v89 = vld [vmem:[#allocation5 + $0x38] sm:$0xf]
    %v90 = vld [vmem:[#allocation5 + $0x3c] sm:$0xf]
    %v91 = vld [vmem:[#allocation2] sm:$0x1]
    %v93 = vpack.i.b16 %v91, %v91
    %v95 = vlaneseq
    %v96 = vshrl.u32 %v95, 7
    %v97 = vsub.s32 0, %v96
    %v98 = vrot.slane %v93, %v97
    %v100 = vunpack.c.l.b16 %v98
    %v101 = vpack.c.b16 %v100, %v100
    %v103 = vadd.bf16 %v75, %v101
    %v104 = vadd.bf16 %v76, %v101
    %v105 = vadd.bf16 %v77, %v101
    %v106 = vadd.bf16 %v78, %v101
    %v107 = vadd.bf16 %v79, %v101
    %v108 = vadd.bf16 %v80, %v101
    %v109 = vadd.bf16 %v81, %v101
    %v110 = vadd.bf16 %v82, %v101
    %v111 = vadd.bf16 %v83, %v101
    %v112 = vadd.bf16 %v84, %v101
    %v113 = vadd.bf16 %v85, %v101
    %v114 = vadd.bf16 %v86, %v101
    %v115 = vadd.bf16 %v87, %v101
    %v116 = vadd.bf16 %v88, %v101
    %v117 = vadd.bf16 %v89, %v101
    %v118 = vadd.bf16 %v90, %v101
    %v135 = vunpack.c.l.b16 %v103
    %v136 = vunpack.c.l.b16 %v104
    %v137 = vunpack.c.l.b16 %v105
    %v138 = vunpack.c.l.b16 %v106
    %v139 = vunpack.c.l.b16 %v107
    %v140 = vunpack.c.l.b16 %v108
    %v141 = vunpack.c.l.b16 %v109
    %v142 = vunpack.c.l.b16 %v110
    %v143 = vunpack.c.l.b16 %v111
    %v144 = vunpack.c.l.b16 %v112
    %v145 = vunpack.c.l.b16 %v113
    %v146 = vunpack.c.l.b16 %v114
    %v147 = vunpack.c.l.b16 %v115
    %v148 = vunpack.c.l.b16 %v116
    %v149 = vunpack.c.l.b16 %v117
    %v150 = vunpack.c.l.b16 %v118
    %v151 = vpack.c.b16 %v136, %v135
    %v152 = vpack.c.b16 %v138, %v137
    %v153 = vpack.c.b16 %v140, %v139
    %v154 = vpack.c.b16 %v142, %v141
    %v155 = vpack.c.b16 %v144, %v143
    %v156 = vpack.c.b16 %v146, %v145
    %v157 = vpack.c.b16 %v148, %v147
    %v158 = vpack.c.b16 %v150, %v149
    %v167 = vlaneseq
    %v168 = vshrl.u32 %v167, 7
    %v169 = vadd.s32 %v168, 8
    %v170 = vadd.s32 %v168, 16
    %v171 = vadd.s32 %v168, 24
    %v172 = vadd.s32 %v168, 32
    %v173 = vadd.s32 %v168, 40
    %v174 = vadd.s32 %v168, 48
    %v175 = vadd.s32 %v168, 56
    %v176 = vadd.s32 %v168, 64
    %v177 = vadd.s32 %v168, 72
    %v178 = vadd.s32 %v168, 80
    %v179 = vadd.s32 %v168, 88
    %v180 = vadd.s32 %v168, 96
    %v181 = vadd.s32 %v168, 104
    %v182 = vadd.s32 %v168, 112
    %v183 = vadd.s32 %v168, 120
    %v184 = vadd.s32 %v168, 128
    %v185 = vadd.s32 %v168, 136
    %v186 = vadd.s32 %v168, 144
    %v187 = vadd.s32 %v168, 152
    %v188 = vand.u32 %v168, 7
    %v189 = vand.u32 %v169, 7
    %v190 = vand.u32 %v170, 7
    %v191 = vand.u32 %v171, 7
    %v192 = vand.u32 %v172, 7
    %v193 = vand.u32 %v173, 7
    %v194 = vand.u32 %v174, 7
    %v195 = vand.u32 %v175, 7
    %v196 = vand.u32 %v176, 7
    %v197 = vand.u32 %v177, 7
    %v198 = vand.u32 %v178, 7
    %v199 = vand.u32 %v179, 7
    %v200 = vand.u32 %v180, 7
    %v201 = vand.u32 %v181, 7
    %v202 = vand.u32 %v182, 7
    %v203 = vand.u32 %v183, 7
    %v204 = vand.u32 %v184, 7
    %v205 = vand.u32 %v185, 7
    %v206 = vand.u32 %v186, 7
    %v207 = vand.u32 %v187, 7
    %vm208 = vcmp.eq.s32.totalorder %v188, 0
    %vm209 = vcmp.eq.s32.totalorder %v189, 0
    %vm210 = vcmp.eq.s32.totalorder %v190, 0
    %vm211 = vcmp.eq.s32.totalorder %v191, 0
    %vm212 = vcmp.eq.s32.totalorder %v192, 0
    %vm213 = vcmp.eq.s32.totalorder %v193, 0
    %vm214 = vcmp.eq.s32.totalorder %v194, 0
    %vm215 = vcmp.eq.s32.totalorder %v195, 0
    %vm216 = vcmp.eq.s32.totalorder %v196, 0
    %vm217 = vcmp.eq.s32.totalorder %v197, 0
    %vm218 = vcmp.eq.s32.totalorder %v198, 0
    %vm219 = vcmp.eq.s32.totalorder %v199, 0
    %vm220 = vcmp.eq.s32.totalorder %v200, 0
    %vm221 = vcmp.eq.s32.totalorder %v201, 0
    %vm222 = vcmp.eq.s32.totalorder %v202, 0
    %vm223 = vcmp.eq.s32.totalorder %v203, 0
    %vm224 = vcmp.eq.s32.totalorder %v204, 0
    %vm225 = vcmp.eq.s32.totalorder %v205, 0
    %vm226 = vcmp.eq.s32.totalorder %v206, 0
    %vm227 = vcmp.eq.s32.totalorder %v207, 0
    %vm228 = vsmask.f32 256
    %v230 = vshrl.u32 0, 16
    %v232 = vrot.slane %v230, 7
    %v233 = vshll.u32 0, 16
    %v235 = vor.u32 %v232, %v233
    %v237 = vshrl.u32 %v151, 16
    %v239 = vrot.slane %v237, 7
    %v240 = vshll.u32 %v151, 16
    %v242 = vor.u32 %v239, %v240
    %v243 = vsel %vm228, %v232, %v242
    %v245 = vshrl.u32 %v152, 16
    %v247 = vrot.slane %v245, 7
    %v248 = vshll.u32 %v152, 16
    %v250 = vor.u32 %v247, %v248
    %v251 = vsel %vm228, %v239, %v250
    %v253 = vshrl.u32 %v153, 16
    %v255 = vrot.slane %v253, 7
    %v256 = vshll.u32 %v153, 16
    %v258 = vor.u32 %v255, %v256
    %v259 = vsel %vm228, %v247, %v258
    %v261 = vshrl.u32 %v154, 16
    %v263 = vrot.slane %v261, 7
    %v264 = vshll.u32 %v154, 16
    %v266 = vor.u32 %v263, %v264
    %v267 = vsel %vm228, %v255, %v266
    %v269 = vshrl.u32 %v155, 16
    %v271 = vrot.slane %v269, 7
    %v272 = vshll.u32 %v155, 16
    %v274 = vor.u32 %v271, %v272
    %v275 = vsel %vm228, %v263, %v274
    %v277 = vshrl.u32 %v156, 16
    %v279 = vrot.slane %v277, 7
    %v280 = vshll.u32 %v156, 16
    %v282 = vor.u32 %v279, %v280
    %v283 = vsel %vm228, %v271, %v282
    %v285 = vshrl.u32 %v157, 16
    %v287 = vrot.slane %v285, 7
    %v288 = vshll.u32 %v157, 16
    %v290 = vor.u32 %v287, %v288
    %v291 = vsel %vm228, %v279, %v290
    %v293 = vshrl.u32 %v158, 16
    %v295 = vrot.slane %v293, 7
    %v296 = vshll.u32 %v158, 16
    %v298 = vor.u32 %v295, %v296
    %v299 = vsel %vm228, %v287, %v298
    %v300 = vsel %vm228, %v295, %v235
    %vm311 = vcmask 1040384
    %vm312 = vmand %vm311, %vm228
    %v313 = vsel %vm312, 0, %v235
    %vm314 = vmpackc.low %vm208, %vm208
    %vm315 = vmpackc.low %vm209, %vm209
    %vm316 = vmpackc.low %vm210, %vm210
    %vm317 = vmpackc.low %vm211, %vm211
    %vm318 = vmpackc.low %vm212, %vm212
    %vm319 = vmpackc.low %vm213, %vm213
    %vm320 = vmpackc.low %vm214, %vm214
    %vm321 = vmpackc.low %vm215, %vm215
    %vm322 = vmpackc.low %vm216, %vm216
    %vm323 = vmpackc.low %vm217, %vm217
    %vm324 = vmpackc.low %vm218, %vm218
    %vm325 = vmpackc.low %vm219, %vm219
    %vm326 = vmpackc.low %vm220, %vm220
    %vm327 = vmpackc.low %vm221, %vm221
    %vm328 = vmpackc.low %vm222, %vm222
    %vm329 = vmpackc.low %vm223, %vm223
    %vm330 = vmpackc.low %vm224, %vm224
    %vm331 = vmpackc.low %vm225, %vm225
    %vm332 = vmpackc.low %vm226, %vm226
    %vm333 = vmpackc.low %vm227, %vm227
    %v334 = vsel %vm314, 65537, 0
    %v335 = vsel %vm315, 65537, 0
    %v336 = vsel %vm316, 65537, 0
    %v337 = vsel %vm317, 65537, 0
    %v338 = vsel %vm318, 65537, 0
    %v339 = vsel %vm319, 65537, 0
    %v340 = vsel %vm320, 65537, 0
    %v341 = vsel %vm321, 65537, 0
    %v342 = vsel %vm322, 65537, 0
    %v343 = vsel %vm323, 65537, 0
    %v344 = vsel %vm324, 65537, 0
    %v345 = vsel %vm325, 65537, 0
    %v346 = vsel %vm326, 65537, 0
    %v347 = vsel %vm327, 65537, 0
    %v348 = vsel %vm328, 65537, 0
    %v349 = vsel %vm329, 65537, 0
    %v350 = vsel %vm330, 65537, 0
    %v351 = vsel %vm331, 65537, 0
    %v352 = vsel %vm332, 65537, 0
    %v353 = vsel %vm333, 65537, 0
    %v354 = vunpack.c.l.b16 %v334
    %v355 = vunpack.c.l.b16 %v335
    %v356 = vunpack.c.l.b16 %v336
    %v357 = vunpack.c.l.b16 %v337
    %v358 = vunpack.c.l.b16 %v338
    %v359 = vunpack.c.l.b16 %v339
    %v360 = vunpack.c.l.b16 %v340
    %v361 = vunpack.c.l.b16 %v341
    %v362 = vunpack.c.l.b16 %v342
    %v363 = vunpack.c.l.b16 %v343
    %v364 = vunpack.c.l.b16 %v344
    %v365 = vunpack.c.l.b16 %v345
    %v366 = vunpack.c.l.b16 %v346
    %v367 = vunpack.c.l.b16 %v347
    %v368 = vunpack.c.l.b16 %v348
    %v369 = vunpack.c.l.b16 %v349
    %v370 = vunpack.c.l.b16 %v350
    %v371 = vunpack.c.l.b16 %v351
    %v372 = vunpack.c.l.b16 %v352
    %v373 = vunpack.c.l.b16 %v353
    %v374 = vpack.c.b16 %v355, %v354
    %v375 = vpack.c.b16 %v357, %v356
    %v376 = vpack.c.b16 %v359, %v358
    %v377 = vpack.c.b16 %v361, %v360
    %v378 = vpack.c.b16 %v363, %v362
    %v379 = vpack.c.b16 %v365, %v364
    %v380 = vpack.c.b16 %v367, %v366
    %v381 = vpack.c.b16 %v369, %v368
    %v382 = vpack.c.b16 %v371, %v370
    %v383 = vpack.c.b16 %v373, %v372
    %vm384 = vcmp.ne.s16.totalorder %v374, 0
    %vm385 = vcmp.ne.s16.totalorder %v375, 0
    %vm386 = vcmp.ne.s16.totalorder %v376, 0
    %vm387 = vcmp.ne.s16.totalorder %v377, 0
    %vm388 = vcmp.ne.s16.totalorder %v378, 0
    %vm389 = vcmp.ne.s16.totalorder %v379, 0
    %vm390 = vcmp.ne.s16.totalorder %v380, 0
    %vm391 = vcmp.ne.s16.totalorder %v381, 0
    %vm392 = vcmp.ne.s16.totalorder %v382, 0
    %vm393 = vcmp.ne.s16.totalorder %v383, 0
    %v394 = vsel %vm384, 0, %v313
    %v395 = vsel %vm385, 0, %v243
    %v396 = vsel %vm386, 0, %v251
    %v397 = vsel %vm387, 0, %v259
    %v398 = vsel %vm388, 0, %v267
    %v399 = vsel %vm389, 0, %v275
    %v400 = vsel %vm390, 0, %v283
    %v401 = vsel %vm391, 0, %v291
    %v402 = vsel %vm392, 0, %v299
    %v403 = vsel %vm393, 0, %v300
    %vm404 = vcmp.eq.s32.totalorder %v188, 7
    %vm405 = vcmp.eq.s32.totalorder %v189, 7
    %vm406 = vcmp.eq.s32.totalorder %v190, 7
    %vm407 = vcmp.eq.s32.totalorder %v191, 7
    %vm408 = vcmp.eq.s32.totalorder %v192, 7
    %vm409 = vcmp.eq.s32.totalorder %v193, 7
    %vm410 = vcmp.eq.s32.totalorder %v194, 7
    %vm411 = vcmp.eq.s32.totalorder %v195, 7
    %vm412 = vcmp.eq.s32.totalorder %v196, 7
    %vm413 = vcmp.eq.s32.totalorder %v197, 7
    %vm414 = vcmp.eq.s32.totalorder %v198, 7
    %vm415 = vcmp.eq.s32.totalorder %v199, 7
    %vm416 = vcmp.eq.s32.totalorder %v200, 7
    %vm417 = vcmp.eq.s32.totalorder %v201, 7
    %vm418 = vcmp.eq.s32.totalorder %v202, 7
    %vm419 = vcmp.eq.s32.totalorder %v203, 7
    %vm420 = vcmp.eq.s32.totalorder %v204, 7
    %vm421 = vcmp.eq.s32.totalorder %v205, 7
    %vm422 = vcmp.eq.s32.totalorder %v206, 7
    %vm423 = vcmp.eq.s32.totalorder %v207, 7
    %vm424 = vsmask.f32 7424
    %v425 = vrot.slane %v233, 1
    %v426 = vor.u32 %v230, %v425
    %v427 = vrot.slane %v240, 1
    %v428 = vsel %vm424, %v426, %v427
    %v429 = vor.u32 %v237, %v427
    %v430 = vrot.slane %v248, 1
    %v431 = vsel %vm424, %v429, %v430
    %v432 = vor.u32 %v245, %v430
    %v433 = vrot.slane %v256, 1
    %v434 = vsel %vm424, %v432, %v433
    %v435 = vor.u32 %v253, %v433
    %v436 = vrot.slane %v264, 1
    %v437 = vsel %vm424, %v435, %v436
    %v438 = vor.u32 %v261, %v436
    %v439 = vrot.slane %v272, 1
    %v440 = vsel %vm424, %v438, %v439
    %v441 = vor.u32 %v269, %v439
    %v442 = vrot.slane %v280, 1
    %v443 = vsel %vm424, %v441, %v442
    %v444 = vor.u32 %v277, %v442
    %v445 = vrot.slane %v288, 1
    %v446 = vsel %vm424, %v444, %v445
    %v447 = vor.u32 %v285, %v445
    %v448 = vrot.slane %v296, 1
    %v449 = vsel %vm424, %v447, %v448
    %v450 = vor.u32 %v293, %v448
    %v451 = vsel %vm424, %v450, %v425
    %vm462 = vcmask 1047552
    %vm463 = vmand %vm462, %vm424
    %v464 = vsel %vm463, %v426, 0
    %vm465 = vmpackc.low %vm404, %vm404
    %vm466 = vmpackc.low %vm405, %vm405
    %vm467 = vmpackc.low %vm406, %vm406
    %vm468 = vmpackc.low %vm407, %vm407
    %vm469 = vmpackc.low %vm408, %vm408
    %vm470 = vmpackc.low %vm409, %vm409
    %vm471 = vmpackc.low %vm410, %vm410
    %vm472 = vmpackc.low %vm411, %vm411
    %vm473 = vmpackc.low %vm412, %vm412
    %vm474 = vmpackc.low %vm413, %vm413
    %vm475 = vmpackc.low %vm414, %vm414
    %vm476 = vmpackc.low %vm415, %vm415
    %vm477 = vmpackc.low %vm416, %vm416
    %vm478 = vmpackc.low %vm417, %vm417
    %vm479 = vmpackc.low %vm418, %vm418
    %vm480 = vmpackc.low %vm419, %vm419
    %vm481 = vmpackc.low %vm420, %vm420
    %vm482 = vmpackc.low %vm421, %vm421
    %vm483 = vmpackc.low %vm422, %vm422
    %vm484 = vmpackc.low %vm423, %vm423
    %v485 = vsel %vm465, 65537, 0
    %v486 = vsel %vm466, 65537, 0
    %v487 = vsel %vm467, 65537, 0
    %v488 = vsel %vm468, 65537, 0
    %v489 = vsel %vm469, 65537, 0
    %v490 = vsel %vm470, 65537, 0
    %v491 = vsel %vm471, 65537, 0
    %v492 = vsel %vm472, 65537, 0
    %v493 = vsel %vm473, 65537, 0
    %v494 = vsel %vm474, 65537, 0
    %v495 = vsel %vm475, 65537, 0
    %v496 = vsel %vm476, 65537, 0
    %v497 = vsel %vm477, 65537, 0
    %v498 = vsel %vm478, 65537, 0
    %v499 = vsel %vm479, 65537, 0
    %v500 = vsel %vm480, 65537, 0
    %v501 = vsel %vm481, 65537, 0
    %v502 = vsel %vm482, 65537, 0
    %v503 = vsel %vm483, 65537, 0
    %v504 = vsel %vm484, 65537, 0
    %v505 = vunpack.c.l.b16 %v485
    %v506 = vunpack.c.l.b16 %v486
    %v507 = vunpack.c.l.b16 %v487
    %v508 = vunpack.c.l.b16 %v488
    %v509 = vunpack.c.l.b16 %v489
    %v510 = vunpack.c.l.b16 %v490
    %v511 = vunpack.c.l.b16 %v491
    %v512 = vunpack.c.l.b16 %v492
    %v513 = vunpack.c.l.b16 %v493
    %v514 = vunpack.c.l.b16 %v494
    %v515 = vunpack.c.l.b16 %v495
    %v516 = vunpack.c.l.b16 %v496
    %v517 = vunpack.c.l.b16 %v497
    %v518 = vunpack.c.l.b16 %v498
    %v519 = vunpack.c.l.b16 %v499
    %v520 = vunpack.c.l.b16 %v500
    %v521 = vunpack.c.l.b16 %v501
    %v522 = vunpack.c.l.b16 %v502
    %v523 = vunpack.c.l.b16 %v503
    %v524 = vunpack.c.l.b16 %v504
    %v525 = vpack.c.b16 %v506, %v505
    %v526 = vpack.c.b16 %v508, %v507
    %v527 = vpack.c.b16 %v510, %v509
    %v528 = vpack.c.b16 %v512, %v511
    %v529 = vpack.c.b16 %v514, %v513
    %v530 = vpack.c.b16 %v516, %v515
    %v531 = vpack.c.b16 %v518, %v517
    %v532 = vpack.c.b16 %v520, %v519
    %v533 = vpack.c.b16 %v522, %v521
    %v534 = vpack.c.b16 %v524, %v523
    %vm535 = vcmp.ne.s16.totalorder %v525, 0
    %vm536 = vcmp.ne.s16.totalorder %v526, 0
    %vm537 = vcmp.ne.s16.totalorder %v527, 0
    %vm538 = vcmp.ne.s16.totalorder %v528, 0
    %vm539 = vcmp.ne.s16.totalorder %v529, 0
    %vm540 = vcmp.ne.s16.totalorder %v530, 0
    %vm541 = vcmp.ne.s16.totalorder %v531, 0
    %vm542 = vcmp.ne.s16.totalorder %v532, 0
    %vm543 = vcmp.ne.s16.totalorder %v533, 0
    %vm544 = vcmp.ne.s16.totalorder %v534, 0
    %v545 = vsel %vm535, 0, %v428
    %v546 = vsel %vm536, 0, %v431
    %v547 = vsel %vm537, 0, %v434
    %v548 = vsel %vm538, 0, %v437
    %v549 = vsel %vm539, 0, %v440
    %v550 = vsel %vm540, 0, %v443
    %v551 = vsel %vm541, 0, %v446
    %v552 = vsel %vm542, 0, %v449
    %v553 = vsel %vm543, 0, %v451
    %v554 = vsel %vm544, 0, %v464
    %v555 = vld [vmem:[#allocation7] sm:$0xff]
    %v556 = vld [vmem:[#allocation7 + $0x8] sm:$0xff]
    %v557 = vld [vmem:[#allocation7 + $0x10] sm:$0xff]
    %v558 = vld [vmem:[#allocation7 + $0x18] sm:$0xff]
    %v559 = vld [vmem:[#allocation7 + $0x20] sm:$0xff]
    %v560 = vld [vmem:[#allocation7 + $0x28] sm:$0xff]
    %v561 = vld [vmem:[#allocation7 + $0x30] sm:$0xff]
    %v562 = vld [vmem:[#allocation7 + $0x38] sm:$0xff]
    %v563 = vld [vmem:[#allocation7 + $0x40] sm:$0xff]
    %v564 = vld [vmem:[#allocation7 + $0x48] sm:$0xff]
    %v565 = vld [vmem:[#allocation7 + $0x50] sm:$0xff]
    %v566 = vld [vmem:[#allocation7 + $0x58] sm:$0xff]
    %v567 = vld [vmem:[#allocation7 + $0x60] sm:$0xff]
    %v568 = vld [vmem:[#allocation7 + $0x68] sm:$0xff]
    %v569 = vld [vmem:[#allocation7 + $0x70] sm:$0xff]
    %v570 = vld [vmem:[#allocation7 + $0x78] sm:$0xff]
    %s571 = scalar_lea.vmem [#allocation7], 128
    %v572 = vld [vmem:[%s571] sm:$0xff]
    %v573 = vld [vmem:[%s571 + $0x8] sm:$0xff]
    %v574 = vld [vmem:[%s571 + $0x10] sm:$0xff]
    %v575 = vld [vmem:[%s571 + $0x18] sm:$0xff]
    %v576 = vld [vmem:[%s571 + $0x20] sm:$0xff]
    %v577 = vld [vmem:[%s571 + $0x28] sm:$0xff]
    %v578 = vld [vmem:[%s571 + $0x30] sm:$0xff]
    %v579 = vld [vmem:[%s571 + $0x38] sm:$0xff]
    %v580 = vld [vmem:[%s571 + $0x40] sm:$0xff]
    %v581 = vld [vmem:[%s571 + $0x48] sm:$0xff]
    %v582 = vld [vmem:[%s571 + $0x50] sm:$0xff]
    %v583 = vld [vmem:[%s571 + $0x58] sm:$0xff]
    %v584 = vld [vmem:[%s571 + $0x60] sm:$0xff]
    %v585 = vld [vmem:[%s571 + $0x68] sm:$0xff]
    %v586 = vld [vmem:[%s571 + $0x70] sm:$0xff]
    %v587 = vld [vmem:[%s571 + $0x78] sm:$0xff]
    %v604 = vunpack.c.l.b16 %v572
    %v605 = vunpack.c.h.b16 %v572
    %v606 = vunpack.c.l.b16 %v573
    %v607 = vunpack.c.h.b16 %v573
    %v608 = vunpack.c.l.b16 %v574
    %v609 = vunpack.c.h.b16 %v574
    %v610 = vunpack.c.l.b16 %v575
    %v611 = vunpack.c.h.b16 %v575
    %v612 = vunpack.c.l.b16 %v576
    %v613 = vunpack.c.h.b16 %v576
    %v614 = vunpack.c.l.b16 %v577
    %v615 = vunpack.c.h.b16 %v577
    %v616 = vunpack.c.l.b16 %v578
    %v617 = vunpack.c.h.b16 %v578
    %v618 = vunpack.c.l.b16 %v579
    %v619 = vunpack.c.h.b16 %v579
    %v620 = vunpack.c.l.b16 %v580
    %v621 = vunpack.c.h.b16 %v580
    %v622 = vunpack.c.l.b16 %v581
    %v623 = vunpack.c.h.b16 %v581
    %v624 = vunpack.c.l.b16 %v582
    %v625 = vunpack.c.h.b16 %v582
    %v626 = vunpack.c.l.b16 %v583
    %v627 = vunpack.c.h.b16 %v583
    %v628 = vunpack.c.l.b16 %v584
    %v629 = vunpack.c.h.b16 %v584
    %v630 = vunpack.c.l.b16 %v585
    %v631 = vunpack.c.h.b16 %v585
    %v632 = vunpack.c.l.b16 %v586
    %v633 = vunpack.c.h.b16 %v586
    %v634 = vunpack.c.l.b16 %v587
    %v635 = vunpack.c.h.b16 %v587
    %v636 = vpack.c.b16 %v606, %v604
    %v637 = vpack.c.b16 %v607, %v605
    %v638 = vpack.c.b16 %v610, %v608
    %v639 = vpack.c.b16 %v611, %v609
    %v640 = vpack.c.b16 %v614, %v612
    %v641 = vpack.c.b16 %v615, %v613
    %v642 = vpack.c.b16 %v618, %v616
    %v643 = vpack.c.b16 %v619, %v617
    %v644 = vpack.c.b16 %v622, %v620
    %v645 = vpack.c.b16 %v623, %v621
    %v646 = vpack.c.b16 %v626, %v624
    %v647 = vpack.c.b16 %v627, %v625
    %v648 = vpack.c.b16 %v630, %v628
    %v649 = vpack.c.b16 %v631, %v629
    %v650 = vpack.c.b16 %v634, %v632
    %v651 = vpack.c.b16 %v635, %v633
    %668 = vmatprep.subr.bf16.mxu0 %v637
    %669 = vmatpush1.bf16.msra.mxu0 %v636
    %670 = vmatprep.subr.bf16.mxu0 %v639
    %671 = vmatpush1.bf16.msra.mxu0 %v638
    %672 = vmatprep.subr.bf16.mxu0 %v641
    %673 = vmatpush1.bf16.msra.mxu0 %v640
    %674 = vmatprep.subr.bf16.mxu0 %v643
    %675 = vmatpush1.bf16.msra.mxu0 %v642
    %676 = vmatprep.subr.bf16.mxu0 %v645
    %677 = vmatpush1.bf16.msra.mxu0 %v644
    %678 = vmatprep.subr.bf16.mxu0 %v647
    %679 = vmatpush1.bf16.msra.mxu0 %v646
    %680 = vmatprep.subr.bf16.mxu0 %v649
    %681 = vmatpush1.bf16.msra.mxu0 %v648
    %682 = vmatprep.subr.bf16.mxu0 %v651
    %683 = vmatpush1.bf16.msra.mxu0 %v650
    %684 = vmatprep.subr.bf16.mxu0 0
    %685 = vmatpush1.bf16.msra.mxu0 0
    %686 = vmatprep.subr.bf16.mxu0 0
    %687 = vmatpush1.bf16.msra.mxu0 0
    %688 = vmatprep.subr.bf16.mxu0 0
    %689 = vmatpush1.bf16.msra.mxu0 0
    %690 = vmatprep.subr.bf16.mxu0 0
    %691 = vmatpush1.bf16.msra.mxu0 0
    %692 = vmatprep.subr.bf16.mxu0 0
    %693 = vmatpush1.bf16.msra.mxu0 0
    %694 = vmatprep.subr.bf16.mxu0 0
    %695 = vmatpush1.bf16.msra.mxu0 0
    %696 = vmatprep.subr.bf16.mxu0 0
    %697 = vmatpush1.bf16.msra.mxu0 0
    %698 = vmatprep.subr.bf16.mxu0 0
    %699 = vmatpush1.bf16.msra.mxu0 0
    %700 = vmatprep.mubr.bf16.mxu0 0
    %701 = vmatmul.mubr.bf16.gmra.mrb[0].mxu0 0
    %v702 = vpop.f32.mrb[0].mxu0
    %v703 = vadd.f32 0.0, %v702
    %v704 = vpop.f32.mrb[0].mxu0
    %v705 = vadd.f32 0.0, %v704
    %v706 = vpop.f32.mrb[0].mxu0
    %v707 = vadd.f32 0.0, %v706
    %v708 = vpop.f32.mrb[0].mxu0
    %v709 = vadd.f32 0.0, %v708
    %710 = vmatprep.mubr.bf16.mxu0 0
    %711 = vmatmul.mubr.bf16.gmra.mrb[0].mxu0 %v151
    %v712 = vpop.f32.mrb[0].mxu0
    %v713 = vadd.f32 0.0, %v712
    %v714 = vpop.f32.mrb[0].mxu0
    %v715 = vadd.f32 0.0, %v714
    %v716 = vpop.f32.mrb[0].mxu0
    %v717 = vadd.f32 0.0, %v716
    %v718 = vpop.f32.mrb[0].mxu0
    %v719 = vadd.f32 0.0, %v718
    %720 = vmatprep.mubr.bf16.mxu0 0
    %721 = vmatmul.mubr.bf16.gmra.mrb[0].mxu0 %v152
    %v722 = vpop.f32.mrb[0].mxu0
    %v723 = vadd.f32 0.0, %v722
    %v724 = vpop.f32.mrb[0].mxu0
    %v725 = vadd.f32 0.0, %v724
    %v726 = vpop.f32.mrb[0].mxu0
    %v727 = vadd.f32 0.0, %v726
    %v728 = vpop.f32.mrb[0].mxu0
    %v729 = vadd.f32 0.0, %v728
    %730 = vmatprep.mubr.bf16.mxu0 0
    %731 = vmatmul.mubr.bf16.gmra.mrb[0].mxu0 %v153
    %v732 = vpop.f32.mrb[0].mxu0
    %v733 = vadd.f32 0.0, %v732
    %v734 = vpop.f32.mrb[0].mxu0
    %v735 = vadd.f32 0.0, %v734
    %v736 = vpop.f32.mrb[0].mxu0
    %v737 = vadd.f32 0.0, %v736
    %v738 = vpop.f32.mrb[0].mxu0
    %v739 = vadd.f32 0.0, %v738
    %740 = vmatprep.mubr.bf16.mxu0 0
    %741 = vmatmul.mubr.bf16.gmra.mrb[0].mxu0 %v154
    %v742 = vpop.f32.mrb[0].mxu0
    %v743 = vadd.f32 0.0, %v742
    %v744 = vpop.f32.mrb[0].mxu0
    %v745 = vadd.f32 0.0, %v744
    %v746 = vpop.f32.mrb[0].mxu0
    %v747 = vadd.f32 0.0, %v746
    %v748 = vpop.f32.mrb[0].mxu0
    %v749 = vadd.f32 0.0, %v748
    %750 = vmatprep.mubr.bf16.mxu0 0
    %751 = vmatmul.mubr.bf16.gmra.mrb[0].mxu0 %v155
    %v752 = vpop.f32.mrb[0].mxu0
    %v753 = vadd.f32 0.0, %v752
    %v754 = vpop.f32.mrb[0].mxu0
    %v755 = vadd.f32 0.0, %v754
    %v756 = vpop.f32.mrb[0].mxu0
    %v757 = vadd.f32 0.0, %v756
    %v758 = vpop.f32.mrb[0].mxu0
    %v759 = vadd.f32 0.0, %v758
    %760 = vmatprep.mubr.bf16.mxu0 0
    %761 = vmatmul.mubr.bf16.gmra.mrb[0].mxu0 %v156
    %v762 = vpop.f32.mrb[0].mxu0
    %v763 = vadd.f32 0.0, %v762
    %v764 = vpop.f32.mrb[0].mxu0
    %v765 = vadd.f32 0.0, %v764
    %v766 = vpop.f32.mrb[0].mxu0
    %v767 = vadd.f32 0.0, %v766
    %v768 = vpop.f32.mrb[0].mxu0
    %v769 = vadd.f32 0.0, %v768
    %770 = vmatprep.mubr.bf16.mxu0 0
    %771 = vmatmul.mubr.bf16.gmra.mrb[0].mxu0 %v157
    %v772 = vpop.f32.mrb[0].mxu0
    %v773 = vadd.f32 0.0, %v772
    %v774 = vpop.f32.mrb[0].mxu0
    %v775 = vadd.f32 0.0, %v774
    %v776 = vpop.f32.mrb[0].mxu0
    %v777 = vadd.f32 0.0, %v776
    %v778 = vpop.f32.mrb[0].mxu0
    %v779 = vadd.f32 0.0, %v778
    %780 = vdwg.mxu0
    %v797 = vunpack.c.l.b16 %v555
    %v798 = vunpack.c.h.b16 %v555
    %v799 = vunpack.c.l.b16 %v556
    %v800 = vunpack.c.h.b16 %v556
    %v801 = vunpack.c.l.b16 %v557
    %v802 = vunpack.c.h.b16 %v557
    %v803 = vunpack.c.l.b16 %v558
    %v804 = vunpack.c.h.b16 %v558
    %v805 = vunpack.c.l.b16 %v559
    %v806 = vunpack.c.h.b16 %v559
    %v807 = vunpack.c.l.b16 %v560
    %v808 = vunpack.c.h.b16 %v560
    %v809 = vunpack.c.l.b16 %v561
    %v810 = vunpack.c.h.b16 %v561
    %v811 = vunpack.c.l.b16 %v562
    %v812 = vunpack.c.h.b16 %v562
    %v813 = vunpack.c.l.b16 %v563
    %v814 = vunpack.c.h.b16 %v563
    %v815 = vunpack.c.l.b16 %v564
    %v816 = vunpack.c.h.b16 %v564
    %v817 = vunpack.c.l.b16 %v565
    %v818 = vunpack.c.h.b16 %v565
    %v819 = vunpack.c.l.b16 %v566
    %v820 = vunpack.c.h.b16 %v566
    %v821 = vunpack.c.l.b16 %v567
    %v822 = vunpack.c.h.b16 %v567
    %v823 = vunpack.c.l.b16 %v568
    %v824 = vunpack.c.h.b16 %v568
    %v825 = vunpack.c.l.b16 %v569
    %v826 = vunpack.c.h.b16 %v569
    %v827 = vunpack.c.l.b16 %v570
    %v828 = vunpack.c.h.b16 %v570
    %v829 = vpack.c.b16 %v799, %v797
    %v830 = vpack.c.b16 %v800, %v798
    %v831 = vpack.c.b16 %v803, %v801
    %v832 = vpack.c.b16 %v804, %v802
    %v833 = vpack.c.b16 %v807, %v805
    %v834 = vpack.c.b16 %v808, %v806
    %v835 = vpack.c.b16 %v811, %v809
    %v836 = vpack.c.b16 %v812, %v810
    %v837 = vpack.c.b16 %v815, %v813
    %v838 = vpack.c.b16 %v816, %v814
    %v839 = vpack.c.b16 %v819, %v817
    %v840 = vpack.c.b16 %v820, %v818
    %v841 = vpack.c.b16 %v823, %v821
    %v842 = vpack.c.b16 %v824, %v822
    %v843 = vpack.c.b16 %v827, %v825
    %v844 = vpack.c.b16 %v828, %v826
    %861 = vmatprep.subr.bf16.mxu0 %v830
    %862 = vmatpush1.bf16.msra.mxu0 %v829
    %863 = vmatprep.subr.bf16.mxu0 %v832
    %864 = vmatpush1.bf16.msra.mxu0 %v831
    %865 = vmatprep.subr.bf16.mxu0 %v834
    %866 = vmatpush1.bf16.msra.mxu0 %v833
    %867 = vmatprep.subr.bf16.mxu0 %v836
    %868 = vmatpush1.bf16.msra.mxu0 %v835
    %869 = vmatprep.subr.bf16.mxu0 %v838
    %870 = vmatpush1.bf16.msra.mxu0 %v837
    %871 = vmatprep.subr.bf16.mxu0 %v840
    %872 = vmatpush1.bf16.msra.mxu0 %v839
    %873 = vmatprep.subr.bf16.mxu0 %v842
    %874 = vmatpush1.bf16.msra.mxu0 %v841
    %875 = vmatprep.subr.bf16.mxu0 %v844
    %876 = vmatpush1.bf16.msra.mxu0 %v843
    %877 = vmatprep.subr.bf16.mxu0 0
    %878 = vmatpush1.bf16.msra.mxu0 0
    %879 = vmatprep.subr.bf16.mxu0 0
    %880 = vmatpush1.bf16.msra.mxu0 0
    %881 = vmatprep.subr.bf16.mxu0 0
    %882 = vmatpush1.bf16.msra.mxu0 0
    %883 = vmatprep.subr.bf16.mxu0 0
    %884 = vmatpush1.bf16.msra.mxu0 0
    %885 = vmatprep.subr.bf16.mxu0 0
    %886 = vmatpush1.bf16.msra.mxu0 0
    %887 = vmatprep.subr.bf16.mxu0 0
    %888 = vmatpush1.bf16.msra.mxu0 0
    %889 = vmatprep.subr.bf16.mxu0 0
    %890 = vmatpush1.bf16.msra.mxu0 0
    %891 = vmatprep.subr.bf16.mxu0 0
    %892 = vmatpush1.bf16.msra.mxu0 0
    %893 = vmatprep.mubr.bf16.mxu0 0
    %894 = vmatmul.mubr.bf16.gmra.mrb[0].mxu0 %v394
    %v895 = vpop.f32.mrb[0].mxu0
    %v896 = vadd.f32 %v703, %v895
    %v897 = vpop.f32.mrb[0].mxu0
    %v898 = vadd.f32 %v705, %v897
    %v899 = vpop.f32.mrb[0].mxu0
    %v900 = vadd.f32 %v707, %v899
    %v901 = vpop.f32.mrb[0].mxu0
    %v902 = vadd.f32 %v709, %v901
    %903 = vmatprep.mubr.bf16.mxu0 0
    %904 = vmatmul.mubr.bf16.gmra.mrb[0].mxu0 %v395
    %v905 = vpop.f32.mrb[0].mxu0
    %v906 = vadd.f32 %v713, %v905
    %v907 = vpop.f32.mrb[0].mxu0
    %v908 = vadd.f32 %v715, %v907
    %v909 = vpop.f32.mrb[0].mxu0
    %v910 = vadd.f32 %v717, %v909
    %v911 = vpop.f32.mrb[0].mxu0
    %v912 = vadd.f32 %v719, %v911
    %913 = vmatprep.mubr.bf16.mxu0 0
    %914 = vmatmul.mubr.bf16.gmra.mrb[0].mxu0 %v396
    %v915 = vpop.f32.mrb[0].mxu0
    %v916 = vadd.f32 %v723, %v915
    %v917 = vpop.f32.mrb[0].mxu0
    %v918 = vadd.f32 %v725, %v917
    %v919 = vpop.f32.mrb[0].mxu0
    %v920 = vadd.f32 %v727, %v919
    %v921 = vpop.f32.mrb[0].mxu0
    %v922 = vadd.f32 %v729, %v921
    %923 = vmatprep.mubr.bf16.mxu0 0
    %924 = vmatmul.mubr.bf16.gmra.mrb[0].mxu0 %v397
    %v925 = vpop.f32.mrb[0].mxu0
    %v926 = vadd.f32 %v733, %v925
    %v927 = vpop.f32.mrb[0].mxu0
    %v928 = vadd.f32 %v735, %v927
    %v929 = vpop.f32.mrb[0].mxu0
    %v930 = vadd.f32 %v737, %v929
    %v931 = vpop.f32.mrb[0].mxu0
    %v932 = vadd.f32 %v739, %v931
    %933 = vmatprep.mubr.bf16.mxu0 0
    %934 = vmatmul.mubr.bf16.gmra.mrb[0].mxu0 %v398
    %v935 = vpop.f32.mrb[0].mxu0
    %v936 = vadd.f32 %v743, %v935
    %v937 = vpop.f32.mrb[0].mxu0
    %v938 = vadd.f32 %v745, %v937
    %v939 = vpop.f32.mrb[0].mxu0
    %v940 = vadd.f32 %v747, %v939
    %v941 = vpop.f32.mrb[0].mxu0
    %v942 = vadd.f32 %v749, %v941
    %943 = vmatprep.mubr.bf16.mxu0 0
    %944 = vmatmul.mubr.bf16.gmra.mrb[0].mxu0 %v399
    %v945 = vpop.f32.mrb[0].mxu0
    %v946 = vadd.f32 %v753, %v945
    %v947 = vpop.f32.mrb[0].mxu0
    %v948 = vadd.f32 %v755, %v947
    %v949 = vpop.f32.mrb[0].mxu0
    %v950 = vadd.f32 %v757, %v949
    %v951 = vpop.f32.mrb[0].mxu0
    %v952 = vadd.f32 %v759, %v951
    %953 = vmatprep.mubr.bf16.mxu0 0
    %954 = vmatmul.mubr.bf16.gmra.mrb[0].mxu0 %v400
    %v955 = vpop.f32.mrb[0].mxu0
    %v956 = vadd.f32 %v763, %v955
    %v957 = vpop.f32.mrb[0].mxu0
    %v958 = vadd.f32 %v765, %v957
    %v959 = vpop.f32.mrb[0].mxu0
    %v960 = vadd.f32 %v767, %v959
    %v961 = vpop.f32.mrb[0].mxu0
    %v962 = vadd.f32 %v769, %v961
    %963 = vmatprep.mubr.bf16.mxu0 0
    %964 = vmatmul.mubr.bf16.gmra.mrb[0].mxu0 %v401
    %v965 = vpop.f32.mrb[0].mxu0
    %v966 = vadd.f32 %v773, %v965
    %v967 = vpop.f32.mrb[0].mxu0
    %v968 = vadd.f32 %v775, %v967
    %v969 = vpop.f32.mrb[0].mxu0
    %v970 = vadd.f32 %v777, %v969
    %v971 = vpop.f32.mrb[0].mxu0
    %v972 = vadd.f32 %v779, %v971
    %973 = vdwg.mxu0
    %s974 = scalar_lea.vmem [#allocation7], 256
    %v975 = vld [vmem:[%s974] sm:$0xff]
    %v976 = vld [vmem:[%s974 + $0x8] sm:$0xff]
    %v977 = vld [vmem:[%s974 + $0x10] sm:$0xff]
    %v978 = vld [vmem:[%s974 + $0x18] sm:$0xff]
    %v979 = vld [vmem:[%s974 + $0x20] sm:$0xff]
    %v980 = vld [vmem:[%s974 + $0x28] sm:$0xff]
    %v981 = vld [vmem:[%s974 + $0x30] sm:$0xff]
    %v982 = vld [vmem:[%s974 + $0x38] sm:$0xff]
    %v983 = vld [vmem:[%s974 + $0x40] sm:$0xff]
    %v984 = vld [vmem:[%s974 + $0x48] sm:$0xff]
    %v985 = vld [vmem:[%s974 + $0x50] sm:$0xff]
    %v986 = vld [vmem:[%s974 + $0x58] sm:$0xff]
    %v987 = vld [vmem:[%s974 + $0x60] sm:$0xff]
    %v988 = vld [vmem:[%s974 + $0x68] sm:$0xff]
    %v989 = vld [vmem:[%s974 + $0x70] sm:$0xff]
    %v990 = vld [vmem:[%s974 + $0x78] sm:$0xff]
    %v1007 = vunpack.c.l.b16 %v975
    %v1008 = vunpack.c.h.b16 %v975
    %v1009 = vunpack.c.l.b16 %v976
    %v1010 = vunpack.c.h.b16 %v976
    %v1011 = vunpack.c.l.b16 %v977
    %v1012 = vunpack.c.h.b16 %v977
    %v1013 = vunpack.c.l.b16 %v978
    %v1014 = vunpack.c.h.b16 %v978
    %v1015 = vunpack.c.l.b16 %v979
    %v1016 = vunpack.c.h.b16 %v979
    %v1017 = vunpack.c.l.b16 %v980
    %v1018 = vunpack.c.h.b16 %v980
    %v1019 = vunpack.c.l.b16 %v981
    %v1020 = vunpack.c.h.b16 %v981
    %v1021 = vunpack.c.l.b16 %v982
    %v1022 = vunpack.c.h.b16 %v982
    %v1023 = vunpack.c.l.b16 %v983
    %v1024 = vunpack.c.h.b16 %v983
    %v1025 = vunpack.c.l.b16 %v984
    %v1026 = vunpack.c.h.b16 %v984
    %v1027 = vunpack.c.l.b16 %v985
    %v1028 = vunpack.c.h.b16 %v985
    %v1029 = vunpack.c.l.b16 %v986
    %v1030 = vunpack.c.h.b16 %v986
    %v1031 = vunpack.c.l.b16 %v987
    %v1032 = vunpack.c.h.b16 %v987
    %v1033 = vunpack.c.l.b16 %v988
    %v1034 = vunpack.c.h.b16 %v988
    %v1035 = vunpack.c.l.b16 %v989
    %v1036 = vunpack.c.h.b16 %v989
    %v1037 = vunpack.c.l.b16 %v990
    %v1038 = vunpack.c.h.b16 %v990
    %v1039 = vpack.c.b16 %v1009, %v1007
    %v1040 = vpack.c.b16 %v1010, %v1008
    %v1041 = vpack.c.b16 %v1013, %v1011
    %v1042 = vpack.c.b16 %v1014, %v1012
    %v1043 = vpack.c.b16 %v1017, %v1015
    %v1044 = vpack.c.b16 %v1018, %v1016
    %v1045 = vpack.c.b16 %v1021, %v1019
    %v1046 = vpack.c.b16 %v1022, %v1020
    %v1047 = vpack.c.b16 %v1025, %v1023
    %v1048 = vpack.c.b16 %v1026, %v1024
    %v1049 = vpack.c.b16 %v1029, %v1027
    %v1050 = vpack.c.b16 %v1030, %v1028
    %v1051 = vpack.c.b16 %v1033, %v1031
    %v1052 = vpack.c.b16 %v1034, %v1032
    %v1053 = vpack.c.b16 %v1037, %v1035
    %v1054 = vpack.c.b16 %v1038, %v1036
    %1071 = vmatprep.subr.bf16.mxu0 %v1040
    %1072 = vmatpush1.bf16.msra.mxu0 %v1039
    %1073 = vmatprep.subr.bf16.mxu0 %v1042
    %1074 = vmatpush1.bf16.msra.mxu0 %v1041
    %1075 = vmatprep.subr.bf16.mxu0 %v1044
    %1076 = vmatpush1.bf16.msra.mxu0 %v1043
    %1077 = vmatprep.subr.bf16.mxu0 %v1046
    %1078 = vmatpush1.bf16.msra.mxu0 %v1045
    %1079 = vmatprep.subr.bf16.mxu0 %v1048
    %1080 = vmatpush1.bf16.msra.mxu0 %v1047
    %1081 = vmatprep.subr.bf16.mxu0 %v1050
    %1082 = vmatpush1.bf16.msra.mxu0 %v1049
    %1083 = vmatprep.subr.bf16.mxu0 %v1052
    %1084 = vmatpush1.bf16.msra.mxu0 %v1051
    %1085 = vmatprep.subr.bf16.mxu0 %v1054
    %1086 = vmatpush1.bf16.msra.mxu0 %v1053
    %1087 = vmatprep.subr.bf16.mxu0 0
    %1088 = vmatpush1.bf16.msra.mxu0 0
    %1089 = vmatprep.subr.bf16.mxu0 0
    %1090 = vmatpush1.bf16.msra.mxu0 0
    %1091 = vmatprep.subr.bf16.mxu0 0
    %1092 = vmatpush1.bf16.msra.mxu0 0
    %1093 = vmatprep.subr.bf16.mxu0 0
    %1094 = vmatpush1.bf16.msra.mxu0 0
    %1095 = vmatprep.subr.bf16.mxu0 0
    %1096 = vmatpush1.bf16.msra.mxu0 0
    %1097 = vmatprep.subr.bf16.mxu0 0
    %1098 = vmatpush1.bf16.msra.mxu0 0
    %1099 = vmatprep.subr.bf16.mxu0 0
    %1100 = vmatpush1.bf16.msra.mxu0 0
    %1101 = vmatprep.subr.bf16.mxu0 0
    %1102 = vmatpush1.bf16.msra.mxu0 0
    %1103 = vmatprep.mubr.bf16.mxu0 0
    %1104 = vmatmul.mubr.bf16.gmra.mrb[0].mxu0 %v545
    %v1105 = vpop.f32.mrb[0].mxu0
    %v1106 = vadd.f32 0.0, %v1105
    %v1107 = vpop.f32.mrb[0].mxu0
    %v1108 = vadd.f32 0.0, %v1107
    %v1109 = vpop.f32.mrb[0].mxu0
    %v1110 = vadd.f32 0.0, %v1109
    %v1111 = vpop.f32.mrb[0].mxu0
    %v1112 = vadd.f32 0.0, %v1111
    %1113 = vmatprep.mubr.bf16.mxu0 0
    %1114 = vmatmul.mubr.bf16.gmra.mrb[0].mxu0 %v546
    %v1115 = vpop.f32.mrb[0].mxu0
    %v1116 = vadd.f32 0.0, %v1115
    %v1117 = vpop.f32.mrb[0].mxu0
    %v1118 = vadd.f32 0.0, %v1117
    %v1119 = vpop.f32.mrb[0].mxu0
    %v1120 = vadd.f32 0.0, %v1119
    %v1121 = vpop.f32.mrb[0].mxu0
    %v1122 = vadd.f32 0.0, %v1121
    %1123 = vmatprep.mubr.bf16.mxu0 0
    %1124 = vmatmul.mubr.bf16.gmra.mrb[0].mxu0 %v547
    %v1125 = vpop.f32.mrb[0].mxu0
    %v1126 = vadd.f32 0.0, %v1125
    %v1127 = vpop.f32.mrb[0].mxu0
    %v1128 = vadd.f32 0.0, %v1127
    %v1129 = vpop.f32.mrb[0].mxu0
    %v1130 = vadd.f32 0.0, %v1129
    %v1131 = vpop.f32.mrb[0].mxu0
    %v1132 = vadd.f32 0.0, %v1131
    %1133 = vmatprep.mubr.bf16.mxu0 0
    %1134 = vmatmul.mubr.bf16.gmra.mrb[0].mxu0 %v548
    %v1135 = vpop.f32.mrb[0].mxu0
    %v1136 = vadd.f32 0.0, %v1135
    %v1137 = vpop.f32.mrb[0].mxu0
    %v1138 = vadd.f32 0.0, %v1137
    %v1139 = vpop.f32.mrb[0].mxu0
    %v1140 = vadd.f32 0.0, %v1139
    %v1141 = vpop.f32.mrb[0].mxu0
    %v1142 = vadd.f32 0.0, %v1141
    %1143 = vmatprep.mubr.bf16.mxu0 0
    %1144 = vmatmul.mubr.bf16.gmra.mrb[0].mxu0 %v549
    %v1145 = vpop.f32.mrb[0].mxu0
    %v1146 = vadd.f32 0.0, %v1145
    %v1147 = vpop.f32.mrb[0].mxu0
    %v1148 = vadd.f32 0.0, %v1147
    %v1149 = vpop.f32.mrb[0].mxu0
    %v1150 = vadd.f32 0.0, %v1149
    %v1151 = vpop.f32.mrb[0].mxu0
    %v1152 = vadd.f32 0.0, %v1151
    %1153 = vmatprep.mubr.bf16.mxu0 0
    %1154 = vmatmul.mubr.bf16.gmra.mrb[0].mxu0 %v550
    %v1155 = vpop.f32.mrb[0].mxu0
    %v1156 = vadd.f32 0.0, %v1155
    %v1157 = vpop.f32.mrb[0].mxu0
    %v1158 = vadd.f32 0.0, %v1157
    %v1159 = vpop.f32.mrb[0].mxu0
    %v1160 = vadd.f32 0.0, %v1159
    %v1161 = vpop.f32.mrb[0].mxu0
    %v1162 = vadd.f32 0.0, %v1161
    %1163 = vmatprep.mubr.bf16.mxu0 0
    %1164 = vmatmul.mubr.bf16.gmra.mrb[0].mxu0 %v551
    %v1165 = vpop.f32.mrb[0].mxu0
    %v1166 = vadd.f32 0.0, %v1165
    %v1167 = vpop.f32.mrb[0].mxu0
    %v1168 = vadd.f32 0.0, %v1167
    %v1169 = vpop.f32.mrb[0].mxu0
    %v1170 = vadd.f32 0.0, %v1169
    %v1171 = vpop.f32.mrb[0].mxu0
    %v1172 = vadd.f32 0.0, %v1171
    %1173 = vmatprep.mubr.bf16.mxu0 0
    %1174 = vmatmul.mubr.bf16.gmra.mrb[0].mxu0 %v552
    %v1175 = vpop.f32.mrb[0].mxu0
    %v1176 = vadd.f32 0.0, %v1175
    %v1177 = vpop.f32.mrb[0].mxu0
    %v1178 = vadd.f32 0.0, %v1177
    %v1179 = vpop.f32.mrb[0].mxu0
    %v1180 = vadd.f32 0.0, %v1179
    %v1181 = vpop.f32.mrb[0].mxu0
    %v1182 = vadd.f32 0.0, %v1181
    %1183 = vdwg.mxu0
    %v1184 = vadd.f32 %v896, %v1106
    %v1185 = vadd.f32 %v898, %v1108
    %v1186 = vadd.f32 %v900, %v1110
    %v1187 = vadd.f32 %v902, %v1112
    %v1188 = vadd.f32 %v906, %v1116
    %v1189 = vadd.f32 %v908, %v1118
    %v1190 = vadd.f32 %v910, %v1120
    %v1191 = vadd.f32 %v912, %v1122
    %v1192 = vadd.f32 %v916, %v1126
    %v1193 = vadd.f32 %v918, %v1128
    %v1194 = vadd.f32 %v920, %v1130
    %v1195 = vadd.f32 %v922, %v1132
    %v1196 = vadd.f32 %v926, %v1136
    %v1197 = vadd.f32 %v928, %v1138
    %v1198 = vadd.f32 %v930, %v1140
    %v1199 = vadd.f32 %v932, %v1142
    %v1200 = vadd.f32 %v936, %v1146
    %v1201 = vadd.f32 %v938, %v1148
    %v1202 = vadd.f32 %v940, %v1150
    %v1203 = vadd.f32 %v942, %v1152
    %v1204 = vadd.f32 %v946, %v1156
    %v1205 = vadd.f32 %v948, %v1158
    %v1206 = vadd.f32 %v950, %v1160
    %v1207 = vadd.f32 %v952, %v1162
    %v1208 = vadd.f32 %v956, %v1166
    %v1209 = vadd.f32 %v958, %v1168
    %v1210 = vadd.f32 %v960, %v1170
    %v1211 = vadd.f32 %v962, %v1172
    %v1212 = vadd.f32 %v966, %v1176
    %v1213 = vadd.f32 %v968, %v1178
    %v1214 = vadd.f32 %v970, %v1180
    %v1215 = vadd.f32 %v972, %v1182
    %s1216 = scalar_lea.vmem [#allocation7], 384
    %v1217 = vld [vmem:[%s1216] sm:$0xff]
    %v1218 = vld [vmem:[%s1216 + $0x8] sm:$0xff]
    %v1219 = vld [vmem:[%s1216 + $0x10] sm:$0xff]
    %v1220 = vld [vmem:[%s1216 + $0x18] sm:$0xff]
    %v1221 = vld [vmem:[%s1216 + $0x20] sm:$0xff]
    %v1222 = vld [vmem:[%s1216 + $0x28] sm:$0xff]
    %v1223 = vld [vmem:[%s1216 + $0x30] sm:$0xff]
    %v1224 = vld [vmem:[%s1216 + $0x38] sm:$0xff]
    %v1225 = vld [vmem:[%s1216 + $0x40] sm:$0xff]
    %v1226 = vld [vmem:[%s1216 + $0x48] sm:$0xff]
    %v1227 = vld [vmem:[%s1216 + $0x50] sm:$0xff]
    %v1228 = vld [vmem:[%s1216 + $0x58] sm:$0xff]
    %v1229 = vld [vmem:[%s1216 + $0x60] sm:$0xff]
    %v1230 = vld [vmem:[%s1216 + $0x68] sm:$0xff]
    %v1231 = vld [vmem:[%s1216 + $0x70] sm:$0xff]
    %v1232 = vld [vmem:[%s1216 + $0x78] sm:$0xff]
    %v1249 = vunpack.c.l.b16 %v1217
    %v1250 = vunpack.c.h.b16 %v1217
    %v1251 = vunpack.c.l.b16 %v1218
    %v1252 = vunpack.c.h.b16 %v1218
    %v1253 = vunpack.c.l.b16 %v1219
    %v1254 = vunpack.c.h.b16 %v1219
    %v1255 = vunpack.c.l.b16 %v1220
    %v1256 = vunpack.c.h.b16 %v1220
    %v1257 = vunpack.c.l.b16 %v1221
    %v1258 = vunpack.c.h.b16 %v1221
    %v1259 = vunpack.c.l.b16 %v1222
    %v1260 = vunpack.c.h.b16 %v1222
    %v1261 = vunpack.c.l.b16 %v1223
    %v1262 = vunpack.c.h.b16 %v1223
    %v1263 = vunpack.c.l.b16 %v1224
    %v1264 = vunpack.c.h.b16 %v1224
    %v1265 = vunpack.c.l.b16 %v1225
    %v1266 = vunpack.c.h.b16 %v1225
    %v1267 = vunpack.c.l.b16 %v1226
    %v1268 = vunpack.c.h.b16 %v1226
    %v1269 = vunpack.c.l.b16 %v1227
    %v1270 = vunpack.c.h.b16 %v1227
    %v1271 = vunpack.c.l.b16 %v1228
    %v1272 = vunpack.c.h.b16 %v1228
    %v1273 = vunpack.c.l.b16 %v1229
    %v1274 = vunpack.c.h.b16 %v1229
    %v1275 = vunpack.c.l.b16 %v1230
    %v1276 = vunpack.c.h.b16 %v1230
    %v1277 = vunpack.c.l.b16 %v1231
    %v1278 = vunpack.c.h.b16 %v1231
    %v1279 = vunpack.c.l.b16 %v1232
    %v1280 = vunpack.c.h.b16 %v1232
    %v1281 = vpack.c.b16 %v1251, %v1249
    %v1282 = vpack.c.b16 %v1252, %v1250
    %v1283 = vpack.c.b16 %v1255, %v1253
    %v1284 = vpack.c.b16 %v1256, %v1254
    %v1285 = vpack.c.b16 %v1259, %v1257
    %v1286 = vpack.c.b16 %v1260, %v1258
    %v1287 = vpack.c.b16 %v1263, %v1261
    %v1288 = vpack.c.b16 %v1264, %v1262
    %v1289 = vpack.c.b16 %v1267, %v1265
    %v1290 = vpack.c.b16 %v1268, %v1266
    %v1291 = vpack.c.b16 %v1271, %v1269
    %v1292 = vpack.c.b16 %v1272, %v1270
    %v1293 = vpack.c.b16 %v1275, %v1273
    %v1294 = vpack.c.b16 %v1276, %v1274
    %v1295 = vpack.c.b16 %v1279, %v1277
    %v1296 = vpack.c.b16 %v1280, %v1278
    %1313 = vmatprep.subr.bf16.mxu0 %v1282
    %1314 = vmatpush1.bf16.msra.mxu0 %v1281
    %1315 = vmatprep.subr.bf16.mxu0 %v1284
    %1316 = vmatpush1.bf16.msra.mxu0 %v1283
    %1317 = vmatprep.subr.bf16.mxu0 %v1286
    %1318 = vmatpush1.bf16.msra.mxu0 %v1285
    %1319 = vmatprep.subr.bf16.mxu0 %v1288
    %1320 = vmatpush1.bf16.msra.mxu0 %v1287
    %1321 = vmatprep.subr.bf16.mxu0 %v1290
    %1322 = vmatpush1.bf16.msra.mxu0 %v1289
    %1323 = vmatprep.subr.bf16.mxu0 %v1292
    %1324 = vmatpush1.bf16.msra.mxu0 %v1291
    %1325 = vmatprep.subr.bf16.mxu0 %v1294
    %1326 = vmatpush1.bf16.msra.mxu0 %v1293
    %1327 = vmatprep.subr.bf16.mxu0 %v1296
    %1328 = vmatpush1.bf16.msra.mxu0 %v1295
    %1329 = vmatprep.subr.bf16.mxu0 0
    %1330 = vmatpush1.bf16.msra.mxu0 0
    %1331 = vmatprep.subr.bf16.mxu0 0
    %1332 = vmatpush1.bf16.msra.mxu0 0
    %1333 = vmatprep.subr.bf16.mxu0 0
    %1334 = vmatpush1.bf16.msra.mxu0 0
    %1335 = vmatprep.subr.bf16.mxu0 0
    %1336 = vmatpush1.bf16.msra.mxu0 0
    %1337 = vmatprep.subr.bf16.mxu0 0
    %1338 = vmatpush1.bf16.msra.mxu0 0
    %1339 = vmatprep.subr.bf16.mxu0 0
    %1340 = vmatpush1.bf16.msra.mxu0 0
    %1341 = vmatprep.subr.bf16.mxu0 0
    %1342 = vmatpush1.bf16.msra.mxu0 0
    %1343 = vmatprep.subr.bf16.mxu0 0
    %1344 = vmatpush1.bf16.msra.mxu0 0
    %1345 = vmatprep.mubr.bf16.mxu0 0
    %1346 = vmatmul.mubr.bf16.gmra.mrb[0].mxu0 %v395
    %v1347 = vpop.f32.mrb[0].mxu0
    %v1348 = vadd.f32 0.0, %v1347
    %v1349 = vpop.f32.mrb[0].mxu0
    %v1350 = vadd.f32 0.0, %v1349
    %v1351 = vpop.f32.mrb[0].mxu0
    %v1352 = vadd.f32 0.0, %v1351
    %v1353 = vpop.f32.mrb[0].mxu0
    %v1354 = vadd.f32 0.0, %v1353
    %1355 = vmatprep.mubr.bf16.mxu0 0
    %1356 = vmatmul.mubr.bf16.gmra.mrb[0].mxu0 %v396
    %v1357 = vpop.f32.mrb[0].mxu0
    %v1358 = vadd.f32 0.0, %v1357
    %v1359 = vpop.f32.mrb[0].mxu0
    %v1360 = vadd.f32 0.0, %v1359
    %v1361 = vpop.f32.mrb[0].mxu0
    %v1362 = vadd.f32 0.0, %v1361
    %v1363 = vpop.f32.mrb[0].mxu0
    %v1364 = vadd.f32 0.0, %v1363
    %1365 = vmatprep.mubr.bf16.mxu0 0
    %1366 = vmatmul.mubr.bf16.gmra.mrb[0].mxu0 %v397
    %v1367 = vpop.f32.mrb[0].mxu0
    %v1368 = vadd.f32 0.0, %v1367
    %v1369 = vpop.f32.mrb[0].mxu0
    %v1370 = vadd.f32 0.0, %v1369
    %v1371 = vpop.f32.mrb[0].mxu0
    %v1372 = vadd.f32 0.0, %v1371
    %v1373 = vpop.f32.mrb[0].mxu0
    %v1374 = vadd.f32 0.0, %v1373
    %1375 = vmatprep.mubr.bf16.mxu0 0
    %1376 = vmatmul.mubr.bf16.gmra.mrb[0].mxu0 %v398
    %v1377 = vpop.f32.mrb[0].mxu0
    %v1378 = vadd.f32 0.0, %v1377
    %v1379 = vpop.f32.mrb[0].mxu0
    %v1380 = vadd.f32 0.0, %v1379
    %v1381 = vpop.f32.mrb[0].mxu0
    %v1382 = vadd.f32 0.0, %v1381
    %v1383 = vpop.f32.mrb[0].mxu0
    %v1384 = vadd.f32 0.0, %v1383
    %1385 = vmatprep.mubr.bf16.mxu0 0
    %1386 = vmatmul.mubr.bf16.gmra.mrb[0].mxu0 %v399
    %v1387 = vpop.f32.mrb[0].mxu0
    %v1388 = vadd.f32 0.0, %v1387
    %v1389 = vpop.f32.mrb[0].mxu0
    %v1390 = vadd.f32 0.0, %v1389
    %v1391 = vpop.f32.mrb[0].mxu0
    %v1392 = vadd.f32 0.0, %v1391
    %v1393 = vpop.f32.mrb[0].mxu0
    %v1394 = vadd.f32 0.0, %v1393
    %1395 = vmatprep.mubr.bf16.mxu0 0
    %1396 = vmatmul.mubr.bf16.gmra.mrb[0].mxu0 %v400
    %v1397 = vpop.f32.mrb[0].mxu0
    %v1398 = vadd.f32 0.0, %v1397
    %v1399 = vpop.f32.mrb[0].mxu0
    %v1400 = vadd.f32 0.0, %v1399
    %v1401 = vpop.f32.mrb[0].mxu0
    %v1402 = vadd.f32 0.0, %v1401
    %v1403 = vpop.f32.mrb[0].mxu0
    %v1404 = vadd.f32 0.0, %v1403
    %1405 = vmatprep.mubr.bf16.mxu0 0
    %1406 = vmatmul.mubr.bf16.gmra.mrb[0].mxu0 %v401
    %v1407 = vpop.f32.mrb[0].mxu0
    %v1408 = vadd.f32 0.0, %v1407
    %v1409 = vpop.f32.mrb[0].mxu0
    %v1410 = vadd.f32 0.0, %v1409
    %v1411 = vpop.f32.mrb[0].mxu0
    %v1412 = vadd.f32 0.0, %v1411
    %v1413 = vpop.f32.mrb[0].mxu0
    %v1414 = vadd.f32 0.0, %v1413
    %1415 = vmatprep.mubr.bf16.mxu0 0
    %1416 = vmatmul.mubr.bf16.gmra.mrb[0].mxu0 %v402
    %v1417 = vpop.f32.mrb[0].mxu0
    %v1418 = vadd.f32 0.0, %v1417
    %v1419 = vpop.f32.mrb[0].mxu0
    %v1420 = vadd.f32 0.0, %v1419
    %v1421 = vpop.f32.mrb[0].mxu0
    %v1422 = vadd.f32 0.0, %v1421
    %v1423 = vpop.f32.mrb[0].mxu0
    %v1424 = vadd.f32 0.0, %v1423
    %1425 = vdwg.mxu0
    %v1426 = vadd.f32 %v1184, %v1348
    %v1427 = vadd.f32 %v1185, %v1350
    %v1428 = vadd.f32 %v1186, %v1352
    %v1429 = vadd.f32 %v1187, %v1354
    %v1430 = vadd.f32 %v1188, %v1358
    %v1431 = vadd.f32 %v1189, %v1360
    %v1432 = vadd.f32 %v1190, %v1362
    %v1433 = vadd.f32 %v1191, %v1364
    %v1434 = vadd.f32 %v1192, %v1368
    %v1435 = vadd.f32 %v1193, %v1370
    %v1436 = vadd.f32 %v1194, %v1372
    %v1437 = vadd.f32 %v1195, %v1374
    %v1438 = vadd.f32 %v1196, %v1378
    %v1439 = vadd.f32 %v1197, %v1380
    %v1440 = vadd.f32 %v1198, %v1382
    %v1441 = vadd.f32 %v1199, %v1384
    %v1442 = vadd.f32 %v1200, %v1388
    %v1443 = vadd.f32 %v1201, %v1390
    %v1444 = vadd.f32 %v1202, %v1392
    %v1445 = vadd.f32 %v1203, %v1394
    %v1446 = vadd.f32 %v1204, %v1398
    %v1447 = vadd.f32 %v1205, %v1400
    %v1448 = vadd.f32 %v1206, %v1402
    %v1449 = vadd.f32 %v1207, %v1404
    %v1450 = vadd.f32 %v1208, %v1408
    %v1451 = vadd.f32 %v1209, %v1410
    %v1452 = vadd.f32 %v1210, %v1412
    %v1453 = vadd.f32 %v1211, %v1414
    %v1454 = vadd.f32 %v1212, %v1418
    %v1455 = vadd.f32 %v1213, %v1420
    %v1456 = vadd.f32 %v1214, %v1422
    %v1457 = vadd.f32 %v1215, %v1424
    %s1458 = scalar_lea.vmem [#allocation7], 512
    %v1459 = vld [vmem:[%s1458] sm:$0xff]
    %v1460 = vld [vmem:[%s1458 + $0x8] sm:$0xff]
    %v1461 = vld [vmem:[%s1458 + $0x10] sm:$0xff]
    %v1462 = vld [vmem:[%s1458 + $0x18] sm:$0xff]
    %v1463 = vld [vmem:[%s1458 + $0x20] sm:$0xff]
    %v1464 = vld [vmem:[%s1458 + $0x28] sm:$0xff]
    %v1465 = vld [vmem:[%s1458 + $0x30] sm:$0xff]
    %v1466 = vld [vmem:[%s1458 + $0x38] sm:$0xff]
    %v1467 = vld [vmem:[%s1458 + $0x40] sm:$0xff]
    %v1468 = vld [vmem:[%s1458 + $0x48] sm:$0xff]
    %v1469 = vld [vmem:[%s1458 + $0x50] sm:$0xff]
    %v1470 = vld [vmem:[%s1458 + $0x58] sm:$0xff]
    %v1471 = vld [vmem:[%s1458 + $0x60] sm:$0xff]
    %v1472 = vld [vmem:[%s1458 + $0x68] sm:$0xff]
    %v1473 = vld [vmem:[%s1458 + $0x70] sm:$0xff]
    %v1474 = vld [vmem:[%s1458 + $0x78] sm:$0xff]
    %v1491 = vunpack.c.l.b16 %v1459
    %v1492 = vunpack.c.h.b16 %v1459
    %v1493 = vunpack.c.l.b16 %v1460
    %v1494 = vunpack.c.h.b16 %v1460
    %v1495 = vunpack.c.l.b16 %v1461
    %v1496 = vunpack.c.h.b16 %v1461
    %v1497 = vunpack.c.l.b16 %v1462
    %v1498 = vunpack.c.h.b16 %v1462
    %v1499 = vunpack.c.l.b16 %v1463
    %v1500 = vunpack.c.h.b16 %v1463
    %v1501 = vunpack.c.l.b16 %v1464
    %v1502 = vunpack.c.h.b16 %v1464
    %v1503 = vunpack.c.l.b16 %v1465
    %v1504 = vunpack.c.h.b16 %v1465
    %v1505 = vunpack.c.l.b16 %v1466
    %v1506 = vunpack.c.h.b16 %v1466
    %v1507 = vunpack.c.l.b16 %v1467
    %v1508 = vunpack.c.h.b16 %v1467
    %v1509 = vunpack.c.l.b16 %v1468
    %v1510 = vunpack.c.h.b16 %v1468
    %v1511 = vunpack.c.l.b16 %v1469
    %v1512 = vunpack.c.h.b16 %v1469
    %v1513 = vunpack.c.l.b16 %v1470
    %v1514 = vunpack.c.h.b16 %v1470
    %v1515 = vunpack.c.l.b16 %v1471
    %v1516 = vunpack.c.h.b16 %v1471
    %v1517 = vunpack.c.l.b16 %v1472
    %v1518 = vunpack.c.h.b16 %v1472
    %v1519 = vunpack.c.l.b16 %v1473
    %v1520 = vunpack.c.h.b16 %v1473
    %v1521 = vunpack.c.l.b16 %v1474
    %v1522 = vunpack.c.h.b16 %v1474
    %v1523 = vpack.c.b16 %v1493, %v1491
    %v1524 = vpack.c.b16 %v1494, %v1492
    %v1525 = vpack.c.b16 %v1497, %v1495
    %v1526 = vpack.c.b16 %v1498, %v1496
    %v1527 = vpack.c.b16 %v1501, %v1499
    %v1528 = vpack.c.b16 %v1502, %v1500
    %v1529 = vpack.c.b16 %v1505, %v1503
    %v1530 = vpack.c.b16 %v1506, %v1504
    %v1531 = vpack.c.b16 %v1509, %v1507
    %v1532 = vpack.c.b16 %v1510, %v1508
    %v1533 = vpack.c.b16 %v1513, %v1511
    %v1534 = vpack.c.b16 %v1514, %v1512
    %v1535 = vpack.c.b16 %v1517, %v1515
    %v1536 = vpack.c.b16 %v1518, %v1516
    %v1537 = vpack.c.b16 %v1521, %v1519
    %v1538 = vpack.c.b16 %v1522, %v1520
    %1555 = vmatprep.subr.bf16.mxu0 %v1524
    %1556 = vmatpush1.bf16.msra.mxu0 %v1523
    %1557 = vmatprep.subr.bf16.mxu0 %v1526
    %1558 = vmatpush1.bf16.msra.mxu0 %v1525
    %1559 = vmatprep.subr.bf16.mxu0 %v1528
    %1560 = vmatpush1.bf16.msra.mxu0 %v1527
    %1561 = vmatprep.subr.bf16.mxu0 %v1530
    %1562 = vmatpush1.bf16.msra.mxu0 %v1529
    %1563 = vmatprep.subr.bf16.mxu0 %v1532
    %1564 = vmatpush1.bf16.msra.mxu0 %v1531
    %1565 = vmatprep.subr.bf16.mxu0 %v1534
    %1566 = vmatpush1.bf16.msra.mxu0 %v1533
    %1567 = vmatprep.subr.bf16.mxu0 %v1536
    %1568 = vmatpush1.bf16.msra.mxu0 %v1535
    %1569 = vmatprep.subr.bf16.mxu0 %v1538
    %1570 = vmatpush1.bf16.msra.mxu0 %v1537
    %1571 = vmatprep.subr.bf16.mxu0 0
    %1572 = vmatpush1.bf16.msra.mxu0 0
    %1573 = vmatprep.subr.bf16.mxu0 0
    %1574 = vmatpush1.bf16.msra.mxu0 0
    %1575 = vmatprep.subr.bf16.mxu0 0
    %1576 = vmatpush1.bf16.msra.mxu0 0
    %1577 = vmatprep.subr.bf16.mxu0 0
    %1578 = vmatpush1.bf16.msra.mxu0 0
    %1579 = vmatprep.subr.bf16.mxu0 0
    %1580 = vmatpush1.bf16.msra.mxu0 0
    %1581 = vmatprep.subr.bf16.mxu0 0
    %1582 = vmatpush1.bf16.msra.mxu0 0
    %1583 = vmatprep.subr.bf16.mxu0 0
    %1584 = vmatpush1.bf16.msra.mxu0 0
    %1585 = vmatprep.subr.bf16.mxu0 0
    %1586 = vmatpush1.bf16.msra.mxu0 0
    %1587 = vmatprep.mubr.bf16.mxu0 0
    %1588 = vmatmul.mubr.bf16.gmra.mrb[0].mxu0 %v151
    %v1589 = vpop.f32.mrb[0].mxu0
    %v1590 = vadd.f32 0.0, %v1589
    %v1591 = vpop.f32.mrb[0].mxu0
    %v1592 = vadd.f32 0.0, %v1591
    %v1593 = vpop.f32.mrb[0].mxu0
    %v1594 = vadd.f32 0.0, %v1593
    %v1595 = vpop.f32.mrb[0].mxu0
    %v1596 = vadd.f32 0.0, %v1595
    %1597 = vmatprep.mubr.bf16.mxu0 0
    %1598 = vmatmul.mubr.bf16.gmra.mrb[0].mxu0 %v152
    %v1599 = vpop.f32.mrb[0].mxu0
    %v1600 = vadd.f32 0.0, %v1599
    %v1601 = vpop.f32.mrb[0].mxu0
    %v1602 = vadd.f32 0.0, %v1601
    %v1603 = vpop.f32.mrb[0].mxu0
    %v1604 = vadd.f32 0.0, %v1603
    %v1605 = vpop.f32.mrb[0].mxu0
    %v1606 = vadd.f32 0.0, %v1605
    %1607 = vmatprep.mubr.bf16.mxu0 0
    %1608 = vmatmul.mubr.bf16.gmra.mrb[0].mxu0 %v153
    %v1609 = vpop.f32.mrb[0].mxu0
    %v1610 = vadd.f32 0.0, %v1609
    %v1611 = vpop.f32.mrb[0].mxu0
    %v1612 = vadd.f32 0.0, %v1611
    %v1613 = vpop.f32.mrb[0].mxu0
    %v1614 = vadd.f32 0.0, %v1613
    %v1615 = vpop.f32.mrb[0].mxu0
    %v1616 = vadd.f32 0.0, %v1615
    %1617 = vmatprep.mubr.bf16.mxu0 0
    %1618 = vmatmul.mubr.bf16.gmra.mrb[0].mxu0 %v154
    %v1619 = vpop.f32.mrb[0].mxu0
    %v1620 = vadd.f32 0.0, %v1619
    %v1621 = vpop.f32.mrb[0].mxu0
    %v1622 = vadd.f32 0.0, %v1621
    %v1623 = vpop.f32.mrb[0].mxu0
    %v1624 = vadd.f32 0.0, %v1623
    %v1625 = vpop.f32.mrb[0].mxu0
    %v1626 = vadd.f32 0.0, %v1625
    %1627 = vmatprep.mubr.bf16.mxu0 0
    %1628 = vmatmul.mubr.bf16.gmra.mrb[0].mxu0 %v155
    %v1629 = vpop.f32.mrb[0].mxu0
    %v1630 = vadd.f32 0.0, %v1629
    %v1631 = vpop.f32.mrb[0].mxu0
    %v1632 = vadd.f32 0.0, %v1631
    %v1633 = vpop.f32.mrb[0].mxu0
    %v1634 = vadd.f32 0.0, %v1633
    %v1635 = vpop.f32.mrb[0].mxu0
    %v1636 = vadd.f32 0.0, %v1635
    %1637 = vmatprep.mubr.bf16.mxu0 0
    %1638 = vmatmul.mubr.bf16.gmra.mrb[0].mxu0 %v156
    %v1639 = vpop.f32.mrb[0].mxu0
    %v1640 = vadd.f32 0.0, %v1639
    %v1641 = vpop.f32.mrb[0].mxu0
    %v1642 = vadd.f32 0.0, %v1641
    %v1643 = vpop.f32.mrb[0].mxu0
    %v1644 = vadd.f32 0.0, %v1643
    %v1645 = vpop.f32.mrb[0].mxu0
    %v1646 = vadd.f32 0.0, %v1645
    %1647 = vmatprep.mubr.bf16.mxu0 0
    %1648 = vmatmul.mubr.bf16.gmra.mrb[0].mxu0 %v157
    %v1649 = vpop.f32.mrb[0].mxu0
    %v1650 = vadd.f32 0.0, %v1649
    %v1651 = vpop.f32.mrb[0].mxu0
    %v1652 = vadd.f32 0.0, %v1651
    %v1653 = vpop.f32.mrb[0].mxu0
    %v1654 = vadd.f32 0.0, %v1653
    %v1655 = vpop.f32.mrb[0].mxu0
    %v1656 = vadd.f32 0.0, %v1655
    %1657 = vmatprep.mubr.bf16.mxu0 0
    %1658 = vmatmul.mubr.bf16.gmra.mrb[0].mxu0 %v158
    %v1659 = vpop.f32.mrb[0].mxu0
    %v1660 = vadd.f32 0.0, %v1659
    %v1661 = vpop.f32.mrb[0].mxu0
    %v1662 = vadd.f32 0.0, %v1661
    %v1663 = vpop.f32.mrb[0].mxu0
    %v1664 = vadd.f32 0.0, %v1663
    %v1665 = vpop.f32.mrb[0].mxu0
    %v1666 = vadd.f32 0.0, %v1665
    %1667 = vdwg.mxu0
    %v1668 = vadd.f32 %v1426, %v1590
    %v1669 = vadd.f32 %v1427, %v1592
    %v1670 = vadd.f32 %v1428, %v1594
    %v1671 = vadd.f32 %v1429, %v1596
    %v1672 = vadd.f32 %v1430, %v1600
    %v1673 = vadd.f32 %v1431, %v1602
    %v1674 = vadd.f32 %v1432, %v1604
    %v1675 = vadd.f32 %v1433, %v1606
    %v1676 = vadd.f32 %v1434, %v1610
    %v1677 = vadd.f32 %v1435, %v1612
    %v1678 = vadd.f32 %v1436, %v1614
    %v1679 = vadd.f32 %v1437, %v1616
    %v1680 = vadd.f32 %v1438, %v1620
    %v1681 = vadd.f32 %v1439, %v1622
    %v1682 = vadd.f32 %v1440, %v1624
    %v1683 = vadd.f32 %v1441, %v1626
    %v1684 = vadd.f32 %v1442, %v1630
    %v1685 = vadd.f32 %v1443, %v1632
    %v1686 = vadd.f32 %v1444, %v1634
    %v1687 = vadd.f32 %v1445, %v1636
    %v1688 = vadd.f32 %v1446, %v1640
    %v1689 = vadd.f32 %v1447, %v1642
    %v1690 = vadd.f32 %v1448, %v1644
    %v1691 = vadd.f32 %v1449, %v1646
    %v1692 = vadd.f32 %v1450, %v1650
    %v1693 = vadd.f32 %v1451, %v1652
    %v1694 = vadd.f32 %v1452, %v1654
    %v1695 = vadd.f32 %v1453, %v1656
    %v1696 = vadd.f32 %v1454, %v1660
    %v1697 = vadd.f32 %v1455, %v1662
    %v1698 = vadd.f32 %v1456, %v1664
    %v1699 = vadd.f32 %v1457, %v1666
    %s1700 = scalar_lea.vmem [#allocation7], 640
    %v1701 = vld [vmem:[%s1700] sm:$0xff]
    %v1702 = vld [vmem:[%s1700 + $0x8] sm:$0xff]
    %v1703 = vld [vmem:[%s1700 + $0x10] sm:$0xff]
    %v1704 = vld [vmem:[%s1700 + $0x18] sm:$0xff]
    %v1705 = vld [vmem:[%s1700 + $0x20] sm:$0xff]
    %v1706 = vld [vmem:[%s1700 + $0x28] sm:$0xff]
    %v1707 = vld [vmem:[%s1700 + $0x30] sm:$0xff]
    %v1708 = vld [vmem:[%s1700 + $0x38] sm:$0xff]
    %v1709 = vld [vmem:[%s1700 + $0x40] sm:$0xff]
    %v1710 = vld [vmem:[%s1700 + $0x48] sm:$0xff]
    %v1711 = vld [vmem:[%s1700 + $0x50] sm:$0xff]
    %v1712 = vld [vmem:[%s1700 + $0x58] sm:$0xff]
    %v1713 = vld [vmem:[%s1700 + $0x60] sm:$0xff]
    %v1714 = vld [vmem:[%s1700 + $0x68] sm:$0xff]
    %v1715 = vld [vmem:[%s1700 + $0x70] sm:$0xff]
    %v1716 = vld [vmem:[%s1700 + $0x78] sm:$0xff]
    %v1733 = vunpack.c.l.b16 %v1701
    %v1734 = vunpack.c.h.b16 %v1701
    %v1735 = vunpack.c.l.b16 %v1702
    %v1736 = vunpack.c.h.b16 %v1702
    %v1737 = vunpack.c.l.b16 %v1703
    %v1738 = vunpack.c.h.b16 %v1703
    %v1739 = vunpack.c.l.b16 %v1704
    %v1740 = vunpack.c.h.b16 %v1704
    %v1741 = vunpack.c.l.b16 %v1705
    %v1742 = vunpack.c.h.b16 %v1705
    %v1743 = vunpack.c.l.b16 %v1706
    %v1744 = vunpack.c.h.b16 %v1706
    %v1745 = vunpack.c.l.b16 %v1707
    %v1746 = vunpack.c.h.b16 %v1707
    %v1747 = vunpack.c.l.b16 %v1708
    %v1748 = vunpack.c.h.b16 %v1708
    %v1749 = vunpack.c.l.b16 %v1709
    %v1750 = vunpack.c.h.b16 %v1709
    %v1751 = vunpack.c.l.b16 %v1710
    %v1752 = vunpack.c.h.b16 %v1710
    %v1753 = vunpack.c.l.b16 %v1711
    %v1754 = vunpack.c.h.b16 %v1711
    %v1755 = vunpack.c.l.b16 %v1712
    %v1756 = vunpack.c.h.b16 %v1712
    %v1757 = vunpack.c.l.b16 %v1713
    %v1758 = vunpack.c.h.b16 %v1713
    %v1759 = vunpack.c.l.b16 %v1714
    %v1760 = vunpack.c.h.b16 %v1714
    %v1761 = vunpack.c.l.b16 %v1715
    %v1762 = vunpack.c.h.b16 %v1715
    %v1763 = vunpack.c.l.b16 %v1716
    %v1764 = vunpack.c.h.b16 %v1716
    %v1765 = vpack.c.b16 %v1735, %v1733
    %v1766 = vpack.c.b16 %v1736, %v1734
    %v1767 = vpack.c.b16 %v1739, %v1737
    %v1768 = vpack.c.b16 %v1740, %v1738
    %v1769 = vpack.c.b16 %v1743, %v1741
    %v1770 = vpack.c.b16 %v1744, %v1742
    %v1771 = vpack.c.b16 %v1747, %v1745
    %v1772 = vpack.c.b16 %v1748, %v1746
    %v1773 = vpack.c.b16 %v1751, %v1749
    %v1774 = vpack.c.b16 %v1752, %v1750
    %v1775 = vpack.c.b16 %v1755, %v1753
    %v1776 = vpack.c.b16 %v1756, %v1754
    %v1777 = vpack.c.b16 %v1759, %v1757
    %v1778 = vpack.c.b16 %v1760, %v1758
    %v1779 = vpack.c.b16 %v1763, %v1761
    %v1780 = vpack.c.b16 %v1764, %v1762
    %1797 = vmatprep.subr.bf16.mxu0 %v1766
    %1798 = vmatpush1.bf16.msra.mxu0 %v1765
    %1799 = vmatprep.subr.bf16.mxu0 %v1768
    %1800 = vmatpush1.bf16.msra.mxu0 %v1767
    %1801 = vmatprep.subr.bf16.mxu0 %v1770
    %1802 = vmatpush1.bf16.msra.mxu0 %v1769
    %1803 = vmatprep.subr.bf16.mxu0 %v1772
    %1804 = vmatpush1.bf16.msra.mxu0 %v1771
    %1805 = vmatprep.subr.bf16.mxu0 %v1774
    %1806 = vmatpush1.bf16.msra.mxu0 %v1773
    %1807 = vmatprep.subr.bf16.mxu0 %v1776
    %1808 = vmatpush1.bf16.msra.mxu0 %v1775
    %1809 = vmatprep.subr.bf16.mxu0 %v1778
    %1810 = vmatpush1.bf16.msra.mxu0 %v1777
    %1811 = vmatprep.subr.bf16.mxu0 %v1780
    %1812 = vmatpush1.bf16.msra.mxu0 %v1779
    %1813 = vmatprep.subr.bf16.mxu0 0
    %1814 = vmatpush1.bf16.msra.mxu0 0
    %1815 = vmatprep.subr.bf16.mxu0 0
    %1816 = vmatpush1.bf16.msra.mxu0 0
    %1817 = vmatprep.subr.bf16.mxu0 0
    %1818 = vmatpush1.bf16.msra.mxu0 0
    %1819 = vmatprep.subr.bf16.mxu0 0
    %1820 = vmatpush1.bf16.msra.mxu0 0
    %1821 = vmatprep.subr.bf16.mxu0 0
    %1822 = vmatpush1.bf16.msra.mxu0 0
    %1823 = vmatprep.subr.bf16.mxu0 0
    %1824 = vmatpush1.bf16.msra.mxu0 0
    %1825 = vmatprep.subr.bf16.mxu0 0
    %1826 = vmatpush1.bf16.msra.mxu0 0
    %1827 = vmatprep.subr.bf16.mxu0 0
    %1828 = vmatpush1.bf16.msra.mxu0 0
    %1829 = vmatprep.mubr.bf16.mxu0 0
    %1830 = vmatmul.mubr.bf16.gmra.mrb[0].mxu0 %v546
    %v1831 = vpop.f32.mrb[0].mxu0
    %v1832 = vadd.f32 0.0, %v1831
    %v1833 = vpop.f32.mrb[0].mxu0
    %v1834 = vadd.f32 0.0, %v1833
    %v1835 = vpop.f32.mrb[0].mxu0
    %v1836 = vadd.f32 0.0, %v1835
    %v1837 = vpop.f32.mrb[0].mxu0
    %v1838 = vadd.f32 0.0, %v1837
    %1839 = vmatprep.mubr.bf16.mxu0 0
    %1840 = vmatmul.mubr.bf16.gmra.mrb[0].mxu0 %v547
    %v1841 = vpop.f32.mrb[0].mxu0
    %v1842 = vadd.f32 0.0, %v1841
    %v1843 = vpop.f32.mrb[0].mxu0
    %v1844 = vadd.f32 0.0, %v1843
    %v1845 = vpop.f32.mrb[0].mxu0
    %v1846 = vadd.f32 0.0, %v1845
    %v1847 = vpop.f32.mrb[0].mxu0
    %v1848 = vadd.f32 0.0, %v1847
    %1849 = vmatprep.mubr.bf16.mxu0 0
    %1850 = vmatmul.mubr.bf16.gmra.mrb[0].mxu0 %v548
    %v1851 = vpop.f32.mrb[0].mxu0
    %v1852 = vadd.f32 0.0, %v1851
    %v1853 = vpop.f32.mrb[0].mxu0
    %v1854 = vadd.f32 0.0, %v1853
    %v1855 = vpop.f32.mrb[0].mxu0
    %v1856 = vadd.f32 0.0, %v1855
    %v1857 = vpop.f32.mrb[0].mxu0
    %v1858 = vadd.f32 0.0, %v1857
    %1859 = vmatprep.mubr.bf16.mxu0 0
    %1860 = vmatmul.mubr.bf16.gmra.mrb[0].mxu0 %v549
    %v1861 = vpop.f32.mrb[0].mxu0
    %v1862 = vadd.f32 0.0, %v1861
    %v1863 = vpop.f32.mrb[0].mxu0
    %v1864 = vadd.f32 0.0, %v1863
    %v1865 = vpop.f32.mrb[0].mxu0
    %v1866 = vadd.f32 0.0, %v1865
    %v1867 = vpop.f32.mrb[0].mxu0
    %v1868 = vadd.f32 0.0, %v1867
    %1869 = vmatprep.mubr.bf16.mxu0 0
    %1870 = vmatmul.mubr.bf16.gmra.mrb[0].mxu0 %v550
    %v1871 = vpop.f32.mrb[0].mxu0
    %v1872 = vadd.f32 0.0, %v1871
    %v1873 = vpop.f32.mrb[0].mxu0
    %v1874 = vadd.f32 0.0, %v1873
    %v1875 = vpop.f32.mrb[0].mxu0
    %v1876 = vadd.f32 0.0, %v1875
    %v1877 = vpop.f32.mrb[0].mxu0
    %v1878 = vadd.f32 0.0, %v1877
    %1879 = vmatprep.mubr.bf16.mxu0 0
    %1880 = vmatmul.mubr.bf16.gmra.mrb[0].mxu0 %v551
    %v1881 = vpop.f32.mrb[0].mxu0
    %v1882 = vadd.f32 0.0, %v1881
    %v1883 = vpop.f32.mrb[0].mxu0
    %v1884 = vadd.f32 0.0, %v1883
    %v1885 = vpop.f32.mrb[0].mxu0
    %v1886 = vadd.f32 0.0, %v1885
    %v1887 = vpop.f32.mrb[0].mxu0
    %v1888 = vadd.f32 0.0, %v1887
    %1889 = vmatprep.mubr.bf16.mxu0 0
    %1890 = vmatmul.mubr.bf16.gmra.mrb[0].mxu0 %v552
    %v1891 = vpop.f32.mrb[0].mxu0
    %v1892 = vadd.f32 0.0, %v1891
    %v1893 = vpop.f32.mrb[0].mxu0
    %v1894 = vadd.f32 0.0, %v1893
    %v1895 = vpop.f32.mrb[0].mxu0
    %v1896 = vadd.f32 0.0, %v1895
    %v1897 = vpop.f32.mrb[0].mxu0
    %v1898 = vadd.f32 0.0, %v1897
    %1899 = vmatprep.mubr.bf16.mxu0 0
    %1900 = vmatmul.mubr.bf16.gmra.mrb[0].mxu0 %v553
    %v1901 = vpop.f32.mrb[0].mxu0
    %v1902 = vadd.f32 0.0, %v1901
    %v1903 = vpop.f32.mrb[0].mxu0
    %v1904 = vadd.f32 0.0, %v1903
    %v1905 = vpop.f32.mrb[0].mxu0
    %v1906 = vadd.f32 0.0, %v1905
    %v1907 = vpop.f32.mrb[0].mxu0
    %v1908 = vadd.f32 0.0, %v1907
    %1909 = vdwg.mxu0
    %v1910 = vadd.f32 %v1668, %v1832
    %v1911 = vadd.f32 %v1669, %v1834
    %v1912 = vadd.f32 %v1670, %v1836
    %v1913 = vadd.f32 %v1671, %v1838
    %v1914 = vadd.f32 %v1672, %v1842
    %v1915 = vadd.f32 %v1673, %v1844
    %v1916 = vadd.f32 %v1674, %v1846
    %v1917 = vadd.f32 %v1675, %v1848
    %v1918 = vadd.f32 %v1676, %v1852
    %v1919 = vadd.f32 %v1677, %v1854
    %v1920 = vadd.f32 %v1678, %v1856
    %v1921 = vadd.f32 %v1679, %v1858
    %v1922 = vadd.f32 %v1680, %v1862
    %v1923 = vadd.f32 %v1681, %v1864
    %v1924 = vadd.f32 %v1682, %v1866
    %v1925 = vadd.f32 %v1683, %v1868
    %v1926 = vadd.f32 %v1684, %v1872
    %v1927 = vadd.f32 %v1685, %v1874
    %v1928 = vadd.f32 %v1686, %v1876
    %v1929 = vadd.f32 %v1687, %v1878
    %v1930 = vadd.f32 %v1688, %v1882
    %v1931 = vadd.f32 %v1689, %v1884
    %v1932 = vadd.f32 %v1690, %v1886
    %v1933 = vadd.f32 %v1691, %v1888
    %v1934 = vadd.f32 %v1692, %v1892
    %v1935 = vadd.f32 %v1693, %v1894
    %v1936 = vadd.f32 %v1694, %v1896
    %v1937 = vadd.f32 %v1695, %v1898
    %v1938 = vadd.f32 %v1696, %v1902
    %v1939 = vadd.f32 %v1697, %v1904
    %v1940 = vadd.f32 %v1698, %v1906
    %v1941 = vadd.f32 %v1699, %v1908
    %s1942 = scalar_lea.vmem [#allocation7], 768
    %v1943 = vld [vmem:[%s1942] sm:$0xff]
    %v1944 = vld [vmem:[%s1942 + $0x8] sm:$0xff]
    %v1945 = vld [vmem:[%s1942 + $0x10] sm:$0xff]
    %v1946 = vld [vmem:[%s1942 + $0x18] sm:$0xff]
    %v1947 = vld [vmem:[%s1942 + $0x20] sm:$0xff]
    %v1948 = vld [vmem:[%s1942 + $0x28] sm:$0xff]
    %v1949 = vld [vmem:[%s1942 + $0x30] sm:$0xff]
    %v1950 = vld [vmem:[%s1942 + $0x38] sm:$0xff]
    %v1951 = vld [vmem:[%s1942 + $0x40] sm:$0xff]
    %v1952 = vld [vmem:[%s1942 + $0x48] sm:$0xff]
    %v1953 = vld [vmem:[%s1942 + $0x50] sm:$0xff]
    %v1954 = vld [vmem:[%s1942 + $0x58] sm:$0xff]
    %v1955 = vld [vmem:[%s1942 + $0x60] sm:$0xff]
    %v1956 = vld [vmem:[%s1942 + $0x68] sm:$0xff]
    %v1957 = vld [vmem:[%s1942 + $0x70] sm:$0xff]
    %v1958 = vld [vmem:[%s1942 + $0x78] sm:$0xff]
    %v1975 = vunpack.c.l.b16 %v1943
    %v1976 = vunpack.c.h.b16 %v1943
    %v1977 = vunpack.c.l.b16 %v1944
    %v1978 = vunpack.c.h.b16 %v1944
    %v1979 = vunpack.c.l.b16 %v1945
    %v1980 = vunpack.c.h.b16 %v1945
    %v1981 = vunpack.c.l.b16 %v1946
    %v1982 = vunpack.c.h.b16 %v1946
    %v1983 = vunpack.c.l.b16 %v1947
    %v1984 = vunpack.c.h.b16 %v1947
    %v1985 = vunpack.c.l.b16 %v1948
    %v1986 = vunpack.c.h.b16 %v1948
    %v1987 = vunpack.c.l.b16 %v1949
    %v1988 = vunpack.c.h.b16 %v1949
    %v1989 = vunpack.c.l.b16 %v1950
    %v1990 = vunpack.c.h.b16 %v1950
    %v1991 = vunpack.c.l.b16 %v1951
    %v1992 = vunpack.c.h.b16 %v1951
    %v1993 = vunpack.c.l.b16 %v1952
    %v1994 = vunpack.c.h.b16 %v1952
    %v1995 = vunpack.c.l.b16 %v1953
    %v1996 = vunpack.c.h.b16 %v1953
    %v1997 = vunpack.c.l.b16 %v1954
    %v1998 = vunpack.c.h.b16 %v1954
    %v1999 = vunpack.c.l.b16 %v1955
    %v2000 = vunpack.c.h.b16 %v1955
    %v2001 = vunpack.c.l.b16 %v1956
    %v2002 = vunpack.c.h.b16 %v1956
    %v2003 = vunpack.c.l.b16 %v1957
    %v2004 = vunpack.c.h.b16 %v1957
    %v2005 = vunpack.c.l.b16 %v1958
    %v2006 = vunpack.c.h.b16 %v1958
    %v2007 = vpack.c.b16 %v1977, %v1975
    %v2008 = vpack.c.b16 %v1978, %v1976
    %v2009 = vpack.c.b16 %v1981, %v1979
    %v2010 = vpack.c.b16 %v1982, %v1980
    %v2011 = vpack.c.b16 %v1985, %v1983
    %v2012 = vpack.c.b16 %v1986, %v1984
    %v2013 = vpack.c.b16 %v1989, %v1987
    %v2014 = vpack.c.b16 %v1990, %v1988
    %v2015 = vpack.c.b16 %v1993, %v1991
    %v2016 = vpack.c.b16 %v1994, %v1992
    %v2017 = vpack.c.b16 %v1997, %v1995
    %v2018 = vpack.c.b16 %v1998, %v1996
    %v2019 = vpack.c.b16 %v2001, %v1999
    %v2020 = vpack.c.b16 %v2002, %v2000
    %v2021 = vpack.c.b16 %v2005, %v2003
    %v2022 = vpack.c.b16 %v2006, %v2004
    %2039 = vmatprep.subr.bf16.mxu0 %v2008
    %2040 = vmatpush1.bf16.msra.mxu0 %v2007
    %2041 = vmatprep.subr.bf16.mxu0 %v2010
    %2042 = vmatpush1.bf16.msra.mxu0 %v2009
    %2043 = vmatprep.subr.bf16.mxu0 %v2012
    %2044 = vmatpush1.bf16.msra.mxu0 %v2011
    %2045 = vmatprep.subr.bf16.mxu0 %v2014
    %2046 = vmatpush1.bf16.msra.mxu0 %v2013
    %2047 = vmatprep.subr.bf16.mxu0 %v2016
    %2048 = vmatpush1.bf16.msra.mxu0 %v2015
    %2049 = vmatprep.subr.bf16.mxu0 %v2018
    %2050 = vmatpush1.bf16.msra.mxu0 %v2017
    %2051 = vmatprep.subr.bf16.mxu0 %v2020
    %2052 = vmatpush1.bf16.msra.mxu0 %v2019
    %2053 = vmatprep.subr.bf16.mxu0 %v2022
    %2054 = vmatpush1.bf16.msra.mxu0 %v2021
    %2055 = vmatprep.subr.bf16.mxu0 0
    %2056 = vmatpush1.bf16.msra.mxu0 0
    %2057 = vmatprep.subr.bf16.mxu0 0
    %2058 = vmatpush1.bf16.msra.mxu0 0
    %2059 = vmatprep.subr.bf16.mxu0 0
    %2060 = vmatpush1.bf16.msra.mxu0 0
    %2061 = vmatprep.subr.bf16.mxu0 0
    %2062 = vmatpush1.bf16.msra.mxu0 0
    %2063 = vmatprep.subr.bf16.mxu0 0
    %2064 = vmatpush1.bf16.msra.mxu0 0
    %2065 = vmatprep.subr.bf16.mxu0 0
    %2066 = vmatpush1.bf16.msra.mxu0 0
    %2067 = vmatprep.subr.bf16.mxu0 0
    %2068 = vmatpush1.bf16.msra.mxu0 0
    %2069 = vmatprep.subr.bf16.mxu0 0
    %2070 = vmatpush1.bf16.msra.mxu0 0
    %2071 = vmatprep.mubr.bf16.mxu0 0
    %2072 = vmatmul.mubr.bf16.gmra.mrb[0].mxu0 %v396
    %v2073 = vpop.f32.mrb[0].mxu0
    %v2074 = vadd.f32 0.0, %v2073
    %v2075 = vpop.f32.mrb[0].mxu0
    %v2076 = vadd.f32 0.0, %v2075
    %v2077 = vpop.f32.mrb[0].mxu0
    %v2078 = vadd.f32 0.0, %v2077
    %v2079 = vpop.f32.mrb[0].mxu0
    %v2080 = vadd.f32 0.0, %v2079
    %2081 = vmatprep.mubr.bf16.mxu0 0
    %2082 = vmatmul.mubr.bf16.gmra.mrb[0].mxu0 %v397
    %v2083 = vpop.f32.mrb[0].mxu0
    %v2084 = vadd.f32 0.0, %v2083
    %v2085 = vpop.f32.mrb[0].mxu0
    %v2086 = vadd.f32 0.0, %v2085
    %v2087 = vpop.f32.mrb[0].mxu0
    %v2088 = vadd.f32 0.0, %v2087
    %v2089 = vpop.f32.mrb[0].mxu0
    %v2090 = vadd.f32 0.0, %v2089
    %2091 = vmatprep.mubr.bf16.mxu0 0
    %2092 = vmatmul.mubr.bf16.gmra.mrb[0].mxu0 %v398
    %v2093 = vpop.f32.mrb[0].mxu0
    %v2094 = vadd.f32 0.0, %v2093
    %v2095 = vpop.f32.mrb[0].mxu0
    %v2096 = vadd.f32 0.0, %v2095
    %v2097 = vpop.f32.mrb[0].mxu0
    %v2098 = vadd.f32 0.0, %v2097
    %v2099 = vpop.f32.mrb[0].mxu0
    %v2100 = vadd.f32 0.0, %v2099
    %2101 = vmatprep.mubr.bf16.mxu0 0
    %2102 = vmatmul.mubr.bf16.gmra.mrb[0].mxu0 %v399
    %v2103 = vpop.f32.mrb[0].mxu0
    %v2104 = vadd.f32 0.0, %v2103
    %v2105 = vpop.f32.mrb[0].mxu0
    %v2106 = vadd.f32 0.0, %v2105
    %v2107 = vpop.f32.mrb[0].mxu0
    %v2108 = vadd.f32 0.0, %v2107
    %v2109 = vpop.f32.mrb[0].mxu0
    %v2110 = vadd.f32 0.0, %v2109
    %2111 = vmatprep.mubr.bf16.mxu0 0
    %2112 = vmatmul.mubr.bf16.gmra.mrb[0].mxu0 %v400
    %v2113 = vpop.f32.mrb[0].mxu0
    %v2114 = vadd.f32 0.0, %v2113
    %v2115 = vpop.f32.mrb[0].mxu0
    %v2116 = vadd.f32 0.0, %v2115
    %v2117 = vpop.f32.mrb[0].mxu0
    %v2118 = vadd.f32 0.0, %v2117
    %v2119 = vpop.f32.mrb[0].mxu0
    %v2120 = vadd.f32 0.0, %v2119
    %2121 = vmatprep.mubr.bf16.mxu0 0
    %2122 = vmatmul.mubr.bf16.gmra.mrb[0].mxu0 %v401
    %v2123 = vpop.f32.mrb[0].mxu0
    %v2124 = vadd.f32 0.0, %v2123
    %v2125 = vpop.f32.mrb[0].mxu0
    %v2126 = vadd.f32 0.0, %v2125
    %v2127 = vpop.f32.mrb[0].mxu0
    %v2128 = vadd.f32 0.0, %v2127
    %v2129 = vpop.f32.mrb[0].mxu0
    %v2130 = vadd.f32 0.0, %v2129
    %2131 = vmatprep.mubr.bf16.mxu0 0
    %2132 = vmatmul.mubr.bf16.gmra.mrb[0].mxu0 %v402
    %v2133 = vpop.f32.mrb[0].mxu0
    %v2134 = vadd.f32 0.0, %v2133
    %v2135 = vpop.f32.mrb[0].mxu0
    %v2136 = vadd.f32 0.0, %v2135
    %v2137 = vpop.f32.mrb[0].mxu0
    %v2138 = vadd.f32 0.0, %v2137
    %v2139 = vpop.f32.mrb[0].mxu0
    %v2140 = vadd.f32 0.0, %v2139
    %2141 = vmatprep.mubr.bf16.mxu0 0
    %2142 = vmatmul.mubr.bf16.gmra.mrb[0].mxu0 %v403
    %v2143 = vpop.f32.mrb[0].mxu0
    %v2144 = vadd.f32 0.0, %v2143
    %v2145 = vpop.f32.mrb[0].mxu0
    %v2146 = vadd.f32 0.0, %v2145
    %v2147 = vpop.f32.mrb[0].mxu0
    %v2148 = vadd.f32 0.0, %v2147
    %v2149 = vpop.f32.mrb[0].mxu0
    %v2150 = vadd.f32 0.0, %v2149
    %2151 = vdwg.mxu0
    %v2152 = vadd.f32 %v1910, %v2074
    %v2153 = vadd.f32 %v1911, %v2076
    %v2154 = vadd.f32 %v1912, %v2078
    %v2155 = vadd.f32 %v1913, %v2080
    %v2156 = vadd.f32 %v1914, %v2084
    %v2157 = vadd.f32 %v1915, %v2086
    %v2158 = vadd.f32 %v1916, %v2088
    %v2159 = vadd.f32 %v1917, %v2090
    %v2160 = vadd.f32 %v1918, %v2094
    %v2161 = vadd.f32 %v1919, %v2096
    %v2162 = vadd.f32 %v1920, %v2098
    %v2163 = vadd.f32 %v1921, %v2100
    %v2164 = vadd.f32 %v1922, %v2104
    %v2165 = vadd.f32 %v1923, %v2106
    %v2166 = vadd.f32 %v1924, %v2108
    %v2167 = vadd.f32 %v1925, %v2110
    %v2168 = vadd.f32 %v1926, %v2114
    %v2169 = vadd.f32 %v1927, %v2116
    %v2170 = vadd.f32 %v1928, %v2118
    %v2171 = vadd.f32 %v1929, %v2120
    %v2172 = vadd.f32 %v1930, %v2124
    %v2173 = vadd.f32 %v1931, %v2126
    %v2174 = vadd.f32 %v1932, %v2128
    %v2175 = vadd.f32 %v1933, %v2130
    %v2176 = vadd.f32 %v1934, %v2134
    %v2177 = vadd.f32 %v1935, %v2136
    %v2178 = vadd.f32 %v1936, %v2138
    %v2179 = vadd.f32 %v1937, %v2140
    %v2180 = vadd.f32 %v1938, %v2144
    %v2181 = vadd.f32 %v1939, %v2146
    %v2182 = vadd.f32 %v1940, %v2148
    %v2183 = vadd.f32 %v1941, %v2150
    %s2184 = scalar_lea.vmem [#allocation7], 896
    %v2185 = vld [vmem:[%s2184] sm:$0xff]
    %v2186 = vld [vmem:[%s2184 + $0x8] sm:$0xff]
    %v2187 = vld [vmem:[%s2184 + $0x10] sm:$0xff]
    %v2188 = vld [vmem:[%s2184 + $0x18] sm:$0xff]
    %v2189 = vld [vmem:[%s2184 + $0x20] sm:$0xff]
    %v2190 = vld [vmem:[%s2184 + $0x28] sm:$0xff]
    %v2191 = vld [vmem:[%s2184 + $0x30] sm:$0xff]
    %v2192 = vld [vmem:[%s2184 + $0x38] sm:$0xff]
    %v2193 = vld [vmem:[%s2184 + $0x40] sm:$0xff]
    %v2194 = vld [vmem:[%s2184 + $0x48] sm:$0xff]
    %v2195 = vld [vmem:[%s2184 + $0x50] sm:$0xff]
    %v2196 = vld [vmem:[%s2184 + $0x58] sm:$0xff]
    %v2197 = vld [vmem:[%s2184 + $0x60] sm:$0xff]
    %v2198 = vld [vmem:[%s2184 + $0x68] sm:$0xff]
    %v2199 = vld [vmem:[%s2184 + $0x70] sm:$0xff]
    %v2200 = vld [vmem:[%s2184 + $0x78] sm:$0xff]
    %v2217 = vunpack.c.l.b16 %v2185
    %v2218 = vunpack.c.h.b16 %v2185
    %v2219 = vunpack.c.l.b16 %v2186
    %v2220 = vunpack.c.h.b16 %v2186
    %v2221 = vunpack.c.l.b16 %v2187
    %v2222 = vunpack.c.h.b16 %v2187
    %v2223 = vunpack.c.l.b16 %v2188
    %v2224 = vunpack.c.h.b16 %v2188
    %v2225 = vunpack.c.l.b16 %v2189
    %v2226 = vunpack.c.h.b16 %v2189
    %v2227 = vunpack.c.l.b16 %v2190
    %v2228 = vunpack.c.h.b16 %v2190
    %v2229 = vunpack.c.l.b16 %v2191
    %v2230 = vunpack.c.h.b16 %v2191
    %v2231 = vunpack.c.l.b16 %v2192
    %v2232 = vunpack.c.h.b16 %v2192
    %v2233 = vunpack.c.l.b16 %v2193
    %v2234 = vunpack.c.h.b16 %v2193
    %v2235 = vunpack.c.l.b16 %v2194
    %v2236 = vunpack.c.h.b16 %v2194
    %v2237 = vunpack.c.l.b16 %v2195
    %v2238 = vunpack.c.h.b16 %v2195
    %v2239 = vunpack.c.l.b16 %v2196
    %v2240 = vunpack.c.h.b16 %v2196
    %v2241 = vunpack.c.l.b16 %v2197
    %v2242 = vunpack.c.h.b16 %v2197
    %v2243 = vunpack.c.l.b16 %v2198
    %v2244 = vunpack.c.h.b16 %v2198
    %v2245 = vunpack.c.l.b16 %v2199
    %v2246 = vunpack.c.h.b16 %v2199
    %v2247 = vunpack.c.l.b16 %v2200
    %v2248 = vunpack.c.h.b16 %v2200
    %v2249 = vpack.c.b16 %v2219, %v2217
    %v2250 = vpack.c.b16 %v2220, %v2218
    %v2251 = vpack.c.b16 %v2223, %v2221
    %v2252 = vpack.c.b16 %v2224, %v2222
    %v2253 = vpack.c.b16 %v2227, %v2225
    %v2254 = vpack.c.b16 %v2228, %v2226
    %v2255 = vpack.c.b16 %v2231, %v2229
    %v2256 = vpack.c.b16 %v2232, %v2230
    %v2257 = vpack.c.b16 %v2235, %v2233
    %v2258 = vpack.c.b16 %v2236, %v2234
    %v2259 = vpack.c.b16 %v2239, %v2237
    %v2260 = vpack.c.b16 %v2240, %v2238
    %v2261 = vpack.c.b16 %v2243, %v2241
    %v2262 = vpack.c.b16 %v2244, %v2242
    %v2263 = vpack.c.b16 %v2247, %v2245
    %v2264 = vpack.c.b16 %v2248, %v2246
    %2281 = vmatprep.subr.bf16.mxu0 %v2250
    %2282 = vmatpush1.bf16.msra.mxu0 %v2249
    %2283 = vmatprep.subr.bf16.mxu0 %v2252
    %2284 = vmatpush1.bf16.msra.mxu0 %v2251
    %2285 = vmatprep.subr.bf16.mxu0 %v2254
    %2286 = vmatpush1.bf16.msra.mxu0 %v2253
    %2287 = vmatprep.subr.bf16.mxu0 %v2256
    %2288 = vmatpush1.bf16.msra.mxu0 %v2255
    %2289 = vmatprep.subr.bf16.mxu0 %v2258
    %2290 = vmatpush1.bf16.msra.mxu0 %v2257
    %2291 = vmatprep.subr.bf16.mxu0 %v2260
    %2292 = vmatpush1.bf16.msra.mxu0 %v2259
    %2293 = vmatprep.subr.bf16.mxu0 %v2262
    %2294 = vmatpush1.bf16.msra.mxu0 %v2261
    %2295 = vmatprep.subr.bf16.mxu0 %v2264
    %2296 = vmatpush1.bf16.msra.mxu0 %v2263
    %2297 = vmatprep.subr.bf16.mxu0 0
    %2298 = vmatpush1.bf16.msra.mxu0 0
    %2299 = vmatprep.subr.bf16.mxu0 0
    %2300 = vmatpush1.bf16.msra.mxu0 0
    %2301 = vmatprep.subr.bf16.mxu0 0
    %2302 = vmatpush1.bf16.msra.mxu0 0
    %2303 = vmatprep.subr.bf16.mxu0 0
    %2304 = vmatpush1.bf16.msra.mxu0 0
    %2305 = vmatprep.subr.bf16.mxu0 0
    %2306 = vmatpush1.bf16.msra.mxu0 0
    %2307 = vmatprep.subr.bf16.mxu0 0
    %2308 = vmatpush1.bf16.msra.mxu0 0
    %2309 = vmatprep.subr.bf16.mxu0 0
    %2310 = vmatpush1.bf16.msra.mxu0 0
    %2311 = vmatprep.subr.bf16.mxu0 0
    %2312 = vmatpush1.bf16.msra.mxu0 0
    %2313 = vmatprep.mubr.bf16.mxu0 0
    %2314 = vmatmul.mubr.bf16.gmra.mrb[0].mxu0 %v152
    %v2315 = vpop.f32.mrb[0].mxu0
    %v2316 = vadd.f32 0.0, %v2315
    %v2317 = vpop.f32.mrb[0].mxu0
    %v2318 = vadd.f32 0.0, %v2317
    %v2319 = vpop.f32.mrb[0].mxu0
    %v2320 = vadd.f32 0.0, %v2319
    %v2321 = vpop.f32.mrb[0].mxu0
    %v2322 = vadd.f32 0.0, %v2321
    %2323 = vmatprep.mubr.bf16.mxu0 0
    %2324 = vmatmul.mubr.bf16.gmra.mrb[0].mxu0 %v153
    %v2325 = vpop.f32.mrb[0].mxu0
    %v2326 = vadd.f32 0.0, %v2325
    %v2327 = vpop.f32.mrb[0].mxu0
    %v2328 = vadd.f32 0.0, %v2327
    %v2329 = vpop.f32.mrb[0].mxu0
    %v2330 = vadd.f32 0.0, %v2329
    %v2331 = vpop.f32.mrb[0].mxu0
    %v2332 = vadd.f32 0.0, %v2331
    %2333 = vmatprep.mubr.bf16.mxu0 0
    %2334 = vmatmul.mubr.bf16.gmra.mrb[0].mxu0 %v154
    %v2335 = vpop.f32.mrb[0].mxu0
    %v2336 = vadd.f32 0.0, %v2335
    %v2337 = vpop.f32.mrb[0].mxu0
    %v2338 = vadd.f32 0.0, %v2337
    %v2339 = vpop.f32.mrb[0].mxu0
    %v2340 = vadd.f32 0.0, %v2339
    %v2341 = vpop.f32.mrb[0].mxu0
    %v2342 = vadd.f32 0.0, %v2341
    %2343 = vmatprep.mubr.bf16.mxu0 0
    %2344 = vmatmul.mubr.bf16.gmra.mrb[0].mxu0 %v155
    %v2345 = vpop.f32.mrb[0].mxu0
    %v2346 = vadd.f32 0.0, %v2345
    %v2347 = vpop.f32.mrb[0].mxu0
    %v2348 = vadd.f32 0.0, %v2347
    %v2349 = vpop.f32.mrb[0].mxu0
    %v2350 = vadd.f32 0.0, %v2349
    %v2351 = vpop.f32.mrb[0].mxu0
    %v2352 = vadd.f32 0.0, %v2351
    %2353 = vmatprep.mubr.bf16.mxu0 0
    %2354 = vmatmul.mubr.bf16.gmra.mrb[0].mxu0 %v156
    %v2355 = vpop.f32.mrb[0].mxu0
    %v2356 = vadd.f32 0.0, %v2355
    %v2357 = vpop.f32.mrb[0].mxu0
    %v2358 = vadd.f32 0.0, %v2357
    %v2359 = vpop.f32.mrb[0].mxu0
    %v2360 = vadd.f32 0.0, %v2359
    %v2361 = vpop.f32.mrb[0].mxu0
    %v2362 = vadd.f32 0.0, %v2361
    %2363 = vmatprep.mubr.bf16.mxu0 0
    %2364 = vmatmul.mubr.bf16.gmra.mrb[0].mxu0 %v157
    %v2365 = vpop.f32.mrb[0].mxu0
    %v2366 = vadd.f32 0.0, %v2365
    %v2367 = vpop.f32.mrb[0].mxu0
    %v2368 = vadd.f32 0.0, %v2367
    %v2369 = vpop.f32.mrb[0].mxu0
    %v2370 = vadd.f32 0.0, %v2369
    %v2371 = vpop.f32.mrb[0].mxu0
    %v2372 = vadd.f32 0.0, %v2371
    %2373 = vmatprep.mubr.bf16.mxu0 0
    %2374 = vmatmul.mubr.bf16.gmra.mrb[0].mxu0 %v158
    %v2375 = vpop.f32.mrb[0].mxu0
    %v2376 = vadd.f32 0.0, %v2375
    %v2377 = vpop.f32.mrb[0].mxu0
    %v2378 = vadd.f32 0.0, %v2377
    %v2379 = vpop.f32.mrb[0].mxu0
    %v2380 = vadd.f32 0.0, %v2379
    %v2381 = vpop.f32.mrb[0].mxu0
    %v2382 = vadd.f32 0.0, %v2381
    %2383 = vmatprep.mubr.bf16.mxu0 0
    %2384 = vmatmul.mubr.bf16.gmra.mrb[0].mxu0 0
    %v2385 = vpop.f32.mrb[0].mxu0
    %v2386 = vadd.f32 0.0, %v2385
    %v2387 = vpop.f32.mrb[0].mxu0
    %v2388 = vadd.f32 0.0, %v2387
    %v2389 = vpop.f32.mrb[0].mxu0
    %v2390 = vadd.f32 0.0, %v2389
    %v2391 = vpop.f32.mrb[0].mxu0
    %v2392 = vadd.f32 0.0, %v2391
    %2393 = vdwg.mxu0
    %v2394 = vadd.f32 %v2152, %v2316
    %v2395 = vadd.f32 %v2153, %v2318
    %v2396 = vadd.f32 %v2154, %v2320
    %v2397 = vadd.f32 %v2155, %v2322
    %v2398 = vadd.f32 %v2156, %v2326
    %v2399 = vadd.f32 %v2157, %v2328
    %v2400 = vadd.f32 %v2158, %v2330
    %v2401 = vadd.f32 %v2159, %v2332
    %v2402 = vadd.f32 %v2160, %v2336
    %v2403 = vadd.f32 %v2161, %v2338
    %v2404 = vadd.f32 %v2162, %v2340
    %v2405 = vadd.f32 %v2163, %v2342
    %v2406 = vadd.f32 %v2164, %v2346
    %v2407 = vadd.f32 %v2165, %v2348
    %v2408 = vadd.f32 %v2166, %v2350
    %v2409 = vadd.f32 %v2167, %v2352
    %v2410 = vadd.f32 %v2168, %v2356
    %v2411 = vadd.f32 %v2169, %v2358
    %v2412 = vadd.f32 %v2170, %v2360
    %v2413 = vadd.f32 %v2171, %v2362
    %v2414 = vadd.f32 %v2172, %v2366
    %v2415 = vadd.f32 %v2173, %v2368
    %v2416 = vadd.f32 %v2174, %v2370
    %v2417 = vadd.f32 %v2175, %v2372
    %v2418 = vadd.f32 %v2176, %v2376
    %v2419 = vadd.f32 %v2177, %v2378
    %v2420 = vadd.f32 %v2178, %v2380
    %v2421 = vadd.f32 %v2179, %v2382
    %v2422 = vadd.f32 %v2180, %v2386
    %v2423 = vadd.f32 %v2181, %v2388
    %v2424 = vadd.f32 %v2182, %v2390
    %v2425 = vadd.f32 %v2183, %v2392
    %s2426 = scalar_lea.vmem [#allocation7], 1024
    %v2427 = vld [vmem:[%s2426] sm:$0xff]
    %v2428 = vld [vmem:[%s2426 + $0x8] sm:$0xff]
    %v2429 = vld [vmem:[%s2426 + $0x10] sm:$0xff]
    %v2430 = vld [vmem:[%s2426 + $0x18] sm:$0xff]
    %v2431 = vld [vmem:[%s2426 + $0x20] sm:$0xff]
    %v2432 = vld [vmem:[%s2426 + $0x28] sm:$0xff]
    %v2433 = vld [vmem:[%s2426 + $0x30] sm:$0xff]
    %v2434 = vld [vmem:[%s2426 + $0x38] sm:$0xff]
    %v2435 = vld [vmem:[%s2426 + $0x40] sm:$0xff]
    %v2436 = vld [vmem:[%s2426 + $0x48] sm:$0xff]
    %v2437 = vld [vmem:[%s2426 + $0x50] sm:$0xff]
    %v2438 = vld [vmem:[%s2426 + $0x58] sm:$0xff]
    %v2439 = vld [vmem:[%s2426 + $0x60] sm:$0xff]
    %v2440 = vld [vmem:[%s2426 + $0x68] sm:$0xff]
    %v2441 = vld [vmem:[%s2426 + $0x70] sm:$0xff]
    %v2442 = vld [vmem:[%s2426 + $0x78] sm:$0xff]
    %v2459 = vunpack.c.l.b16 %v2427
    %v2460 = vunpack.c.h.b16 %v2427
    %v2461 = vunpack.c.l.b16 %v2428
    %v2462 = vunpack.c.h.b16 %v2428
    %v2463 = vunpack.c.l.b16 %v2429
    %v2464 = vunpack.c.h.b16 %v2429
    %v2465 = vunpack.c.l.b16 %v2430
    %v2466 = vunpack.c.h.b16 %v2430
    %v2467 = vunpack.c.l.b16 %v2431
    %v2468 = vunpack.c.h.b16 %v2431
    %v2469 = vunpack.c.l.b16 %v2432
    %v2470 = vunpack.c.h.b16 %v2432
    %v2471 = vunpack.c.l.b16 %v2433
    %v2472 = vunpack.c.h.b16 %v2433
    %v2473 = vunpack.c.l.b16 %v2434
    %v2474 = vunpack.c.h.b16 %v2434
    %v2475 = vunpack.c.l.b16 %v2435
    %v2476 = vunpack.c.h.b16 %v2435
    %v2477 = vunpack.c.l.b16 %v2436
    %v2478 = vunpack.c.h.b16 %v2436
    %v2479 = vunpack.c.l.b16 %v2437
    %v2480 = vunpack.c.h.b16 %v2437
    %v2481 = vunpack.c.l.b16 %v2438
    %v2482 = vunpack.c.h.b16 %v2438
    %v2483 = vunpack.c.l.b16 %v2439
    %v2484 = vunpack.c.h.b16 %v2439
    %v2485 = vunpack.c.l.b16 %v2440
    %v2486 = vunpack.c.h.b16 %v2440
    %v2487 = vunpack.c.l.b16 %v2441
    %v2488 = vunpack.c.h.b16 %v2441
    %v2489 = vunpack.c.l.b16 %v2442
    %v2490 = vunpack.c.h.b16 %v2442
    %v2491 = vpack.c.b16 %v2461, %v2459
    %v2492 = vpack.c.b16 %v2462, %v2460
    %v2493 = vpack.c.b16 %v2465, %v2463
    %v2494 = vpack.c.b16 %v2466, %v2464
    %v2495 = vpack.c.b16 %v2469, %v2467
    %v2496 = vpack.c.b16 %v2470, %v2468
    %v2497 = vpack.c.b16 %v2473, %v2471
    %v2498 = vpack.c.b16 %v2474, %v2472
    %v2499 = vpack.c.b16 %v2477, %v2475
    %v2500 = vpack.c.b16 %v2478, %v2476
    %v2501 = vpack.c.b16 %v2481, %v2479
    %v2502 = vpack.c.b16 %v2482, %v2480
    %v2503 = vpack.c.b16 %v2485, %v2483
    %v2504 = vpack.c.b16 %v2486, %v2484
    %v2505 = vpack.c.b16 %v2489, %v2487
    %v2506 = vpack.c.b16 %v2490, %v2488
    %2523 = vmatprep.subr.bf16.mxu0 %v2492
    %2524 = vmatpush1.bf16.msra.mxu0 %v2491
    %2525 = vmatprep.subr.bf16.mxu0 %v2494
    %2526 = vmatpush1.bf16.msra.mxu0 %v2493
    %2527 = vmatprep.subr.bf16.mxu0 %v2496
    %2528 = vmatpush1.bf16.msra.mxu0 %v2495
    %2529 = vmatprep.subr.bf16.mxu0 %v2498
    %2530 = vmatpush1.bf16.msra.mxu0 %v2497
    %2531 = vmatprep.subr.bf16.mxu0 %v2500
    %2532 = vmatpush1.bf16.msra.mxu0 %v2499
    %2533 = vmatprep.subr.bf16.mxu0 %v2502
    %2534 = vmatpush1.bf16.msra.mxu0 %v2501
    %2535 = vmatprep.subr.bf16.mxu0 %v2504
    %2536 = vmatpush1.bf16.msra.mxu0 %v2503
    %2537 = vmatprep.subr.bf16.mxu0 %v2506
    %2538 = vmatpush1.bf16.msra.mxu0 %v2505
    %2539 = vmatprep.subr.bf16.mxu0 0
    %2540 = vmatpush1.bf16.msra.mxu0 0
    %2541 = vmatprep.subr.bf16.mxu0 0
    %2542 = vmatpush1.bf16.msra.mxu0 0
    %2543 = vmatprep.subr.bf16.mxu0 0
    %2544 = vmatpush1.bf16.msra.mxu0 0
    %2545 = vmatprep.subr.bf16.mxu0 0
    %2546 = vmatpush1.bf16.msra.mxu0 0
    %2547 = vmatprep.subr.bf16.mxu0 0
    %2548 = vmatpush1.bf16.msra.mxu0 0
    %2549 = vmatprep.subr.bf16.mxu0 0
    %2550 = vmatpush1.bf16.msra.mxu0 0
    %2551 = vmatprep.subr.bf16.mxu0 0
    %2552 = vmatpush1.bf16.msra.mxu0 0
    %2553 = vmatprep.subr.bf16.mxu0 0
    %2554 = vmatpush1.bf16.msra.mxu0 0
    %2555 = vmatprep.mubr.bf16.mxu0 0
    %2556 = vmatmul.mubr.bf16.gmra.mrb[0].mxu0 %v547
    %v2557 = vpop.f32.mrb[0].mxu0
    %v2558 = vadd.f32 0.0, %v2557
    %v2559 = vpop.f32.mrb[0].mxu0
    %v2560 = vadd.f32 0.0, %v2559
    %v2561 = vpop.f32.mrb[0].mxu0
    %v2562 = vadd.f32 0.0, %v2561
    %v2563 = vpop.f32.mrb[0].mxu0
    %v2564 = vadd.f32 0.0, %v2563
    %2565 = vmatprep.mubr.bf16.mxu0 0
    %2566 = vmatmul.mubr.bf16.gmra.mrb[0].mxu0 %v548
    %v2567 = vpop.f32.mrb[0].mxu0
    %v2568 = vadd.f32 0.0, %v2567
    %v2569 = vpop.f32.mrb[0].mxu0
    %v2570 = vadd.f32 0.0, %v2569
    %v2571 = vpop.f32.mrb[0].mxu0
    %v2572 = vadd.f32 0.0, %v2571
    %v2573 = vpop.f32.mrb[0].mxu0
    %v2574 = vadd.f32 0.0, %v2573
    %2575 = vmatprep.mubr.bf16.mxu0 0
    %2576 = vmatmul.mubr.bf16.gmra.mrb[0].mxu0 %v549
    %v2577 = vpop.f32.mrb[0].mxu0
    %v2578 = vadd.f32 0.0, %v2577
    %v2579 = vpop.f32.mrb[0].mxu0
    %v2580 = vadd.f32 0.0, %v2579
    %v2581 = vpop.f32.mrb[0].mxu0
    %v2582 = vadd.f32 0.0, %v2581
    %v2583 = vpop.f32.mrb[0].mxu0
    %v2584 = vadd.f32 0.0, %v2583
    %2585 = vmatprep.mubr.bf16.mxu0 0
    %2586 = vmatmul.mubr.bf16.gmra.mrb[0].mxu0 %v550
    %v2587 = vpop.f32.mrb[0].mxu0
    %v2588 = vadd.f32 0.0, %v2587
    %v2589 = vpop.f32.mrb[0].mxu0
    %v2590 = vadd.f32 0.0, %v2589
    %v2591 = vpop.f32.mrb[0].mxu0
    %v2592 = vadd.f32 0.0, %v2591
    %v2593 = vpop.f32.mrb[0].mxu0
    %v2594 = vadd.f32 0.0, %v2593
    %2595 = vmatprep.mubr.bf16.mxu0 0
    %2596 = vmatmul.mubr.bf16.gmra.mrb[0].mxu0 %v551
    %v2597 = vpop.f32.mrb[0].mxu0
    %v2598 = vadd.f32 0.0, %v2597
    %v2599 = vpop.f32.mrb[0].mxu0
    %v2600 = vadd.f32 0.0, %v2599
    %v2601 = vpop.f32.mrb[0].mxu0
    %v2602 = vadd.f32 0.0, %v2601
    %v2603 = vpop.f32.mrb[0].mxu0
    %v2604 = vadd.f32 0.0, %v2603
    %2605 = vmatprep.mubr.bf16.mxu0 0
    %2606 = vmatmul.mubr.bf16.gmra.mrb[0].mxu0 %v552
    %v2607 = vpop.f32.mrb[0].mxu0
    %v2608 = vadd.f32 0.0, %v2607
    %v2609 = vpop.f32.mrb[0].mxu0
    %v2610 = vadd.f32 0.0, %v2609
    %v2611 = vpop.f32.mrb[0].mxu0
    %v2612 = vadd.f32 0.0, %v2611
    %v2613 = vpop.f32.mrb[0].mxu0
    %v2614 = vadd.f32 0.0, %v2613
    %2615 = vmatprep.mubr.bf16.mxu0 0
    %2616 = vmatmul.mubr.bf16.gmra.mrb[0].mxu0 %v553
    %v2617 = vpop.f32.mrb[0].mxu0
    %v2618 = vadd.f32 0.0, %v2617
    %v2619 = vpop.f32.mrb[0].mxu0
    %v2620 = vadd.f32 0.0, %v2619
    %v2621 = vpop.f32.mrb[0].mxu0
    %v2622 = vadd.f32 0.0, %v2621
    %v2623 = vpop.f32.mrb[0].mxu0
    %v2624 = vadd.f32 0.0, %v2623
    %2625 = vmatprep.mubr.bf16.mxu0 0
    %2626 = vmatmul.mubr.bf16.gmra.mrb[0].mxu0 %v554
    %v2627 = vpop.f32.mrb[0].mxu0
    %v2628 = vadd.f32 0.0, %v2627
    %v2629 = vpop.f32.mrb[0].mxu0
    %v2630 = vadd.f32 0.0, %v2629
    %v2631 = vpop.f32.mrb[0].mxu0
    %v2632 = vadd.f32 0.0, %v2631
    %v2633 = vpop.f32.mrb[0].mxu0
    %v2634 = vadd.f32 0.0, %v2633
    %2635 = vdwg.mxu0
    %v2636 = vadd.f32 %v2394, %v2558
    %v2637 = vadd.f32 %v2395, %v2560
    %v2638 = vadd.f32 %v2396, %v2562
    %v2639 = vadd.f32 %v2397, %v2564
    %v2640 = vadd.f32 %v2398, %v2568
    %v2641 = vadd.f32 %v2399, %v2570
    %v2642 = vadd.f32 %v2400, %v2572
    %v2643 = vadd.f32 %v2401, %v2574
    %v2644 = vadd.f32 %v2402, %v2578
    %v2645 = vadd.f32 %v2403, %v2580
    %v2646 = vadd.f32 %v2404, %v2582
    %v2647 = vadd.f32 %v2405, %v2584
    %v2648 = vadd.f32 %v2406, %v2588
    %v2649 = vadd.f32 %v2407, %v2590
    %v2650 = vadd.f32 %v2408, %v2592
    %v2651 = vadd.f32 %v2409, %v2594
    %v2652 = vadd.f32 %v2410, %v2598
    %v2653 = vadd.f32 %v2411, %v2600
    %v2654 = vadd.f32 %v2412, %v2602
    %v2655 = vadd.f32 %v2413, %v2604
    %v2656 = vadd.f32 %v2414, %v2608
    %v2657 = vadd.f32 %v2415, %v2610
    %v2658 = vadd.f32 %v2416, %v2612
    %v2659 = vadd.f32 %v2417, %v2614
    %v2660 = vadd.f32 %v2418, %v2618
    %v2661 = vadd.f32 %v2419, %v2620
    %v2662 = vadd.f32 %v2420, %v2622
    %v2663 = vadd.f32 %v2421, %v2624
    %v2664 = vadd.f32 %v2422, %v2628
    %v2665 = vadd.f32 %v2423, %v2630
    %v2666 = vadd.f32 %v2424, %v2632
    %v2667 = vadd.f32 %v2425, %v2634
    %v2668 = vld [vmem:[#allocation8] sm:$0x3]
    %v2670 = vlaneseq
    %v2671 = vshrl.u32 %v2670, 7
    %v2672 = vsub.s32 0, %v2671
    %v2673 = vrot.slane %v2668, %v2672
    %v2674 = vlaneseq
    %v2675 = vshrl.u32 %v2674, 7
    %v2676 = vsub.s32 1, %v2675
    %v2677 = vrot.slane %v2668, %v2676
    %v2680 = vadd.f32 %v2636, %v2673
    %v2681 = vadd.f32 %v2637, %v2677
    %v2682 = vadd.f32 %v2638, %v2673
    %v2683 = vadd.f32 %v2639, %v2677
    %v2684 = vadd.f32 %v2640, %v2673
    %v2685 = vadd.f32 %v2641, %v2677
    %v2686 = vadd.f32 %v2642, %v2673
    %v2687 = vadd.f32 %v2643, %v2677
    %v2688 = vadd.f32 %v2644, %v2673
    %v2689 = vadd.f32 %v2645, %v2677
    %v2690 = vadd.f32 %v2646, %v2673
    %v2691 = vadd.f32 %v2647, %v2677
    %v2692 = vadd.f32 %v2648, %v2673
    %v2693 = vadd.f32 %v2649, %v2677
    %v2694 = vadd.f32 %v2650, %v2673
    %v2695 = vadd.f32 %v2651, %v2677
    %v2696 = vadd.f32 %v2652, %v2673
    %v2697 = vadd.f32 %v2653, %v2677
    %v2698 = vadd.f32 %v2654, %v2673
    %v2699 = vadd.f32 %v2655, %v2677
    %v2700 = vadd.f32 %v2656, %v2673
    %v2701 = vadd.f32 %v2657, %v2677
    %v2702 = vadd.f32 %v2658, %v2673
    %v2703 = vadd.f32 %v2659, %v2677
    %v2704 = vadd.f32 %v2660, %v2673
    %v2705 = vadd.f32 %v2661, %v2677
    %v2706 = vadd.f32 %v2662, %v2673
    %v2707 = vadd.f32 %v2663, %v2677
    %v2708 = vadd.f32 %v2664, %v2673
    %v2709 = vadd.f32 %v2665, %v2677
    %v2710 = vadd.f32 %v2666, %v2673
    %v2711 = vadd.f32 %v2667, %v2677
    %v2712 = vmax.f32 %v2680, 0.0
    %v2713 = vmax.f32 %v2681, 0.0
    %v2714 = vmax.f32 %v2682, 0.0
    %v2715 = vmax.f32 %v2683, 0.0
    %v2716 = vmax.f32 %v2684, 0.0
    %v2717 = vmax.f32 %v2685, 0.0
    %v2718 = vmax.f32 %v2686, 0.0
    %v2719 = vmax.f32 %v2687, 0.0
    %v2720 = vmax.f32 %v2688, 0.0
    %v2721 = vmax.f32 %v2689, 0.0
    %v2722 = vmax.f32 %v2690, 0.0
    %v2723 = vmax.f32 %v2691, 0.0
    %v2724 = vmax.f32 %v2692, 0.0
    %v2725 = vmax.f32 %v2693, 0.0
    %v2726 = vmax.f32 %v2694, 0.0
    %v2727 = vmax.f32 %v2695, 0.0
    %v2728 = vmax.f32 %v2696, 0.0
    %v2729 = vmax.f32 %v2697, 0.0
    %v2730 = vmax.f32 %v2698, 0.0
    %v2731 = vmax.f32 %v2699, 0.0
    %v2732 = vmax.f32 %v2700, 0.0
    %v2733 = vmax.f32 %v2701, 0.0
    %v2734 = vmax.f32 %v2702, 0.0
    %v2735 = vmax.f32 %v2703, 0.0
    %v2736 = vmax.f32 %v2704, 0.0
    %v2737 = vmax.f32 %v2705, 0.0
    %v2738 = vmax.f32 %v2706, 0.0
    %v2739 = vmax.f32 %v2707, 0.0
    %v2740 = vmax.f32 %v2708, 0.0
    %v2741 = vmax.f32 %v2709, 0.0
    %v2742 = vmax.f32 %v2710, 0.0
    %v2743 = vmax.f32 %v2711, 0.0
    %v2744 = vmax.f32 %v2712, %v2716
    %v2745 = vmax.f32 %v2713, %v2717
    %v2746 = vmax.f32 %v2714, %v2718
    %v2747 = vmax.f32 %v2715, %v2719
    %v2748 = vmax.f32 %v2720, %v2724
    %v2749 = vmax.f32 %v2721, %v2725
    %v2750 = vmax.f32 %v2722, %v2726
    %v2751 = vmax.f32 %v2723, %v2727
    %v2752 = vmax.f32 %v2728, %v2732
    %v2753 = vmax.f32 %v2729, %v2733
    %v2754 = vmax.f32 %v2730, %v2734
    %v2755 = vmax.f32 %v2731, %v2735
    %v2756 = vmax.f32 %v2736, %v2740
    %v2757 = vmax.f32 %v2737, %v2741
    %v2758 = vmax.f32 %v2738, %v2742
    %v2759 = vmax.f32 %v2739, %v2743
    %v2776 = vcombine.low %v2744, %v2745
    %v2777 = vcombine.high %v2744, %v2745
    %v2779 = vunpack.c.l.s4 1983009808
    %v2780 = vunpack.c.0.s8 %v2779
    %v2781 = vlaneseq
    %v2782 = vshrl.u32 %v2781, 7
    %v2783 = vsub.s32 %v2780, %v2782
    %v2784 = vrot.slane %v2776, %v2783
    %v2786 = vunpack.c.l.s4 1983009808
    %v2787 = vunpack.c.0.s8 %v2786
    %v2788 = vlaneseq
    %v2789 = vshrl.u32 %v2788, 7
    %v2790 = vsub.s32 %v2787, %v2789
    %v2791 = vrot.slane %v2777, %v2790
    %v2792 = vcombine.high %v2784, %v2784
    %v2793 = vcombine.high %v2791, %v2791
    %v2794 = vcombine.low %v2746, %v2747
    %v2795 = vcombine.high %v2746, %v2747
    %v2797 = vunpack.c.l.s4 1983009808
    %v2798 = vunpack.c.0.s8 %v2797
    %v2799 = vlaneseq
    %v2800 = vshrl.u32 %v2799, 7
    %v2801 = vsub.s32 %v2798, %v2800
    %v2802 = vrot.slane %v2794, %v2801
    %v2804 = vunpack.c.l.s4 1983009808
    %v2805 = vunpack.c.0.s8 %v2804
    %v2806 = vlaneseq
    %v2807 = vshrl.u32 %v2806, 7
    %v2808 = vsub.s32 %v2805, %v2807
    %v2809 = vrot.slane %v2795, %v2808
    %v2810 = vcombine.high %v2802, %v2802
    %v2811 = vcombine.high %v2809, %v2809
    %v2812 = vcombine.low %v2748, %v2749
    %v2813 = vcombine.high %v2748, %v2749
    %v2815 = vunpack.c.l.s4 1983009808
    %v2816 = vunpack.c.0.s8 %v2815
    %v2817 = vlaneseq
    %v2818 = vshrl.u32 %v2817, 7
    %v2819 = vsub.s32 %v2816, %v2818
    %v2820 = vrot.slane %v2812, %v2819
    %v2822 = vunpack.c.l.s4 1983009808
    %v2823 = vunpack.c.0.s8 %v2822
    %v2824 = vlaneseq
    %v2825 = vshrl.u32 %v2824, 7
    %v2826 = vsub.s32 %v2823, %v2825
    %v2827 = vrot.slane %v2813, %v2826
    %v2828 = vcombine.high %v2820, %v2820
    %v2829 = vcombine.high %v2827, %v2827
    %v2830 = vcombine.low %v2750, %v2751
    %v2831 = vcombine.high %v2750, %v2751
    %v2833 = vunpack.c.l.s4 1983009808
    %v2834 = vunpack.c.0.s8 %v2833
    %v2835 = vlaneseq
    %v2836 = vshrl.u32 %v2835, 7
    %v2837 = vsub.s32 %v2834, %v2836
    %v2838 = vrot.slane %v2830, %v2837
    %v2840 = vunpack.c.l.s4 1983009808
    %v2841 = vunpack.c.0.s8 %v2840
    %v2842 = vlaneseq
    %v2843 = vshrl.u32 %v2842, 7
    %v2844 = vsub.s32 %v2841, %v2843
    %v2845 = vrot.slane %v2831, %v2844
    %v2846 = vcombine.high %v2838, %v2838
    %v2847 = vcombine.high %v2845, %v2845
    %v2848 = vcombine.low %v2752, %v2753
    %v2849 = vcombine.high %v2752, %v2753
    %v2851 = vunpack.c.l.s4 1983009808
    %v2852 = vunpack.c.0.s8 %v2851
    %v2853 = vlaneseq
    %v2854 = vshrl.u32 %v2853, 7
    %v2855 = vsub.s32 %v2852, %v2854
    %v2856 = vrot.slane %v2848, %v2855
    %v2858 = vunpack.c.l.s4 1983009808
    %v2859 = vunpack.c.0.s8 %v2858
    %v2860 = vlaneseq
    %v2861 = vshrl.u32 %v2860, 7
    %v2862 = vsub.s32 %v2859, %v2861
    %v2863 = vrot.slane %v2849, %v2862
    %v2864 = vcombine.high %v2856, %v2856
    %v2865 = vcombine.high %v2863, %v2863
    %v2866 = vcombine.low %v2754, %v2755
    %v2867 = vcombine.high %v2754, %v2755
    %v2869 = vunpack.c.l.s4 1983009808
    %v2870 = vunpack.c.0.s8 %v2869
    %v2871 = vlaneseq
    %v2872 = vshrl.u32 %v2871, 7
    %v2873 = vsub.s32 %v2870, %v2872
    %v2874 = vrot.slane %v2866, %v2873
    %v2876 = vunpack.c.l.s4 1983009808
    %v2877 = vunpack.c.0.s8 %v2876
    %v2878 = vlaneseq
    %v2879 = vshrl.u32 %v2878, 7
    %v2880 = vsub.s32 %v2877, %v2879
    %v2881 = vrot.slane %v2867, %v2880
    %v2882 = vcombine.high %v2874, %v2874
    %v2883 = vcombine.high %v2881, %v2881
    %v2884 = vcombine.low %v2756, %v2757
    %v2885 = vcombine.high %v2756, %v2757
    %v2887 = vunpack.c.l.s4 1983009808
    %v2888 = vunpack.c.0.s8 %v2887
    %v2889 = vlaneseq
    %v2890 = vshrl.u32 %v2889, 7
    %v2891 = vsub.s32 %v2888, %v2890
    %v2892 = vrot.slane %v2884, %v2891
    %v2894 = vunpack.c.l.s4 1983009808
    %v2895 = vunpack.c.0.s8 %v2894
    %v2896 = vlaneseq
    %v2897 = vshrl.u32 %v2896, 7
    %v2898 = vsub.s32 %v2895, %v2897
    %v2899 = vrot.slane %v2885, %v2898
    %v2900 = vcombine.high %v2892, %v2892
    %v2901 = vcombine.high %v2899, %v2899
    %v2902 = vcombine.low %v2758, %v2759
    %v2903 = vcombine.high %v2758, %v2759
    %v2905 = vunpack.c.l.s4 1983009808
    %v2906 = vunpack.c.0.s8 %v2905
    %v2907 = vlaneseq
    %v2908 = vshrl.u32 %v2907, 7
    %v2909 = vsub.s32 %v2906, %v2908
    %v2910 = vrot.slane %v2902, %v2909
    %v2912 = vunpack.c.l.s4 1983009808
    %v2913 = vunpack.c.0.s8 %v2912
    %v2914 = vlaneseq
    %v2915 = vshrl.u32 %v2914, 7
    %v2916 = vsub.s32 %v2913, %v2915
    %v2917 = vrot.slane %v2903, %v2916
    %v2918 = vcombine.high %v2910, %v2910
    %v2919 = vcombine.high %v2917, %v2917
    %v2952 = vrot.slane %v2784, 7
    %v2953 = vrot.slane %v2952, 2
    %v2954 = vrot.slane %v2792, 7
    %v2955 = vrot.slane %v2954, 2
    %v2956 = vrot.slane %v2791, 7
    %v2957 = vrot.slane %v2956, 2
    %v2958 = vrot.slane %v2793, 7
    %v2959 = vrot.slane %v2958, 2
    %v2960 = vrot.slane %v2802, 7
    %v2961 = vrot.slane %v2960, 2
    %v2962 = vrot.slane %v2810, 7
    %v2963 = vrot.slane %v2962, 2
    %v2964 = vrot.slane %v2809, 7
    %v2965 = vrot.slane %v2964, 2
    %v2966 = vrot.slane %v2811, 7
    %v2967 = vrot.slane %v2966, 2
    %v2968 = vrot.slane %v2820, 7
    %v2969 = vrot.slane %v2968, 2
    %v2970 = vrot.slane %v2828, 7
    %v2971 = vrot.slane %v2970, 2
    %v2972 = vrot.slane %v2827, 7
    %v2973 = vrot.slane %v2972, 2
    %v2974 = vrot.slane %v2829, 7
    %v2975 = vrot.slane %v2974, 2
    %v2976 = vrot.slane %v2838, 7
    %v2977 = vrot.slane %v2976, 2
    %v2978 = vrot.slane %v2846, 7
    %v2979 = vrot.slane %v2978, 2
    %v2980 = vrot.slane %v2845, 7
    %v2981 = vrot.slane %v2980, 2
    %v2982 = vrot.slane %v2847, 7
    %v2983 = vrot.slane %v2982, 2
    %v2984 = vrot.slane %v2856, 7
    %v2985 = vrot.slane %v2984, 2
    %v2986 = vrot.slane %v2864, 7
    %v2987 = vrot.slane %v2986, 2
    %v2988 = vrot.slane %v2863, 7
    %v2989 = vrot.slane %v2988, 2
    %v2990 = vrot.slane %v2865, 7
    %v2991 = vrot.slane %v2990, 2
    %v2992 = vrot.slane %v2874, 7
    %v2993 = vrot.slane %v2992, 2
    %v2994 = vrot.slane %v2882, 7
    %v2995 = vrot.slane %v2994, 2
    %v2996 = vrot.slane %v2881, 7
    %v2997 = vrot.slane %v2996, 2
    %v2998 = vrot.slane %v2883, 7
    %v2999 = vrot.slane %v2998, 2
    %v3000 = vrot.slane %v2892, 7
    %v3001 = vrot.slane %v3000, 2
    %v3002 = vrot.slane %v2900, 7
    %v3003 = vrot.slane %v3002, 2
    %v3004 = vrot.slane %v2899, 7
    %v3005 = vrot.slane %v3004, 2
    %v3006 = vrot.slane %v2901, 7
    %v3007 = vrot.slane %v3006, 2
    %v3008 = vrot.slane %v2910, 7
    %v3009 = vrot.slane %v3008, 2
    %v3010 = vrot.slane %v2918, 7
    %v3011 = vrot.slane %v3010, 2
    %v3012 = vrot.slane %v2917, 7
    %v3013 = vrot.slane %v3012, 2
    %v3014 = vrot.slane %v2919, 7
    %v3015 = vrot.slane %v3014, 2
    %v3048 = vmax.f32 %v2784, %v2953
    %v3049 = vmax.f32 %v2792, %v2955
    %v3050 = vmax.f32 %v2791, %v2957
    %v3051 = vmax.f32 %v2793, %v2959
    %v3052 = vmax.f32 %v2802, %v2961
    %v3053 = vmax.f32 %v2810, %v2963
    %v3054 = vmax.f32 %v2809, %v2965
    %v3055 = vmax.f32 %v2811, %v2967
    %v3056 = vmax.f32 %v2820, %v2969
    %v3057 = vmax.f32 %v2828, %v2971
    %v3058 = vmax.f32 %v2827, %v2973
    %v3059 = vmax.f32 %v2829, %v2975
    %v3060 = vmax.f32 %v2838, %v2977
    %v3061 = vmax.f32 %v2846, %v2979
    %v3062 = vmax.f32 %v2845, %v2981
    %v3063 = vmax.f32 %v2847, %v2983
    %v3064 = vmax.f32 %v2856, %v2985
    %v3065 = vmax.f32 %v2864, %v2987
    %v3066 = vmax.f32 %v2863, %v2989
    %v3067 = vmax.f32 %v2865, %v2991
    %v3068 = vmax.f32 %v2874, %v2993
    %v3069 = vmax.f32 %v2882, %v2995
    %v3070 = vmax.f32 %v2881, %v2997
    %v3071 = vmax.f32 %v2883, %v2999
    %v3072 = vmax.f32 %v2892, %v3001
    %v3073 = vmax.f32 %v2900, %v3003
    %v3074 = vmax.f32 %v2899, %v3005
    %v3075 = vmax.f32 %v2901, %v3007
    %v3076 = vmax.f32 %v2910, %v3009
    %v3077 = vmax.f32 %v2918, %v3011
    %v3078 = vmax.f32 %v2917, %v3013
    %v3079 = vmax.f32 %v2919, %v3015
    %v3112 = vlaneseq
    %v3113 = vshrl.u32 %v3112, 7
    %v3114 = vsub.s32 0, %v3113
    %v3115 = vrot.slane %v3048, %v3114
    %v3116 = vlaneseq
    %v3117 = vshrl.u32 %v3116, 7
    %v3118 = vsub.s32 2, %v3117
    %v3119 = vrot.slane %v3048, %v3118
    %v3120 = vlaneseq
    %v3121 = vshrl.u32 %v3120, 7
    %v3122 = vsub.s32 0, %v3121
    %v3123 = vrot.slane %v3049, %v3122
    %v3124 = vlaneseq
    %v3125 = vshrl.u32 %v3124, 7
    %v3126 = vsub.s32 2, %v3125
    %v3127 = vrot.slane %v3049, %v3126
    %v3128 = vlaneseq
    %v3129 = vshrl.u32 %v3128, 7
    %v3130 = vsub.s32 0, %v3129
    %v3131 = vrot.slane %v3050, %v3130
    %v3132 = vlaneseq
    %v3133 = vshrl.u32 %v3132, 7
    %v3134 = vsub.s32 2, %v3133
    %v3135 = vrot.slane %v3050, %v3134
    %v3136 = vlaneseq
    %v3137 = vshrl.u32 %v3136, 7
    %v3138 = vsub.s32 0, %v3137
    %v3139 = vrot.slane %v3051, %v3138
    %v3140 = vlaneseq
    %v3141 = vshrl.u32 %v3140, 7
    %v3142 = vsub.s32 2, %v3141
    %v3143 = vrot.slane %v3051, %v3142
    %v3144 = vlaneseq
    %v3145 = vshrl.u32 %v3144, 7
    %v3146 = vsub.s32 0, %v3145
    %v3147 = vrot.slane %v3052, %v3146
    %v3148 = vlaneseq
    %v3149 = vshrl.u32 %v3148, 7
    %v3150 = vsub.s32 2, %v3149
    %v3151 = vrot.slane %v3052, %v3150
    %v3152 = vlaneseq
    %v3153 = vshrl.u32 %v3152, 7
    %v3154 = vsub.s32 0, %v3153
    %v3155 = vrot.slane %v3053, %v3154
    %v3156 = vlaneseq
    %v3157 = vshrl.u32 %v3156, 7
    %v3158 = vsub.s32 2, %v3157
    %v3159 = vrot.slane %v3053, %v3158
    %v3160 = vlaneseq
    %v3161 = vshrl.u32 %v3160, 7
    %v3162 = vsub.s32 0, %v3161
    %v3163 = vrot.slane %v3054, %v3162
    %v3164 = vlaneseq
    %v3165 = vshrl.u32 %v3164, 7
    %v3166 = vsub.s32 2, %v3165
    %v3167 = vrot.slane %v3054, %v3166
    %v3168 = vlaneseq
    %v3169 = vshrl.u32 %v3168, 7
    %v3170 = vsub.s32 0, %v3169
    %v3171 = vrot.slane %v3055, %v3170
    %v3172 = vlaneseq
    %v3173 = vshrl.u32 %v3172, 7
    %v3174 = vsub.s32 2, %v3173
    %v3175 = vrot.slane %v3055, %v3174
    %v3176 = vlaneseq
    %v3177 = vshrl.u32 %v3176, 7
    %v3178 = vsub.s32 0, %v3177
    %v3179 = vrot.slane %v3056, %v3178
    %v3180 = vlaneseq
    %v3181 = vshrl.u32 %v3180, 7
    %v3182 = vsub.s32 2, %v3181
    %v3183 = vrot.slane %v3056, %v3182
    %v3184 = vlaneseq
    %v3185 = vshrl.u32 %v3184, 7
    %v3186 = vsub.s32 0, %v3185
    %v3187 = vrot.slane %v3057, %v3186
    %v3188 = vlaneseq
    %v3189 = vshrl.u32 %v3188, 7
    %v3190 = vsub.s32 2, %v3189
    %v3191 = vrot.slane %v3057, %v3190
    %v3192 = vlaneseq
    %v3193 = vshrl.u32 %v3192, 7
    %v3194 = vsub.s32 0, %v3193
    %v3195 = vrot.slane %v3058, %v3194
    %v3196 = vlaneseq
    %v3197 = vshrl.u32 %v3196, 7
    %v3198 = vsub.s32 2, %v3197
    %v3199 = vrot.slane %v3058, %v3198
    %v3200 = vlaneseq
    %v3201 = vshrl.u32 %v3200, 7
    %v3202 = vsub.s32 0, %v3201
    %v3203 = vrot.slane %v3059, %v3202
    %v3204 = vlaneseq
    %v3205 = vshrl.u32 %v3204, 7
    %v3206 = vsub.s32 2, %v3205
    %v3207 = vrot.slane %v3059, %v3206
    %v3208 = vlaneseq
    %v3209 = vshrl.u32 %v3208, 7
    %v3210 = vsub.s32 0, %v3209
    %v3211 = vrot.slane %v3060, %v3210
    %v3212 = vlaneseq
    %v3213 = vshrl.u32 %v3212, 7
    %v3214 = vsub.s32 2, %v3213
    %v3215 = vrot.slane %v3060, %v3214
    %v3216 = vlaneseq
    %v3217 = vshrl.u32 %v3216, 7
    %v3218 = vsub.s32 0, %v3217
    %v3219 = vrot.slane %v3061, %v3218
    %v3220 = vlaneseq
    %v3221 = vshrl.u32 %v3220, 7
    %v3222 = vsub.s32 2, %v3221
    %v3223 = vrot.slane %v3061, %v3222
    %v3224 = vlaneseq
    %v3225 = vshrl.u32 %v3224, 7
    %v3226 = vsub.s32 0, %v3225
    %v3227 = vrot.slane %v3062, %v3226
    %v3228 = vlaneseq
    %v3229 = vshrl.u32 %v3228, 7
    %v3230 = vsub.s32 2, %v3229
    %v3231 = vrot.slane %v3062, %v3230
    %v3232 = vlaneseq
    %v3233 = vshrl.u32 %v3232, 7
    %v3234 = vsub.s32 0, %v3233
    %v3235 = vrot.slane %v3063, %v3234
    %v3236 = vlaneseq
    %v3237 = vshrl.u32 %v3236, 7
    %v3238 = vsub.s32 2, %v3237
    %v3239 = vrot.slane %v3063, %v3238
    %v3240 = vlaneseq
    %v3241 = vshrl.u32 %v3240, 7
    %v3242 = vsub.s32 0, %v3241
    %v3243 = vrot.slane %v3064, %v3242
    %v3244 = vlaneseq
    %v3245 = vshrl.u32 %v3244, 7
    %v3246 = vsub.s32 2, %v3245
    %v3247 = vrot.slane %v3064, %v3246
    %v3248 = vlaneseq
    %v3249 = vshrl.u32 %v3248, 7
    %v3250 = vsub.s32 0, %v3249
    %v3251 = vrot.slane %v3065, %v3250
    %v3252 = vlaneseq
    %v3253 = vshrl.u32 %v3252, 7
    %v3254 = vsub.s32 2, %v3253
    %v3255 = vrot.slane %v3065, %v3254
    %v3256 = vlaneseq
    %v3257 = vshrl.u32 %v3256, 7
    %v3258 = vsub.s32 0, %v3257
    %v3259 = vrot.slane %v3066, %v3258
    %v3260 = vlaneseq
    %v3261 = vshrl.u32 %v3260, 7
    %v3262 = vsub.s32 2, %v3261
    %v3263 = vrot.slane %v3066, %v3262
    %v3264 = vlaneseq
    %v3265 = vshrl.u32 %v3264, 7
    %v3266 = vsub.s32 0, %v3265
    %v3267 = vrot.slane %v3067, %v3266
    %v3268 = vlaneseq
    %v3269 = vshrl.u32 %v3268, 7
    %v3270 = vsub.s32 2, %v3269
    %v3271 = vrot.slane %v3067, %v3270
    %v3272 = vlaneseq
    %v3273 = vshrl.u32 %v3272, 7
    %v3274 = vsub.s32 0, %v3273
    %v3275 = vrot.slane %v3068, %v3274
    %v3276 = vlaneseq
    %v3277 = vshrl.u32 %v3276, 7
    %v3278 = vsub.s32 2, %v3277
    %v3279 = vrot.slane %v3068, %v3278
    %v3280 = vlaneseq
    %v3281 = vshrl.u32 %v3280, 7
    %v3282 = vsub.s32 0, %v3281
    %v3283 = vrot.slane %v3069, %v3282
    %v3284 = vlaneseq
    %v3285 = vshrl.u32 %v3284, 7
    %v3286 = vsub.s32 2, %v3285
    %v3287 = vrot.slane %v3069, %v3286
    %v3288 = vlaneseq
    %v3289 = vshrl.u32 %v3288, 7
    %v3290 = vsub.s32 0, %v3289
    %v3291 = vrot.slane %v3070, %v3290
    %v3292 = vlaneseq
    %v3293 = vshrl.u32 %v3292, 7
    %v3294 = vsub.s32 2, %v3293
    %v3295 = vrot.slane %v3070, %v3294
    %v3296 = vlaneseq
    %v3297 = vshrl.u32 %v3296, 7
    %v3298 = vsub.s32 0, %v3297
    %v3299 = vrot.slane %v3071, %v3298
    %v3300 = vlaneseq
    %v3301 = vshrl.u32 %v3300, 7
    %v3302 = vsub.s32 2, %v3301
    %v3303 = vrot.slane %v3071, %v3302
    %v3304 = vlaneseq
    %v3305 = vshrl.u32 %v3304, 7
    %v3306 = vsub.s32 0, %v3305
    %v3307 = vrot.slane %v3072, %v3306
    %v3308 = vlaneseq
    %v3309 = vshrl.u32 %v3308, 7
    %v3310 = vsub.s32 2, %v3309
    %v3311 = vrot.slane %v3072, %v3310
    %v3312 = vlaneseq
    %v3313 = vshrl.u32 %v3312, 7
    %v3314 = vsub.s32 0, %v3313
    %v3315 = vrot.slane %v3073, %v3314
    %v3316 = vlaneseq
    %v3317 = vshrl.u32 %v3316, 7
    %v3318 = vsub.s32 2, %v3317
    %v3319 = vrot.slane %v3073, %v3318
    %v3320 = vlaneseq
    %v3321 = vshrl.u32 %v3320, 7
    %v3322 = vsub.s32 0, %v3321
    %v3323 = vrot.slane %v3074, %v3322
    %v3324 = vlaneseq
    %v3325 = vshrl.u32 %v3324, 7
    %v3326 = vsub.s32 2, %v3325
    %v3327 = vrot.slane %v3074, %v3326
    %v3328 = vlaneseq
    %v3329 = vshrl.u32 %v3328, 7
    %v3330 = vsub.s32 0, %v3329
    %v3331 = vrot.slane %v3075, %v3330
    %v3332 = vlaneseq
    %v3333 = vshrl.u32 %v3332, 7
    %v3334 = vsub.s32 2, %v3333
    %v3335 = vrot.slane %v3075, %v3334
    %v3336 = vlaneseq
    %v3337 = vshrl.u32 %v3336, 7
    %v3338 = vsub.s32 0, %v3337
    %v3339 = vrot.slane %v3076, %v3338
    %v3340 = vlaneseq
    %v3341 = vshrl.u32 %v3340, 7
    %v3342 = vsub.s32 2, %v3341
    %v3343 = vrot.slane %v3076, %v3342
    %v3344 = vlaneseq
    %v3345 = vshrl.u32 %v3344, 7
    %v3346 = vsub.s32 0, %v3345
    %v3347 = vrot.slane %v3077, %v3346
    %v3348 = vlaneseq
    %v3349 = vshrl.u32 %v3348, 7
    %v3350 = vsub.s32 2, %v3349
    %v3351 = vrot.slane %v3077, %v3350
    %v3352 = vlaneseq
    %v3353 = vshrl.u32 %v3352, 7
    %v3354 = vsub.s32 0, %v3353
    %v3355 = vrot.slane %v3078, %v3354
    %v3356 = vlaneseq
    %v3357 = vshrl.u32 %v3356, 7
    %v3358 = vsub.s32 2, %v3357
    %v3359 = vrot.slane %v3078, %v3358
    %v3360 = vlaneseq
    %v3361 = vshrl.u32 %v3360, 7
    %v3362 = vsub.s32 0, %v3361
    %v3363 = vrot.slane %v3079, %v3362
    %v3364 = vlaneseq
    %v3365 = vshrl.u32 %v3364, 7
    %v3366 = vsub.s32 2, %v3365
    %v3367 = vrot.slane %v3079, %v3366
    %vm3368 = vcmask 1041409
    %v3369 = vsel %vm3368, %v3123, %v3115
    %vm3370 = vcmask 1042434
    %v3371 = vsel %vm3370, %v3131, %v3369
    %vm3372 = vcmask 1043459
    %v3373 = vsel %vm3372, %v3139, %v3371
    %vm3374 = vcmask 1044484
    %v3375 = vsel %vm3374, %v3147, %v3373
    %vm3376 = vcmask 1045509
    %v3377 = vsel %vm3376, %v3155, %v3375
    %vm3378 = vcmask 1046534
    %v3379 = vsel %vm3378, %v3163, %v3377
    %vm3380 = vcmask 1047559
    %v3381 = vsel %vm3380, %v3171, %v3379
    %v3382 = vsel %vm3368, %v3127, %v3119
    %v3383 = vsel %vm3370, %v3135, %v3382
    %v3384 = vsel %vm3372, %v3143, %v3383
    %v3385 = vsel %vm3374, %v3151, %v3384
    %v3386 = vsel %vm3376, %v3159, %v3385
    %v3387 = vsel %vm3378, %v3167, %v3386
    %v3388 = vsel %vm3380, %v3175, %v3387
    %v3389 = vsel %vm3368, %v3187, %v3179
    %v3390 = vsel %vm3370, %v3195, %v3389
    %v3391 = vsel %vm3372, %v3203, %v3390
    %v3392 = vsel %vm3374, %v3211, %v3391
    %v3393 = vsel %vm3376, %v3219, %v3392
    %v3394 = vsel %vm3378, %v3227, %v3393
    %v3395 = vsel %vm3380, %v3235, %v3394
    %v3396 = vsel %vm3368, %v3191, %v3183
    %v3397 = vsel %vm3370, %v3199, %v3396
    %v3398 = vsel %vm3372, %v3207, %v3397
    %v3399 = vsel %vm3374, %v3215, %v3398
    %v3400 = vsel %vm3376, %v3223, %v3399
    %v3401 = vsel %vm3378, %v3231, %v3400
    %v3402 = vsel %vm3380, %v3239, %v3401
    %v3403 = vsel %vm3368, %v3251, %v3243
    %v3404 = vsel %vm3370, %v3259, %v3403
    %v3405 = vsel %vm3372, %v3267, %v3404
    %v3406 = vsel %vm3374, %v3275, %v3405
    %v3407 = vsel %vm3376, %v3283, %v3406
    %v3408 = vsel %vm3378, %v3291, %v3407
    %v3409 = vsel %vm3380, %v3299, %v3408
    %v3410 = vsel %vm3368, %v3255, %v3247
    %v3411 = vsel %vm3370, %v3263, %v3410
    %v3412 = vsel %vm3372, %v3271, %v3411
    %v3413 = vsel %vm3374, %v3279, %v3412
    %v3414 = vsel %vm3376, %v3287, %v3413
    %v3415 = vsel %vm3378, %v3295, %v3414
    %v3416 = vsel %vm3380, %v3303, %v3415
    %v3417 = vsel %vm3368, %v3315, %v3307
    %v3418 = vsel %vm3370, %v3323, %v3417
    %v3419 = vsel %vm3372, %v3331, %v3418
    %v3420 = vsel %vm3374, %v3339, %v3419
    %v3421 = vsel %vm3376, %v3347, %v3420
    %v3422 = vsel %vm3378, %v3355, %v3421
    %v3423 = vsel %vm3380, %v3363, %v3422
    %v3424 = vsel %vm3368, %v3319, %v3311
    %v3425 = vsel %vm3370, %v3327, %v3424
    %v3426 = vsel %vm3372, %v3335, %v3425
    %v3427 = vsel %vm3374, %v3343, %v3426
    %v3428 = vsel %vm3376, %v3351, %v3427
    %v3429 = vsel %vm3378, %v3359, %v3428
    %v3430 = vsel %vm3380, %v3367, %v3429
    %v3439 = vadd.f32 %v3381, %v3395
    %v3440 = vadd.f32 %v3439, %v3409
    %v3441 = vadd.f32 %v3440, %v3423
    %v3442 = vrot.slane %v3441, 4
    %v3443 = vadd.f32 %v3441, %v3442
    %v3444 = vrot.slane %v3443, 2
    %v3445 = vadd.f32 %v3443, %v3444
    %v3446 = vrot.slane %v3445, 1
    %v3447 = vadd.f32 %v3445, %v3446
    %v3448 = vadd.f32 %v3388, %v3402
    %v3449 = vadd.f32 %v3448, %v3416
    %v3450 = vadd.f32 %v3449, %v3430
    %v3451 = vrot.slane %v3450, 4
    %v3452 = vadd.f32 %v3450, %v3451
    %v3453 = vrot.slane %v3452, 2
    %v3454 = vadd.f32 %v3452, %v3453
    %v3455 = vrot.slane %v3454, 1
    %v3456 = vadd.f32 %v3454, %v3455
    %v3457 = vmul.f32 %v3048, %v3048
    %v3458 = vmul.f32 %v3049, %v3049
    %v3459 = vmul.f32 %v3050, %v3050
    %v3460 = vmul.f32 %v3051, %v3051
    %v3461 = vmul.f32 %v3052, %v3052
    %v3462 = vmul.f32 %v3053, %v3053
    %v3463 = vmul.f32 %v3054, %v3054
    %v3464 = vmul.f32 %v3055, %v3055
    %v3465 = vmul.f32 %v3056, %v3056
    %v3466 = vmul.f32 %v3057, %v3057
    %v3467 = vmul.f32 %v3058, %v3058
    %v3468 = vmul.f32 %v3059, %v3059
    %v3469 = vmul.f32 %v3060, %v3060
    %v3470 = vmul.f32 %v3061, %v3061
    %v3471 = vmul.f32 %v3062, %v3062
    %v3472 = vmul.f32 %v3063, %v3063
    %v3473 = vmul.f32 %v3064, %v3064
    %v3474 = vmul.f32 %v3065, %v3065
    %v3475 = vmul.f32 %v3066, %v3066
    %v3476 = vmul.f32 %v3067, %v3067
    %v3477 = vmul.f32 %v3068, %v3068
    %v3478 = vmul.f32 %v3069, %v3069
    %v3479 = vmul.f32 %v3070, %v3070
    %v3480 = vmul.f32 %v3071, %v3071
    %v3481 = vmul.f32 %v3072, %v3072
    %v3482 = vmul.f32 %v3073, %v3073
    %v3483 = vmul.f32 %v3074, %v3074
    %v3484 = vmul.f32 %v3075, %v3075
    %v3485 = vmul.f32 %v3076, %v3076
    %v3486 = vmul.f32 %v3077, %v3077
    %v3487 = vmul.f32 %v3078, %v3078
    %v3488 = vmul.f32 %v3079, %v3079
    %v3521 = vlaneseq
    %v3522 = vshrl.u32 %v3521, 7
    %v3523 = vsub.s32 0, %v3522
    %v3524 = vrot.slane %v3457, %v3523
    %v3525 = vlaneseq
    %v3526 = vshrl.u32 %v3525, 7
    %v3527 = vsub.s32 2, %v3526
    %v3528 = vrot.slane %v3457, %v3527
    %v3529 = vlaneseq
    %v3530 = vshrl.u32 %v3529, 7
    %v3531 = vsub.s32 0, %v3530
    %v3532 = vrot.slane %v3458, %v3531
    %v3533 = vlaneseq
    %v3534 = vshrl.u32 %v3533, 7
    %v3535 = vsub.s32 2, %v3534
    %v3536 = vrot.slane %v3458, %v3535
    %v3537 = vlaneseq
    %v3538 = vshrl.u32 %v3537, 7
    %v3539 = vsub.s32 0, %v3538
    %v3540 = vrot.slane %v3459, %v3539
    %v3541 = vlaneseq
    %v3542 = vshrl.u32 %v3541, 7
    %v3543 = vsub.s32 2, %v3542
    %v3544 = vrot.slane %v3459, %v3543
    %v3545 = vlaneseq
    %v3546 = vshrl.u32 %v3545, 7
    %v3547 = vsub.s32 0, %v3546
    %v3548 = vrot.slane %v3460, %v3547
    %v3549 = vlaneseq
    %v3550 = vshrl.u32 %v3549, 7
    %v3551 = vsub.s32 2, %v3550
    %v3552 = vrot.slane %v3460, %v3551
    %v3553 = vlaneseq
    %v3554 = vshrl.u32 %v3553, 7
    %v3555 = vsub.s32 0, %v3554
    %v3556 = vrot.slane %v3461, %v3555
    %v3557 = vlaneseq
    %v3558 = vshrl.u32 %v3557, 7
    %v3559 = vsub.s32 2, %v3558
    %v3560 = vrot.slane %v3461, %v3559
    %v3561 = vlaneseq
    %v3562 = vshrl.u32 %v3561, 7
    %v3563 = vsub.s32 0, %v3562
    %v3564 = vrot.slane %v3462, %v3563
    %v3565 = vlaneseq
    %v3566 = vshrl.u32 %v3565, 7
    %v3567 = vsub.s32 2, %v3566
    %v3568 = vrot.slane %v3462, %v3567
    %v3569 = vlaneseq
    %v3570 = vshrl.u32 %v3569, 7
    %v3571 = vsub.s32 0, %v3570
    %v3572 = vrot.slane %v3463, %v3571
    %v3573 = vlaneseq
    %v3574 = vshrl.u32 %v3573, 7
    %v3575 = vsub.s32 2, %v3574
    %v3576 = vrot.slane %v3463, %v3575
    %v3577 = vlaneseq
    %v3578 = vshrl.u32 %v3577, 7
    %v3579 = vsub.s32 0, %v3578
    %v3580 = vrot.slane %v3464, %v3579
    %v3581 = vlaneseq
    %v3582 = vshrl.u32 %v3581, 7
    %v3583 = vsub.s32 2, %v3582
    %v3584 = vrot.slane %v3464, %v3583
    %v3585 = vlaneseq
    %v3586 = vshrl.u32 %v3585, 7
    %v3587 = vsub.s32 0, %v3586
    %v3588 = vrot.slane %v3465, %v3587
    %v3589 = vlaneseq
    %v3590 = vshrl.u32 %v3589, 7
    %v3591 = vsub.s32 2, %v3590
    %v3592 = vrot.slane %v3465, %v3591
    %v3593 = vlaneseq
    %v3594 = vshrl.u32 %v3593, 7
    %v3595 = vsub.s32 0, %v3594
    %v3596 = vrot.slane %v3466, %v3595
    %v3597 = vlaneseq
    %v3598 = vshrl.u32 %v3597, 7
    %v3599 = vsub.s32 2, %v3598
    %v3600 = vrot.slane %v3466, %v3599
    %v3601 = vlaneseq
    %v3602 = vshrl.u32 %v3601, 7
    %v3603 = vsub.s32 0, %v3602
    %v3604 = vrot.slane %v3467, %v3603
    %v3605 = vlaneseq
    %v3606 = vshrl.u32 %v3605, 7
    %v3607 = vsub.s32 2, %v3606
    %v3608 = vrot.slane %v3467, %v3607
    %v3609 = vlaneseq
    %v3610 = vshrl.u32 %v3609, 7
    %v3611 = vsub.s32 0, %v3610
    %v3612 = vrot.slane %v3468, %v3611
    %v3613 = vlaneseq
    %v3614 = vshrl.u32 %v3613, 7
    %v3615 = vsub.s32 2, %v3614
    %v3616 = vrot.slane %v3468, %v3615
    %v3617 = vlaneseq
    %v3618 = vshrl.u32 %v3617, 7
    %v3619 = vsub.s32 0, %v3618
    %v3620 = vrot.slane %v3469, %v3619
    %v3621 = vlaneseq
    %v3622 = vshrl.u32 %v3621, 7
    %v3623 = vsub.s32 2, %v3622
    %v3624 = vrot.slane %v3469, %v3623
    %v3625 = vlaneseq
    %v3626 = vshrl.u32 %v3625, 7
    %v3627 = vsub.s32 0, %v3626
    %v3628 = vrot.slane %v3470, %v3627
    %v3629 = vlaneseq
    %v3630 = vshrl.u32 %v3629, 7
    %v3631 = vsub.s32 2, %v3630
    %v3632 = vrot.slane %v3470, %v3631
    %v3633 = vlaneseq
    %v3634 = vshrl.u32 %v3633, 7
    %v3635 = vsub.s32 0, %v3634
    %v3636 = vrot.slane %v3471, %v3635
    %v3637 = vlaneseq
    %v3638 = vshrl.u32 %v3637, 7
    %v3639 = vsub.s32 2, %v3638
    %v3640 = vrot.slane %v3471, %v3639
    %v3641 = vlaneseq
    %v3642 = vshrl.u32 %v3641, 7
    %v3643 = vsub.s32 0, %v3642
    %v3644 = vrot.slane %v3472, %v3643
    %v3645 = vlaneseq
    %v3646 = vshrl.u32 %v3645, 7
    %v3647 = vsub.s32 2, %v3646
    %v3648 = vrot.slane %v3472, %v3647
    %v3649 = vlaneseq
    %v3650 = vshrl.u32 %v3649, 7
    %v3651 = vsub.s32 0, %v3650
    %v3652 = vrot.slane %v3473, %v3651
    %v3653 = vlaneseq
    %v3654 = vshrl.u32 %v3653, 7
    %v3655 = vsub.s32 2, %v3654
    %v3656 = vrot.slane %v3473, %v3655
    %v3657 = vlaneseq
    %v3658 = vshrl.u32 %v3657, 7
    %v3659 = vsub.s32 0, %v3658
    %v3660 = vrot.slane %v3474, %v3659
    %v3661 = vlaneseq
    %v3662 = vshrl.u32 %v3661, 7
    %v3663 = vsub.s32 2, %v3662
    %v3664 = vrot.slane %v3474, %v3663
    %v3665 = vlaneseq
    %v3666 = vshrl.u32 %v3665, 7
    %v3667 = vsub.s32 0, %v3666
    %v3668 = vrot.slane %v3475, %v3667
    %v3669 = vlaneseq
    %v3670 = vshrl.u32 %v3669, 7
    %v3671 = vsub.s32 2, %v3670
    %v3672 = vrot.slane %v3475, %v3671
    %v3673 = vlaneseq
    %v3674 = vshrl.u32 %v3673, 7
    %v3675 = vsub.s32 0, %v3674
    %v3676 = vrot.slane %v3476, %v3675
    %v3677 = vlaneseq
    %v3678 = vshrl.u32 %v3677, 7
    %v3679 = vsub.s32 2, %v3678
    %v3680 = vrot.slane %v3476, %v3679
    %v3681 = vlaneseq
    %v3682 = vshrl.u32 %v3681, 7
    %v3683 = vsub.s32 0, %v3682
    %v3684 = vrot.slane %v3477, %v3683
    %v3685 = vlaneseq
    %v3686 = vshrl.u32 %v3685, 7
    %v3687 = vsub.s32 2, %v3686
    %v3688 = vrot.slane %v3477, %v3687
    %v3689 = vlaneseq
    %v3690 = vshrl.u32 %v3689, 7
    %v3691 = vsub.s32 0, %v3690
    %v3692 = vrot.slane %v3478, %v3691
    %v3693 = vlaneseq
    %v3694 = vshrl.u32 %v3693, 7
    %v3695 = vsub.s32 2, %v3694
    %v3696 = vrot.slane %v3478, %v3695
    %v3697 = vlaneseq
    %v3698 = vshrl.u32 %v3697, 7
    %v3699 = vsub.s32 0, %v3698
    %v3700 = vrot.slane %v3479, %v3699
    %v3701 = vlaneseq
    %v3702 = vshrl.u32 %v3701, 7
    %v3703 = vsub.s32 2, %v3702
    %v3704 = vrot.slane %v3479, %v3703
    %v3705 = vlaneseq
    %v3706 = vshrl.u32 %v3705, 7
    %v3707 = vsub.s32 0, %v3706
    %v3708 = vrot.slane %v3480, %v3707
    %v3709 = vlaneseq
    %v3710 = vshrl.u32 %v3709, 7
    %v3711 = vsub.s32 2, %v3710
    %v3712 = vrot.slane %v3480, %v3711
    %v3713 = vlaneseq
    %v3714 = vshrl.u32 %v3713, 7
    %v3715 = vsub.s32 0, %v3714
    %v3716 = vrot.slane %v3481, %v3715
    %v3717 = vlaneseq
    %v3718 = vshrl.u32 %v3717, 7
    %v3719 = vsub.s32 2, %v3718
    %v3720 = vrot.slane %v3481, %v3719
    %v3721 = vlaneseq
    %v3722 = vshrl.u32 %v3721, 7
    %v3723 = vsub.s32 0, %v3722
    %v3724 = vrot.slane %v3482, %v3723
    %v3725 = vlaneseq
    %v3726 = vshrl.u32 %v3725, 7
    %v3727 = vsub.s32 2, %v3726
    %v3728 = vrot.slane %v3482, %v3727
    %v3729 = vlaneseq
    %v3730 = vshrl.u32 %v3729, 7
    %v3731 = vsub.s32 0, %v3730
    %v3732 = vrot.slane %v3483, %v3731
    %v3733 = vlaneseq
    %v3734 = vshrl.u32 %v3733, 7
    %v3735 = vsub.s32 2, %v3734
    %v3736 = vrot.slane %v3483, %v3735
    %v3737 = vlaneseq
    %v3738 = vshrl.u32 %v3737, 7
    %v3739 = vsub.s32 0, %v3738
    %v3740 = vrot.slane %v3484, %v3739
    %v3741 = vlaneseq
    %v3742 = vshrl.u32 %v3741, 7
    %v3743 = vsub.s32 2, %v3742
    %v3744 = vrot.slane %v3484, %v3743
    %v3745 = vlaneseq
    %v3746 = vshrl.u32 %v3745, 7
    %v3747 = vsub.s32 0, %v3746
    %v3748 = vrot.slane %v3485, %v3747
    %v3749 = vlaneseq
    %v3750 = vshrl.u32 %v3749, 7
    %v3751 = vsub.s32 2, %v3750
    %v3752 = vrot.slane %v3485, %v3751
    %v3753 = vlaneseq
    %v3754 = vshrl.u32 %v3753, 7
    %v3755 = vsub.s32 0, %v3754
    %v3756 = vrot.slane %v3486, %v3755
    %v3757 = vlaneseq
    %v3758 = vshrl.u32 %v3757, 7
    %v3759 = vsub.s32 2, %v3758
    %v3760 = vrot.slane %v3486, %v3759
    %v3761 = vlaneseq
    %v3762 = vshrl.u32 %v3761, 7
    %v3763 = vsub.s32 0, %v3762
    %v3764 = vrot.slane %v3487, %v3763
    %v3765 = vlaneseq
    %v3766 = vshrl.u32 %v3765, 7
    %v3767 = vsub.s32 2, %v3766
    %v3768 = vrot.slane %v3487, %v3767
    %v3769 = vlaneseq
    %v3770 = vshrl.u32 %v3769, 7
    %v3771 = vsub.s32 0, %v3770
    %v3772 = vrot.slane %v3488, %v3771
    %v3773 = vlaneseq
    %v3774 = vshrl.u32 %v3773, 7
    %v3775 = vsub.s32 2, %v3774
    %v3776 = vrot.slane %v3488, %v3775
    %v3777 = vsel %vm3368, %v3532, %v3524
    %v3778 = vsel %vm3370, %v3540, %v3777
    %v3779 = vsel %vm3372, %v3548, %v3778
    %v3780 = vsel %vm3374, %v3556, %v3779
    %v3781 = vsel %vm3376, %v3564, %v3780
    %v3782 = vsel %vm3378, %v3572, %v3781
    %v3783 = vsel %vm3380, %v3580, %v3782
    %v3784 = vsel %vm3368, %v3536, %v3528
    %v3785 = vsel %vm3370, %v3544, %v3784
    %v3786 = vsel %vm3372, %v3552, %v3785
    %v3787 = vsel %vm3374, %v3560, %v3786
    %v3788 = vsel %vm3376, %v3568, %v3787
    %v3789 = vsel %vm3378, %v3576, %v3788
    %v3790 = vsel %vm3380, %v3584, %v3789
    %v3791 = vsel %vm3368, %v3596, %v3588
    %v3792 = vsel %vm3370, %v3604, %v3791
    %v3793 = vsel %vm3372, %v3612, %v3792
    %v3794 = vsel %vm3374, %v3620, %v3793
    %v3795 = vsel %vm3376, %v3628, %v3794
    %v3796 = vsel %vm3378, %v3636, %v3795
    %v3797 = vsel %vm3380, %v3644, %v3796
    %v3798 = vsel %vm3368, %v3600, %v3592
    %v3799 = vsel %vm3370, %v3608, %v3798
    %v3800 = vsel %vm3372, %v3616, %v3799
    %v3801 = vsel %vm3374, %v3624, %v3800
    %v3802 = vsel %vm3376, %v3632, %v3801
    %v3803 = vsel %vm3378, %v3640, %v3802
    %v3804 = vsel %vm3380, %v3648, %v3803
    %v3805 = vsel %vm3368, %v3660, %v3652
    %v3806 = vsel %vm3370, %v3668, %v3805
    %v3807 = vsel %vm3372, %v3676, %v3806
    %v3808 = vsel %vm3374, %v3684, %v3807
    %v3809 = vsel %vm3376, %v3692, %v3808
    %v3810 = vsel %vm3378, %v3700, %v3809
    %v3811 = vsel %vm3380, %v3708, %v3810
    %v3812 = vsel %vm3368, %v3664, %v3656
    %v3813 = vsel %vm3370, %v3672, %v3812
    %v3814 = vsel %vm3372, %v3680, %v3813
    %v3815 = vsel %vm3374, %v3688, %v3814
    %v3816 = vsel %vm3376, %v3696, %v3815
    %v3817 = vsel %vm3378, %v3704, %v3816
    %v3818 = vsel %vm3380, %v3712, %v3817
    %v3819 = vsel %vm3368, %v3724, %v3716
    %v3820 = vsel %vm3370, %v3732, %v3819
    %v3821 = vsel %vm3372, %v3740, %v3820
    %v3822 = vsel %vm3374, %v3748, %v3821
    %v3823 = vsel %vm3376, %v3756, %v3822
    %v3824 = vsel %vm3378, %v3764, %v3823
    %v3825 = vsel %vm3380, %v3772, %v3824
    %v3826 = vsel %vm3368, %v3728, %v3720
    %v3827 = vsel %vm3370, %v3736, %v3826
    %v3828 = vsel %vm3372, %v3744, %v3827
    %v3829 = vsel %vm3374, %v3752, %v3828
    %v3830 = vsel %vm3376, %v3760, %v3829
    %v3831 = vsel %vm3378, %v3768, %v3830
    %v3832 = vsel %vm3380, %v3776, %v3831
    %v3841 = vadd.f32 %v3783, %v3797
    %v3842 = vadd.f32 %v3841, %v3811
    %v3843 = vadd.f32 %v3842, %v3825
    %v3844 = vrot.slane %v3843, 4
    %v3845 = vadd.f32 %v3843, %v3844
    %v3846 = vrot.slane %v3845, 2
    %v3847 = vadd.f32 %v3845, %v3846
    %v3848 = vrot.slane %v3847, 1
    %v3849 = vadd.f32 %v3847, %v3848
    %v3850 = vadd.f32 %v3790, %v3804
    %v3851 = vadd.f32 %v3850, %v3818
    %v3852 = vadd.f32 %v3851, %v3832
    %v3853 = vrot.slane %v3852, 4
    %v3854 = vadd.f32 %v3852, %v3853
    %v3855 = vrot.slane %v3854, 2
    %v3856 = vadd.f32 %v3854, %v3855
    %v3857 = vrot.slane %v3856, 1
    %v3858 = vadd.f32 %v3856, %v3857
    %v3861 = vrot.slane %v3849, 7
    %v3862 = vrot.slane %v3858, 7
    %vm3865 = vcmask 1040384
    %v3866 = vsel %vm3865, %v3447, %v3861
    %v3867 = vsel %vm3865, %v3456, %v3862
    %v3870 = vcombine.low %v3866, %v3867
    %v3872 = vunpack.c.l.s4 1983009808
    %v3873 = vunpack.c.0.s8 %v3872
    %v3874 = vlaneseq
    %v3875 = vshrl.u32 %v3874, 7
    %v3876 = vsub.s32 %v3873, %v3875
    %v3877 = vrot.slane %v3870, %v3876
    %3879 = vst [vmem:[#allocation11] sm:$0xf] %v3877
    %v3944 = vpack.c.bf16 %v3115, %v3115
    %v3945 = vpack.c.bf16 %v3119, %v3119
    %v3946 = vpack.c.bf16 %v3123, %v3123
    %v3947 = vpack.c.bf16 %v3127, %v3127
    %v3948 = vpack.c.bf16 %v3131, %v3131
    %v3949 = vpack.c.bf16 %v3135, %v3135
    %v3950 = vpack.c.bf16 %v3139, %v3139
    %v3951 = vpack.c.bf16 %v3143, %v3143
    %v3952 = vpack.c.bf16 %v3147, %v3147
    %v3953 = vpack.c.bf16 %v3151, %v3151
    %v3954 = vpack.c.bf16 %v3155, %v3155
    %v3955 = vpack.c.bf16 %v3159, %v3159
    %v3956 = vpack.c.bf16 %v3163, %v3163
    %v3957 = vpack.c.bf16 %v3167, %v3167
    %v3958 = vpack.c.bf16 %v3171, %v3171
    %v3959 = vpack.c.bf16 %v3175, %v3175
    %v3960 = vpack.c.bf16 %v3179, %v3179
    %v3961 = vpack.c.bf16 %v3183, %v3183
    %v3962 = vpack.c.bf16 %v3187, %v3187
    %v3963 = vpack.c.bf16 %v3191, %v3191
    %v3964 = vpack.c.bf16 %v3195, %v3195
    %v3965 = vpack.c.bf16 %v3199, %v3199
    %v3966 = vpack.c.bf16 %v3203, %v3203
    %v3967 = vpack.c.bf16 %v3207, %v3207
    %v3968 = vpack.c.bf16 %v3211, %v3211
    %v3969 = vpack.c.bf16 %v3215, %v3215
    %v3970 = vpack.c.bf16 %v3219, %v3219
    %v3971 = vpack.c.bf16 %v3223, %v3223
    %v3972 = vpack.c.bf16 %v3227, %v3227
    %v3973 = vpack.c.bf16 %v3231, %v3231
    %v3974 = vpack.c.bf16 %v3235, %v3235
    %v3975 = vpack.c.bf16 %v3239, %v3239
    %v3976 = vpack.c.bf16 %v3243, %v3243
    %v3977 = vpack.c.bf16 %v3247, %v3247
    %v3978 = vpack.c.bf16 %v3251, %v3251
    %v3979 = vpack.c.bf16 %v3255, %v3255
    %v3980 = vpack.c.bf16 %v3259, %v3259
    %v3981 = vpack.c.bf16 %v3263, %v3263
    %v3982 = vpack.c.bf16 %v3267, %v3267
    %v3983 = vpack.c.bf16 %v3271, %v3271
    %v3984 = vpack.c.bf16 %v3275, %v3275
    %v3985 = vpack.c.bf16 %v3279, %v3279
    %v3986 = vpack.c.bf16 %v3283, %v3283
    %v3987 = vpack.c.bf16 %v3287, %v3287
    %v3988 = vpack.c.bf16 %v3291, %v3291
    %v3989 = vpack.c.bf16 %v3295, %v3295
    %v3990 = vpack.c.bf16 %v3299, %v3299
    %v3991 = vpack.c.bf16 %v3303, %v3303
    %v3992 = vpack.c.bf16 %v3307, %v3307
    %v3993 = vpack.c.bf16 %v3311, %v3311
    %v3994 = vpack.c.bf16 %v3315, %v3315
    %v3995 = vpack.c.bf16 %v3319, %v3319
    %v3996 = vpack.c.bf16 %v3323, %v3323
    %v3997 = vpack.c.bf16 %v3327, %v3327
    %v3998 = vpack.c.bf16 %v3331, %v3331
    %v3999 = vpack.c.bf16 %v3335, %v3335
    %v4000 = vpack.c.bf16 %v3339, %v3339
    %v4001 = vpack.c.bf16 %v3343, %v3343
    %v4002 = vpack.c.bf16 %v3347, %v3347
    %v4003 = vpack.c.bf16 %v3351, %v3351
    %v4004 = vpack.c.bf16 %v3355, %v3355
    %v4005 = vpack.c.bf16 %v3359, %v3359
    %v4006 = vpack.c.bf16 %v3363, %v3363
    %v4007 = vpack.c.bf16 %v3367, %v3367
    %v4072 = vunpack.c.l.b16 %v3944
    %v4073 = vunpack.c.l.b16 %v3945
    %v4074 = vunpack.c.l.b16 %v3946
    %v4075 = vunpack.c.l.b16 %v3947
    %v4076 = vunpack.c.l.b16 %v3948
    %v4077 = vunpack.c.l.b16 %v3949
    %v4078 = vunpack.c.l.b16 %v3950
    %v4079 = vunpack.c.l.b16 %v3951
    %v4080 = vunpack.c.l.b16 %v3952
    %v4081 = vunpack.c.l.b16 %v3953
    %v4082 = vunpack.c.l.b16 %v3954
    %v4083 = vunpack.c.l.b16 %v3955
    %v4084 = vunpack.c.l.b16 %v3956
    %v4085 = vunpack.c.l.b16 %v3957
    %v4086 = vunpack.c.l.b16 %v3958
    %v4087 = vunpack.c.l.b16 %v3959
    %v4088 = vunpack.c.l.b16 %v3960
    %v4089 = vunpack.c.l.b16 %v3961
    %v4090 = vunpack.c.l.b16 %v3962
    %v4091 = vunpack.c.l.b16 %v3963
    %v4092 = vunpack.c.l.b16 %v3964
    %v4093 = vunpack.c.l.b16 %v3965
    %v4094 = vunpack.c.l.b16 %v3966
    %v4095 = vunpack.c.l.b16 %v3967
    %v4096 = vunpack.c.l.b16 %v3968
    %v4097 = vunpack.c.l.b16 %v3969
    %v4098 = vunpack.c.l.b16 %v3970
    %v4099 = vunpack.c.l.b16 %v3971
    %v4100 = vunpack.c.l.b16 %v3972
    %v4101 = vunpack.c.l.b16 %v3973
    %v4102 = vunpack.c.l.b16 %v3974
    %v4103 = vunpack.c.l.b16 %v3975
    %v4104 = vunpack.c.l.b16 %v3976
    %v4105 = vunpack.c.l.b16 %v3977
    %v4106 = vunpack.c.l.b16 %v3978
    %v4107 = vunpack.c.l.b16 %v3979
    %v4108 = vunpack.c.l.b16 %v3980
    %v4109 = vunpack.c.l.b16 %v3981
    %v4110 = vunpack.c.l.b16 %v3982
    %v4111 = vunpack.c.l.b16 %v3983
    %v4112 = vunpack.c.l.b16 %v3984
    %v4113 = vunpack.c.l.b16 %v3985
    %v4114 = vunpack.c.l.b16 %v3986
    %v4115 = vunpack.c.l.b16 %v3987
    %v4116 = vunpack.c.l.b16 %v3988
    %v4117 = vunpack.c.l.b16 %v3989
    %v4118 = vunpack.c.l.b16 %v3990
    %v4119 = vunpack.c.l.b16 %v3991
    %v4120 = vunpack.c.l.b16 %v3992
    %v4121 = vunpack.c.l.b16 %v3993
    %v4122 = vunpack.c.l.b16 %v3994
    %v4123 = vunpack.c.l.b16 %v3995
    %v4124 = vunpack.c.l.b16 %v3996
    %v4125 = vunpack.c.l.b16 %v3997
    %v4126 = vunpack.c.l.b16 %v3998
    %v4127 = vunpack.c.l.b16 %v3999
    %v4128 = vunpack.c.l.b16 %v4000
    %v4129 = vunpack.c.l.b16 %v4001
    %v4130 = vunpack.c.l.b16 %v4002
    %v4131 = vunpack.c.l.b16 %v4003
    %v4132 = vunpack.c.l.b16 %v4004
    %v4133 = vunpack.c.l.b16 %v4005
    %v4134 = vunpack.c.l.b16 %v4006
    %v4135 = vunpack.c.l.b16 %v4007
    %v4136 = vpack.c.b16 %v4073, %v4072
    %v4137 = vpack.c.b16 %v4075, %v4074
    %v4138 = vpack.c.b16 %v4077, %v4076
    %v4139 = vpack.c.b16 %v4079, %v4078
    %v4140 = vpack.c.b16 %v4081, %v4080
    %v4141 = vpack.c.b16 %v4083, %v4082
    %v4142 = vpack.c.b16 %v4085, %v4084
    %v4143 = vpack.c.b16 %v4087, %v4086
    %v4144 = vpack.c.b16 %v4089, %v4088
    %v4145 = vpack.c.b16 %v4091, %v4090
    %v4146 = vpack.c.b16 %v4093, %v4092
    %v4147 = vpack.c.b16 %v4095, %v4094
    %v4148 = vpack.c.b16 %v4097, %v4096
    %v4149 = vpack.c.b16 %v4099, %v4098
    %v4150 = vpack.c.b16 %v4101, %v4100
    %v4151 = vpack.c.b16 %v4103, %v4102
    %v4152 = vpack.c.b16 %v4105, %v4104
    %v4153 = vpack.c.b16 %v4107, %v4106
    %v4154 = vpack.c.b16 %v4109, %v4108
    %v4155 = vpack.c.b16 %v4111, %v4110
    %v4156 = vpack.c.b16 %v4113, %v4112
    %v4157 = vpack.c.b16 %v4115, %v4114
    %v4158 = vpack.c.b16 %v4117, %v4116
    %v4159 = vpack.c.b16 %v4119, %v4118
    %v4160 = vpack.c.b16 %v4121, %v4120
    %v4161 = vpack.c.b16 %v4123, %v4122
    %v4162 = vpack.c.b16 %v4125, %v4124
    %v4163 = vpack.c.b16 %v4127, %v4126
    %v4164 = vpack.c.b16 %v4129, %v4128
    %v4165 = vpack.c.b16 %v4131, %v4130
    %v4166 = vpack.c.b16 %v4133, %v4132
    %v4167 = vpack.c.b16 %v4135, %v4134
    %v4168 = vunpack.c.l.b16 %v4136
    %v4169 = vunpack.c.h.b16 %v4136
    %v4170 = vunpack.c.l.b16 %v4137
    %v4171 = vunpack.c.h.b16 %v4137
    %v4172 = vunpack.c.l.b16 %v4138
    %v4173 = vunpack.c.h.b16 %v4138
    %v4174 = vunpack.c.l.b16 %v4139
    %v4175 = vunpack.c.h.b16 %v4139
    %v4176 = vunpack.c.l.b16 %v4140
    %v4177 = vunpack.c.h.b16 %v4140
    %v4178 = vunpack.c.l.b16 %v4141
    %v4179 = vunpack.c.h.b16 %v4141
    %v4180 = vunpack.c.l.b16 %v4142
    %v4181 = vunpack.c.h.b16 %v4142
    %v4182 = vunpack.c.l.b16 %v4143
    %v4183 = vunpack.c.h.b16 %v4143
    %v4184 = vunpack.c.l.b16 %v4144
    %v4185 = vunpack.c.h.b16 %v4144
    %v4186 = vunpack.c.l.b16 %v4145
    %v4187 = vunpack.c.h.b16 %v4145
    %v4188 = vunpack.c.l.b16 %v4146
    %v4189 = vunpack.c.h.b16 %v4146
    %v4190 = vunpack.c.l.b16 %v4147
    %v4191 = vunpack.c.h.b16 %v4147
    %v4192 = vunpack.c.l.b16 %v4148
    %v4193 = vunpack.c.h.b16 %v4148
    %v4194 = vunpack.c.l.b16 %v4149
    %v4195 = vunpack.c.h.b16 %v4149
    %v4196 = vunpack.c.l.b16 %v4150
    %v4197 = vunpack.c.h.b16 %v4150
    %v4198 = vunpack.c.l.b16 %v4151
    %v4199 = vunpack.c.h.b16 %v4151
    %v4200 = vunpack.c.l.b16 %v4152
    %v4201 = vunpack.c.h.b16 %v4152
    %v4202 = vunpack.c.l.b16 %v4153
    %v4203 = vunpack.c.h.b16 %v4153
    %v4204 = vunpack.c.l.b16 %v4154
    %v4205 = vunpack.c.h.b16 %v4154
    %v4206 = vunpack.c.l.b16 %v4155
    %v4207 = vunpack.c.h.b16 %v4155
    %v4208 = vunpack.c.l.b16 %v4156
    %v4209 = vunpack.c.h.b16 %v4156
    %v4210 = vunpack.c.l.b16 %v4157
    %v4211 = vunpack.c.h.b16 %v4157
    %v4212 = vunpack.c.l.b16 %v4158
    %v4213 = vunpack.c.h.b16 %v4158
    %v4214 = vunpack.c.l.b16 %v4159
    %v4215 = vunpack.c.h.b16 %v4159
    %v4216 = vunpack.c.l.b16 %v4160
    %v4217 = vunpack.c.h.b16 %v4160
    %v4218 = vunpack.c.l.b16 %v4161
    %v4219 = vunpack.c.h.b16 %v4161
    %v4220 = vunpack.c.l.b16 %v4162
    %v4221 = vunpack.c.h.b16 %v4162
    %v4222 = vunpack.c.l.b16 %v4163
    %v4223 = vunpack.c.h.b16 %v4163
    %v4224 = vunpack.c.l.b16 %v4164
    %v4225 = vunpack.c.h.b16 %v4164
    %v4226 = vunpack.c.l.b16 %v4165
    %v4227 = vunpack.c.h.b16 %v4165
    %v4228 = vunpack.c.l.b16 %v4166
    %v4229 = vunpack.c.h.b16 %v4166
    %v4230 = vunpack.c.l.b16 %v4167
    %v4231 = vunpack.c.h.b16 %v4167
    %v4232 = vrot.slane %v4170, 7
    %v4233 = vsel %vm3368, %v4232, %v4168
    %v4234 = vrot.slane %v4172, 6
    %v4235 = vsel %vm3370, %v4234, %v4233
    %v4236 = vrot.slane %v4174, 5
    %v4237 = vsel %vm3372, %v4236, %v4235
    %v4238 = vrot.slane %v4176, 4
    %v4239 = vsel %vm3374, %v4238, %v4237
    %v4240 = vrot.slane %v4178, 3
    %v4241 = vsel %vm3376, %v4240, %v4239
    %v4242 = vrot.slane %v4180, 2
    %v4243 = vsel %vm3378, %v4242, %v4241
    %v4244 = vrot.slane %v4182, 1
    %v4245 = vsel %vm3380, %v4244, %v4243
    %v4246 = vrot.slane %v4171, 7
    %v4247 = vsel %vm3368, %v4246, %v4169
    %v4248 = vrot.slane %v4173, 6
    %v4249 = vsel %vm3370, %v4248, %v4247
    %v4250 = vrot.slane %v4175, 5
    %v4251 = vsel %vm3372, %v4250, %v4249
    %v4252 = vrot.slane %v4177, 4
    %v4253 = vsel %vm3374, %v4252, %v4251
    %v4254 = vrot.slane %v4179, 3
    %v4255 = vsel %vm3376, %v4254, %v4253
    %v4256 = vrot.slane %v4181, 2
    %v4257 = vsel %vm3378, %v4256, %v4255
    %v4258 = vrot.slane %v4183, 1
    %v4259 = vsel %vm3380, %v4258, %v4257
    %v4260 = vrot.slane %v4186, 7
    %v4261 = vsel %vm3368, %v4260, %v4184
    %v4262 = vrot.slane %v4188, 6
    %v4263 = vsel %vm3370, %v4262, %v4261
    %v4264 = vrot.slane %v4190, 5
    %v4265 = vsel %vm3372, %v4264, %v4263
    %v4266 = vrot.slane %v4192, 4
    %v4267 = vsel %vm3374, %v4266, %v4265
    %v4268 = vrot.slane %v4194, 3
    %v4269 = vsel %vm3376, %v4268, %v4267
    %v4270 = vrot.slane %v4196, 2
    %v4271 = vsel %vm3378, %v4270, %v4269
    %v4272 = vrot.slane %v4198, 1
    %v4273 = vsel %vm3380, %v4272, %v4271
    %v4274 = vrot.slane %v4187, 7
    %v4275 = vsel %vm3368, %v4274, %v4185
    %v4276 = vrot.slane %v4189, 6
    %v4277 = vsel %vm3370, %v4276, %v4275
    %v4278 = vrot.slane %v4191, 5
    %v4279 = vsel %vm3372, %v4278, %v4277
    %v4280 = vrot.slane %v4193, 4
    %v4281 = vsel %vm3374, %v4280, %v4279
    %v4282 = vrot.slane %v4195, 3
    %v4283 = vsel %vm3376, %v4282, %v4281
    %v4284 = vrot.slane %v4197, 2
    %v4285 = vsel %vm3378, %v4284, %v4283
    %v4286 = vrot.slane %v4199, 1
    %v4287 = vsel %vm3380, %v4286, %v4285
    %v4288 = vrot.slane %v4202, 7
    %v4289 = vsel %vm3368, %v4288, %v4200
    %v4290 = vrot.slane %v4204, 6
    %v4291 = vsel %vm3370, %v4290, %v4289
    %v4292 = vrot.slane %v4206, 5
    %v4293 = vsel %vm3372, %v4292, %v4291
    %v4294 = vrot.slane %v4208, 4
    %v4295 = vsel %vm3374, %v4294, %v4293
    %v4296 = vrot.slane %v4210, 3
    %v4297 = vsel %vm3376, %v4296, %v4295
    %v4298 = vrot.slane %v4212, 2
    %v4299 = vsel %vm3378, %v4298, %v4297
    %v4300 = vrot.slane %v4214, 1
    %v4301 = vsel %vm3380, %v4300, %v4299
    %v4302 = vrot.slane %v4203, 7
    %v4303 = vsel %vm3368, %v4302, %v4201
    %v4304 = vrot.slane %v4205, 6
    %v4305 = vsel %vm3370, %v4304, %v4303
    %v4306 = vrot.slane %v4207, 5
    %v4307 = vsel %vm3372, %v4306, %v4305
    %v4308 = vrot.slane %v4209, 4
    %v4309 = vsel %vm3374, %v4308, %v4307
    %v4310 = vrot.slane %v4211, 3
    %v4311 = vsel %vm3376, %v4310, %v4309
    %v4312 = vrot.slane %v4213, 2
    %v4313 = vsel %vm3378, %v4312, %v4311
    %v4314 = vrot.slane %v4215, 1
    %v4315 = vsel %vm3380, %v4314, %v4313
    %v4316 = vrot.slane %v4218, 7
    %v4317 = vsel %vm3368, %v4316, %v4216
    %v4318 = vrot.slane %v4220, 6
    %v4319 = vsel %vm3370, %v4318, %v4317
    %v4320 = vrot.slane %v4222, 5
    %v4321 = vsel %vm3372, %v4320, %v4319
    %v4322 = vrot.slane %v4224, 4
    %v4323 = vsel %vm3374, %v4322, %v4321
    %v4324 = vrot.slane %v4226, 3
    %v4325 = vsel %vm3376, %v4324, %v4323
    %v4326 = vrot.slane %v4228, 2
    %v4327 = vsel %vm3378, %v4326, %v4325
    %v4328 = vrot.slane %v4230, 1
    %v4329 = vsel %vm3380, %v4328, %v4327
    %v4330 = vrot.slane %v4219, 7
    %v4331 = vsel %vm3368, %v4330, %v4217
    %v4332 = vrot.slane %v4221, 6
    %v4333 = vsel %vm3370, %v4332, %v4331
    %v4334 = vrot.slane %v4223, 5
    %v4335 = vsel %vm3372, %v4334, %v4333
    %v4336 = vrot.slane %v4225, 4
    %v4337 = vsel %vm3374, %v4336, %v4335
    %v4338 = vrot.slane %v4227, 3
    %v4339 = vsel %vm3376, %v4338, %v4337
    %v4340 = vrot.slane %v4229, 2
    %v4341 = vsel %vm3378, %v4340, %v4339
    %v4342 = vrot.slane %v4231, 1
    %v4343 = vsel %vm3380, %v4342, %v4341
    %v4344 = vpack.c.b16 %v4259, %v4245
    %v4345 = vpack.c.b16 %v4287, %v4273
    %v4346 = vpack.c.b16 %v4315, %v4301
    %v4347 = vpack.c.b16 %v4343, %v4329
    %4352 = vst [vmem:[#allocation10] sm:$0xff] %v4344
    %4353 = vst [vmem:[#allocation10 + $0x8] sm:$0xff] %v4345
    %4354 = vst [vmem:[#allocation10 + $0x10] sm:$0xff] %v4346
    %4355 = vst [vmem:[#allocation10 + $0x18] sm:$0xff] %v4347
    // Predicated region
    $region34: #{vae_encoder_forward.5} parent=1 // pred_check
      _
    $region35: #{vae_encoder_forward.5} parent=1 // pred_check_branch
      %4357 = sbr.rel (0) target = $region37
    $region36: #{vae_encoder_forward.5} parent=1 // pred_region
      %s4359 = ssub.s32 512, 512
      %4360 = vsyncadd [#allocation4], %s4359
      %s4361 = sshll.u32 [#allocation10], 4
      %s4362 = int_to_ptr.vmem [resolvable:$true] %s4361
      %4367 = dma.vmem_to_hbm [thread:$0]  %s4362, 512, %s4, [#allocation4], 128, 128, 8
    $region37: #{vae_encoder_forward.5} parent=1 // pred_fallthru
      _
    // Predicated region
    $region38: #{vae_encoder_forward.5} parent=1 // pred_check
      _
    $region39: #{vae_encoder_forward.5} parent=1 // pred_check_branch
      %4369 = sbr.rel (0) target = $region41
    $region40: #{vae_encoder_forward.5} parent=1 // pred_region
      %s4371 = ssub.s32 64, 64
      %4372 = vsyncadd [#allocation12], %s4371
      %s4374 = sshll.u32 [#allocation11], 4
      %s4375 = int_to_ptr.vmem [resolvable:$true] %s4374
      %4377 = dma.vmem_to_hbm [thread:$0]  %s4375, 64, %s5, [#allocation12]
    $region41: #{vae_encoder_forward.5} parent=1 // pred_fallthru
      _
    // Predicated region
    $region42: #{vae_encoder_forward.5} parent=1 // pred_check
      _
    $region43: #{vae_encoder_forward.5} parent=1 // pred_check_branch
      %4379 = sbr.rel (0) target = $region45
    $region44: #{vae_encoder_forward.5} parent=1 // pred_region
      %4380 = dma.done [#allocation4], 512
    $region45: #{vae_encoder_forward.5} parent=1 // pred_fallthru
      _
    // Predicated region
    $region46: #{vae_encoder_forward.5} parent=1 // pred_check
      _
    $region47: #{vae_encoder_forward.5} parent=1 // pred_check_branch
      %4382 = sbr.rel (0) target = $region49
    $region48: #{vae_encoder_forward.5} parent=1 // pred_region
      %4383 = dma.done [#allocation12], 64
    $region49: #{vae_encoder_forward.5} parent=1 // pred_fallthru
      _
    %4384 = vsyncpa [#allocation3], 1
    %4385 = vsyncpa [#allocation6], 1
    %4386 = vsyncpa [#allocation9], 1
    %4387 = vsyncpa [#allocation4], 1
    %4388 = vsyncpa [#allocation12], 1

// kernel: vae_encoder_forward.6
$region0: #{vae_encoder_forward.6}
  #allocation0 [shape = 'u32[]', space=smem, size = 0x4, offset = 0x4, fixed_abs, tag = 'smem constant byte address 0x4 - core index']
  #allocation1 [shape = 'u32[144,128]{1,0:T(1,128)}', space=vmem, size = 0x12000, scoped, tag = 'internal scratch']
  %s0 = inlined_call_operand.hbm [shape: bf16[1,256], index: 0, kind: input, shape index: {}]
  %s1 = inlined_call_operand.hbm [shape: bf16[4,8,256], index: 1, kind: input, shape index: {}]
  %s2 = inlined_call_operand.hbm [shape: bf16[9,256,256], index: 2, kind: input, shape index: {}]
  %s3 = inlined_call_operand.hbm [shape: f32[1,256], index: 3, kind: input, shape index: {}]
  %s4 = inlined_call_operand.hbm [shape: bf16[4,8,256], index: 4, kind: output, shape index: {0}]
  %s5 = inlined_call_operand.hbm [shape: f32[1,2,256], index: 5, kind: output, shape index: {1}]
  %6 = xla_tuple %s4, %s5
  %s7 = sld [smem:[#allocation0]]
  $region50: #{vae_encoder_forward.6} parent=0
    _
  %s9 = ssub.s32 1, %s7
  %s10 = scalar_select 0, %s9, %s7
  $region1: #{vae_encoder_forward.6} parent=0
    #allocation2 [shape = 'u8[1024]{0}', space=vmem, size = 0x400, scoped, tag = 'input window, operand 0, single buffered']
    #allocation3 [shape = 's32[1]{0}', space=sflag, size = 0x4, scoped, tag = 'scoped memory for vae_encoder_forward.6']
    #allocation4 [shape = 's32[1]{0}', space=sflag, size = 0x4, scoped, tag = 'scoped memory for vae_encoder_forward.6']
    #allocation5 [shape = 'u8[16384]{0}', space=vmem, size = 0x4000, scoped, tag = 'input window, operand 1, single buffered']
    #allocation6 [shape = 's32[1]{0}', space=sflag, size = 0x4, scoped, tag = 'scoped memory for vae_encoder_forward.6']
    #allocation7 [shape = 'u8[1179648]{0}', space=vmem, size = 0x120000, scoped, tag = 'input window, operand 2, single buffered']
    #allocation8 [shape = 'u8[1024]{0}', space=vmem, size = 0x400, scoped, tag = 'input window, operand 3, single buffered']
    #allocation9 [shape = 's32[1]{0}', space=sflag, size = 0x4, scoped, tag = 'scoped memory for vae_encoder_forward.6']
    #allocation10 [shape = 'u8[16384]{0}', space=vmem, size = 0x4000, scoped, tag = 'output window, operand 0, single buffered']
    #allocation11 [shape = 'u8[2048]{0}', space=vmem, size = 0x800, scoped, tag = 'output window, operand 1, single buffered']
    #allocation12 [shape = 's32[1]{0}', space=sflag, size = 0x4, scoped, tag = 'scoped memory for vae_encoder_forward.6']
    %11 = vsyncpa [#allocation3], 0
    %12 = vsyncpa [#allocation6], 0
    %13 = vsyncpa [#allocation9], 0
    %14 = vsyncpa [#allocation4], 0
    %15 = vsyncpa [#allocation12], 0
    // Predicated region
    $region2: #{vae_encoder_forward.6} parent=1 // pred_check
      _
    $region3: #{vae_encoder_forward.6} parent=1 // pred_check_branch
      %17 = sbr.rel (0) target = $region5
    $region4: #{vae_encoder_forward.6} parent=1 // pred_region
      %s19 = ssub.s32 32, 32
      %20 = vsyncadd [#allocation3], %s19
      %s22 = sshll.u32 [#allocation2], 4
      %s23 = int_to_ptr.vmem [resolvable:$true] %s22
      %25 = dma.hbm_to_vmem [thread:$0]  %s0, 32, %s23, [#allocation3]
    $region5: #{vae_encoder_forward.6} parent=1 // pred_fallthru
      _
    // Predicated region
    $region6: #{vae_encoder_forward.6} parent=1 // pred_check
      _
    $region7: #{vae_encoder_forward.6} parent=1 // pred_check_branch
      %27 = sbr.rel (0) target = $region9
    $region8: #{vae_encoder_forward.6} parent=1 // pred_region
      %s29 = ssub.s32 512, 512
      %30 = vsyncadd [#allocation6], %s29
      %s31 = sshll.u32 [#allocation5], 4
      %s32 = int_to_ptr.vmem [resolvable:$true] %s31
      %37 = dma.hbm_to_vmem [thread:$0]  %s1, 512, %s32, [#allocation6], 128, 128, 8
    $region9: #{vae_encoder_forward.6} parent=1 // pred_fallthru
      _
    // Predicated region
    $region10: #{vae_encoder_forward.6} parent=1 // pred_check
      _
    $region11: #{vae_encoder_forward.6} parent=1 // pred_check_branch
      %39 = sbr.rel (0) target = $region13
    $region12: #{vae_encoder_forward.6} parent=1 // pred_region
      %s41 = ssub.s32 36864, 36864
      %42 = vsyncadd [#allocation6], %s41
      %s43 = sshll.u32 [#allocation7], 4
      %s44 = int_to_ptr.vmem [resolvable:$true] %s43
      %49 = dma.hbm_to_vmem [thread:$0]  %s2, 36864, %s44, [#allocation6], 128, 128, 8
    $region13: #{vae_encoder_forward.6} parent=1 // pred_fallthru
      _
    // Predicated region
    $region14: #{vae_encoder_forward.6} parent=1 // pred_check
      _
    $region15: #{vae_encoder_forward.6} parent=1 // pred_check_branch
      %51 = sbr.rel (0) target = $region17
    $region16: #{vae_encoder_forward.6} parent=1 // pred_region
      %s53 = ssub.s32 32, 32
      %54 = vsyncadd [#allocation9], %s53
      %s56 = sshll.u32 [#allocation8], 4
      %s57 = int_to_ptr.vmem [resolvable:$true] %s56
      %59 = dma.hbm_to_vmem [thread:$0]  %s3, 32, %s57, [#allocation9]
    $region17: #{vae_encoder_forward.6} parent=1 // pred_fallthru
      _
    // Predicated region
    $region18: #{vae_encoder_forward.6} parent=1 // pred_check
      _
    $region19: #{vae_encoder_forward.6} parent=1 // pred_check_branch
      %61 = sbr.rel (0) target = $region21
    $region20: #{vae_encoder_forward.6} parent=1 // pred_region
      %62 = dma.done [#allocation3], 32
    $region21: #{vae_encoder_forward.6} parent=1 // pred_fallthru
      _
    // Predicated region
    $region22: #{vae_encoder_forward.6} parent=1 // pred_check
      _
    $region23: #{vae_encoder_forward.6} parent=1 // pred_check_branch
      %64 = sbr.rel (0) target = $region25
    $region24: #{vae_encoder_forward.6} parent=1 // pred_region
      %65 = dma.done [#allocation6], 512
    $region25: #{vae_encoder_forward.6} parent=1 // pred_fallthru
      _
    // Predicated region
    $region26: #{vae_encoder_forward.6} parent=1 // pred_check
      _
    $region27: #{vae_encoder_forward.6} parent=1 // pred_check_branch
      %67 = sbr.rel (0) target = $region29
    $region28: #{vae_encoder_forward.6} parent=1 // pred_region
      %68 = dma.done [#allocation6], 36864
    $region29: #{vae_encoder_forward.6} parent=1 // pred_fallthru
      _
    // Predicated region
    $region30: #{vae_encoder_forward.6} parent=1 // pred_check
      _
    $region31: #{vae_encoder_forward.6} parent=1 // pred_check_branch
      %70 = sbr.rel (0) target = $region33
    $region32: #{vae_encoder_forward.6} parent=1 // pred_region
      %71 = dma.done [#allocation9], 32
    $region33: #{vae_encoder_forward.6} parent=1 // pred_fallthru
      _
    %v75 = vld [vmem:[#allocation5] sm:$0xff]
    %v76 = vld [vmem:[#allocation5 + $0x8] sm:$0xff]
    %v77 = vld [vmem:[#allocation5 + $0x10] sm:$0xff]
    %v78 = vld [vmem:[#allocation5 + $0x18] sm:$0xff]
    %v79 = vld [vmem:[#allocation2] sm:$0x3]
    %v82 = vunpack.c.l.s4 1966171168
    %v83 = vunpack.c.0.s8 %v82
    %v84 = vlaneseq
    %v85 = vshrl.u32 %v84, 7
    %v86 = vsub.s32 %v83, %v85
    %v87 = vrot.slane %v79, %v86
    %v88 = vcombine.high %v87, %v87
    %v90 = vunpack.c.l.s4 1966171168
    %v91 = vunpack.c.0.s8 %v90
    %v92 = vlaneseq
    %v93 = vshrl.u32 %v92, 7
    %v94 = vsub.s32 %v91, %v93
    %v95 = vrot.slane %v87, %v94
    %v97 = vunpack.c.l.s4 1966171168
    %v98 = vunpack.c.0.s8 %v97
    %v99 = vlaneseq
    %v100 = vshrl.u32 %v99, 7
    %v101 = vsub.s32 %v98, %v100
    %v102 = vrot.slane %v88, %v101
    %v104 = vpack.i.b16 %v95, %v95
    %v106 = vlaneseq
    %v107 = vshrl.u32 %v106, 7
    %v108 = vsub.s32 0, %v107
    %v109 = vrot.slane %v104, %v108
    %v111 = vpack.i.b16 %v102, %v102
    %v113 = vlaneseq
    %v114 = vshrl.u32 %v113, 7
    %v115 = vsub.s32 0, %v114
    %v116 = vrot.slane %v111, %v115
    %v119 = vunpack.c.l.b16 %v109
    %v120 = vunpack.c.l.b16 %v116
    %v121 = vpack.c.b16 %v120, %v119
    %v123 = vadd.bf16 %v75, %v121
    %v124 = vadd.bf16 %v76, %v121
    %v125 = vadd.bf16 %v77, %v121
    %v126 = vadd.bf16 %v78, %v121
    %v131 = vunpack.c.l.b16 %v123
    %v132 = vunpack.c.h.b16 %v123
    %v133 = vunpack.c.l.b16 %v124
    %v134 = vunpack.c.h.b16 %v124
    %v135 = vunpack.c.l.b16 %v125
    %v136 = vunpack.c.h.b16 %v125
    %v137 = vunpack.c.l.b16 %v126
    %v138 = vunpack.c.h.b16 %v126
    %v139 = vpack.c.b16 %v131, %v131
    %v140 = vpack.c.b16 %v132, %v132
    %v141 = vpack.c.b16 %v135, %v133
    %v142 = vpack.c.b16 %v136, %v134
    %v143 = vpack.c.b16 %v137, %v137
    %v144 = vpack.c.b16 %v138, %v138
    %vm147 = vcmask 1043456
    %v150 = vsel %vm147, 0, %v139
    %v153 = vsel %vm147, 0, %v140
    %v156 = vsel %vm147, %v143, 0
    %v159 = vsel %vm147, %v144, 0
    %v161 = vlaneseq
    %v162 = vshrl.u32 %v161, 7
    %v163 = vadd.s32 %v162, 8
    %v164 = vadd.s32 %v162, 16
    %v165 = vadd.s32 %v162, 24
    %v166 = vadd.s32 %v162, 32
    %v167 = vadd.s32 %v162, 40
    %v168 = vand.u32 %v162, 3
    %v169 = vand.u32 %v163, 3
    %v170 = vand.u32 %v164, 3
    %v171 = vand.u32 %v165, 3
    %v172 = vand.u32 %v166, 3
    %v173 = vand.u32 %v167, 3
    %vm174 = vcmp.eq.s32.totalorder %v168, 0
    %vm175 = vcmp.eq.s32.totalorder %v169, 0
    %vm176 = vcmp.eq.s32.totalorder %v170, 0
    %vm177 = vcmp.eq.s32.totalorder %v171, 0
    %vm178 = vcmp.eq.s32.totalorder %v172, 0
    %vm179 = vcmp.eq.s32.totalorder %v173, 0
    %vm180 = vsmask.f32 256
    %v181 = vshrl.u32 %v150, 16
    %v183 = vrot.slane %v181, 7
    %v184 = vshll.u32 %v150, 16
    %v186 = vor.u32 %v183, %v184
    %v187 = vshrl.u32 %v153, 16
    %v189 = vrot.slane %v187, 7
    %v190 = vshll.u32 %v153, 16
    %v192 = vor.u32 %v189, %v190
    %v194 = vshrl.u32 %v141, 16
    %v196 = vrot.slane %v194, 7
    %v197 = vshll.u32 %v141, 16
    %v199 = vor.u32 %v196, %v197
    %v200 = vsel %vm180, %v183, %v199
    %v202 = vshrl.u32 %v142, 16
    %v204 = vrot.slane %v202, 7
    %v205 = vshll.u32 %v142, 16
    %v207 = vor.u32 %v204, %v205
    %v208 = vsel %vm180, %v189, %v207
    %v209 = vshrl.u32 %v156, 16
    %v211 = vrot.slane %v209, 7
    %v212 = vshll.u32 %v156, 16
    %v214 = vor.u32 %v211, %v212
    %v215 = vsel %vm180, %v196, %v214
    %v216 = vshrl.u32 %v159, 16
    %v218 = vrot.slane %v216, 7
    %v219 = vshll.u32 %v159, 16
    %v221 = vor.u32 %v218, %v219
    %v222 = vsel %vm180, %v204, %v221
    %vm229 = vcmask 1040384
    %vm230 = vmand %vm229, %vm180
    %v231 = vsel %vm230, 0, %v186
    %v232 = vsel %vm230, 0, %v192
    %vm233 = vmpackc.low %vm174, %vm174
    %vm234 = vmpackc.low %vm175, %vm175
    %vm235 = vmpackc.low %vm176, %vm176
    %vm236 = vmpackc.low %vm177, %vm177
    %vm237 = vmpackc.low %vm178, %vm178
    %vm238 = vmpackc.low %vm179, %vm179
    %v239 = vsel %vm233, 65537, 0
    %v240 = vsel %vm234, 65537, 0
    %v241 = vsel %vm235, 65537, 0
    %v242 = vsel %vm236, 65537, 0
    %v243 = vsel %vm237, 65537, 0
    %v244 = vsel %vm238, 65537, 0
    %v245 = vunpack.c.l.b16 %v239
    %v246 = vunpack.c.l.b16 %v240
    %v247 = vunpack.c.l.b16 %v241
    %v248 = vunpack.c.l.b16 %v242
    %v249 = vunpack.c.l.b16 %v243
    %v250 = vunpack.c.l.b16 %v244
    %v251 = vpack.c.b16 %v246, %v245
    %v252 = vpack.c.b16 %v248, %v247
    %v253 = vpack.c.b16 %v250, %v249
    %vm254 = vcmp.ne.s16.totalorder %v251, 0
    %vm255 = vcmp.ne.s16.totalorder %v252, 0
    %vm256 = vcmp.ne.s16.totalorder %v253, 0
    %v257 = vsel %vm254, 0, %v231
    %v258 = vsel %vm254, 0, %v232
    %v259 = vsel %vm255, 0, %v200
    %v260 = vsel %vm255, 0, %v208
    %v261 = vsel %vm256, 0, %v215
    %v262 = vsel %vm256, 0, %v222
    %vm263 = vcmp.eq.s32.totalorder %v168, 3
    %vm264 = vcmp.eq.s32.totalorder %v169, 3
    %vm265 = vcmp.eq.s32.totalorder %v170, 3
    %vm266 = vcmp.eq.s32.totalorder %v171, 3
    %vm267 = vcmp.eq.s32.totalorder %v172, 3
    %vm268 = vcmp.eq.s32.totalorder %v173, 3
    %vm269 = vsmask.f32 7424
    %v270 = vrot.slane %v184, 1
    %v271 = vor.u32 %v181, %v270
    %v272 = vrot.slane %v197, 1
    %v273 = vsel %vm269, %v271, %v272
    %v274 = vrot.slane %v190, 1
    %v275 = vor.u32 %v187, %v274
    %v276 = vrot.slane %v205, 1
    %v277 = vsel %vm269, %v275, %v276
    %v278 = vor.u32 %v194, %v272
    %v279 = vrot.slane %v212, 1
    %v280 = vsel %vm269, %v278, %v279
    %v281 = vor.u32 %v202, %v276
    %v282 = vrot.slane %v219, 1
    %v283 = vsel %vm269, %v281, %v282
    %v284 = vor.u32 %v209, %v279
    %v285 = vor.u32 %v216, %v282
    %vm292 = vcmask 1047552
    %vm293 = vmand %vm292, %vm269
    %v294 = vsel %vm293, %v284, 0
    %v295 = vsel %vm293, %v285, 0
    %vm296 = vmpackc.low %vm263, %vm263
    %vm297 = vmpackc.low %vm264, %vm264
    %vm298 = vmpackc.low %vm265, %vm265
    %vm299 = vmpackc.low %vm266, %vm266
    %vm300 = vmpackc.low %vm267, %vm267
    %vm301 = vmpackc.low %vm268, %vm268
    %v302 = vsel %vm296, 65537, 0
    %v303 = vsel %vm297, 65537, 0
    %v304 = vsel %vm298, 65537, 0
    %v305 = vsel %vm299, 65537, 0
    %v306 = vsel %vm300, 65537, 0
    %v307 = vsel %vm301, 65537, 0
    %v308 = vunpack.c.l.b16 %v302
    %v309 = vunpack.c.l.b16 %v303
    %v310 = vunpack.c.l.b16 %v304
    %v311 = vunpack.c.l.b16 %v305
    %v312 = vunpack.c.l.b16 %v306
    %v313 = vunpack.c.l.b16 %v307
    %v314 = vpack.c.b16 %v309, %v308
    %v315 = vpack.c.b16 %v311, %v310
    %v316 = vpack.c.b16 %v313, %v312
    %vm317 = vcmp.ne.s16.totalorder %v314, 0
    %vm318 = vcmp.ne.s16.totalorder %v315, 0
    %vm319 = vcmp.ne.s16.totalorder %v316, 0
    %v320 = vsel %vm317, 0, %v273
    %v321 = vsel %vm317, 0, %v277
    %v322 = vsel %vm318, 0, %v280
    %v323 = vsel %vm318, 0, %v283
    %v324 = vsel %vm319, 0, %v294
    %v325 = vsel %vm319, 0, %v295
    %v326 = vld [vmem:[#allocation7] sm:$0xff]
    %v327 = vld [vmem:[#allocation7 + $0x8] sm:$0xff]
    %v328 = vld [vmem:[#allocation7 + $0x10] sm:$0xff]
    %v329 = vld [vmem:[#allocation7 + $0x18] sm:$0xff]
    %v330 = vld [vmem:[#allocation7 + $0x20] sm:$0xff]
    %v331 = vld [vmem:[#allocation7 + $0x28] sm:$0xff]
    %v332 = vld [vmem:[#allocation7 + $0x30] sm:$0xff]
    %v333 = vld [vmem:[#allocation7 + $0x38] sm:$0xff]
    %v334 = vld [vmem:[#allocation7 + $0x40] sm:$0xff]
    %v335 = vld [vmem:[#allocation7 + $0x48] sm:$0xff]
    %v336 = vld [vmem:[#allocation7 + $0x50] sm:$0xff]
    %v337 = vld [vmem:[#allocation7 + $0x58] sm:$0xff]
    %v338 = vld [vmem:[#allocation7 + $0x60] sm:$0xff]
    %v339 = vld [vmem:[#allocation7 + $0x68] sm:$0xff]
    %v340 = vld [vmem:[#allocation7 + $0x70] sm:$0xff]
    %v341 = vld [vmem:[#allocation7 + $0x78] sm:$0xff]
    %v342 = vld [vmem:[#allocation7 + $0x80] sm:$0xff]
    %v343 = vld [vmem:[#allocation7 + $0x88] sm:$0xff]
    %v344 = vld [vmem:[#allocation7 + $0x90] sm:$0xff]
    %v345 = vld [vmem:[#allocation7 + $0x98] sm:$0xff]
    %v346 = vld [vmem:[#allocation7 + $0xa0] sm:$0xff]
    %v347 = vld [vmem:[#allocation7 + $0xa8] sm:$0xff]
    %v348 = vld [vmem:[#allocation7 + $0xb0] sm:$0xff]
    %v349 = vld [vmem:[#allocation7 + $0xb8] sm:$0xff]
    %v350 = vld [vmem:[#allocation7 + $0xc0] sm:$0xff]
    %v351 = vld [vmem:[#allocation7 + $0xc8] sm:$0xff]
    %v352 = vld [vmem:[#allocation7 + $0xd0] sm:$0xff]
    %v353 = vld [vmem:[#allocation7 + $0xd8] sm:$0xff]
    %v354 = vld [vmem:[#allocation7 + $0xe0] sm:$0xff]
    %v355 = vld [vmem:[#allocation7 + $0xe8] sm:$0xff]
    %v356 = vld [vmem:[#allocation7 + $0xf0] sm:$0xff]
    %v357 = vld [vmem:[#allocation7 + $0xf8] sm:$0xff]
    %s358 = scalar_lea.vmem [#allocation7], 256
    %v359 = vld [vmem:[%s358] sm:$0xff]
    %v360 = vld [vmem:[%s358 + $0x8] sm:$0xff]
    %v361 = vld [vmem:[%s358 + $0x10] sm:$0xff]
    %v362 = vld [vmem:[%s358 + $0x18] sm:$0xff]
    %v363 = vld [vmem:[%s358 + $0x20] sm:$0xff]
    %v364 = vld [vmem:[%s358 + $0x28] sm:$0xff]
    %v365 = vld [vmem:[%s358 + $0x30] sm:$0xff]
    %v366 = vld [vmem:[%s358 + $0x38] sm:$0xff]
    %v367 = vld [vmem:[%s358 + $0x40] sm:$0xff]
    %v368 = vld [vmem:[%s358 + $0x48] sm:$0xff]
    %v369 = vld [vmem:[%s358 + $0x50] sm:$0xff]
    %v370 = vld [vmem:[%s358 + $0x58] sm:$0xff]
    %v371 = vld [vmem:[%s358 + $0x60] sm:$0xff]
    %v372 = vld [vmem:[%s358 + $0x68] sm:$0xff]
    %v373 = vld [vmem:[%s358 + $0x70] sm:$0xff]
    %v374 = vld [vmem:[%s358 + $0x78] sm:$0xff]
    %v375 = vld [vmem:[%s358 + $0x80] sm:$0xff]
    %v376 = vld [vmem:[%s358 + $0x88] sm:$0xff]
    %v377 = vld [vmem:[%s358 + $0x90] sm:$0xff]
    %v378 = vld [vmem:[%s358 + $0x98] sm:$0xff]
    %v379 = vld [vmem:[%s358 + $0xa0] sm:$0xff]
    %v380 = vld [vmem:[%s358 + $0xa8] sm:$0xff]
    %v381 = vld [vmem:[%s358 + $0xb0] sm:$0xff]
    %v382 = vld [vmem:[%s358 + $0xb8] sm:$0xff]
    %v383 = vld [vmem:[%s358 + $0xc0] sm:$0xff]
    %v384 = vld [vmem:[%s358 + $0xc8] sm:$0xff]
    %v385 = vld [vmem:[%s358 + $0xd0] sm:$0xff]
    %v386 = vld [vmem:[%s358 + $0xd8] sm:$0xff]
    %v387 = vld [vmem:[%s358 + $0xe0] sm:$0xff]
    %v388 = vld [vmem:[%s358 + $0xe8] sm:$0xff]
    %v389 = vld [vmem:[%s358 + $0xf0] sm:$0xff]
    %v390 = vld [vmem:[%s358 + $0xf8] sm:$0xff]
    %v423 = vunpack.c.l.b16 %v359
    %v424 = vunpack.c.h.b16 %v359
    %v425 = vunpack.c.l.b16 %v360
    %v426 = vunpack.c.h.b16 %v360
    %v427 = vunpack.c.l.b16 %v361
    %v428 = vunpack.c.h.b16 %v361
    %v429 = vunpack.c.l.b16 %v362
    %v430 = vunpack.c.h.b16 %v362
    %v431 = vunpack.c.l.b16 %v363
    %v432 = vunpack.c.h.b16 %v363
    %v433 = vunpack.c.l.b16 %v364
    %v434 = vunpack.c.h.b16 %v364
    %v435 = vunpack.c.l.b16 %v365
    %v436 = vunpack.c.h.b16 %v365
    %v437 = vunpack.c.l.b16 %v366
    %v438 = vunpack.c.h.b16 %v366
    %v439 = vunpack.c.l.b16 %v367
    %v440 = vunpack.c.h.b16 %v367
    %v441 = vunpack.c.l.b16 %v368
    %v442 = vunpack.c.h.b16 %v368
    %v443 = vunpack.c.l.b16 %v369
    %v444 = vunpack.c.h.b16 %v369
    %v445 = vunpack.c.l.b16 %v370
    %v446 = vunpack.c.h.b16 %v370
    %v447 = vunpack.c.l.b16 %v371
    %v448 = vunpack.c.h.b16 %v371
    %v449 = vunpack.c.l.b16 %v372
    %v450 = vunpack.c.h.b16 %v372
    %v451 = vunpack.c.l.b16 %v373
    %v452 = vunpack.c.h.b16 %v373
    %v453 = vunpack.c.l.b16 %v374
    %v454 = vunpack.c.h.b16 %v374
    %v455 = vunpack.c.l.b16 %v375
    %v456 = vunpack.c.h.b16 %v375
    %v457 = vunpack.c.l.b16 %v376
    %v458 = vunpack.c.h.b16 %v376
    %v459 = vunpack.c.l.b16 %v377
    %v460 = vunpack.c.h.b16 %v377
    %v461 = vunpack.c.l.b16 %v378
    %v462 = vunpack.c.h.b16 %v378
    %v463 = vunpack.c.l.b16 %v379
    %v464 = vunpack.c.h.b16 %v379
    %v465 = vunpack.c.l.b16 %v380
    %v466 = vunpack.c.h.b16 %v380
    %v467 = vunpack.c.l.b16 %v381
    %v468 = vunpack.c.h.b16 %v381
    %v469 = vunpack.c.l.b16 %v382
    %v470 = vunpack.c.h.b16 %v382
    %v471 = vunpack.c.l.b16 %v383
    %v472 = vunpack.c.h.b16 %v383
    %v473 = vunpack.c.l.b16 %v384
    %v474 = vunpack.c.h.b16 %v384
    %v475 = vunpack.c.l.b16 %v385
    %v476 = vunpack.c.h.b16 %v385
    %v477 = vunpack.c.l.b16 %v386
    %v478 = vunpack.c.h.b16 %v386
    %v479 = vunpack.c.l.b16 %v387
    %v480 = vunpack.c.h.b16 %v387
    %v481 = vunpack.c.l.b16 %v388
    %v482 = vunpack.c.h.b16 %v388
    %v483 = vunpack.c.l.b16 %v389
    %v484 = vunpack.c.h.b16 %v389
    %v485 = vunpack.c.l.b16 %v390
    %v486 = vunpack.c.h.b16 %v390
    %v487 = vpack.c.b16 %v425, %v423
    %v488 = vpack.c.b16 %v426, %v424
    %v489 = vpack.c.b16 %v429, %v427
    %v490 = vpack.c.b16 %v430, %v428
    %v491 = vpack.c.b16 %v433, %v431
    %v492 = vpack.c.b16 %v434, %v432
    %v493 = vpack.c.b16 %v437, %v435
    %v494 = vpack.c.b16 %v438, %v436
    %v495 = vpack.c.b16 %v441, %v439
    %v496 = vpack.c.b16 %v442, %v440
    %v497 = vpack.c.b16 %v445, %v443
    %v498 = vpack.c.b16 %v446, %v444
    %v499 = vpack.c.b16 %v449, %v447
    %v500 = vpack.c.b16 %v450, %v448
    %v501 = vpack.c.b16 %v453, %v451
    %v502 = vpack.c.b16 %v454, %v452
    %v503 = vpack.c.b16 %v457, %v455
    %v504 = vpack.c.b16 %v458, %v456
    %v505 = vpack.c.b16 %v461, %v459
    %v506 = vpack.c.b16 %v462, %v460
    %v507 = vpack.c.b16 %v465, %v463
    %v508 = vpack.c.b16 %v466, %v464
    %v509 = vpack.c.b16 %v469, %v467
    %v510 = vpack.c.b16 %v470, %v468
    %v511 = vpack.c.b16 %v473, %v471
    %v512 = vpack.c.b16 %v474, %v472
    %v513 = vpack.c.b16 %v477, %v475
    %v514 = vpack.c.b16 %v478, %v476
    %v515 = vpack.c.b16 %v481, %v479
    %v516 = vpack.c.b16 %v482, %v480
    %v517 = vpack.c.b16 %v485, %v483
    %v518 = vpack.c.b16 %v486, %v484
    %551 = vmatprep.subr.bf16.mxu0 %v488
    %552 = vmatpush1.bf16.msra.mxu0 %v487
    %553 = vmatprep.subr.bf16.mxu0 %v490
    %554 = vmatpush1.bf16.msra.mxu0 %v489
    %555 = vmatprep.subr.bf16.mxu0 %v492
    %556 = vmatpush1.bf16.msra.mxu0 %v491
    %557 = vmatprep.subr.bf16.mxu0 %v494
    %558 = vmatpush1.bf16.msra.mxu0 %v493
    %559 = vmatprep.subr.bf16.mxu0 %v496
    %560 = vmatpush1.bf16.msra.mxu0 %v495
    %561 = vmatprep.subr.bf16.mxu0 %v498
    %562 = vmatpush1.bf16.msra.mxu0 %v497
    %563 = vmatprep.subr.bf16.mxu0 %v500
    %564 = vmatpush1.bf16.msra.mxu0 %v499
    %565 = vmatprep.subr.bf16.mxu0 %v502
    %566 = vmatpush1.bf16.msra.mxu0 %v501
    %567 = vmatprep.subr.bf16.mxu0 %v504
    %568 = vmatpush1.bf16.msra.mxu0 %v503
    %569 = vmatprep.subr.bf16.mxu0 %v506
    %570 = vmatpush1.bf16.msra.mxu0 %v505
    %571 = vmatprep.subr.bf16.mxu0 %v508
    %572 = vmatpush1.bf16.msra.mxu0 %v507
    %573 = vmatprep.subr.bf16.mxu0 %v510
    %574 = vmatpush1.bf16.msra.mxu0 %v509
    %575 = vmatprep.subr.bf16.mxu0 %v512
    %576 = vmatpush1.bf16.msra.mxu0 %v511
    %577 = vmatprep.subr.bf16.mxu0 %v514
    %578 = vmatpush1.bf16.msra.mxu0 %v513
    %579 = vmatprep.subr.bf16.mxu0 %v516
    %580 = vmatpush1.bf16.msra.mxu0 %v515
    %581 = vmatprep.subr.bf16.mxu0 %v518
    %582 = vmatpush1.bf16.msra.mxu0 %v517
    %583 = vmatprep.mubr.bf16.mxu0 %v153
    %584 = vmatmul.mubr.bf16.gmra.mrb[0].mxu0 %v150
    %v585 = vpop.f32.mrb[0].mxu0
    %v586 = vadd.f32 0.0, %v585
    %v587 = vpop.f32.mrb[0].mxu0
    %v588 = vadd.f32 0.0, %v587
    %v589 = vpop.f32.mrb[0].mxu0
    %v590 = vadd.f32 0.0, %v589
    %v591 = vpop.f32.mrb[0].mxu0
    %v592 = vadd.f32 0.0, %v591
    %593 = vmatprep.mubr.bf16.mxu0 %v142
    %594 = vmatmul.mubr.bf16.gmra.mrb[0].mxu0 %v141
    %v595 = vpop.f32.mrb[0].mxu0
    %v596 = vadd.f32 0.0, %v595
    %v597 = vpop.f32.mrb[0].mxu0
    %v598 = vadd.f32 0.0, %v597
    %v599 = vpop.f32.mrb[0].mxu0
    %v600 = vadd.f32 0.0, %v599
    %v601 = vpop.f32.mrb[0].mxu0
    %v602 = vadd.f32 0.0, %v601
    %603 = vdwg.mxu0
    %v636 = vunpack.c.l.b16 %v326
    %v637 = vunpack.c.h.b16 %v326
    %v638 = vunpack.c.l.b16 %v327
    %v639 = vunpack.c.h.b16 %v327
    %v640 = vunpack.c.l.b16 %v328
    %v641 = vunpack.c.h.b16 %v328
    %v642 = vunpack.c.l.b16 %v329
    %v643 = vunpack.c.h.b16 %v329
    %v644 = vunpack.c.l.b16 %v330
    %v645 = vunpack.c.h.b16 %v330
    %v646 = vunpack.c.l.b16 %v331
    %v647 = vunpack.c.h.b16 %v331
    %v648 = vunpack.c.l.b16 %v332
    %v649 = vunpack.c.h.b16 %v332
    %v650 = vunpack.c.l.b16 %v333
    %v651 = vunpack.c.h.b16 %v333
    %v652 = vunpack.c.l.b16 %v334
    %v653 = vunpack.c.h.b16 %v334
    %v654 = vunpack.c.l.b16 %v335
    %v655 = vunpack.c.h.b16 %v335
    %v656 = vunpack.c.l.b16 %v336
    %v657 = vunpack.c.h.b16 %v336
    %v658 = vunpack.c.l.b16 %v337
    %v659 = vunpack.c.h.b16 %v337
    %v660 = vunpack.c.l.b16 %v338
    %v661 = vunpack.c.h.b16 %v338
    %v662 = vunpack.c.l.b16 %v339
    %v663 = vunpack.c.h.b16 %v339
    %v664 = vunpack.c.l.b16 %v340
    %v665 = vunpack.c.h.b16 %v340
    %v666 = vunpack.c.l.b16 %v341
    %v667 = vunpack.c.h.b16 %v341
    %v668 = vunpack.c.l.b16 %v342
    %v669 = vunpack.c.h.b16 %v342
    %v670 = vunpack.c.l.b16 %v343
    %v671 = vunpack.c.h.b16 %v343
    %v672 = vunpack.c.l.b16 %v344
    %v673 = vunpack.c.h.b16 %v344
    %v674 = vunpack.c.l.b16 %v345
    %v675 = vunpack.c.h.b16 %v345
    %v676 = vunpack.c.l.b16 %v346
    %v677 = vunpack.c.h.b16 %v346
    %v678 = vunpack.c.l.b16 %v347
    %v679 = vunpack.c.h.b16 %v347
    %v680 = vunpack.c.l.b16 %v348
    %v681 = vunpack.c.h.b16 %v348
    %v682 = vunpack.c.l.b16 %v349
    %v683 = vunpack.c.h.b16 %v349
    %v684 = vunpack.c.l.b16 %v350
    %v685 = vunpack.c.h.b16 %v350
    %v686 = vunpack.c.l.b16 %v351
    %v687 = vunpack.c.h.b16 %v351
    %v688 = vunpack.c.l.b16 %v352
    %v689 = vunpack.c.h.b16 %v352
    %v690 = vunpack.c.l.b16 %v353
    %v691 = vunpack.c.h.b16 %v353
    %v692 = vunpack.c.l.b16 %v354
    %v693 = vunpack.c.h.b16 %v354
    %v694 = vunpack.c.l.b16 %v355
    %v695 = vunpack.c.h.b16 %v355
    %v696 = vunpack.c.l.b16 %v356
    %v697 = vunpack.c.h.b16 %v356
    %v698 = vunpack.c.l.b16 %v357
    %v699 = vunpack.c.h.b16 %v357
    %v700 = vpack.c.b16 %v638, %v636
    %v701 = vpack.c.b16 %v639, %v637
    %v702 = vpack.c.b16 %v642, %v640
    %v703 = vpack.c.b16 %v643, %v641
    %v704 = vpack.c.b16 %v646, %v644
    %v705 = vpack.c.b16 %v647, %v645
    %v706 = vpack.c.b16 %v650, %v648
    %v707 = vpack.c.b16 %v651, %v649
    %v708 = vpack.c.b16 %v654, %v652
    %v709 = vpack.c.b16 %v655, %v653
    %v710 = vpack.c.b16 %v658, %v656
    %v711 = vpack.c.b16 %v659, %v657
    %v712 = vpack.c.b16 %v662, %v660
    %v713 = vpack.c.b16 %v663, %v661
    %v714 = vpack.c.b16 %v666, %v664
    %v715 = vpack.c.b16 %v667, %v665
    %v716 = vpack.c.b16 %v670, %v668
    %v717 = vpack.c.b16 %v671, %v669
    %v718 = vpack.c.b16 %v674, %v672
    %v719 = vpack.c.b16 %v675, %v673
    %v720 = vpack.c.b16 %v678, %v676
    %v721 = vpack.c.b16 %v679, %v677
    %v722 = vpack.c.b16 %v682, %v680
    %v723 = vpack.c.b16 %v683, %v681
    %v724 = vpack.c.b16 %v686, %v684
    %v725 = vpack.c.b16 %v687, %v685
    %v726 = vpack.c.b16 %v690, %v688
    %v727 = vpack.c.b16 %v691, %v689
    %v728 = vpack.c.b16 %v694, %v692
    %v729 = vpack.c.b16 %v695, %v693
    %v730 = vpack.c.b16 %v698, %v696
    %v731 = vpack.c.b16 %v699, %v697
    %764 = vmatprep.subr.bf16.mxu0 %v701
    %765 = vmatpush1.bf16.msra.mxu0 %v700
    %766 = vmatprep.subr.bf16.mxu0 %v703
    %767 = vmatpush1.bf16.msra.mxu0 %v702
    %768 = vmatprep.subr.bf16.mxu0 %v705
    %769 = vmatpush1.bf16.msra.mxu0 %v704
    %770 = vmatprep.subr.bf16.mxu0 %v707
    %771 = vmatpush1.bf16.msra.mxu0 %v706
    %772 = vmatprep.subr.bf16.mxu0 %v709
    %773 = vmatpush1.bf16.msra.mxu0 %v708
    %774 = vmatprep.subr.bf16.mxu0 %v711
    %775 = vmatpush1.bf16.msra.mxu0 %v710
    %776 = vmatprep.subr.bf16.mxu0 %v713
    %777 = vmatpush1.bf16.msra.mxu0 %v712
    %778 = vmatprep.subr.bf16.mxu0 %v715
    %779 = vmatpush1.bf16.msra.mxu0 %v714
    %780 = vmatprep.subr.bf16.mxu0 %v717
    %781 = vmatpush1.bf16.msra.mxu0 %v716
    %782 = vmatprep.subr.bf16.mxu0 %v719
    %783 = vmatpush1.bf16.msra.mxu0 %v718
    %784 = vmatprep.subr.bf16.mxu0 %v721
    %785 = vmatpush1.bf16.msra.mxu0 %v720
    %786 = vmatprep.subr.bf16.mxu0 %v723
    %787 = vmatpush1.bf16.msra.mxu0 %v722
    %788 = vmatprep.subr.bf16.mxu0 %v725
    %789 = vmatpush1.bf16.msra.mxu0 %v724
    %790 = vmatprep.subr.bf16.mxu0 %v727
    %791 = vmatpush1.bf16.msra.mxu0 %v726
    %792 = vmatprep.subr.bf16.mxu0 %v729
    %793 = vmatpush1.bf16.msra.mxu0 %v728
    %794 = vmatprep.subr.bf16.mxu0 %v731
    %795 = vmatpush1.bf16.msra.mxu0 %v730
    %796 = vmatprep.mubr.bf16.mxu0 %v258
    %797 = vmatmul.mubr.bf16.gmra.mrb[0].mxu0 %v257
    %v798 = vpop.f32.mrb[0].mxu0
    %v799 = vadd.f32 %v586, %v798
    %v800 = vpop.f32.mrb[0].mxu0
    %v801 = vadd.f32 %v588, %v800
    %v802 = vpop.f32.mrb[0].mxu0
    %v803 = vadd.f32 %v590, %v802
    %v804 = vpop.f32.mrb[0].mxu0
    %v805 = vadd.f32 %v592, %v804
    %806 = vmatprep.mubr.bf16.mxu0 %v260
    %807 = vmatmul.mubr.bf16.gmra.mrb[0].mxu0 %v259
    %v808 = vpop.f32.mrb[0].mxu0
    %v809 = vadd.f32 %v596, %v808
    %v810 = vpop.f32.mrb[0].mxu0
    %v811 = vadd.f32 %v598, %v810
    %v812 = vpop.f32.mrb[0].mxu0
    %v813 = vadd.f32 %v600, %v812
    %v814 = vpop.f32.mrb[0].mxu0
    %v815 = vadd.f32 %v602, %v814
    %816 = vdwg.mxu0
    %s817 = scalar_lea.vmem [#allocation7], 512
    %v818 = vld [vmem:[%s817] sm:$0xff]
    %v819 = vld [vmem:[%s817 + $0x8] sm:$0xff]
    %v820 = vld [vmem:[%s817 + $0x10] sm:$0xff]
    %v821 = vld [vmem:[%s817 + $0x18] sm:$0xff]
    %v822 = vld [vmem:[%s817 + $0x20] sm:$0xff]
    %v823 = vld [vmem:[%s817 + $0x28] sm:$0xff]
    %v824 = vld [vmem:[%s817 + $0x30] sm:$0xff]
    %v825 = vld [vmem:[%s817 + $0x38] sm:$0xff]
    %v826 = vld [vmem:[%s817 + $0x40] sm:$0xff]
    %v827 = vld [vmem:[%s817 + $0x48] sm:$0xff]
    %v828 = vld [vmem:[%s817 + $0x50] sm:$0xff]
    %v829 = vld [vmem:[%s817 + $0x58] sm:$0xff]
    %v830 = vld [vmem:[%s817 + $0x60] sm:$0xff]
    %v831 = vld [vmem:[%s817 + $0x68] sm:$0xff]
    %v832 = vld [vmem:[%s817 + $0x70] sm:$0xff]
    %v833 = vld [vmem:[%s817 + $0x78] sm:$0xff]
    %v834 = vld [vmem:[%s817 + $0x80] sm:$0xff]
    %v835 = vld [vmem:[%s817 + $0x88] sm:$0xff]
    %v836 = vld [vmem:[%s817 + $0x90] sm:$0xff]
    %v837 = vld [vmem:[%s817 + $0x98] sm:$0xff]
    %v838 = vld [vmem:[%s817 + $0xa0] sm:$0xff]
    %v839 = vld [vmem:[%s817 + $0xa8] sm:$0xff]
    %v840 = vld [vmem:[%s817 + $0xb0] sm:$0xff]
    %v841 = vld [vmem:[%s817 + $0xb8] sm:$0xff]
    %v842 = vld [vmem:[%s817 + $0xc0] sm:$0xff]
    %v843 = vld [vmem:[%s817 + $0xc8] sm:$0xff]
    %v844 = vld [vmem:[%s817 + $0xd0] sm:$0xff]
    %v845 = vld [vmem:[%s817 + $0xd8] sm:$0xff]
    %v846 = vld [vmem:[%s817 + $0xe0] sm:$0xff]
    %v847 = vld [vmem:[%s817 + $0xe8] sm:$0xff]
    %v848 = vld [vmem:[%s817 + $0xf0] sm:$0xff]
    %v849 = vld [vmem:[%s817 + $0xf8] sm:$0xff]
    %v882 = vunpack.c.l.b16 %v818
    %v883 = vunpack.c.h.b16 %v818
    %v884 = vunpack.c.l.b16 %v819
    %v885 = vunpack.c.h.b16 %v819
    %v886 = vunpack.c.l.b16 %v820
    %v887 = vunpack.c.h.b16 %v820
    %v888 = vunpack.c.l.b16 %v821
    %v889 = vunpack.c.h.b16 %v821
    %v890 = vunpack.c.l.b16 %v822
    %v891 = vunpack.c.h.b16 %v822
    %v892 = vunpack.c.l.b16 %v823
    %v893 = vunpack.c.h.b16 %v823
    %v894 = vunpack.c.l.b16 %v824
    %v895 = vunpack.c.h.b16 %v824
    %v896 = vunpack.c.l.b16 %v825
    %v897 = vunpack.c.h.b16 %v825
    %v898 = vunpack.c.l.b16 %v826
    %v899 = vunpack.c.h.b16 %v826
    %v900 = vunpack.c.l.b16 %v827
    %v901 = vunpack.c.h.b16 %v827
    %v902 = vunpack.c.l.b16 %v828
    %v903 = vunpack.c.h.b16 %v828
    %v904 = vunpack.c.l.b16 %v829
    %v905 = vunpack.c.h.b16 %v829
    %v906 = vunpack.c.l.b16 %v830
    %v907 = vunpack.c.h.b16 %v830
    %v908 = vunpack.c.l.b16 %v831
    %v909 = vunpack.c.h.b16 %v831
    %v910 = vunpack.c.l.b16 %v832
    %v911 = vunpack.c.h.b16 %v832
    %v912 = vunpack.c.l.b16 %v833
    %v913 = vunpack.c.h.b16 %v833
    %v914 = vunpack.c.l.b16 %v834
    %v915 = vunpack.c.h.b16 %v834
    %v916 = vunpack.c.l.b16 %v835
    %v917 = vunpack.c.h.b16 %v835
    %v918 = vunpack.c.l.b16 %v836
    %v919 = vunpack.c.h.b16 %v836
    %v920 = vunpack.c.l.b16 %v837
    %v921 = vunpack.c.h.b16 %v837
    %v922 = vunpack.c.l.b16 %v838
    %v923 = vunpack.c.h.b16 %v838
    %v924 = vunpack.c.l.b16 %v839
    %v925 = vunpack.c.h.b16 %v839
    %v926 = vunpack.c.l.b16 %v840
    %v927 = vunpack.c.h.b16 %v840
    %v928 = vunpack.c.l.b16 %v841
    %v929 = vunpack.c.h.b16 %v841
    %v930 = vunpack.c.l.b16 %v842
    %v931 = vunpack.c.h.b16 %v842
    %v932 = vunpack.c.l.b16 %v843
    %v933 = vunpack.c.h.b16 %v843
    %v934 = vunpack.c.l.b16 %v844
    %v935 = vunpack.c.h.b16 %v844
    %v936 = vunpack.c.l.b16 %v845
    %v937 = vunpack.c.h.b16 %v845
    %v938 = vunpack.c.l.b16 %v846
    %v939 = vunpack.c.h.b16 %v846
    %v940 = vunpack.c.l.b16 %v847
    %v941 = vunpack.c.h.b16 %v847
    %v942 = vunpack.c.l.b16 %v848
    %v943 = vunpack.c.h.b16 %v848
    %v944 = vunpack.c.l.b16 %v849
    %v945 = vunpack.c.h.b16 %v849
    %v946 = vpack.c.b16 %v884, %v882
    %v947 = vpack.c.b16 %v885, %v883
    %v948 = vpack.c.b16 %v888, %v886
    %v949 = vpack.c.b16 %v889, %v887
    %v950 = vpack.c.b16 %v892, %v890
    %v951 = vpack.c.b16 %v893, %v891
    %v952 = vpack.c.b16 %v896, %v894
    %v953 = vpack.c.b16 %v897, %v895
    %v954 = vpack.c.b16 %v900, %v898
    %v955 = vpack.c.b16 %v901, %v899
    %v956 = vpack.c.b16 %v904, %v902
    %v957 = vpack.c.b16 %v905, %v903
    %v958 = vpack.c.b16 %v908, %v906
    %v959 = vpack.c.b16 %v909, %v907
    %v960 = vpack.c.b16 %v912, %v910
    %v961 = vpack.c.b16 %v913, %v911
    %v962 = vpack.c.b16 %v916, %v914
    %v963 = vpack.c.b16 %v917, %v915
    %v964 = vpack.c.b16 %v920, %v918
    %v965 = vpack.c.b16 %v921, %v919
    %v966 = vpack.c.b16 %v924, %v922
    %v967 = vpack.c.b16 %v925, %v923
    %v968 = vpack.c.b16 %v928, %v926
    %v969 = vpack.c.b16 %v929, %v927
    %v970 = vpack.c.b16 %v932, %v930
    %v971 = vpack.c.b16 %v933, %v931
    %v972 = vpack.c.b16 %v936, %v934
    %v973 = vpack.c.b16 %v937, %v935
    %v974 = vpack.c.b16 %v940, %v938
    %v975 = vpack.c.b16 %v941, %v939
    %v976 = vpack.c.b16 %v944, %v942
    %v977 = vpack.c.b16 %v945, %v943
    %1010 = vmatprep.subr.bf16.mxu0 %v947
    %1011 = vmatpush1.bf16.msra.mxu0 %v946
    %1012 = vmatprep.subr.bf16.mxu0 %v949
    %1013 = vmatpush1.bf16.msra.mxu0 %v948
    %1014 = vmatprep.subr.bf16.mxu0 %v951
    %1015 = vmatpush1.bf16.msra.mxu0 %v950
    %1016 = vmatprep.subr.bf16.mxu0 %v953
    %1017 = vmatpush1.bf16.msra.mxu0 %v952
    %1018 = vmatprep.subr.bf16.mxu0 %v955
    %1019 = vmatpush1.bf16.msra.mxu0 %v954
    %1020 = vmatprep.subr.bf16.mxu0 %v957
    %1021 = vmatpush1.bf16.msra.mxu0 %v956
    %1022 = vmatprep.subr.bf16.mxu0 %v959
    %1023 = vmatpush1.bf16.msra.mxu0 %v958
    %1024 = vmatprep.subr.bf16.mxu0 %v961
    %1025 = vmatpush1.bf16.msra.mxu0 %v960
    %1026 = vmatprep.subr.bf16.mxu0 %v963
    %1027 = vmatpush1.bf16.msra.mxu0 %v962
    %1028 = vmatprep.subr.bf16.mxu0 %v965
    %1029 = vmatpush1.bf16.msra.mxu0 %v964
    %1030 = vmatprep.subr.bf16.mxu0 %v967
    %1031 = vmatpush1.bf16.msra.mxu0 %v966
    %1032 = vmatprep.subr.bf16.mxu0 %v969
    %1033 = vmatpush1.bf16.msra.mxu0 %v968
    %1034 = vmatprep.subr.bf16.mxu0 %v971
    %1035 = vmatpush1.bf16.msra.mxu0 %v970
    %1036 = vmatprep.subr.bf16.mxu0 %v973
    %1037 = vmatpush1.bf16.msra.mxu0 %v972
    %1038 = vmatprep.subr.bf16.mxu0 %v975
    %1039 = vmatpush1.bf16.msra.mxu0 %v974
    %1040 = vmatprep.subr.bf16.mxu0 %v977
    %1041 = vmatpush1.bf16.msra.mxu0 %v976
    %1042 = vmatprep.mubr.bf16.mxu0 %v321
    %1043 = vmatmul.mubr.bf16.gmra.mrb[0].mxu0 %v320
    %v1044 = vpop.f32.mrb[0].mxu0
    %v1045 = vadd.f32 0.0, %v1044
    %v1046 = vpop.f32.mrb[0].mxu0
    %v1047 = vadd.f32 0.0, %v1046
    %v1048 = vpop.f32.mrb[0].mxu0
    %v1049 = vadd.f32 0.0, %v1048
    %v1050 = vpop.f32.mrb[0].mxu0
    %v1051 = vadd.f32 0.0, %v1050
    %1052 = vmatprep.mubr.bf16.mxu0 %v323
    %1053 = vmatmul.mubr.bf16.gmra.mrb[0].mxu0 %v322
    %v1054 = vpop.f32.mrb[0].mxu0
    %v1055 = vadd.f32 0.0, %v1054
    %v1056 = vpop.f32.mrb[0].mxu0
    %v1057 = vadd.f32 0.0, %v1056
    %v1058 = vpop.f32.mrb[0].mxu0
    %v1059 = vadd.f32 0.0, %v1058
    %v1060 = vpop.f32.mrb[0].mxu0
    %v1061 = vadd.f32 0.0, %v1060
    %1062 = vdwg.mxu0
    %v1063 = vadd.f32 %v799, %v1045
    %v1064 = vadd.f32 %v801, %v1047
    %v1065 = vadd.f32 %v803, %v1049
    %v1066 = vadd.f32 %v805, %v1051
    %v1067 = vadd.f32 %v809, %v1055
    %v1068 = vadd.f32 %v811, %v1057
    %v1069 = vadd.f32 %v813, %v1059
    %v1070 = vadd.f32 %v815, %v1061
    %s1071 = scalar_lea.vmem [#allocation7], 768
    %v1072 = vld [vmem:[%s1071] sm:$0xff]
    %v1073 = vld [vmem:[%s1071 + $0x8] sm:$0xff]
    %v1074 = vld [vmem:[%s1071 + $0x10] sm:$0xff]
    %v1075 = vld [vmem:[%s1071 + $0x18] sm:$0xff]
    %v1076 = vld [vmem:[%s1071 + $0x20] sm:$0xff]
    %v1077 = vld [vmem:[%s1071 + $0x28] sm:$0xff]
    %v1078 = vld [vmem:[%s1071 + $0x30] sm:$0xff]
    %v1079 = vld [vmem:[%s1071 + $0x38] sm:$0xff]
    %v1080 = vld [vmem:[%s1071 + $0x40] sm:$0xff]
    %v1081 = vld [vmem:[%s1071 + $0x48] sm:$0xff]
    %v1082 = vld [vmem:[%s1071 + $0x50] sm:$0xff]
    %v1083 = vld [vmem:[%s1071 + $0x58] sm:$0xff]
    %v1084 = vld [vmem:[%s1071 + $0x60] sm:$0xff]
    %v1085 = vld [vmem:[%s1071 + $0x68] sm:$0xff]
    %v1086 = vld [vmem:[%s1071 + $0x70] sm:$0xff]
    %v1087 = vld [vmem:[%s1071 + $0x78] sm:$0xff]
    %v1088 = vld [vmem:[%s1071 + $0x80] sm:$0xff]
    %v1089 = vld [vmem:[%s1071 + $0x88] sm:$0xff]
    %v1090 = vld [vmem:[%s1071 + $0x90] sm:$0xff]
    %v1091 = vld [vmem:[%s1071 + $0x98] sm:$0xff]
    %v1092 = vld [vmem:[%s1071 + $0xa0] sm:$0xff]
    %v1093 = vld [vmem:[%s1071 + $0xa8] sm:$0xff]
    %v1094 = vld [vmem:[%s1071 + $0xb0] sm:$0xff]
    %v1095 = vld [vmem:[%s1071 + $0xb8] sm:$0xff]
    %v1096 = vld [vmem:[%s1071 + $0xc0] sm:$0xff]
    %v1097 = vld [vmem:[%s1071 + $0xc8] sm:$0xff]
    %v1098 = vld [vmem:[%s1071 + $0xd0] sm:$0xff]
    %v1099 = vld [vmem:[%s1071 + $0xd8] sm:$0xff]
    %v1100 = vld [vmem:[%s1071 + $0xe0] sm:$0xff]
    %v1101 = vld [vmem:[%s1071 + $0xe8] sm:$0xff]
    %v1102 = vld [vmem:[%s1071 + $0xf0] sm:$0xff]
    %v1103 = vld [vmem:[%s1071 + $0xf8] sm:$0xff]
    %vm1110 = vcmask 1043456
    %v1111 = vrot.slane %v257, 4
    %v1112 = vrot.slane %v259, 4
    %v1113 = vsel %vm1110, %v1111, %v1112
    %v1114 = vrot.slane %v258, 4
    %v1115 = vrot.slane %v260, 4
    %v1116 = vsel %vm1110, %v1114, %v1115
    %v1117 = vrot.slane %v261, 4
    %v1118 = vsel %vm1110, %v1112, %v1117
    %v1119 = vrot.slane %v262, 4
    %v1120 = vsel %vm1110, %v1115, %v1119
    %v1157 = vunpack.c.l.b16 %v1072
    %v1158 = vunpack.c.h.b16 %v1072
    %v1159 = vunpack.c.l.b16 %v1073
    %v1160 = vunpack.c.h.b16 %v1073
    %v1161 = vunpack.c.l.b16 %v1074
    %v1162 = vunpack.c.h.b16 %v1074
    %v1163 = vunpack.c.l.b16 %v1075
    %v1164 = vunpack.c.h.b16 %v1075
    %v1165 = vunpack.c.l.b16 %v1076
    %v1166 = vunpack.c.h.b16 %v1076
    %v1167 = vunpack.c.l.b16 %v1077
    %v1168 = vunpack.c.h.b16 %v1077
    %v1169 = vunpack.c.l.b16 %v1078
    %v1170 = vunpack.c.h.b16 %v1078
    %v1171 = vunpack.c.l.b16 %v1079
    %v1172 = vunpack.c.h.b16 %v1079
    %v1173 = vunpack.c.l.b16 %v1080
    %v1174 = vunpack.c.h.b16 %v1080
    %v1175 = vunpack.c.l.b16 %v1081
    %v1176 = vunpack.c.h.b16 %v1081
    %v1177 = vunpack.c.l.b16 %v1082
    %v1178 = vunpack.c.h.b16 %v1082
    %v1179 = vunpack.c.l.b16 %v1083
    %v1180 = vunpack.c.h.b16 %v1083
    %v1181 = vunpack.c.l.b16 %v1084
    %v1182 = vunpack.c.h.b16 %v1084
    %v1183 = vunpack.c.l.b16 %v1085
    %v1184 = vunpack.c.h.b16 %v1085
    %v1185 = vunpack.c.l.b16 %v1086
    %v1186 = vunpack.c.h.b16 %v1086
    %v1187 = vunpack.c.l.b16 %v1087
    %v1188 = vunpack.c.h.b16 %v1087
    %v1189 = vunpack.c.l.b16 %v1088
    %v1190 = vunpack.c.h.b16 %v1088
    %v1191 = vunpack.c.l.b16 %v1089
    %v1192 = vunpack.c.h.b16 %v1089
    %v1193 = vunpack.c.l.b16 %v1090
    %v1194 = vunpack.c.h.b16 %v1090
    %v1195 = vunpack.c.l.b16 %v1091
    %v1196 = vunpack.c.h.b16 %v1091
    %v1197 = vunpack.c.l.b16 %v1092
    %v1198 = vunpack.c.h.b16 %v1092
    %v1199 = vunpack.c.l.b16 %v1093
    %v1200 = vunpack.c.h.b16 %v1093
    %v1201 = vunpack.c.l.b16 %v1094
    %v1202 = vunpack.c.h.b16 %v1094
    %v1203 = vunpack.c.l.b16 %v1095
    %v1204 = vunpack.c.h.b16 %v1095
    %v1205 = vunpack.c.l.b16 %v1096
    %v1206 = vunpack.c.h.b16 %v1096
    %v1207 = vunpack.c.l.b16 %v1097
    %v1208 = vunpack.c.h.b16 %v1097
    %v1209 = vunpack.c.l.b16 %v1098
    %v1210 = vunpack.c.h.b16 %v1098
    %v1211 = vunpack.c.l.b16 %v1099
    %v1212 = vunpack.c.h.b16 %v1099
    %v1213 = vunpack.c.l.b16 %v1100
    %v1214 = vunpack.c.h.b16 %v1100
    %v1215 = vunpack.c.l.b16 %v1101
    %v1216 = vunpack.c.h.b16 %v1101
    %v1217 = vunpack.c.l.b16 %v1102
    %v1218 = vunpack.c.h.b16 %v1102
    %v1219 = vunpack.c.l.b16 %v1103
    %v1220 = vunpack.c.h.b16 %v1103
    %v1221 = vpack.c.b16 %v1159, %v1157
    %v1222 = vpack.c.b16 %v1160, %v1158
    %v1223 = vpack.c.b16 %v1163, %v1161
    %v1224 = vpack.c.b16 %v1164, %v1162
    %v1225 = vpack.c.b16 %v1167, %v1165
    %v1226 = vpack.c.b16 %v1168, %v1166
    %v1227 = vpack.c.b16 %v1171, %v1169
    %v1228 = vpack.c.b16 %v1172, %v1170
    %v1229 = vpack.c.b16 %v1175, %v1173
    %v1230 = vpack.c.b16 %v1176, %v1174
    %v1231 = vpack.c.b16 %v1179, %v1177
    %v1232 = vpack.c.b16 %v1180, %v1178
    %v1233 = vpack.c.b16 %v1183, %v1181
    %v1234 = vpack.c.b16 %v1184, %v1182
    %v1235 = vpack.c.b16 %v1187, %v1185
    %v1236 = vpack.c.b16 %v1188, %v1186
    %v1237 = vpack.c.b16 %v1191, %v1189
    %v1238 = vpack.c.b16 %v1192, %v1190
    %v1239 = vpack.c.b16 %v1195, %v1193
    %v1240 = vpack.c.b16 %v1196, %v1194
    %v1241 = vpack.c.b16 %v1199, %v1197
    %v1242 = vpack.c.b16 %v1200, %v1198
    %v1243 = vpack.c.b16 %v1203, %v1201
    %v1244 = vpack.c.b16 %v1204, %v1202
    %v1245 = vpack.c.b16 %v1207, %v1205
    %v1246 = vpack.c.b16 %v1208, %v1206
    %v1247 = vpack.c.b16 %v1211, %v1209
    %v1248 = vpack.c.b16 %v1212, %v1210
    %v1249 = vpack.c.b16 %v1215, %v1213
    %v1250 = vpack.c.b16 %v1216, %v1214
    %v1251 = vpack.c.b16 %v1219, %v1217
    %v1252 = vpack.c.b16 %v1220, %v1218
    %1285 = vmatprep.subr.bf16.mxu0 %v1222
    %1286 = vmatpush1.bf16.msra.mxu0 %v1221
    %1287 = vmatprep.subr.bf16.mxu0 %v1224
    %1288 = vmatpush1.bf16.msra.mxu0 %v1223
    %1289 = vmatprep.subr.bf16.mxu0 %v1226
    %1290 = vmatpush1.bf16.msra.mxu0 %v1225
    %1291 = vmatprep.subr.bf16.mxu0 %v1228
    %1292 = vmatpush1.bf16.msra.mxu0 %v1227
    %1293 = vmatprep.subr.bf16.mxu0 %v1230
    %1294 = vmatpush1.bf16.msra.mxu0 %v1229
    %1295 = vmatprep.subr.bf16.mxu0 %v1232
    %1296 = vmatpush1.bf16.msra.mxu0 %v1231
    %1297 = vmatprep.subr.bf16.mxu0 %v1234
    %1298 = vmatpush1.bf16.msra.mxu0 %v1233
    %1299 = vmatprep.subr.bf16.mxu0 %v1236
    %1300 = vmatpush1.bf16.msra.mxu0 %v1235
    %1301 = vmatprep.subr.bf16.mxu0 %v1238
    %1302 = vmatpush1.bf16.msra.mxu0 %v1237
    %1303 = vmatprep.subr.bf16.mxu0 %v1240
    %1304 = vmatpush1.bf16.msra.mxu0 %v1239
    %1305 = vmatprep.subr.bf16.mxu0 %v1242
    %1306 = vmatpush1.bf16.msra.mxu0 %v1241
    %1307 = vmatprep.subr.bf16.mxu0 %v1244
    %1308 = vmatpush1.bf16.msra.mxu0 %v1243
    %1309 = vmatprep.subr.bf16.mxu0 %v1246
    %1310 = vmatpush1.bf16.msra.mxu0 %v1245
    %1311 = vmatprep.subr.bf16.mxu0 %v1248
    %1312 = vmatpush1.bf16.msra.mxu0 %v1247
    %1313 = vmatprep.subr.bf16.mxu0 %v1250
    %1314 = vmatpush1.bf16.msra.mxu0 %v1249
    %1315 = vmatprep.subr.bf16.mxu0 %v1252
    %1316 = vmatpush1.bf16.msra.mxu0 %v1251
    %1317 = vmatprep.mubr.bf16.mxu0 %v1116
    %1318 = vmatmul.mubr.bf16.gmra.mrb[0].mxu0 %v1113
    %v1319 = vpop.f32.mrb[0].mxu0
    %v1320 = vadd.f32 0.0, %v1319
    %v1321 = vpop.f32.mrb[0].mxu0
    %v1322 = vadd.f32 0.0, %v1321
    %v1323 = vpop.f32.mrb[0].mxu0
    %v1324 = vadd.f32 0.0, %v1323
    %v1325 = vpop.f32.mrb[0].mxu0
    %v1326 = vadd.f32 0.0, %v1325
    %1327 = vmatprep.mubr.bf16.mxu0 %v1120
    %1328 = vmatmul.mubr.bf16.gmra.mrb[0].mxu0 %v1118
    %v1329 = vpop.f32.mrb[0].mxu0
    %v1330 = vadd.f32 0.0, %v1329
    %v1331 = vpop.f32.mrb[0].mxu0
    %v1332 = vadd.f32 0.0, %v1331
    %v1333 = vpop.f32.mrb[0].mxu0
    %v1334 = vadd.f32 0.0, %v1333
    %v1335 = vpop.f32.mrb[0].mxu0
    %v1336 = vadd.f32 0.0, %v1335
    %1337 = vdwg.mxu0
    %v1338 = vadd.f32 %v1063, %v1320
    %v1339 = vadd.f32 %v1064, %v1322
    %v1340 = vadd.f32 %v1065, %v1324
    %v1341 = vadd.f32 %v1066, %v1326
    %v1342 = vadd.f32 %v1067, %v1330
    %v1343 = vadd.f32 %v1068, %v1332
    %v1344 = vadd.f32 %v1069, %v1334
    %v1345 = vadd.f32 %v1070, %v1336
    %s1346 = scalar_lea.vmem [#allocation7], 1024
    %v1347 = vld [vmem:[%s1346] sm:$0xff]
    %v1348 = vld [vmem:[%s1346 + $0x8] sm:$0xff]
    %v1349 = vld [vmem:[%s1346 + $0x10] sm:$0xff]
    %v1350 = vld [vmem:[%s1346 + $0x18] sm:$0xff]
    %v1351 = vld [vmem:[%s1346 + $0x20] sm:$0xff]
    %v1352 = vld [vmem:[%s1346 + $0x28] sm:$0xff]
    %v1353 = vld [vmem:[%s1346 + $0x30] sm:$0xff]
    %v1354 = vld [vmem:[%s1346 + $0x38] sm:$0xff]
    %v1355 = vld [vmem:[%s1346 + $0x40] sm:$0xff]
    %v1356 = vld [vmem:[%s1346 + $0x48] sm:$0xff]
    %v1357 = vld [vmem:[%s1346 + $0x50] sm:$0xff]
    %v1358 = vld [vmem:[%s1346 + $0x58] sm:$0xff]
    %v1359 = vld [vmem:[%s1346 + $0x60] sm:$0xff]
    %v1360 = vld [vmem:[%s1346 + $0x68] sm:$0xff]
    %v1361 = vld [vmem:[%s1346 + $0x70] sm:$0xff]
    %v1362 = vld [vmem:[%s1346 + $0x78] sm:$0xff]
    %v1363 = vld [vmem:[%s1346 + $0x80] sm:$0xff]
    %v1364 = vld [vmem:[%s1346 + $0x88] sm:$0xff]
    %v1365 = vld [vmem:[%s1346 + $0x90] sm:$0xff]
    %v1366 = vld [vmem:[%s1346 + $0x98] sm:$0xff]
    %v1367 = vld [vmem:[%s1346 + $0xa0] sm:$0xff]
    %v1368 = vld [vmem:[%s1346 + $0xa8] sm:$0xff]
    %v1369 = vld [vmem:[%s1346 + $0xb0] sm:$0xff]
    %v1370 = vld [vmem:[%s1346 + $0xb8] sm:$0xff]
    %v1371 = vld [vmem:[%s1346 + $0xc0] sm:$0xff]
    %v1372 = vld [vmem:[%s1346 + $0xc8] sm:$0xff]
    %v1373 = vld [vmem:[%s1346 + $0xd0] sm:$0xff]
    %v1374 = vld [vmem:[%s1346 + $0xd8] sm:$0xff]
    %v1375 = vld [vmem:[%s1346 + $0xe0] sm:$0xff]
    %v1376 = vld [vmem:[%s1346 + $0xe8] sm:$0xff]
    %v1377 = vld [vmem:[%s1346 + $0xf0] sm:$0xff]
    %v1378 = vld [vmem:[%s1346 + $0xf8] sm:$0xff]
    %v1383 = vrot.slane %v150, 4
    %v1384 = vrot.slane %v141, 4
    %v1385 = vsel %vm1110, %v1383, %v1384
    %v1386 = vrot.slane %v153, 4
    %v1387 = vrot.slane %v142, 4
    %v1388 = vsel %vm1110, %v1386, %v1387
    %v1389 = vrot.slane %v156, 4
    %v1390 = vsel %vm1110, %v1384, %v1389
    %v1391 = vrot.slane %v159, 4
    %v1392 = vsel %vm1110, %v1387, %v1391
    %v1429 = vunpack.c.l.b16 %v1347
    %v1430 = vunpack.c.h.b16 %v1347
    %v1431 = vunpack.c.l.b16 %v1348
    %v1432 = vunpack.c.h.b16 %v1348
    %v1433 = vunpack.c.l.b16 %v1349
    %v1434 = vunpack.c.h.b16 %v1349
    %v1435 = vunpack.c.l.b16 %v1350
    %v1436 = vunpack.c.h.b16 %v1350
    %v1437 = vunpack.c.l.b16 %v1351
    %v1438 = vunpack.c.h.b16 %v1351
    %v1439 = vunpack.c.l.b16 %v1352
    %v1440 = vunpack.c.h.b16 %v1352
    %v1441 = vunpack.c.l.b16 %v1353
    %v1442 = vunpack.c.h.b16 %v1353
    %v1443 = vunpack.c.l.b16 %v1354
    %v1444 = vunpack.c.h.b16 %v1354
    %v1445 = vunpack.c.l.b16 %v1355
    %v1446 = vunpack.c.h.b16 %v1355
    %v1447 = vunpack.c.l.b16 %v1356
    %v1448 = vunpack.c.h.b16 %v1356
    %v1449 = vunpack.c.l.b16 %v1357
    %v1450 = vunpack.c.h.b16 %v1357
    %v1451 = vunpack.c.l.b16 %v1358
    %v1452 = vunpack.c.h.b16 %v1358
    %v1453 = vunpack.c.l.b16 %v1359
    %v1454 = vunpack.c.h.b16 %v1359
    %v1455 = vunpack.c.l.b16 %v1360
    %v1456 = vunpack.c.h.b16 %v1360
    %v1457 = vunpack.c.l.b16 %v1361
    %v1458 = vunpack.c.h.b16 %v1361
    %v1459 = vunpack.c.l.b16 %v1362
    %v1460 = vunpack.c.h.b16 %v1362
    %v1461 = vunpack.c.l.b16 %v1363
    %v1462 = vunpack.c.h.b16 %v1363
    %v1463 = vunpack.c.l.b16 %v1364
    %v1464 = vunpack.c.h.b16 %v1364
    %v1465 = vunpack.c.l.b16 %v1365
    %v1466 = vunpack.c.h.b16 %v1365
    %v1467 = vunpack.c.l.b16 %v1366
    %v1468 = vunpack.c.h.b16 %v1366
    %v1469 = vunpack.c.l.b16 %v1367
    %v1470 = vunpack.c.h.b16 %v1367
    %v1471 = vunpack.c.l.b16 %v1368
    %v1472 = vunpack.c.h.b16 %v1368
    %v1473 = vunpack.c.l.b16 %v1369
    %v1474 = vunpack.c.h.b16 %v1369
    %v1475 = vunpack.c.l.b16 %v1370
    %v1476 = vunpack.c.h.b16 %v1370
    %v1477 = vunpack.c.l.b16 %v1371
    %v1478 = vunpack.c.h.b16 %v1371
    %v1479 = vunpack.c.l.b16 %v1372
    %v1480 = vunpack.c.h.b16 %v1372
    %v1481 = vunpack.c.l.b16 %v1373
    %v1482 = vunpack.c.h.b16 %v1373
    %v1483 = vunpack.c.l.b16 %v1374
    %v1484 = vunpack.c.h.b16 %v1374
    %v1485 = vunpack.c.l.b16 %v1375
    %v1486 = vunpack.c.h.b16 %v1375
    %v1487 = vunpack.c.l.b16 %v1376
    %v1488 = vunpack.c.h.b16 %v1376
    %v1489 = vunpack.c.l.b16 %v1377
    %v1490 = vunpack.c.h.b16 %v1377
    %v1491 = vunpack.c.l.b16 %v1378
    %v1492 = vunpack.c.h.b16 %v1378
    %v1493 = vpack.c.b16 %v1431, %v1429
    %v1494 = vpack.c.b16 %v1432, %v1430
    %v1495 = vpack.c.b16 %v1435, %v1433
    %v1496 = vpack.c.b16 %v1436, %v1434
    %v1497 = vpack.c.b16 %v1439, %v1437
    %v1498 = vpack.c.b16 %v1440, %v1438
    %v1499 = vpack.c.b16 %v1443, %v1441
    %v1500 = vpack.c.b16 %v1444, %v1442
    %v1501 = vpack.c.b16 %v1447, %v1445
    %v1502 = vpack.c.b16 %v1448, %v1446
    %v1503 = vpack.c.b16 %v1451, %v1449
    %v1504 = vpack.c.b16 %v1452, %v1450
    %v1505 = vpack.c.b16 %v1455, %v1453
    %v1506 = vpack.c.b16 %v1456, %v1454
    %v1507 = vpack.c.b16 %v1459, %v1457
    %v1508 = vpack.c.b16 %v1460, %v1458
    %v1509 = vpack.c.b16 %v1463, %v1461
    %v1510 = vpack.c.b16 %v1464, %v1462
    %v1511 = vpack.c.b16 %v1467, %v1465
    %v1512 = vpack.c.b16 %v1468, %v1466
    %v1513 = vpack.c.b16 %v1471, %v1469
    %v1514 = vpack.c.b16 %v1472, %v1470
    %v1515 = vpack.c.b16 %v1475, %v1473
    %v1516 = vpack.c.b16 %v1476, %v1474
    %v1517 = vpack.c.b16 %v1479, %v1477
    %v1518 = vpack.c.b16 %v1480, %v1478
    %v1519 = vpack.c.b16 %v1483, %v1481
    %v1520 = vpack.c.b16 %v1484, %v1482
    %v1521 = vpack.c.b16 %v1487, %v1485
    %v1522 = vpack.c.b16 %v1488, %v1486
    %v1523 = vpack.c.b16 %v1491, %v1489
    %v1524 = vpack.c.b16 %v1492, %v1490
    %1557 = vmatprep.subr.bf16.mxu0 %v1494
    %1558 = vmatpush1.bf16.msra.mxu0 %v1493
    %1559 = vmatprep.subr.bf16.mxu0 %v1496
    %1560 = vmatpush1.bf16.msra.mxu0 %v1495
    %1561 = vmatprep.subr.bf16.mxu0 %v1498
    %1562 = vmatpush1.bf16.msra.mxu0 %v1497
    %1563 = vmatprep.subr.bf16.mxu0 %v1500
    %1564 = vmatpush1.bf16.msra.mxu0 %v1499
    %1565 = vmatprep.subr.bf16.mxu0 %v1502
    %1566 = vmatpush1.bf16.msra.mxu0 %v1501
    %1567 = vmatprep.subr.bf16.mxu0 %v1504
    %1568 = vmatpush1.bf16.msra.mxu0 %v1503
    %1569 = vmatprep.subr.bf16.mxu0 %v1506
    %1570 = vmatpush1.bf16.msra.mxu0 %v1505
    %1571 = vmatprep.subr.bf16.mxu0 %v1508
    %1572 = vmatpush1.bf16.msra.mxu0 %v1507
    %1573 = vmatprep.subr.bf16.mxu0 %v1510
    %1574 = vmatpush1.bf16.msra.mxu0 %v1509
    %1575 = vmatprep.subr.bf16.mxu0 %v1512
    %1576 = vmatpush1.bf16.msra.mxu0 %v1511
    %1577 = vmatprep.subr.bf16.mxu0 %v1514
    %1578 = vmatpush1.bf16.msra.mxu0 %v1513
    %1579 = vmatprep.subr.bf16.mxu0 %v1516
    %1580 = vmatpush1.bf16.msra.mxu0 %v1515
    %1581 = vmatprep.subr.bf16.mxu0 %v1518
    %1582 = vmatpush1.bf16.msra.mxu0 %v1517
    %1583 = vmatprep.subr.bf16.mxu0 %v1520
    %1584 = vmatpush1.bf16.msra.mxu0 %v1519
    %1585 = vmatprep.subr.bf16.mxu0 %v1522
    %1586 = vmatpush1.bf16.msra.mxu0 %v1521
    %1587 = vmatprep.subr.bf16.mxu0 %v1524
    %1588 = vmatpush1.bf16.msra.mxu0 %v1523
    %1589 = vmatprep.mubr.bf16.mxu0 %v1388
    %1590 = vmatmul.mubr.bf16.gmra.mrb[0].mxu0 %v1385
    %v1591 = vpop.f32.mrb[0].mxu0
    %v1592 = vadd.f32 0.0, %v1591
    %v1593 = vpop.f32.mrb[0].mxu0
    %v1594 = vadd.f32 0.0, %v1593
    %v1595 = vpop.f32.mrb[0].mxu0
    %v1596 = vadd.f32 0.0, %v1595
    %v1597 = vpop.f32.mrb[0].mxu0
    %v1598 = vadd.f32 0.0, %v1597
    %1599 = vmatprep.mubr.bf16.mxu0 %v1392
    %1600 = vmatmul.mubr.bf16.gmra.mrb[0].mxu0 %v1390
    %v1601 = vpop.f32.mrb[0].mxu0
    %v1602 = vadd.f32 0.0, %v1601
    %v1603 = vpop.f32.mrb[0].mxu0
    %v1604 = vadd.f32 0.0, %v1603
    %v1605 = vpop.f32.mrb[0].mxu0
    %v1606 = vadd.f32 0.0, %v1605
    %v1607 = vpop.f32.mrb[0].mxu0
    %v1608 = vadd.f32 0.0, %v1607
    %1609 = vdwg.mxu0
    %v1610 = vadd.f32 %v1338, %v1592
    %v1611 = vadd.f32 %v1339, %v1594
    %v1612 = vadd.f32 %v1340, %v1596
    %v1613 = vadd.f32 %v1341, %v1598
    %v1614 = vadd.f32 %v1342, %v1602
    %v1615 = vadd.f32 %v1343, %v1604
    %v1616 = vadd.f32 %v1344, %v1606
    %v1617 = vadd.f32 %v1345, %v1608
    %s1618 = scalar_lea.vmem [#allocation7], 1280
    %v1619 = vld [vmem:[%s1618] sm:$0xff]
    %v1620 = vld [vmem:[%s1618 + $0x8] sm:$0xff]
    %v1621 = vld [vmem:[%s1618 + $0x10] sm:$0xff]
    %v1622 = vld [vmem:[%s1618 + $0x18] sm:$0xff]
    %v1623 = vld [vmem:[%s1618 + $0x20] sm:$0xff]
    %v1624 = vld [vmem:[%s1618 + $0x28] sm:$0xff]
    %v1625 = vld [vmem:[%s1618 + $0x30] sm:$0xff]
    %v1626 = vld [vmem:[%s1618 + $0x38] sm:$0xff]
    %v1627 = vld [vmem:[%s1618 + $0x40] sm:$0xff]
    %v1628 = vld [vmem:[%s1618 + $0x48] sm:$0xff]
    %v1629 = vld [vmem:[%s1618 + $0x50] sm:$0xff]
    %v1630 = vld [vmem:[%s1618 + $0x58] sm:$0xff]
    %v1631 = vld [vmem:[%s1618 + $0x60] sm:$0xff]
    %v1632 = vld [vmem:[%s1618 + $0x68] sm:$0xff]
    %v1633 = vld [vmem:[%s1618 + $0x70] sm:$0xff]
    %v1634 = vld [vmem:[%s1618 + $0x78] sm:$0xff]
    %v1635 = vld [vmem:[%s1618 + $0x80] sm:$0xff]
    %v1636 = vld [vmem:[%s1618 + $0x88] sm:$0xff]
    %v1637 = vld [vmem:[%s1618 + $0x90] sm:$0xff]
    %v1638 = vld [vmem:[%s1618 + $0x98] sm:$0xff]
    %v1639 = vld [vmem:[%s1618 + $0xa0] sm:$0xff]
    %v1640 = vld [vmem:[%s1618 + $0xa8] sm:$0xff]
    %v1641 = vld [vmem:[%s1618 + $0xb0] sm:$0xff]
    %v1642 = vld [vmem:[%s1618 + $0xb8] sm:$0xff]
    %v1643 = vld [vmem:[%s1618 + $0xc0] sm:$0xff]
    %v1644 = vld [vmem:[%s1618 + $0xc8] sm:$0xff]
    %v1645 = vld [vmem:[%s1618 + $0xd0] sm:$0xff]
    %v1646 = vld [vmem:[%s1618 + $0xd8] sm:$0xff]
    %v1647 = vld [vmem:[%s1618 + $0xe0] sm:$0xff]
    %v1648 = vld [vmem:[%s1618 + $0xe8] sm:$0xff]
    %v1649 = vld [vmem:[%s1618 + $0xf0] sm:$0xff]
    %v1650 = vld [vmem:[%s1618 + $0xf8] sm:$0xff]
    %v1657 = vrot.slane %v320, 4
    %v1658 = vrot.slane %v322, 4
    %v1659 = vsel %vm1110, %v1657, %v1658
    %v1660 = vrot.slane %v321, 4
    %v1661 = vrot.slane %v323, 4
    %v1662 = vsel %vm1110, %v1660, %v1661
    %v1663 = vrot.slane %v324, 4
    %v1664 = vsel %vm1110, %v1658, %v1663
    %v1665 = vrot.slane %v325, 4
    %v1666 = vsel %vm1110, %v1661, %v1665
    %v1703 = vunpack.c.l.b16 %v1619
    %v1704 = vunpack.c.h.b16 %v1619
    %v1705 = vunpack.c.l.b16 %v1620
    %v1706 = vunpack.c.h.b16 %v1620
    %v1707 = vunpack.c.l.b16 %v1621
    %v1708 = vunpack.c.h.b16 %v1621
    %v1709 = vunpack.c.l.b16 %v1622
    %v1710 = vunpack.c.h.b16 %v1622
    %v1711 = vunpack.c.l.b16 %v1623
    %v1712 = vunpack.c.h.b16 %v1623
    %v1713 = vunpack.c.l.b16 %v1624
    %v1714 = vunpack.c.h.b16 %v1624
    %v1715 = vunpack.c.l.b16 %v1625
    %v1716 = vunpack.c.h.b16 %v1625
    %v1717 = vunpack.c.l.b16 %v1626
    %v1718 = vunpack.c.h.b16 %v1626
    %v1719 = vunpack.c.l.b16 %v1627
    %v1720 = vunpack.c.h.b16 %v1627
    %v1721 = vunpack.c.l.b16 %v1628
    %v1722 = vunpack.c.h.b16 %v1628
    %v1723 = vunpack.c.l.b16 %v1629
    %v1724 = vunpack.c.h.b16 %v1629
    %v1725 = vunpack.c.l.b16 %v1630
    %v1726 = vunpack.c.h.b16 %v1630
    %v1727 = vunpack.c.l.b16 %v1631
    %v1728 = vunpack.c.h.b16 %v1631
    %v1729 = vunpack.c.l.b16 %v1632
    %v1730 = vunpack.c.h.b16 %v1632
    %v1731 = vunpack.c.l.b16 %v1633
    %v1732 = vunpack.c.h.b16 %v1633
    %v1733 = vunpack.c.l.b16 %v1634
    %v1734 = vunpack.c.h.b16 %v1634
    %v1735 = vunpack.c.l.b16 %v1635
    %v1736 = vunpack.c.h.b16 %v1635
    %v1737 = vunpack.c.l.b16 %v1636
    %v1738 = vunpack.c.h.b16 %v1636
    %v1739 = vunpack.c.l.b16 %v1637
    %v1740 = vunpack.c.h.b16 %v1637
    %v1741 = vunpack.c.l.b16 %v1638
    %v1742 = vunpack.c.h.b16 %v1638
    %v1743 = vunpack.c.l.b16 %v1639
    %v1744 = vunpack.c.h.b16 %v1639
    %v1745 = vunpack.c.l.b16 %v1640
    %v1746 = vunpack.c.h.b16 %v1640
    %v1747 = vunpack.c.l.b16 %v1641
    %v1748 = vunpack.c.h.b16 %v1641
    %v1749 = vunpack.c.l.b16 %v1642
    %v1750 = vunpack.c.h.b16 %v1642
    %v1751 = vunpack.c.l.b16 %v1643
    %v1752 = vunpack.c.h.b16 %v1643
    %v1753 = vunpack.c.l.b16 %v1644
    %v1754 = vunpack.c.h.b16 %v1644
    %v1755 = vunpack.c.l.b16 %v1645
    %v1756 = vunpack.c.h.b16 %v1645
    %v1757 = vunpack.c.l.b16 %v1646
    %v1758 = vunpack.c.h.b16 %v1646
    %v1759 = vunpack.c.l.b16 %v1647
    %v1760 = vunpack.c.h.b16 %v1647
    %v1761 = vunpack.c.l.b16 %v1648
    %v1762 = vunpack.c.h.b16 %v1648
    %v1763 = vunpack.c.l.b16 %v1649
    %v1764 = vunpack.c.h.b16 %v1649
    %v1765 = vunpack.c.l.b16 %v1650
    %v1766 = vunpack.c.h.b16 %v1650
    %v1767 = vpack.c.b16 %v1705, %v1703
    %v1768 = vpack.c.b16 %v1706, %v1704
    %v1769 = vpack.c.b16 %v1709, %v1707
    %v1770 = vpack.c.b16 %v1710, %v1708
    %v1771 = vpack.c.b16 %v1713, %v1711
    %v1772 = vpack.c.b16 %v1714, %v1712
    %v1773 = vpack.c.b16 %v1717, %v1715
    %v1774 = vpack.c.b16 %v1718, %v1716
    %v1775 = vpack.c.b16 %v1721, %v1719
    %v1776 = vpack.c.b16 %v1722, %v1720
    %v1777 = vpack.c.b16 %v1725, %v1723
    %v1778 = vpack.c.b16 %v1726, %v1724
    %v1779 = vpack.c.b16 %v1729, %v1727
    %v1780 = vpack.c.b16 %v1730, %v1728
    %v1781 = vpack.c.b16 %v1733, %v1731
    %v1782 = vpack.c.b16 %v1734, %v1732
    %v1783 = vpack.c.b16 %v1737, %v1735
    %v1784 = vpack.c.b16 %v1738, %v1736
    %v1785 = vpack.c.b16 %v1741, %v1739
    %v1786 = vpack.c.b16 %v1742, %v1740
    %v1787 = vpack.c.b16 %v1745, %v1743
    %v1788 = vpack.c.b16 %v1746, %v1744
    %v1789 = vpack.c.b16 %v1749, %v1747
    %v1790 = vpack.c.b16 %v1750, %v1748
    %v1791 = vpack.c.b16 %v1753, %v1751
    %v1792 = vpack.c.b16 %v1754, %v1752
    %v1793 = vpack.c.b16 %v1757, %v1755
    %v1794 = vpack.c.b16 %v1758, %v1756
    %v1795 = vpack.c.b16 %v1761, %v1759
    %v1796 = vpack.c.b16 %v1762, %v1760
    %v1797 = vpack.c.b16 %v1765, %v1763
    %v1798 = vpack.c.b16 %v1766, %v1764
    %1831 = vmatprep.subr.bf16.mxu0 %v1768
    %1832 = vmatpush1.bf16.msra.mxu0 %v1767
    %1833 = vmatprep.subr.bf16.mxu0 %v1770
    %1834 = vmatpush1.bf16.msra.mxu0 %v1769
    %1835 = vmatprep.subr.bf16.mxu0 %v1772
    %1836 = vmatpush1.bf16.msra.mxu0 %v1771
    %1837 = vmatprep.subr.bf16.mxu0 %v1774
    %1838 = vmatpush1.bf16.msra.mxu0 %v1773
    %1839 = vmatprep.subr.bf16.mxu0 %v1776
    %1840 = vmatpush1.bf16.msra.mxu0 %v1775
    %1841 = vmatprep.subr.bf16.mxu0 %v1778
    %1842 = vmatpush1.bf16.msra.mxu0 %v1777
    %1843 = vmatprep.subr.bf16.mxu0 %v1780
    %1844 = vmatpush1.bf16.msra.mxu0 %v1779
    %1845 = vmatprep.subr.bf16.mxu0 %v1782
    %1846 = vmatpush1.bf16.msra.mxu0 %v1781
    %1847 = vmatprep.subr.bf16.mxu0 %v1784
    %1848 = vmatpush1.bf16.msra.mxu0 %v1783
    %1849 = vmatprep.subr.bf16.mxu0 %v1786
    %1850 = vmatpush1.bf16.msra.mxu0 %v1785
    %1851 = vmatprep.subr.bf16.mxu0 %v1788
    %1852 = vmatpush1.bf16.msra.mxu0 %v1787
    %1853 = vmatprep.subr.bf16.mxu0 %v1790
    %1854 = vmatpush1.bf16.msra.mxu0 %v1789
    %1855 = vmatprep.subr.bf16.mxu0 %v1792
    %1856 = vmatpush1.bf16.msra.mxu0 %v1791
    %1857 = vmatprep.subr.bf16.mxu0 %v1794
    %1858 = vmatpush1.bf16.msra.mxu0 %v1793
    %1859 = vmatprep.subr.bf16.mxu0 %v1796
    %1860 = vmatpush1.bf16.msra.mxu0 %v1795
    %1861 = vmatprep.subr.bf16.mxu0 %v1798
    %1862 = vmatpush1.bf16.msra.mxu0 %v1797
    %1863 = vmatprep.mubr.bf16.mxu0 %v1662
    %1864 = vmatmul.mubr.bf16.gmra.mrb[0].mxu0 %v1659
    %v1865 = vpop.f32.mrb[0].mxu0
    %v1866 = vadd.f32 0.0, %v1865
    %v1867 = vpop.f32.mrb[0].mxu0
    %v1868 = vadd.f32 0.0, %v1867
    %v1869 = vpop.f32.mrb[0].mxu0
    %v1870 = vadd.f32 0.0, %v1869
    %v1871 = vpop.f32.mrb[0].mxu0
    %v1872 = vadd.f32 0.0, %v1871
    %1873 = vmatprep.mubr.bf16.mxu0 %v1666
    %1874 = vmatmul.mubr.bf16.gmra.mrb[0].mxu0 %v1664
    %v1875 = vpop.f32.mrb[0].mxu0
    %v1876 = vadd.f32 0.0, %v1875
    %v1877 = vpop.f32.mrb[0].mxu0
    %v1878 = vadd.f32 0.0, %v1877
    %v1879 = vpop.f32.mrb[0].mxu0
    %v1880 = vadd.f32 0.0, %v1879
    %v1881 = vpop.f32.mrb[0].mxu0
    %v1882 = vadd.f32 0.0, %v1881
    %1883 = vdwg.mxu0
    %v1884 = vadd.f32 %v1610, %v1866
    %v1885 = vadd.f32 %v1611, %v1868
    %v1886 = vadd.f32 %v1612, %v1870
    %v1887 = vadd.f32 %v1613, %v1872
    %v1888 = vadd.f32 %v1614, %v1876
    %v1889 = vadd.f32 %v1615, %v1878
    %v1890 = vadd.f32 %v1616, %v1880
    %v1891 = vadd.f32 %v1617, %v1882
    %s1892 = scalar_lea.vmem [#allocation7], 1536
    %v1893 = vld [vmem:[%s1892] sm:$0xff]
    %v1894 = vld [vmem:[%s1892 + $0x8] sm:$0xff]
    %v1895 = vld [vmem:[%s1892 + $0x10] sm:$0xff]
    %v1896 = vld [vmem:[%s1892 + $0x18] sm:$0xff]
    %v1897 = vld [vmem:[%s1892 + $0x20] sm:$0xff]
    %v1898 = vld [vmem:[%s1892 + $0x28] sm:$0xff]
    %v1899 = vld [vmem:[%s1892 + $0x30] sm:$0xff]
    %v1900 = vld [vmem:[%s1892 + $0x38] sm:$0xff]
    %v1901 = vld [vmem:[%s1892 + $0x40] sm:$0xff]
    %v1902 = vld [vmem:[%s1892 + $0x48] sm:$0xff]
    %v1903 = vld [vmem:[%s1892 + $0x50] sm:$0xff]
    %v1904 = vld [vmem:[%s1892 + $0x58] sm:$0xff]
    %v1905 = vld [vmem:[%s1892 + $0x60] sm:$0xff]
    %v1906 = vld [vmem:[%s1892 + $0x68] sm:$0xff]
    %v1907 = vld [vmem:[%s1892 + $0x70] sm:$0xff]
    %v1908 = vld [vmem:[%s1892 + $0x78] sm:$0xff]
    %v1909 = vld [vmem:[%s1892 + $0x80] sm:$0xff]
    %v1910 = vld [vmem:[%s1892 + $0x88] sm:$0xff]
    %v1911 = vld [vmem:[%s1892 + $0x90] sm:$0xff]
    %v1912 = vld [vmem:[%s1892 + $0x98] sm:$0xff]
    %v1913 = vld [vmem:[%s1892 + $0xa0] sm:$0xff]
    %v1914 = vld [vmem:[%s1892 + $0xa8] sm:$0xff]
    %v1915 = vld [vmem:[%s1892 + $0xb0] sm:$0xff]
    %v1916 = vld [vmem:[%s1892 + $0xb8] sm:$0xff]
    %v1917 = vld [vmem:[%s1892 + $0xc0] sm:$0xff]
    %v1918 = vld [vmem:[%s1892 + $0xc8] sm:$0xff]
    %v1919 = vld [vmem:[%s1892 + $0xd0] sm:$0xff]
    %v1920 = vld [vmem:[%s1892 + $0xd8] sm:$0xff]
    %v1921 = vld [vmem:[%s1892 + $0xe0] sm:$0xff]
    %v1922 = vld [vmem:[%s1892 + $0xe8] sm:$0xff]
    %v1923 = vld [vmem:[%s1892 + $0xf0] sm:$0xff]
    %v1924 = vld [vmem:[%s1892 + $0xf8] sm:$0xff]
    %v1957 = vunpack.c.l.b16 %v1893
    %v1958 = vunpack.c.h.b16 %v1893
    %v1959 = vunpack.c.l.b16 %v1894
    %v1960 = vunpack.c.h.b16 %v1894
    %v1961 = vunpack.c.l.b16 %v1895
    %v1962 = vunpack.c.h.b16 %v1895
    %v1963 = vunpack.c.l.b16 %v1896
    %v1964 = vunpack.c.h.b16 %v1896
    %v1965 = vunpack.c.l.b16 %v1897
    %v1966 = vunpack.c.h.b16 %v1897
    %v1967 = vunpack.c.l.b16 %v1898
    %v1968 = vunpack.c.h.b16 %v1898
    %v1969 = vunpack.c.l.b16 %v1899
    %v1970 = vunpack.c.h.b16 %v1899
    %v1971 = vunpack.c.l.b16 %v1900
    %v1972 = vunpack.c.h.b16 %v1900
    %v1973 = vunpack.c.l.b16 %v1901
    %v1974 = vunpack.c.h.b16 %v1901
    %v1975 = vunpack.c.l.b16 %v1902
    %v1976 = vunpack.c.h.b16 %v1902
    %v1977 = vunpack.c.l.b16 %v1903
    %v1978 = vunpack.c.h.b16 %v1903
    %v1979 = vunpack.c.l.b16 %v1904
    %v1980 = vunpack.c.h.b16 %v1904
    %v1981 = vunpack.c.l.b16 %v1905
    %v1982 = vunpack.c.h.b16 %v1905
    %v1983 = vunpack.c.l.b16 %v1906
    %v1984 = vunpack.c.h.b16 %v1906
    %v1985 = vunpack.c.l.b16 %v1907
    %v1986 = vunpack.c.h.b16 %v1907
    %v1987 = vunpack.c.l.b16 %v1908
    %v1988 = vunpack.c.h.b16 %v1908
    %v1989 = vunpack.c.l.b16 %v1909
    %v1990 = vunpack.c.h.b16 %v1909
    %v1991 = vunpack.c.l.b16 %v1910
    %v1992 = vunpack.c.h.b16 %v1910
    %v1993 = vunpack.c.l.b16 %v1911
    %v1994 = vunpack.c.h.b16 %v1911
    %v1995 = vunpack.c.l.b16 %v1912
    %v1996 = vunpack.c.h.b16 %v1912
    %v1997 = vunpack.c.l.b16 %v1913
    %v1998 = vunpack.c.h.b16 %v1913
    %v1999 = vunpack.c.l.b16 %v1914
    %v2000 = vunpack.c.h.b16 %v1914
    %v2001 = vunpack.c.l.b16 %v1915
    %v2002 = vunpack.c.h.b16 %v1915
    %v2003 = vunpack.c.l.b16 %v1916
    %v2004 = vunpack.c.h.b16 %v1916
    %v2005 = vunpack.c.l.b16 %v1917
    %v2006 = vunpack.c.h.b16 %v1917
    %v2007 = vunpack.c.l.b16 %v1918
    %v2008 = vunpack.c.h.b16 %v1918
    %v2009 = vunpack.c.l.b16 %v1919
    %v2010 = vunpack.c.h.b16 %v1919
    %v2011 = vunpack.c.l.b16 %v1920
    %v2012 = vunpack.c.h.b16 %v1920
    %v2013 = vunpack.c.l.b16 %v1921
    %v2014 = vunpack.c.h.b16 %v1921
    %v2015 = vunpack.c.l.b16 %v1922
    %v2016 = vunpack.c.h.b16 %v1922
    %v2017 = vunpack.c.l.b16 %v1923
    %v2018 = vunpack.c.h.b16 %v1923
    %v2019 = vunpack.c.l.b16 %v1924
    %v2020 = vunpack.c.h.b16 %v1924
    %v2021 = vpack.c.b16 %v1959, %v1957
    %v2022 = vpack.c.b16 %v1960, %v1958
    %v2023 = vpack.c.b16 %v1963, %v1961
    %v2024 = vpack.c.b16 %v1964, %v1962
    %v2025 = vpack.c.b16 %v1967, %v1965
    %v2026 = vpack.c.b16 %v1968, %v1966
    %v2027 = vpack.c.b16 %v1971, %v1969
    %v2028 = vpack.c.b16 %v1972, %v1970
    %v2029 = vpack.c.b16 %v1975, %v1973
    %v2030 = vpack.c.b16 %v1976, %v1974
    %v2031 = vpack.c.b16 %v1979, %v1977
    %v2032 = vpack.c.b16 %v1980, %v1978
    %v2033 = vpack.c.b16 %v1983, %v1981
    %v2034 = vpack.c.b16 %v1984, %v1982
    %v2035 = vpack.c.b16 %v1987, %v1985
    %v2036 = vpack.c.b16 %v1988, %v1986
    %v2037 = vpack.c.b16 %v1991, %v1989
    %v2038 = vpack.c.b16 %v1992, %v1990
    %v2039 = vpack.c.b16 %v1995, %v1993
    %v2040 = vpack.c.b16 %v1996, %v1994
    %v2041 = vpack.c.b16 %v1999, %v1997
    %v2042 = vpack.c.b16 %v2000, %v1998
    %v2043 = vpack.c.b16 %v2003, %v2001
    %v2044 = vpack.c.b16 %v2004, %v2002
    %v2045 = vpack.c.b16 %v2007, %v2005
    %v2046 = vpack.c.b16 %v2008, %v2006
    %v2047 = vpack.c.b16 %v2011, %v2009
    %v2048 = vpack.c.b16 %v2012, %v2010
    %v2049 = vpack.c.b16 %v2015, %v2013
    %v2050 = vpack.c.b16 %v2016, %v2014
    %v2051 = vpack.c.b16 %v2019, %v2017
    %v2052 = vpack.c.b16 %v2020, %v2018
    %2085 = vmatprep.subr.bf16.mxu0 %v2022
    %2086 = vmatpush1.bf16.msra.mxu0 %v2021
    %2087 = vmatprep.subr.bf16.mxu0 %v2024
    %2088 = vmatpush1.bf16.msra.mxu0 %v2023
    %2089 = vmatprep.subr.bf16.mxu0 %v2026
    %2090 = vmatpush1.bf16.msra.mxu0 %v2025
    %2091 = vmatprep.subr.bf16.mxu0 %v2028
    %2092 = vmatpush1.bf16.msra.mxu0 %v2027
    %2093 = vmatprep.subr.bf16.mxu0 %v2030
    %2094 = vmatpush1.bf16.msra.mxu0 %v2029
    %2095 = vmatprep.subr.bf16.mxu0 %v2032
    %2096 = vmatpush1.bf16.msra.mxu0 %v2031
    %2097 = vmatprep.subr.bf16.mxu0 %v2034
    %2098 = vmatpush1.bf16.msra.mxu0 %v2033
    %2099 = vmatprep.subr.bf16.mxu0 %v2036
    %2100 = vmatpush1.bf16.msra.mxu0 %v2035
    %2101 = vmatprep.subr.bf16.mxu0 %v2038
    %2102 = vmatpush1.bf16.msra.mxu0 %v2037
    %2103 = vmatprep.subr.bf16.mxu0 %v2040
    %2104 = vmatpush1.bf16.msra.mxu0 %v2039
    %2105 = vmatprep.subr.bf16.mxu0 %v2042
    %2106 = vmatpush1.bf16.msra.mxu0 %v2041
    %2107 = vmatprep.subr.bf16.mxu0 %v2044
    %2108 = vmatpush1.bf16.msra.mxu0 %v2043
    %2109 = vmatprep.subr.bf16.mxu0 %v2046
    %2110 = vmatpush1.bf16.msra.mxu0 %v2045
    %2111 = vmatprep.subr.bf16.mxu0 %v2048
    %2112 = vmatpush1.bf16.msra.mxu0 %v2047
    %2113 = vmatprep.subr.bf16.mxu0 %v2050
    %2114 = vmatpush1.bf16.msra.mxu0 %v2049
    %2115 = vmatprep.subr.bf16.mxu0 %v2052
    %2116 = vmatpush1.bf16.msra.mxu0 %v2051
    %2117 = vmatprep.mubr.bf16.mxu0 %v260
    %2118 = vmatmul.mubr.bf16.gmra.mrb[0].mxu0 %v259
    %v2119 = vpop.f32.mrb[0].mxu0
    %v2120 = vadd.f32 0.0, %v2119
    %v2121 = vpop.f32.mrb[0].mxu0
    %v2122 = vadd.f32 0.0, %v2121
    %v2123 = vpop.f32.mrb[0].mxu0
    %v2124 = vadd.f32 0.0, %v2123
    %v2125 = vpop.f32.mrb[0].mxu0
    %v2126 = vadd.f32 0.0, %v2125
    %2127 = vmatprep.mubr.bf16.mxu0 %v262
    %2128 = vmatmul.mubr.bf16.gmra.mrb[0].mxu0 %v261
    %v2129 = vpop.f32.mrb[0].mxu0
    %v2130 = vadd.f32 0.0, %v2129
    %v2131 = vpop.f32.mrb[0].mxu0
    %v2132 = vadd.f32 0.0, %v2131
    %v2133 = vpop.f32.mrb[0].mxu0
    %v2134 = vadd.f32 0.0, %v2133
    %v2135 = vpop.f32.mrb[0].mxu0
    %v2136 = vadd.f32 0.0, %v2135
    %2137 = vdwg.mxu0
    %v2138 = vadd.f32 %v1884, %v2120
    %v2139 = vadd.f32 %v1885, %v2122
    %v2140 = vadd.f32 %v1886, %v2124
    %v2141 = vadd.f32 %v1887, %v2126
    %v2142 = vadd.f32 %v1888, %v2130
    %v2143 = vadd.f32 %v1889, %v2132
    %v2144 = vadd.f32 %v1890, %v2134
    %v2145 = vadd.f32 %v1891, %v2136
    %s2146 = scalar_lea.vmem [#allocation7], 1792
    %v2147 = vld [vmem:[%s2146] sm:$0xff]
    %v2148 = vld [vmem:[%s2146 + $0x8] sm:$0xff]
    %v2149 = vld [vmem:[%s2146 + $0x10] sm:$0xff]
    %v2150 = vld [vmem:[%s2146 + $0x18] sm:$0xff]
    %v2151 = vld [vmem:[%s2146 + $0x20] sm:$0xff]
    %v2152 = vld [vmem:[%s2146 + $0x28] sm:$0xff]
    %v2153 = vld [vmem:[%s2146 + $0x30] sm:$0xff]
    %v2154 = vld [vmem:[%s2146 + $0x38] sm:$0xff]
    %v2155 = vld [vmem:[%s2146 + $0x40] sm:$0xff]
    %v2156 = vld [vmem:[%s2146 + $0x48] sm:$0xff]
    %v2157 = vld [vmem:[%s2146 + $0x50] sm:$0xff]
    %v2158 = vld [vmem:[%s2146 + $0x58] sm:$0xff]
    %v2159 = vld [vmem:[%s2146 + $0x60] sm:$0xff]
    %v2160 = vld [vmem:[%s2146 + $0x68] sm:$0xff]
    %v2161 = vld [vmem:[%s2146 + $0x70] sm:$0xff]
    %v2162 = vld [vmem:[%s2146 + $0x78] sm:$0xff]
    %v2163 = vld [vmem:[%s2146 + $0x80] sm:$0xff]
    %v2164 = vld [vmem:[%s2146 + $0x88] sm:$0xff]
    %v2165 = vld [vmem:[%s2146 + $0x90] sm:$0xff]
    %v2166 = vld [vmem:[%s2146 + $0x98] sm:$0xff]
    %v2167 = vld [vmem:[%s2146 + $0xa0] sm:$0xff]
    %v2168 = vld [vmem:[%s2146 + $0xa8] sm:$0xff]
    %v2169 = vld [vmem:[%s2146 + $0xb0] sm:$0xff]
    %v2170 = vld [vmem:[%s2146 + $0xb8] sm:$0xff]
    %v2171 = vld [vmem:[%s2146 + $0xc0] sm:$0xff]
    %v2172 = vld [vmem:[%s2146 + $0xc8] sm:$0xff]
    %v2173 = vld [vmem:[%s2146 + $0xd0] sm:$0xff]
    %v2174 = vld [vmem:[%s2146 + $0xd8] sm:$0xff]
    %v2175 = vld [vmem:[%s2146 + $0xe0] sm:$0xff]
    %v2176 = vld [vmem:[%s2146 + $0xe8] sm:$0xff]
    %v2177 = vld [vmem:[%s2146 + $0xf0] sm:$0xff]
    %v2178 = vld [vmem:[%s2146 + $0xf8] sm:$0xff]
    %v2211 = vunpack.c.l.b16 %v2147
    %v2212 = vunpack.c.h.b16 %v2147
    %v2213 = vunpack.c.l.b16 %v2148
    %v2214 = vunpack.c.h.b16 %v2148
    %v2215 = vunpack.c.l.b16 %v2149
    %v2216 = vunpack.c.h.b16 %v2149
    %v2217 = vunpack.c.l.b16 %v2150
    %v2218 = vunpack.c.h.b16 %v2150
    %v2219 = vunpack.c.l.b16 %v2151
    %v2220 = vunpack.c.h.b16 %v2151
    %v2221 = vunpack.c.l.b16 %v2152
    %v2222 = vunpack.c.h.b16 %v2152
    %v2223 = vunpack.c.l.b16 %v2153
    %v2224 = vunpack.c.h.b16 %v2153
    %v2225 = vunpack.c.l.b16 %v2154
    %v2226 = vunpack.c.h.b16 %v2154
    %v2227 = vunpack.c.l.b16 %v2155
    %v2228 = vunpack.c.h.b16 %v2155
    %v2229 = vunpack.c.l.b16 %v2156
    %v2230 = vunpack.c.h.b16 %v2156
    %v2231 = vunpack.c.l.b16 %v2157
    %v2232 = vunpack.c.h.b16 %v2157
    %v2233 = vunpack.c.l.b16 %v2158
    %v2234 = vunpack.c.h.b16 %v2158
    %v2235 = vunpack.c.l.b16 %v2159
    %v2236 = vunpack.c.h.b16 %v2159
    %v2237 = vunpack.c.l.b16 %v2160
    %v2238 = vunpack.c.h.b16 %v2160
    %v2239 = vunpack.c.l.b16 %v2161
    %v2240 = vunpack.c.h.b16 %v2161
    %v2241 = vunpack.c.l.b16 %v2162
    %v2242 = vunpack.c.h.b16 %v2162
    %v2243 = vunpack.c.l.b16 %v2163
    %v2244 = vunpack.c.h.b16 %v2163
    %v2245 = vunpack.c.l.b16 %v2164
    %v2246 = vunpack.c.h.b16 %v2164
    %v2247 = vunpack.c.l.b16 %v2165
    %v2248 = vunpack.c.h.b16 %v2165
    %v2249 = vunpack.c.l.b16 %v2166
    %v2250 = vunpack.c.h.b16 %v2166
    %v2251 = vunpack.c.l.b16 %v2167
    %v2252 = vunpack.c.h.b16 %v2167
    %v2253 = vunpack.c.l.b16 %v2168
    %v2254 = vunpack.c.h.b16 %v2168
    %v2255 = vunpack.c.l.b16 %v2169
    %v2256 = vunpack.c.h.b16 %v2169
    %v2257 = vunpack.c.l.b16 %v2170
    %v2258 = vunpack.c.h.b16 %v2170
    %v2259 = vunpack.c.l.b16 %v2171
    %v2260 = vunpack.c.h.b16 %v2171
    %v2261 = vunpack.c.l.b16 %v2172
    %v2262 = vunpack.c.h.b16 %v2172
    %v2263 = vunpack.c.l.b16 %v2173
    %v2264 = vunpack.c.h.b16 %v2173
    %v2265 = vunpack.c.l.b16 %v2174
    %v2266 = vunpack.c.h.b16 %v2174
    %v2267 = vunpack.c.l.b16 %v2175
    %v2268 = vunpack.c.h.b16 %v2175
    %v2269 = vunpack.c.l.b16 %v2176
    %v2270 = vunpack.c.h.b16 %v2176
    %v2271 = vunpack.c.l.b16 %v2177
    %v2272 = vunpack.c.h.b16 %v2177
    %v2273 = vunpack.c.l.b16 %v2178
    %v2274 = vunpack.c.h.b16 %v2178
    %v2275 = vpack.c.b16 %v2213, %v2211
    %v2276 = vpack.c.b16 %v2214, %v2212
    %v2277 = vpack.c.b16 %v2217, %v2215
    %v2278 = vpack.c.b16 %v2218, %v2216
    %v2279 = vpack.c.b16 %v2221, %v2219
    %v2280 = vpack.c.b16 %v2222, %v2220
    %v2281 = vpack.c.b16 %v2225, %v2223
    %v2282 = vpack.c.b16 %v2226, %v2224
    %v2283 = vpack.c.b16 %v2229, %v2227
    %v2284 = vpack.c.b16 %v2230, %v2228
    %v2285 = vpack.c.b16 %v2233, %v2231
    %v2286 = vpack.c.b16 %v2234, %v2232
    %v2287 = vpack.c.b16 %v2237, %v2235
    %v2288 = vpack.c.b16 %v2238, %v2236
    %v2289 = vpack.c.b16 %v2241, %v2239
    %v2290 = vpack.c.b16 %v2242, %v2240
    %v2291 = vpack.c.b16 %v2245, %v2243
    %v2292 = vpack.c.b16 %v2246, %v2244
    %v2293 = vpack.c.b16 %v2249, %v2247
    %v2294 = vpack.c.b16 %v2250, %v2248
    %v2295 = vpack.c.b16 %v2253, %v2251
    %v2296 = vpack.c.b16 %v2254, %v2252
    %v2297 = vpack.c.b16 %v2257, %v2255
    %v2298 = vpack.c.b16 %v2258, %v2256
    %v2299 = vpack.c.b16 %v2261, %v2259
    %v2300 = vpack.c.b16 %v2262, %v2260
    %v2301 = vpack.c.b16 %v2265, %v2263
    %v2302 = vpack.c.b16 %v2266, %v2264
    %v2303 = vpack.c.b16 %v2269, %v2267
    %v2304 = vpack.c.b16 %v2270, %v2268
    %v2305 = vpack.c.b16 %v2273, %v2271
    %v2306 = vpack.c.b16 %v2274, %v2272
    %2339 = vmatprep.subr.bf16.mxu0 %v2276
    %2340 = vmatpush1.bf16.msra.mxu0 %v2275
    %2341 = vmatprep.subr.bf16.mxu0 %v2278
    %2342 = vmatpush1.bf16.msra.mxu0 %v2277
    %2343 = vmatprep.subr.bf16.mxu0 %v2280
    %2344 = vmatpush1.bf16.msra.mxu0 %v2279
    %2345 = vmatprep.subr.bf16.mxu0 %v2282
    %2346 = vmatpush1.bf16.msra.mxu0 %v2281
    %2347 = vmatprep.subr.bf16.mxu0 %v2284
    %2348 = vmatpush1.bf16.msra.mxu0 %v2283
    %2349 = vmatprep.subr.bf16.mxu0 %v2286
    %2350 = vmatpush1.bf16.msra.mxu0 %v2285
    %2351 = vmatprep.subr.bf16.mxu0 %v2288
    %2352 = vmatpush1.bf16.msra.mxu0 %v2287
    %2353 = vmatprep.subr.bf16.mxu0 %v2290
    %2354 = vmatpush1.bf16.msra.mxu0 %v2289
    %2355 = vmatprep.subr.bf16.mxu0 %v2292
    %2356 = vmatpush1.bf16.msra.mxu0 %v2291
    %2357 = vmatprep.subr.bf16.mxu0 %v2294
    %2358 = vmatpush1.bf16.msra.mxu0 %v2293
    %2359 = vmatprep.subr.bf16.mxu0 %v2296
    %2360 = vmatpush1.bf16.msra.mxu0 %v2295
    %2361 = vmatprep.subr.bf16.mxu0 %v2298
    %2362 = vmatpush1.bf16.msra.mxu0 %v2297
    %2363 = vmatprep.subr.bf16.mxu0 %v2300
    %2364 = vmatpush1.bf16.msra.mxu0 %v2299
    %2365 = vmatprep.subr.bf16.mxu0 %v2302
    %2366 = vmatpush1.bf16.msra.mxu0 %v2301
    %2367 = vmatprep.subr.bf16.mxu0 %v2304
    %2368 = vmatpush1.bf16.msra.mxu0 %v2303
    %2369 = vmatprep.subr.bf16.mxu0 %v2306
    %2370 = vmatpush1.bf16.msra.mxu0 %v2305
    %2371 = vmatprep.mubr.bf16.mxu0 %v142
    %2372 = vmatmul.mubr.bf16.gmra.mrb[0].mxu0 %v141
    %v2373 = vpop.f32.mrb[0].mxu0
    %v2374 = vadd.f32 0.0, %v2373
    %v2375 = vpop.f32.mrb[0].mxu0
    %v2376 = vadd.f32 0.0, %v2375
    %v2377 = vpop.f32.mrb[0].mxu0
    %v2378 = vadd.f32 0.0, %v2377
    %v2379 = vpop.f32.mrb[0].mxu0
    %v2380 = vadd.f32 0.0, %v2379
    %2381 = vmatprep.mubr.bf16.mxu0 %v159
    %2382 = vmatmul.mubr.bf16.gmra.mrb[0].mxu0 %v156
    %v2383 = vpop.f32.mrb[0].mxu0
    %v2384 = vadd.f32 0.0, %v2383
    %v2385 = vpop.f32.mrb[0].mxu0
    %v2386 = vadd.f32 0.0, %v2385
    %v2387 = vpop.f32.mrb[0].mxu0
    %v2388 = vadd.f32 0.0, %v2387
    %v2389 = vpop.f32.mrb[0].mxu0
    %v2390 = vadd.f32 0.0, %v2389
    %2391 = vdwg.mxu0
    %v2392 = vadd.f32 %v2138, %v2374
    %v2393 = vadd.f32 %v2139, %v2376
    %v2394 = vadd.f32 %v2140, %v2378
    %v2395 = vadd.f32 %v2141, %v2380
    %v2396 = vadd.f32 %v2142, %v2384
    %v2397 = vadd.f32 %v2143, %v2386
    %v2398 = vadd.f32 %v2144, %v2388
    %v2399 = vadd.f32 %v2145, %v2390
    %s2400 = scalar_lea.vmem [#allocation7], 2048
    %v2401 = vld [vmem:[%s2400] sm:$0xff]
    %v2402 = vld [vmem:[%s2400 + $0x8] sm:$0xff]
    %v2403 = vld [vmem:[%s2400 + $0x10] sm:$0xff]
    %v2404 = vld [vmem:[%s2400 + $0x18] sm:$0xff]
    %v2405 = vld [vmem:[%s2400 + $0x20] sm:$0xff]
    %v2406 = vld [vmem:[%s2400 + $0x28] sm:$0xff]
    %v2407 = vld [vmem:[%s2400 + $0x30] sm:$0xff]
    %v2408 = vld [vmem:[%s2400 + $0x38] sm:$0xff]
    %v2409 = vld [vmem:[%s2400 + $0x40] sm:$0xff]
    %v2410 = vld [vmem:[%s2400 + $0x48] sm:$0xff]
    %v2411 = vld [vmem:[%s2400 + $0x50] sm:$0xff]
    %v2412 = vld [vmem:[%s2400 + $0x58] sm:$0xff]
    %v2413 = vld [vmem:[%s2400 + $0x60] sm:$0xff]
    %v2414 = vld [vmem:[%s2400 + $0x68] sm:$0xff]
    %v2415 = vld [vmem:[%s2400 + $0x70] sm:$0xff]
    %v2416 = vld [vmem:[%s2400 + $0x78] sm:$0xff]
    %v2417 = vld [vmem:[%s2400 + $0x80] sm:$0xff]
    %v2418 = vld [vmem:[%s2400 + $0x88] sm:$0xff]
    %v2419 = vld [vmem:[%s2400 + $0x90] sm:$0xff]
    %v2420 = vld [vmem:[%s2400 + $0x98] sm:$0xff]
    %v2421 = vld [vmem:[%s2400 + $0xa0] sm:$0xff]
    %v2422 = vld [vmem:[%s2400 + $0xa8] sm:$0xff]
    %v2423 = vld [vmem:[%s2400 + $0xb0] sm:$0xff]
    %v2424 = vld [vmem:[%s2400 + $0xb8] sm:$0xff]
    %v2425 = vld [vmem:[%s2400 + $0xc0] sm:$0xff]
    %v2426 = vld [vmem:[%s2400 + $0xc8] sm:$0xff]
    %v2427 = vld [vmem:[%s2400 + $0xd0] sm:$0xff]
    %v2428 = vld [vmem:[%s2400 + $0xd8] sm:$0xff]
    %v2429 = vld [vmem:[%s2400 + $0xe0] sm:$0xff]
    %v2430 = vld [vmem:[%s2400 + $0xe8] sm:$0xff]
    %v2431 = vld [vmem:[%s2400 + $0xf0] sm:$0xff]
    %v2432 = vld [vmem:[%s2400 + $0xf8] sm:$0xff]
    %v2465 = vunpack.c.l.b16 %v2401
    %v2466 = vunpack.c.h.b16 %v2401
    %v2467 = vunpack.c.l.b16 %v2402
    %v2468 = vunpack.c.h.b16 %v2402
    %v2469 = vunpack.c.l.b16 %v2403
    %v2470 = vunpack.c.h.b16 %v2403
    %v2471 = vunpack.c.l.b16 %v2404
    %v2472 = vunpack.c.h.b16 %v2404
    %v2473 = vunpack.c.l.b16 %v2405
    %v2474 = vunpack.c.h.b16 %v2405
    %v2475 = vunpack.c.l.b16 %v2406
    %v2476 = vunpack.c.h.b16 %v2406
    %v2477 = vunpack.c.l.b16 %v2407
    %v2478 = vunpack.c.h.b16 %v2407
    %v2479 = vunpack.c.l.b16 %v2408
    %v2480 = vunpack.c.h.b16 %v2408
    %v2481 = vunpack.c.l.b16 %v2409
    %v2482 = vunpack.c.h.b16 %v2409
    %v2483 = vunpack.c.l.b16 %v2410
    %v2484 = vunpack.c.h.b16 %v2410
    %v2485 = vunpack.c.l.b16 %v2411
    %v2486 = vunpack.c.h.b16 %v2411
    %v2487 = vunpack.c.l.b16 %v2412
    %v2488 = vunpack.c.h.b16 %v2412
    %v2489 = vunpack.c.l.b16 %v2413
    %v2490 = vunpack.c.h.b16 %v2413
    %v2491 = vunpack.c.l.b16 %v2414
    %v2492 = vunpack.c.h.b16 %v2414
    %v2493 = vunpack.c.l.b16 %v2415
    %v2494 = vunpack.c.h.b16 %v2415
    %v2495 = vunpack.c.l.b16 %v2416
    %v2496 = vunpack.c.h.b16 %v2416
    %v2497 = vunpack.c.l.b16 %v2417
    %v2498 = vunpack.c.h.b16 %v2417
    %v2499 = vunpack.c.l.b16 %v2418
    %v2500 = vunpack.c.h.b16 %v2418
    %v2501 = vunpack.c.l.b16 %v2419
    %v2502 = vunpack.c.h.b16 %v2419
    %v2503 = vunpack.c.l.b16 %v2420
    %v2504 = vunpack.c.h.b16 %v2420
    %v2505 = vunpack.c.l.b16 %v2421
    %v2506 = vunpack.c.h.b16 %v2421
    %v2507 = vunpack.c.l.b16 %v2422
    %v2508 = vunpack.c.h.b16 %v2422
    %v2509 = vunpack.c.l.b16 %v2423
    %v2510 = vunpack.c.h.b16 %v2423
    %v2511 = vunpack.c.l.b16 %v2424
    %v2512 = vunpack.c.h.b16 %v2424
    %v2513 = vunpack.c.l.b16 %v2425
    %v2514 = vunpack.c.h.b16 %v2425
    %v2515 = vunpack.c.l.b16 %v2426
    %v2516 = vunpack.c.h.b16 %v2426
    %v2517 = vunpack.c.l.b16 %v2427
    %v2518 = vunpack.c.h.b16 %v2427
    %v2519 = vunpack.c.l.b16 %v2428
    %v2520 = vunpack.c.h.b16 %v2428
    %v2521 = vunpack.c.l.b16 %v2429
    %v2522 = vunpack.c.h.b16 %v2429
    %v2523 = vunpack.c.l.b16 %v2430
    %v2524 = vunpack.c.h.b16 %v2430
    %v2525 = vunpack.c.l.b16 %v2431
    %v2526 = vunpack.c.h.b16 %v2431
    %v2527 = vunpack.c.l.b16 %v2432
    %v2528 = vunpack.c.h.b16 %v2432
    %v2529 = vpack.c.b16 %v2467, %v2465
    %v2530 = vpack.c.b16 %v2468, %v2466
    %v2531 = vpack.c.b16 %v2471, %v2469
    %v2532 = vpack.c.b16 %v2472, %v2470
    %v2533 = vpack.c.b16 %v2475, %v2473
    %v2534 = vpack.c.b16 %v2476, %v2474
    %v2535 = vpack.c.b16 %v2479, %v2477
    %v2536 = vpack.c.b16 %v2480, %v2478
    %v2537 = vpack.c.b16 %v2483, %v2481
    %v2538 = vpack.c.b16 %v2484, %v2482
    %v2539 = vpack.c.b16 %v2487, %v2485
    %v2540 = vpack.c.b16 %v2488, %v2486
    %v2541 = vpack.c.b16 %v2491, %v2489
    %v2542 = vpack.c.b16 %v2492, %v2490
    %v2543 = vpack.c.b16 %v2495, %v2493
    %v2544 = vpack.c.b16 %v2496, %v2494
    %v2545 = vpack.c.b16 %v2499, %v2497
    %v2546 = vpack.c.b16 %v2500, %v2498
    %v2547 = vpack.c.b16 %v2503, %v2501
    %v2548 = vpack.c.b16 %v2504, %v2502
    %v2549 = vpack.c.b16 %v2507, %v2505
    %v2550 = vpack.c.b16 %v2508, %v2506
    %v2551 = vpack.c.b16 %v2511, %v2509
    %v2552 = vpack.c.b16 %v2512, %v2510
    %v2553 = vpack.c.b16 %v2515, %v2513
    %v2554 = vpack.c.b16 %v2516, %v2514
    %v2555 = vpack.c.b16 %v2519, %v2517
    %v2556 = vpack.c.b16 %v2520, %v2518
    %v2557 = vpack.c.b16 %v2523, %v2521
    %v2558 = vpack.c.b16 %v2524, %v2522
    %v2559 = vpack.c.b16 %v2527, %v2525
    %v2560 = vpack.c.b16 %v2528, %v2526
    %2593 = vmatprep.subr.bf16.mxu0 %v2530
    %2594 = vmatpush1.bf16.msra.mxu0 %v2529
    %2595 = vmatprep.subr.bf16.mxu0 %v2532
    %2596 = vmatpush1.bf16.msra.mxu0 %v2531
    %2597 = vmatprep.subr.bf16.mxu0 %v2534
    %2598 = vmatpush1.bf16.msra.mxu0 %v2533
    %2599 = vmatprep.subr.bf16.mxu0 %v2536
    %2600 = vmatpush1.bf16.msra.mxu0 %v2535
    %2601 = vmatprep.subr.bf16.mxu0 %v2538
    %2602 = vmatpush1.bf16.msra.mxu0 %v2537
    %2603 = vmatprep.subr.bf16.mxu0 %v2540
    %2604 = vmatpush1.bf16.msra.mxu0 %v2539
    %2605 = vmatprep.subr.bf16.mxu0 %v2542
    %2606 = vmatpush1.bf16.msra.mxu0 %v2541
    %2607 = vmatprep.subr.bf16.mxu0 %v2544
    %2608 = vmatpush1.bf16.msra.mxu0 %v2543
    %2609 = vmatprep.subr.bf16.mxu0 %v2546
    %2610 = vmatpush1.bf16.msra.mxu0 %v2545
    %2611 = vmatprep.subr.bf16.mxu0 %v2548
    %2612 = vmatpush1.bf16.msra.mxu0 %v2547
    %2613 = vmatprep.subr.bf16.mxu0 %v2550
    %2614 = vmatpush1.bf16.msra.mxu0 %v2549
    %2615 = vmatprep.subr.bf16.mxu0 %v2552
    %2616 = vmatpush1.bf16.msra.mxu0 %v2551
    %2617 = vmatprep.subr.bf16.mxu0 %v2554
    %2618 = vmatpush1.bf16.msra.mxu0 %v2553
    %2619 = vmatprep.subr.bf16.mxu0 %v2556
    %2620 = vmatpush1.bf16.msra.mxu0 %v2555
    %2621 = vmatprep.subr.bf16.mxu0 %v2558
    %2622 = vmatpush1.bf16.msra.mxu0 %v2557
    %2623 = vmatprep.subr.bf16.mxu0 %v2560
    %2624 = vmatpush1.bf16.msra.mxu0 %v2559
    %2625 = vmatprep.mubr.bf16.mxu0 %v323
    %2626 = vmatmul.mubr.bf16.gmra.mrb[0].mxu0 %v322
    %v2627 = vpop.f32.mrb[0].mxu0
    %v2628 = vadd.f32 0.0, %v2627
    %v2629 = vpop.f32.mrb[0].mxu0
    %v2630 = vadd.f32 0.0, %v2629
    %v2631 = vpop.f32.mrb[0].mxu0
    %v2632 = vadd.f32 0.0, %v2631
    %v2633 = vpop.f32.mrb[0].mxu0
    %v2634 = vadd.f32 0.0, %v2633
    %2635 = vmatprep.mubr.bf16.mxu0 %v325
    %2636 = vmatmul.mubr.bf16.gmra.mrb[0].mxu0 %v324
    %v2637 = vpop.f32.mrb[0].mxu0
    %v2638 = vadd.f32 0.0, %v2637
    %v2639 = vpop.f32.mrb[0].mxu0
    %v2640 = vadd.f32 0.0, %v2639
    %v2641 = vpop.f32.mrb[0].mxu0
    %v2642 = vadd.f32 0.0, %v2641
    %v2643 = vpop.f32.mrb[0].mxu0
    %v2644 = vadd.f32 0.0, %v2643
    %2645 = vdwg.mxu0
    %v2646 = vadd.f32 %v2392, %v2628
    %v2647 = vadd.f32 %v2393, %v2630
    %v2648 = vadd.f32 %v2394, %v2632
    %v2649 = vadd.f32 %v2395, %v2634
    %v2650 = vadd.f32 %v2396, %v2638
    %v2651 = vadd.f32 %v2397, %v2640
    %v2652 = vadd.f32 %v2398, %v2642
    %v2653 = vadd.f32 %v2399, %v2644
    %v2654 = vld [vmem:[#allocation8] sm:$0x3]
    %v2656 = vlaneseq
    %v2657 = vshrl.u32 %v2656, 7
    %v2658 = vsub.s32 0, %v2657
    %v2659 = vrot.slane %v2654, %v2658
    %v2660 = vlaneseq
    %v2661 = vshrl.u32 %v2660, 7
    %v2662 = vsub.s32 1, %v2661
    %v2663 = vrot.slane %v2654, %v2662
    %v2666 = vadd.f32 %v2646, %v2659
    %v2667 = vadd.f32 %v2647, %v2663
    %v2668 = vadd.f32 %v2648, %v2659
    %v2669 = vadd.f32 %v2649, %v2663
    %v2670 = vadd.f32 %v2650, %v2659
    %v2671 = vadd.f32 %v2651, %v2663
    %v2672 = vadd.f32 %v2652, %v2659
    %v2673 = vadd.f32 %v2653, %v2663
    %v2674 = vmax.f32 %v2666, 0.0
    %v2675 = vmax.f32 %v2667, 0.0
    %v2676 = vmax.f32 %v2668, 0.0
    %v2677 = vmax.f32 %v2669, 0.0
    %v2678 = vmax.f32 %v2670, 0.0
    %v2679 = vmax.f32 %v2671, 0.0
    %v2680 = vmax.f32 %v2672, 0.0
    %v2681 = vmax.f32 %v2673, 0.0
    %v2682 = vadd.f32 %v2674, %v2676
    %v2683 = vadd.f32 %v2682, %v2678
    %v2684 = vadd.f32 %v2683, %v2680
    %v2685 = vrot.slane %v2684, 4
    %v2686 = vadd.f32 %v2684, %v2685
    %v2687 = vrot.slane %v2686, 2
    %v2688 = vadd.f32 %v2686, %v2687
    %v2689 = vrot.slane %v2688, 1
    %v2690 = vadd.f32 %v2688, %v2689
    %v2691 = vadd.f32 %v2675, %v2677
    %v2692 = vadd.f32 %v2691, %v2679
    %v2693 = vadd.f32 %v2692, %v2681
    %v2694 = vrot.slane %v2693, 4
    %v2695 = vadd.f32 %v2693, %v2694
    %v2696 = vrot.slane %v2695, 2
    %v2697 = vadd.f32 %v2695, %v2696
    %v2698 = vrot.slane %v2697, 1
    %v2699 = vadd.f32 %v2697, %v2698
    %v2700 = vmul.f32 %v2674, %v2674
    %v2701 = vmul.f32 %v2675, %v2675
    %v2702 = vmul.f32 %v2676, %v2676
    %v2703 = vmul.f32 %v2677, %v2677
    %v2704 = vmul.f32 %v2678, %v2678
    %v2705 = vmul.f32 %v2679, %v2679
    %v2706 = vmul.f32 %v2680, %v2680
    %v2707 = vmul.f32 %v2681, %v2681
    %v2708 = vadd.f32 %v2700, %v2702
    %v2709 = vadd.f32 %v2708, %v2704
    %v2710 = vadd.f32 %v2709, %v2706
    %v2711 = vrot.slane %v2710, 4
    %v2712 = vadd.f32 %v2710, %v2711
    %v2713 = vrot.slane %v2712, 2
    %v2714 = vadd.f32 %v2712, %v2713
    %v2715 = vrot.slane %v2714, 1
    %v2716 = vadd.f32 %v2714, %v2715
    %v2717 = vadd.f32 %v2701, %v2703
    %v2718 = vadd.f32 %v2717, %v2705
    %v2719 = vadd.f32 %v2718, %v2707
    %v2720 = vrot.slane %v2719, 4
    %v2721 = vadd.f32 %v2719, %v2720
    %v2722 = vrot.slane %v2721, 2
    %v2723 = vadd.f32 %v2721, %v2722
    %v2724 = vrot.slane %v2723, 1
    %v2725 = vadd.f32 %v2723, %v2724
    %vm2726 = vcmask 1040384
    %v2727 = vsel %vm2726, %v2690, %v2716
    %v2728 = vsel %vm2726, %v2699, %v2725
    %v2731 = vcombine.low %v2727, %v2728
    %v2733 = vunpack.c.l.s4 1983009808
    %v2734 = vunpack.c.0.s8 %v2733
    %v2735 = vlaneseq
    %v2736 = vshrl.u32 %v2735, 7
    %v2737 = vsub.s32 %v2734, %v2736
    %v2738 = vrot.slane %v2731, %v2737
    %2740 = vst [vmem:[#allocation11] sm:$0xf] %v2738
    %v2741 = vpack.c.bf16 %v2674, %v2674
    %v2742 = vpack.c.bf16 %v2675, %v2675
    %v2743 = vpack.c.bf16 %v2676, %v2676
    %v2744 = vpack.c.bf16 %v2677, %v2677
    %v2745 = vpack.c.bf16 %v2678, %v2678
    %v2746 = vpack.c.bf16 %v2679, %v2679
    %v2747 = vpack.c.bf16 %v2680, %v2680
    %v2748 = vpack.c.bf16 %v2681, %v2681
    %v2757 = vunpack.c.l.b16 %v2741
    %v2758 = vunpack.c.l.b16 %v2742
    %v2759 = vunpack.c.l.b16 %v2743
    %v2760 = vunpack.c.l.b16 %v2744
    %v2761 = vunpack.c.l.b16 %v2745
    %v2762 = vunpack.c.l.b16 %v2746
    %v2763 = vunpack.c.l.b16 %v2747
    %v2764 = vunpack.c.l.b16 %v2748
    %v2765 = vpack.c.b16 %v2758, %v2757
    %v2766 = vpack.c.b16 %v2760, %v2759
    %v2767 = vpack.c.b16 %v2762, %v2761
    %v2768 = vpack.c.b16 %v2764, %v2763
    %2773 = vst [vmem:[#allocation10] sm:$0xff] %v2765
    %2774 = vst [vmem:[#allocation10 + $0x8] sm:$0xff] %v2766
    %2775 = vst [vmem:[#allocation10 + $0x10] sm:$0xff] %v2767
    %2776 = vst [vmem:[#allocation10 + $0x18] sm:$0xff] %v2768
    // Predicated region
    $region34: #{vae_encoder_forward.6} parent=1 // pred_check
      _
    $region35: #{vae_encoder_forward.6} parent=1 // pred_check_branch
      %2778 = sbr.rel (0) target = $region37
    $region36: #{vae_encoder_forward.6} parent=1 // pred_region
      %s2780 = ssub.s32 512, 512
      %2781 = vsyncadd [#allocation4], %s2780
      %s2782 = sshll.u32 [#allocation10], 4
      %s2783 = int_to_ptr.vmem [resolvable:$true] %s2782
      %2788 = dma.vmem_to_hbm [thread:$0]  %s2783, 512, %s4, [#allocation4], 128, 128, 8
    $region37: #{vae_encoder_forward.6} parent=1 // pred_fallthru
      _
    // Predicated region
    $region38: #{vae_encoder_forward.6} parent=1 // pred_check
      _
    $region39: #{vae_encoder_forward.6} parent=1 // pred_check_branch
      %2790 = sbr.rel (0) target = $region41
    $region40: #{vae_encoder_forward.6} parent=1 // pred_region
      %s2792 = ssub.s32 64, 64
      %2793 = vsyncadd [#allocation12], %s2792
      %s2795 = sshll.u32 [#allocation11], 4
      %s2796 = int_to_ptr.vmem [resolvable:$true] %s2795
      %2798 = dma.vmem_to_hbm [thread:$0]  %s2796, 64, %s5, [#allocation12]
    $region41: #{vae_encoder_forward.6} parent=1 // pred_fallthru
      _
    // Predicated region
    $region42: #{vae_encoder_forward.6} parent=1 // pred_check
      _
    $region43: #{vae_encoder_forward.6} parent=1 // pred_check_branch
      %2800 = sbr.rel (0) target = $region45
    $region44: #{vae_encoder_forward.6} parent=1 // pred_region
      %2801 = dma.done [#allocation4], 512
    $region45: #{vae_encoder_forward.6} parent=1 // pred_fallthru
      _
    // Predicated region
    $region46: #{vae_encoder_forward.6} parent=1 // pred_check
      _
    $region47: #{vae_encoder_forward.6} parent=1 // pred_check_branch
      %2803 = sbr.rel (0) target = $region49
    $region48: #{vae_encoder_forward.6} parent=1 // pred_region
      %2804 = dma.done [#allocation12], 64
    $region49: #{vae_encoder_forward.6} parent=1 // pred_fallthru
      _
    %2805 = vsyncpa [#allocation3], 1
    %2806 = vsyncpa [#allocation6], 1
    %2807 = vsyncpa [#allocation9], 1
    %2808 = vsyncpa [#allocation4], 1
    %2809 = vsyncpa [#allocation12], 1

// kernel: vae_encoder_forward.7
$region0: #{vae_encoder_forward.7}
  #allocation0 [shape = 'u32[]', space=smem, size = 0x4, offset = 0x4, fixed_abs, tag = 'smem constant byte address 0x4 - core index']
  #allocation1 [shape = 'u32[144,128]{1,0:T(1,128)}', space=vmem, size = 0x12000, scoped, tag = 'internal scratch']
  %s0 = inlined_call_operand.hbm [shape: bf16[4,8,256], index: 0, kind: input, shape index: {}]
  %s1 = inlined_call_operand.hbm [shape: bf16[256,256], index: 1, kind: input, shape index: {}]
  %s2 = inlined_call_operand.hbm [shape: f32[1,256], index: 2, kind: input, shape index: {}]
  %s3 = inlined_call_operand.hbm [shape: f32[4,8,128], index: 3, kind: input, shape index: {}]
  %s4 = inlined_call_operand.hbm [shape: f32[4,8,128], index: 4, kind: output, shape index: {}]
  %s5 = sld [smem:[#allocation0]]
  $region42: #{vae_encoder_forward.7} parent=0
    _
  %s7 = ssub.s32 1, %s5
  %s8 = scalar_select 0, %s7, %s5
  $region1: #{vae_encoder_forward.7} parent=0
    #allocation2 [shape = 'u8[16384]{0}', space=vmem, size = 0x4000, scoped, tag = 'input window, operand 0, single buffered']
    #allocation3 [shape = 's32[1]{0}', space=sflag, size = 0x4, scoped, tag = 'scoped memory for vae_encoder_forward.7']
    #allocation4 [shape = 's32[1]{0}', space=sflag, size = 0x4, scoped, tag = 'scoped memory for vae_encoder_forward.7']
    #allocation5 [shape = 'u8[131072]{0}', space=vmem, size = 0x20000, scoped, tag = 'input window, operand 1, single buffered']
    #allocation6 [shape = 's32[1]{0}', space=sflag, size = 0x4, scoped, tag = 'scoped memory for vae_encoder_forward.7']
    #allocation7 [shape = 'u8[1024]{0}', space=vmem, size = 0x400, scoped, tag = 'input window, operand 2, single buffered']
    #allocation8 [shape = 'u8[16384]{0}', space=vmem, size = 0x4000, scoped, tag = 'input window, operand 3, single buffered']
    #allocation9 [shape = 's32[1]{0}', space=sflag, size = 0x4, scoped, tag = 'scoped memory for vae_encoder_forward.7']
    #allocation10 [shape = 'u8[16384]{0}', space=vmem, size = 0x4000, scoped, tag = 'output window, operand 0, single buffered']
    %9 = vsyncpa [#allocation3], 0
    %10 = vsyncpa [#allocation6], 0
    %11 = vsyncpa [#allocation9], 0
    %12 = vsyncpa [#allocation4], 0
    // Predicated region
    $region2: #{vae_encoder_forward.7} parent=1 // pred_check
      _
    $region3: #{vae_encoder_forward.7} parent=1 // pred_check_branch
      %14 = sbr.rel (0) target = $region5
    $region4: #{vae_encoder_forward.7} parent=1 // pred_region
      %s16 = ssub.s32 512, 512
      %17 = vsyncadd [#allocation3], %s16
      %s18 = sshll.u32 [#allocation2], 4
      %s19 = int_to_ptr.vmem [resolvable:$true] %s18
      %24 = dma.hbm_to_vmem [thread:$0]  %s0, 512, %s19, [#allocation3], 128, 128, 8
    $region5: #{vae_encoder_forward.7} parent=1 // pred_fallthru
      _
    // Predicated region
    $region6: #{vae_encoder_forward.7} parent=1 // pred_check
      _
    $region7: #{vae_encoder_forward.7} parent=1 // pred_check_branch
      %26 = sbr.rel (0) target = $region9
    $region8: #{vae_encoder_forward.7} parent=1 // pred_region
      %s28 = ssub.s32 4096, 4096
      %29 = vsyncadd [#allocation6], %s28
      %s30 = sshll.u32 [#allocation5], 4
      %s31 = int_to_ptr.vmem [resolvable:$true] %s30
      %36 = dma.hbm_to_vmem [thread:$0]  %s1, 4096, %s31, [#allocation6], 128, 128, 8
    $region9: #{vae_encoder_forward.7} parent=1 // pred_fallthru
      _
    // Predicated region
    $region10: #{vae_encoder_forward.7} parent=1 // pred_check
      _
    $region11: #{vae_encoder_forward.7} parent=1 // pred_check_branch
      %38 = sbr.rel (0) target = $region13
    $region12: #{vae_encoder_forward.7} parent=1 // pred_region
      %s40 = ssub.s32 32, 32
      %41 = vsyncadd [#allocation6], %s40
      %s43 = sshll.u32 [#allocation7], 4
      %s44 = int_to_ptr.vmem [resolvable:$true] %s43
      %46 = dma.hbm_to_vmem [thread:$0]  %s2, 32, %s44, [#allocation6]
    $region13: #{vae_encoder_forward.7} parent=1 // pred_fallthru
      _
    // Predicated region
    $region14: #{vae_encoder_forward.7} parent=1 // pred_check
      _
    $region15: #{vae_encoder_forward.7} parent=1 // pred_check_branch
      %48 = sbr.rel (0) target = $region17
    $region16: #{vae_encoder_forward.7} parent=1 // pred_region
      %s50 = ssub.s32 512, 512
      %51 = vsyncadd [#allocation9], %s50
      %s52 = sshll.u32 [#allocation8], 4
      %s53 = int_to_ptr.vmem [resolvable:$true] %s52
      %58 = dma.hbm_to_vmem [thread:$0]  %s3, 512, %s53, [#allocation9], 128, 128, 8
    $region17: #{vae_encoder_forward.7} parent=1 // pred_fallthru
      _
    // Predicated region
    $region18: #{vae_encoder_forward.7} parent=1 // pred_check
      _
    $region19: #{vae_encoder_forward.7} parent=1 // pred_check_branch
      %60 = sbr.rel (0) target = $region21
    $region20: #{vae_encoder_forward.7} parent=1 // pred_region
      %61 = dma.done [#allocation3], 512
    $region21: #{vae_encoder_forward.7} parent=1 // pred_fallthru
      _
    // Predicated region
    $region22: #{vae_encoder_forward.7} parent=1 // pred_check
      _
    $region23: #{vae_encoder_forward.7} parent=1 // pred_check_branch
      %63 = sbr.rel (0) target = $region25
    $region24: #{vae_encoder_forward.7} parent=1 // pred_region
      %64 = dma.done [#allocation6], 4096
    $region25: #{vae_encoder_forward.7} parent=1 // pred_fallthru
      _
    // Predicated region
    $region26: #{vae_encoder_forward.7} parent=1 // pred_check
      _
    $region27: #{vae_encoder_forward.7} parent=1 // pred_check_branch
      %66 = sbr.rel (0) target = $region29
    $region28: #{vae_encoder_forward.7} parent=1 // pred_region
      %67 = dma.done [#allocation6], 32
    $region29: #{vae_encoder_forward.7} parent=1 // pred_fallthru
      _
    // Predicated region
    $region30: #{vae_encoder_forward.7} parent=1 // pred_check
      _
    $region31: #{vae_encoder_forward.7} parent=1 // pred_check_branch
      %69 = sbr.rel (0) target = $region33
    $region32: #{vae_encoder_forward.7} parent=1 // pred_region
      %70 = dma.done [#allocation9], 512
    $region33: #{vae_encoder_forward.7} parent=1 // pred_fallthru
      _
    %v71 = vld [vmem:[#allocation2] sm:$0xff]
    %v72 = vld [vmem:[#allocation2 + $0x8] sm:$0xff]
    %v73 = vld [vmem:[#allocation2 + $0x10] sm:$0xff]
    %v74 = vld [vmem:[#allocation2 + $0x18] sm:$0xff]
    %v75 = vld [vmem:[#allocation5] sm:$0xff]
    %v76 = vld [vmem:[#allocation5 + $0x8] sm:$0xff]
    %v77 = vld [vmem:[#allocation5 + $0x10] sm:$0xff]
    %v78 = vld [vmem:[#allocation5 + $0x18] sm:$0xff]
    %v79 = vld [vmem:[#allocation5 + $0x20] sm:$0xff]
    %v80 = vld [vmem:[#allocation5 + $0x28] sm:$0xff]
    %v81 = vld [vmem:[#allocation5 + $0x30] sm:$0xff]
    %v82 = vld [vmem:[#allocation5 + $0x38] sm:$0xff]
    %v83 = vld [vmem:[#allocation5 + $0x40] sm:$0xff]
    %v84 = vld [vmem:[#allocation5 + $0x48] sm:$0xff]
    %v85 = vld [vmem:[#allocation5 + $0x50] sm:$0xff]
    %v86 = vld [vmem:[#allocation5 + $0x58] sm:$0xff]
    %v87 = vld [vmem:[#allocation5 + $0x60] sm:$0xff]
    %v88 = vld [vmem:[#allocation5 + $0x68] sm:$0xff]
    %v89 = vld [vmem:[#allocation5 + $0x70] sm:$0xff]
    %v90 = vld [vmem:[#allocation5 + $0x78] sm:$0xff]
    %v91 = vld [vmem:[#allocation5 + $0x80] sm:$0xff]
    %v92 = vld [vmem:[#allocation5 + $0x88] sm:$0xff]
    %v93 = vld [vmem:[#allocation5 + $0x90] sm:$0xff]
    %v94 = vld [vmem:[#allocation5 + $0x98] sm:$0xff]
    %v95 = vld [vmem:[#allocation5 + $0xa0] sm:$0xff]
    %v96 = vld [vmem:[#allocation5 + $0xa8] sm:$0xff]
    %v97 = vld [vmem:[#allocation5 + $0xb0] sm:$0xff]
    %v98 = vld [vmem:[#allocation5 + $0xb8] sm:$0xff]
    %v99 = vld [vmem:[#allocation5 + $0xc0] sm:$0xff]
    %v100 = vld [vmem:[#allocation5 + $0xc8] sm:$0xff]
    %v101 = vld [vmem:[#allocation5 + $0xd0] sm:$0xff]
    %v102 = vld [vmem:[#allocation5 + $0xd8] sm:$0xff]
    %v103 = vld [vmem:[#allocation5 + $0xe0] sm:$0xff]
    %v104 = vld [vmem:[#allocation5 + $0xe8] sm:$0xff]
    %v105 = vld [vmem:[#allocation5 + $0xf0] sm:$0xff]
    %v106 = vld [vmem:[#allocation5 + $0xf8] sm:$0xff]
    %v107 = vld [vmem:[#allocation7] sm:$0x3]
    %v109 = vlaneseq
    %v110 = vshrl.u32 %v109, 7
    %v111 = vsub.s32 0, %v110
    %v112 = vrot.slane %v107, %v111
    %v113 = vlaneseq
    %v114 = vshrl.u32 %v113, 7
    %v115 = vsub.s32 1, %v114
    %v116 = vrot.slane %v107, %v115
    %v123 = vunpack.c.l.b16 %v71
    %v124 = vunpack.c.h.b16 %v71
    %v125 = vunpack.c.l.b16 %v72
    %v126 = vunpack.c.h.b16 %v72
    %v127 = vunpack.c.l.b16 %v73
    %v128 = vunpack.c.h.b16 %v73
    %v129 = vunpack.c.l.b16 %v74
    %v130 = vunpack.c.h.b16 %v74
    %v131 = vpack.c.b16 %v125, %v123
    %v132 = vpack.c.b16 %v126, %v124
    %v133 = vpack.c.b16 %v129, %v127
    %v134 = vpack.c.b16 %v130, %v128
    %v171 = vunpack.c.l.b16 %v75
    %v172 = vunpack.c.h.b16 %v75
    %v173 = vunpack.c.l.b16 %v76
    %v174 = vunpack.c.h.b16 %v76
    %v175 = vunpack.c.l.b16 %v77
    %v176 = vunpack.c.h.b16 %v77
    %v177 = vunpack.c.l.b16 %v78
    %v178 = vunpack.c.h.b16 %v78
    %v179 = vunpack.c.l.b16 %v79
    %v180 = vunpack.c.h.b16 %v79
    %v181 = vunpack.c.l.b16 %v80
    %v182 = vunpack.c.h.b16 %v80
    %v183 = vunpack.c.l.b16 %v81
    %v184 = vunpack.c.h.b16 %v81
    %v185 = vunpack.c.l.b16 %v82
    %v186 = vunpack.c.h.b16 %v82
    %v187 = vunpack.c.l.b16 %v83
    %v188 = vunpack.c.h.b16 %v83
    %v189 = vunpack.c.l.b16 %v84
    %v190 = vunpack.c.h.b16 %v84
    %v191 = vunpack.c.l.b16 %v85
    %v192 = vunpack.c.h.b16 %v85
    %v193 = vunpack.c.l.b16 %v86
    %v194 = vunpack.c.h.b16 %v86
    %v195 = vunpack.c.l.b16 %v87
    %v196 = vunpack.c.h.b16 %v87
    %v197 = vunpack.c.l.b16 %v88
    %v198 = vunpack.c.h.b16 %v88
    %v199 = vunpack.c.l.b16 %v89
    %v200 = vunpack.c.h.b16 %v89
    %v201 = vunpack.c.l.b16 %v90
    %v202 = vunpack.c.h.b16 %v90
    %v203 = vunpack.c.l.b16 %v91
    %v204 = vunpack.c.h.b16 %v91
    %v205 = vunpack.c.l.b16 %v92
    %v206 = vunpack.c.h.b16 %v92
    %v207 = vunpack.c.l.b16 %v93
    %v208 = vunpack.c.h.b16 %v93
    %v209 = vunpack.c.l.b16 %v94
    %v210 = vunpack.c.h.b16 %v94
    %v211 = vunpack.c.l.b16 %v95
    %v212 = vunpack.c.h.b16 %v95
    %v213 = vunpack.c.l.b16 %v96
    %v214 = vunpack.c.h.b16 %v96
    %v215 = vunpack.c.l.b16 %v97
    %v216 = vunpack.c.h.b16 %v97
    %v217 = vunpack.c.l.b16 %v98
    %v218 = vunpack.c.h.b16 %v98
    %v219 = vunpack.c.l.b16 %v99
    %v220 = vunpack.c.h.b16 %v99
    %v221 = vunpack.c.l.b16 %v100
    %v222 = vunpack.c.h.b16 %v100
    %v223 = vunpack.c.l.b16 %v101
    %v224 = vunpack.c.h.b16 %v101
    %v225 = vunpack.c.l.b16 %v102
    %v226 = vunpack.c.h.b16 %v102
    %v227 = vunpack.c.l.b16 %v103
    %v228 = vunpack.c.h.b16 %v103
    %v229 = vunpack.c.l.b16 %v104
    %v230 = vunpack.c.h.b16 %v104
    %v231 = vunpack.c.l.b16 %v105
    %v232 = vunpack.c.h.b16 %v105
    %v233 = vunpack.c.l.b16 %v106
    %v234 = vunpack.c.h.b16 %v106
    %v235 = vpack.c.b16 %v173, %v171
    %v236 = vpack.c.b16 %v174, %v172
    %v237 = vpack.c.b16 %v177, %v175
    %v238 = vpack.c.b16 %v178, %v176
    %v239 = vpack.c.b16 %v181, %v179
    %v240 = vpack.c.b16 %v182, %v180
    %v241 = vpack.c.b16 %v185, %v183
    %v242 = vpack.c.b16 %v186, %v184
    %v243 = vpack.c.b16 %v189, %v187
    %v244 = vpack.c.b16 %v190, %v188
    %v245 = vpack.c.b16 %v193, %v191
    %v246 = vpack.c.b16 %v194, %v192
    %v247 = vpack.c.b16 %v197, %v195
    %v248 = vpack.c.b16 %v198, %v196
    %v249 = vpack.c.b16 %v201, %v199
    %v250 = vpack.c.b16 %v202, %v200
    %v251 = vpack.c.b16 %v205, %v203
    %v252 = vpack.c.b16 %v206, %v204
    %v253 = vpack.c.b16 %v209, %v207
    %v254 = vpack.c.b16 %v210, %v208
    %v255 = vpack.c.b16 %v213, %v211
    %v256 = vpack.c.b16 %v214, %v212
    %v257 = vpack.c.b16 %v217, %v215
    %v258 = vpack.c.b16 %v218, %v216
    %v259 = vpack.c.b16 %v221, %v219
    %v260 = vpack.c.b16 %v222, %v220
    %v261 = vpack.c.b16 %v225, %v223
    %v262 = vpack.c.b16 %v226, %v224
    %v263 = vpack.c.b16 %v229, %v227
    %v264 = vpack.c.b16 %v230, %v228
    %v265 = vpack.c.b16 %v233, %v231
    %v266 = vpack.c.b16 %v234, %v232
    %299 = vmatprep.subr.bf16.mxu0 %v236
    %300 = vmatpush1.bf16.msra.mxu0 %v235
    %301 = vmatprep.subr.bf16.mxu0 %v238
    %302 = vmatpush1.bf16.msra.mxu0 %v237
    %303 = vmatprep.subr.bf16.mxu0 %v240
    %304 = vmatpush1.bf16.msra.mxu0 %v239
    %305 = vmatprep.subr.bf16.mxu0 %v242
    %306 = vmatpush1.bf16.msra.mxu0 %v241
    %307 = vmatprep.subr.bf16.mxu0 %v244
    %308 = vmatpush1.bf16.msra.mxu0 %v243
    %309 = vmatprep.subr.bf16.mxu0 %v246
    %310 = vmatpush1.bf16.msra.mxu0 %v245
    %311 = vmatprep.subr.bf16.mxu0 %v248
    %312 = vmatpush1.bf16.msra.mxu0 %v247
    %313 = vmatprep.subr.bf16.mxu0 %v250
    %314 = vmatpush1.bf16.msra.mxu0 %v249
    %315 = vmatprep.subr.bf16.mxu0 %v252
    %316 = vmatpush1.bf16.msra.mxu0 %v251
    %317 = vmatprep.subr.bf16.mxu0 %v254
    %318 = vmatpush1.bf16.msra.mxu0 %v253
    %319 = vmatprep.subr.bf16.mxu0 %v256
    %320 = vmatpush1.bf16.msra.mxu0 %v255
    %321 = vmatprep.subr.bf16.mxu0 %v258
    %322 = vmatpush1.bf16.msra.mxu0 %v257
    %323 = vmatprep.subr.bf16.mxu0 %v260
    %324 = vmatpush1.bf16.msra.mxu0 %v259
    %325 = vmatprep.subr.bf16.mxu0 %v262
    %326 = vmatpush1.bf16.msra.mxu0 %v261
    %327 = vmatprep.subr.bf16.mxu0 %v264
    %328 = vmatpush1.bf16.msra.mxu0 %v263
    %329 = vmatprep.subr.bf16.mxu0 %v266
    %330 = vmatpush1.bf16.msra.mxu0 %v265
    %331 = vmatprep.mubr.bf16.mxu0 %v132
    %332 = vmatmul.mubr.bf16.gmra.mrb[0].mxu0 %v131
    %v333 = vpop.f32.mrb[0].mxu0
    %v334 = vadd.f32 %v112, %v333
    %v335 = vpop.f32.mrb[0].mxu0
    %v336 = vadd.f32 %v116, %v335
    %v337 = vpop.f32.mrb[0].mxu0
    %v338 = vadd.f32 %v112, %v337
    %v339 = vpop.f32.mrb[0].mxu0
    %v340 = vadd.f32 %v116, %v339
    %341 = vmatprep.mubr.bf16.mxu0 %v134
    %342 = vmatmul.mubr.bf16.gmra.mrb[0].mxu0 %v133
    %v343 = vpop.f32.mrb[0].mxu0
    %v344 = vadd.f32 %v112, %v343
    %v345 = vpop.f32.mrb[0].mxu0
    %v346 = vadd.f32 %v116, %v345
    %v347 = vpop.f32.mrb[0].mxu0
    %v348 = vadd.f32 %v112, %v347
    %v349 = vpop.f32.mrb[0].mxu0
    %v350 = vadd.f32 %v116, %v349
    %351 = vdwg.mxu0
    %v352 = vld [vmem:[#allocation8] sm:$0xff]
    %v353 = vld [vmem:[#allocation8 + $0x8] sm:$0xff]
    %v354 = vld [vmem:[#allocation8 + $0x10] sm:$0xff]
    %v355 = vld [vmem:[#allocation8 + $0x18] sm:$0xff]
    %v356 = vmul.f32 %v336, 0.5
    %v357 = vmul.f32 %v340, 0.5
    %v358 = vmul.f32 %v346, 0.5
    %v359 = vmul.f32 %v350, 0.5
    %v360 = vmul.f32 %v356, 1.442695
    %v361 = vpow.pop %v360
    %v362 = vmul.f32 %v357, 1.442695
    %v363 = vpow.pop %v362
    %v364 = vmul.f32 %v358, 1.442695
    %v365 = vpow.pop %v364
    %v366 = vmul.f32 %v359, 1.442695
    %v367 = vpow.pop %v366
    %v368 = vmul.f32 %v352, %v361
    %v369 = vmul.f32 %v353, %v363
    %v370 = vmul.f32 %v354, %v365
    %v371 = vmul.f32 %v355, %v367
    %v372 = vadd.f32 %v334, %v368
    %v373 = vadd.f32 %v338, %v369
    %v374 = vadd.f32 %v344, %v370
    %v375 = vadd.f32 %v348, %v371
    %376 = vst [vmem:[#allocation10] sm:$0xff] %v372
    %377 = vst [vmem:[#allocation10 + $0x8] sm:$0xff] %v373
    %378 = vst [vmem:[#allocation10 + $0x10] sm:$0xff] %v374
    %379 = vst [vmem:[#allocation10 + $0x18] sm:$0xff] %v375
    // Predicated region
    $region34: #{vae_encoder_forward.7} parent=1 // pred_check
      _
    $region35: #{vae_encoder_forward.7} parent=1 // pred_check_branch
      %381 = sbr.rel (0) target = $region37
    $region36: #{vae_encoder_forward.7} parent=1 // pred_region
      %s383 = ssub.s32 512, 512
      %384 = vsyncadd [#allocation4], %s383
      %s385 = sshll.u32 [#allocation10], 4
      %s386 = int_to_ptr.vmem [resolvable:$true] %s385
      %391 = dma.vmem_to_hbm [thread:$0]  %s386, 512, %s4, [#allocation4], 128, 128, 8
    $region37: #{vae_encoder_forward.7} parent=1 // pred_fallthru
      _
    // Predicated region
    $region38: #{vae_encoder_forward.7} parent=1 // pred_check
      _
    $region39: #{vae_encoder_forward.7} parent=1 // pred_check_branch
      %393 = sbr.rel (0) target = $region41
    $region40: #{vae_encoder_forward.7} parent=1 // pred_region
      %394 = dma.done [#allocation4], 512
    $region41: #{vae_encoder_forward.7} parent=1 // pred_fallthru
      _
    %395 = vsyncpa [#allocation3], 1
    %396 = vsyncpa [#allocation6], 1
    %397 = vsyncpa [#allocation9], 1
    %398 = vsyncpa [#allocation4], 1

</llo_original>
